<compile_context>
chip_gen: v5e
topology: v5e:2x2
jax: 0.10.0
libtpu: 0.0.40
codegen_flags: <defaults>
</compile_context>

<pallas_src>
import functools

import jax
import jax.numpy as jnp
import numpy as np
from jax import lax
from jax.experimental import pallas as pl
from jax.experimental.pallas import tpu as pltpu


def _sigmoid_ref(x):
    return 1.0 / (1.0 + jnp.exp(-x))


def _sigmoid(x):
    # tanh-form logistic: same function, but one EUP transcendental instead of
    # exp + divide competing for VALU slots on the serial recurrent path.
    return 0.5 * (jnp.tanh(0.5 * x) + 1.0)


# -----------------------------------------------------------------------------
# Host-side weight preparation: conv taps -> banded matmul weights.
# -----------------------------------------------------------------------------
def _band_from_taps(w_tap, W, pad):
    """Per-tap conv weights (kw, C, 4H) -> banded matmul weight (W*C, 4*W*H).

    Rows are ordered (w_in, c_in); columns are ordered (gate, w_out, c_out),
    so that for an input laid out with lanes (w, c),  `inp @ band`  equals the
    width-direction "same" conv of the ConvLSTM cell.  Border zero-padding is
    encoded by the zero off-band entries, so no in-kernel masking is needed.
    """
    kw, C, four_h = w_tap.shape
    H = four_h // 4
    wt = w_tap.reshape(kw, C, 4, H)                 # (k, c_in, gate, c_out)
    big = jnp.zeros((W, C, 4, W, H), w_tap.dtype)   # (w_in, c_in, g, w_out, c_out)
    for k in range(kw):
        off = k - pad                               # w_in = w_out + off
        lo, hi = max(0, -off), min(W, W - off)
        if lo >= hi:
            continue
        w_out = np.arange(lo, hi)
        w_in = w_out + off
        big = big.at[w_in, :, :, w_out, :].set(
            jnp.broadcast_to(wt[k][None], (hi - lo, C, 4, H)))
    return big.reshape(W * C, 4 * W * H)


def _band_bias(b, W):
    """(1, 4H) bias -> (1, 4*W*H) matching the banded column order (g, w, c)."""
    four_h = b.shape[-1]
    H = four_h // 4
    return jnp.broadcast_to(b.reshape(4, 1, H), (4, W, H)).reshape(1, 4 * W * H)


# -----------------------------------------------------------------------------
# Fused kernel: stacked ConvLSTM recurrence + FC head, single invocation.
# -----------------------------------------------------------------------------
def _fused_convlstm_fc_kernel(*refs, T, B, W, hidden_dims):
    """refs = (x, [bwx_l, bwh_l, bb_l] * L, fc1_w, fc1_b, fc2_w, fc2_b, out).

    Layouts (last dim = lanes):
      x:      (T, B, W*Cin)       lanes ordered (w, c)
      bwx_l:  (W*C_l, 4*W*H_l)    banded conv-as-matmul weight (rows (w, c_in))
      bwh_l:  (W*H_l, 4*W*H_l)    columns ordered (gate, w_out, c_out)
      bb_l:   (1, 4*W*H_l)
      fc1_w:  (T, W*H_last, 512)  rows permuted to the kernel's (t, w, c) order
      out:    (B, output_dim)
    Gate chunk order is (i, f, o, g), matching the reference used for
    init/validation.
    """
    nl = len(hidden_dims)
    x_ref = refs[0]
    layer_refs = refs[1:1 + 3 * nl]
    fc1w_ref, fc1b_ref, fc2w_ref, fc2b_ref, out_ref = refs[1 + 3 * nl:]

    # Hoist the (tiny) per-layer bias loads out of the time loop; the batch
    # broadcast happens implicitly in the gate add.
    biases = [layer_refs[3 * l + 2][...] for l in range(nl)]

    def step(t, carry):
        hs, cs, acc = carry
        inp = x_ref[t]                                   # (B, W*C0)
        new_hs, new_cs = [], []
        for l in range(nl):
            wh = W * hidden_dims[l]
            # One banded matmul each for the x-path and the h-path replaces
            # the 2*kw shifted matmuls + roll/mask machinery per timestep.
            gates = biases[l] + jnp.dot(inp, layer_refs[3 * l][...],
                                        preferred_element_type=jnp.float32)
            gates = gates + jnp.dot(hs[l], layer_refs[3 * l + 1][...],
                                    preferred_element_type=jnp.float32)
            i_g = _sigmoid(gates[:, 0 * wh:1 * wh])
            f_g = _sigmoid(gates[:, 1 * wh:2 * wh])
            o_g = _sigmoid(gates[:, 2 * wh:3 * wh])
            g_g = jnp.tanh(gates[:, 3 * wh:4 * wh])
            c_new = f_g * cs[l] + i_g * g_g
            h_new = o_g * jnp.tanh(c_new)
            new_hs.append(h_new)
            new_cs.append(c_new)
            inp = h_new
        # fc1 is linear in the flattened sequence -> accumulate per timestep so
        # the last layer's hidden states never round-trip through HBM.
        acc = acc + jnp.dot(inp, fc1w_ref[t],
                            preferred_element_type=jnp.float32)
        return tuple(new_hs), tuple(new_cs), acc

    init = (tuple(jnp.zeros((B, W * h), jnp.float32) for h in hidden_dims),
            tuple(jnp.zeros((B, W * h), jnp.float32) for h in hidden_dims),
            jnp.zeros((B, fc1b_ref.shape[-1]), jnp.float32))
    _, _, acc = lax.fori_loop(0, T, step, init, unroll=True)

    h1 = jnp.maximum(acc + fc1b_ref[...], 0.0)
    out = jnp.dot(h1, fc2w_ref[...],
                  preferred_element_type=jnp.float32) + fc2b_ref[...]
    col = lax.broadcasted_iota(jnp.int32, out.shape, 1)
    out_ref[...] = jnp.where(col < 2, out, _sigmoid(out))


def modified_seismic_convlstm(params, x, *, hidden_dims, kernel_sizes, paddings):
    # x: (B, T, Cin, 1, W)  -- PyTorch NCHW per timestep, batch_first.
    # kernel_sizes is implied by the tap-major weight shapes; kept for parity.
    del kernel_sizes
    B, T, Cin, Hs, W = x.shape
    assert Hs == 1
    nl = len(hidden_dims)
    H_last = hidden_dims[-1]
    out_dim = params["fc2_w"].shape[1]
    n_fc1 = params["fc1_b"].shape[-1]

    # Kernel-native input layout: (T, B, W*Cin), lanes ordered (w, c).
    x_k = jnp.transpose(x[:, :, :, 0, :], (1, 0, 3, 2)).reshape(T, B, W * Cin)

    inputs = [x_k]
    for l in range(nl):
        pad = paddings[l][1]
        inputs.append(_band_from_taps(params[f"wx{l}"], W, pad))
        inputs.append(_band_from_taps(params[f"wh{l}"], W, pad))
        inputs.append(_band_bias(params[f"b{l}"], W))

    # fc1 rows permuted from PyTorch's (t, c, w) flatten order to the kernel's
    # native (t, w, c) order and split per timestep for in-loop accumulation.
    fc1_w_r = (params["fc1_w"]
               .reshape(T, H_last, W, n_fc1)
               .transpose(0, 2, 1, 3)
               .reshape(T, W * H_last, n_fc1))
    inputs += [fc1_w_r, params["fc1_b"], params["fc2_w"], params["fc2_b"]]

    kernel = functools.partial(_fused_convlstm_fc_kernel,
                               T=T, B=B, W=W, hidden_dims=tuple(hidden_dims))
    vmem_spec = pl.BlockSpec(memory_space=pltpu.MemorySpace.VMEM)
    return pl.pallas_call(
        kernel,
        out_shape=jax.ShapeDtypeStruct((B, out_dim), jnp.float32),
        in_specs=[vmem_spec] * len(inputs),
        out_specs=vmem_spec,
        compiler_params=pltpu.CompilerParams(
            vmem_limit_bytes=32 * 1024 * 1024),
    )(*inputs)


# -----------------------------------------------------------------------------
# Parameter init (deterministic, synthetic).
# -----------------------------------------------------------------------------
def init_params(key, input_dim, hidden_dims, kernel_sizes, output_dim,
                num_windows, data_points):
    params = {}
    dims = [input_dim] + list(hidden_dims)
    for l, hd in enumerate(hidden_dims):
        kw = kernel_sizes[l][1]
        key, k1, k2, k3 = jax.random.split(key, 4)
        # Equivalent to the PyTorch conv weight (4H, Cin+H, 1, kw), split into
        # x- and h- parts and transposed to tap-major (kw, C, 4H).
        params[f"wx{l}"] = 0.1 * jax.random.normal(k1, (kw, dims[l], 4 * hd), jnp.float32)
        params[f"wh{l}"] = 0.1 * jax.random.normal(k2, (kw, hd, 4 * hd), jnp.float32)
        params[f"b{l}"] = 0.1 * jax.random.normal(k3, (1, 4 * hd), jnp.float32)
    fc1_in = hidden_dims[-1] * num_windows * 1 * data_points
    key, k1, k2, k3, k4 = jax.random.split(key, 5)
    params["fc1_w"] = 0.02 * jax.random.normal(k1, (fc1_in, 512), jnp.float32)
    params["fc1_b"] = 0.02 * jax.random.normal(k2, (1, 512), jnp.float32)
    params["fc2_w"] = 0.05 * jax.random.normal(k3, (512, output_dim), jnp.float32)
    params["fc2_b"] = 0.05 * jax.random.normal(k4, (1, output_dim), jnp.float32)
    return params


# -----------------------------------------------------------------------------
# Pure-JAX reference (same math) for the correctness check.
# -----------------------------------------------------------------------------
def _ref_forward(params, x, *, hidden_dims, kernel_sizes, paddings):
    B, T, Cin, _, W = x.shape
    cur = jnp.transpose(x[:, :, :, 0, :], (0, 1, 3, 2))  # (B, T, W, Cin)
    for l, hd in enumerate(hidden_dims):
        kw, pad = kernel_sizes[l][1], paddings[l][1]
        wx, wh, b = params[f"wx{l}"], params[f"wh{l}"], params[f"b{l}"]
        h = jnp.zeros((B, W, hd), jnp.float32)
        c = jnp.zeros((B, W, hd), jnp.float32)
        outs = []
        for t in range(T):
            x_t = cur[:, t]
            xp = jnp.pad(x_t, ((0, 0), (pad, pad), (0, 0)))
            hp = jnp.pad(h, ((0, 0), (pad, pad), (0, 0)))
            gates = jnp.zeros((B, W, 4 * hd), jnp.float32) + b[None]
            for k in range(kw):
                gates = gates + jnp.einsum('bwc,co->bwo', xp[:, k:k + W], wx[k])
                gates = gates + jnp.einsum('bwc,co->bwo', hp[:, k:k + W], wh[k])
            i_g = _sigmoid_ref(gates[..., 0 * hd:1 * hd])
            f_g = _sigmoid_ref(gates[..., 1 * hd:2 * hd])
            o_g = _sigmoid_ref(gates[..., 2 * hd:3 * hd])
            g_g = jnp.tanh(gates[..., 3 * hd:4 * hd])
            c = f_g * c + i_g * g_g
            h = o_g * jnp.tanh(c)
            outs.append(h)
        cur = jnp.stack(outs, axis=1)  # (B, T, W, H)
    flat = jnp.transpose(cur, (0, 1, 3, 2)).reshape(B, -1)
    h1 = jnp.maximum(flat @ params["fc1_w"] + params["fc1_b"], 0.0)
    out = h1 @ params["fc2_w"] + params["fc2_b"]
    return jnp.concatenate([out[:, :2], _sigmoid_ref(out[:, 2:])], axis=1)


if __name__ == "__main__":
    B = 2
    num_windows = 8          # T
    data_points = 16         # W
    input_dim = 1
    hidden_dims = [8, 16]
    kernel_sizes = [(1, 3), (1, 3)]
    strides = [(1, 1), (1, 1)]      # assumed (1,1); see TODO(synk) above
    paddings = [(0, 1), (0, 1)]
    output_dim = 4

    key = jax.random.PRNGKey(0)
    kp, kx = jax.random.split(key)
    params = init_params(kp, input_dim, hidden_dims, kernel_sizes,
                         output_dim, num_windows, data_points)
    x = jax.random.normal(kx, (B, num_windows, input_dim, 1, data_points),
                          jnp.float32)

    fwd = jax.jit(functools.partial(
        modified_seismic_convlstm,
        hidden_dims=tuple(hidden_dims),
        kernel_sizes=tuple(map(tuple, kernel_sizes)),
        paddings=tuple(map(tuple, paddings))))

    out = jax.block_until_ready(fwd(params, x))
    assert out.shape == (B, output_dim)

    ref = _ref_forward(params, x, hidden_dims=hidden_dims,
                       kernel_sizes=kernel_sizes, paddings=paddings)
    np.testing.assert_allclose(np.asarray(out), np.asarray(ref),
                               rtol=1e-3, atol=1e-3)

    print("KERNEL_OK")
</pallas_src>

<mosaic_0001>
module attributes {stable_mosaic.version = 11 : i64} {
  func.func @_fused_convlstm_fc_kernel(%arg0: memref<8x2x16xf32, #tpu.memory_space<vmem>>, %arg1: memref<16x512xf32, #tpu.memory_space<vmem>>, %arg2: memref<128x512xf32, #tpu.memory_space<vmem>>, %arg3: memref<1x512xf32, #tpu.memory_space<vmem>>, %arg4: memref<128x1024xf32, #tpu.memory_space<vmem>>, %arg5: memref<256x1024xf32, #tpu.memory_space<vmem>>, %arg6: memref<1x1024xf32, #tpu.memory_space<vmem>>, %arg7: memref<8x256x512xf32, #tpu.memory_space<vmem>>, %arg8: memref<1x512xf32, #tpu.memory_space<vmem>>, %arg9: memref<512x4xf32, #tpu.memory_space<vmem>>, %arg10: memref<1x4xf32, #tpu.memory_space<vmem>>, %arg11: memref<2x4xf32, #tpu.memory_space<vmem>>) attributes {dimension_semantics = [], scalar_prefetch = 0 : i64, scratch_operands = 0 : i64, tpu.core_type = #tpu.core_type<tc>} {
    %c0 = arith.constant 0 : index
    %c0_0 = arith.constant 0 : index
    %0 = vector.load %arg3[%c0, %c0_0] : memref<1x512xf32, #tpu.memory_space<vmem>>, vector<1x512xf32>
    %c0_1 = arith.constant 0 : index
    %c0_2 = arith.constant 0 : index
    %1 = vector.load %arg6[%c0_1, %c0_2] : memref<1x1024xf32, #tpu.memory_space<vmem>>, vector<1x1024xf32>
    %cst = arith.constant 0.000000e+00 : f32
    %2 = vector.broadcast %cst : f32 to vector<2x128xf32>
    %cst_3 = arith.constant 0.000000e+00 : f32
    %3 = vector.broadcast %cst_3 : f32 to vector<2x256xf32>
    %cst_4 = arith.constant 0.000000e+00 : f32
    %4 = vector.broadcast %cst_4 : f32 to vector<2x128xf32>
    %cst_5 = arith.constant 0.000000e+00 : f32
    %5 = vector.broadcast %cst_5 : f32 to vector<2x256xf32>
    %cst_6 = arith.constant 0.000000e+00 : f32
    %6 = vector.broadcast %cst_6 : f32 to vector<2x512xf32>
    %c0_i32 = arith.constant 0 : i32
    %7 = arith.index_cast %c0_i32 : i32 to index
    %c0_7 = arith.constant 0 : index
    %c0_8 = arith.constant 0 : index
    %8 = vector.load %arg0[%7, %c0_7, %c0_8] : memref<8x2x16xf32, #tpu.memory_space<vmem>>, vector<1x2x16xf32>
    %9 = vector.shape_cast %8 : vector<1x2x16xf32> to vector<2x16xf32>
    %c0_9 = arith.constant 0 : index
    %c0_10 = arith.constant 0 : index
    %10 = vector.load %arg1[%c0_9, %c0_10] : memref<16x512xf32, #tpu.memory_space<vmem>>, vector<16x512xf32>
    %cst_11 = arith.constant dense<0.000000e+00> : vector<2x512xf32>
    %11 = tpu.matmul %9, %10, %cst_11 {dimension_numbers = #tpu.dot_dimension_numbers<[1], [0], [0], [1], [0, 0, 1, 1], [], []>} : vector<2x16xf32>, vector<16x512xf32>, vector<2x512xf32> -> vector<2x512xf32>
    %12 = vector.broadcast %0 : vector<1x512xf32> to vector<2x512xf32>
    %13 = arith.addf %12, %11 : vector<2x512xf32>
    %c0_12 = arith.constant 0 : index
    %c0_13 = arith.constant 0 : index
    %14 = vector.load %arg2[%c0_12, %c0_13] : memref<128x512xf32, #tpu.memory_space<vmem>>, vector<128x512xf32>
    %cst_14 = arith.constant dense<0.000000e+00> : vector<2x512xf32>
    %15 = tpu.matmul %2, %14, %cst_14 {dimension_numbers = #tpu.dot_dimension_numbers<[1], [0], [0], [1], [0, 0, 1, 1], [], []>} : vector<2x128xf32>, vector<128x512xf32>, vector<2x512xf32> -> vector<2x512xf32>
    %16 = arith.addf %13, %15 : vector<2x512xf32>
    %17 = vector.extract_strided_slice %16 {offsets = [0, 0], sizes = [2, 128], strides = [1, 1]} : vector<2x512xf32> to vector<2x128xf32>
    %cst_15 = arith.constant 5.000000e-01 : f32
    %18 = vector.broadcast %cst_15 : f32 to vector<2x128xf32>
    %19 = arith.mulf %18, %17 : vector<2x128xf32>
    %20 = math.tanh %19 : vector<2x128xf32>
    %cst_16 = arith.constant 1.000000e+00 : f32
    %21 = vector.broadcast %cst_16 : f32 to vector<2x128xf32>
    %22 = arith.addf %20, %21 : vector<2x128xf32>
    %cst_17 = arith.constant 5.000000e-01 : f32
    %23 = vector.broadcast %cst_17 : f32 to vector<2x128xf32>
    %24 = arith.mulf %23, %22 : vector<2x128xf32>
    %25 = vector.extract_strided_slice %16 {offsets = [0, 128], sizes = [2, 128], strides = [1, 1]} : vector<2x512xf32> to vector<2x128xf32>
    %cst_18 = arith.constant 5.000000e-01 : f32
    %26 = vector.broadcast %cst_18 : f32 to vector<2x128xf32>
    %27 = arith.mulf %26, %25 : vector<2x128xf32>
    %28 = math.tanh %27 : vector<2x128xf32>
    %cst_19 = arith.constant 1.000000e+00 : f32
    %29 = vector.broadcast %cst_19 : f32 to vector<2x128xf32>
    %30 = arith.addf %28, %29 : vector<2x128xf32>
    %cst_20 = arith.constant 5.000000e-01 : f32
    %31 = vector.broadcast %cst_20 : f32 to vector<2x128xf32>
    %32 = arith.mulf %31, %30 : vector<2x128xf32>
    %33 = vector.extract_strided_slice %16 {offsets = [0, 256], sizes = [2, 128], strides = [1, 1]} : vector<2x512xf32> to vector<2x128xf32>
    %cst_21 = arith.constant 5.000000e-01 : f32
    %34 = vector.broadcast %cst_21 : f32 to vector<2x128xf32>
    %35 = arith.mulf %34, %33 : vector<2x128xf32>
    %36 = math.tanh %35 : vector<2x128xf32>
    %cst_22 = arith.constant 1.000000e+00 : f32
    %37 = vector.broadcast %cst_22 : f32 to vector<2x128xf32>
    %38 = arith.addf %36, %37 : vector<2x128xf32>
    %cst_23 = arith.constant 5.000000e-01 : f32
    %39 = vector.broadcast %cst_23 : f32 to vector<2x128xf32>
    %40 = arith.mulf %39, %38 : vector<2x128xf32>
    %41 = vector.extract_strided_slice %16 {offsets = [0, 384], sizes = [2, 128], strides = [1, 1]} : vector<2x512xf32> to vector<2x128xf32>
    %42 = math.tanh %41 : vector<2x128xf32>
    %43 = arith.mulf %32, %4 : vector<2x128xf32>
    %44 = arith.mulf %24, %42 : vector<2x128xf32>
    %45 = arith.addf %43, %44 : vector<2x128xf32>
    %46 = math.tanh %45 : vector<2x128xf32>
    %47 = arith.mulf %40, %46 : vector<2x128xf32>
    %c0_24 = arith.constant 0 : index
    %c0_25 = arith.constant 0 : index
    %48 = vector.load %arg4[%c0_24, %c0_25] : memref<128x1024xf32, #tpu.memory_space<vmem>>, vector<128x1024xf32>
    %cst_26 = arith.constant dense<0.000000e+00> : vector<2x1024xf32>
    %49 = tpu.matmul %47, %48, %cst_26 {dimension_numbers = #tpu.dot_dimension_numbers<[1], [0], [0], [1], [0, 0, 1, 1], [], []>} : vector<2x128xf32>, vector<128x1024xf32>, vector<2x1024xf32> -> vector<2x1024xf32>
    %50 = vector.broadcast %1 : vector<1x1024xf32> to vector<2x1024xf32>
    %51 = arith.addf %50, %49 : vector<2x1024xf32>
    %c0_27 = arith.constant 0 : index
    %c0_28 = arith.constant 0 : index
    %52 = vector.load %arg5[%c0_27, %c0_28] : memref<256x1024xf32, #tpu.memory_space<vmem>>, vector<256x1024xf32>
    %cst_29 = arith.constant dense<0.000000e+00> : vector<2x1024xf32>
    %53 = tpu.matmul %3, %52, %cst_29 {dimension_numbers = #tpu.dot_dimension_numbers<[1], [0], [0], [1], [0, 0, 1, 1], [], []>} : vector<2x256xf32>, vector<256x1024xf32>, vector<2x1024xf32> -> vector<2x1024xf32>
    %54 = arith.addf %51, %53 : vector<2x1024xf32>
    %55 = vector.extract_strided_slice %54 {offsets = [0, 0], sizes = [2, 256], strides = [1, 1]} : vector<2x1024xf32> to vector<2x256xf32>
    %cst_30 = arith.constant 5.000000e-01 : f32
    %56 = vector.broadcast %cst_30 : f32 to vector<2x256xf32>
    %57 = arith.mulf %56, %55 : vector<2x256xf32>
    %58 = math.tanh %57 : vector<2x256xf32>
    %cst_31 = arith.constant 1.000000e+00 : f32
    %59 = vector.broadcast %cst_31 : f32 to vector<2x256xf32>
    %60 = arith.addf %58, %59 : vector<2x256xf32>
    %cst_32 = arith.constant 5.000000e-01 : f32
    %61 = vector.broadcast %cst_32 : f32 to vector<2x256xf32>
    %62 = arith.mulf %61, %60 : vector<2x256xf32>
    %63 = vector.extract_strided_slice %54 {offsets = [0, 256], sizes = [2, 256], strides = [1, 1]} : vector<2x1024xf32> to vector<2x256xf32>
    %cst_33 = arith.constant 5.000000e-01 : f32
    %64 = vector.broadcast %cst_33 : f32 to vector<2x256xf32>
    %65 = arith.mulf %64, %63 : vector<2x256xf32>
    %66 = math.tanh %65 : vector<2x256xf32>
    %cst_34 = arith.constant 1.000000e+00 : f32
    %67 = vector.broadcast %cst_34 : f32 to vector<2x256xf32>
    %68 = arith.addf %66, %67 : vector<2x256xf32>
    %cst_35 = arith.constant 5.000000e-01 : f32
    %69 = vector.broadcast %cst_35 : f32 to vector<2x256xf32>
    %70 = arith.mulf %69, %68 : vector<2x256xf32>
    %71 = vector.extract_strided_slice %54 {offsets = [0, 512], sizes = [2, 256], strides = [1, 1]} : vector<2x1024xf32> to vector<2x256xf32>
    %cst_36 = arith.constant 5.000000e-01 : f32
    %72 = vector.broadcast %cst_36 : f32 to vector<2x256xf32>
    %73 = arith.mulf %72, %71 : vector<2x256xf32>
    %74 = math.tanh %73 : vector<2x256xf32>
    %cst_37 = arith.constant 1.000000e+00 : f32
    %75 = vector.broadcast %cst_37 : f32 to vector<2x256xf32>
    %76 = arith.addf %74, %75 : vector<2x256xf32>
    %cst_38 = arith.constant 5.000000e-01 : f32
    %77 = vector.broadcast %cst_38 : f32 to vector<2x256xf32>
    %78 = arith.mulf %77, %76 : vector<2x256xf32>
    %79 = vector.extract_strided_slice %54 {offsets = [0, 768], sizes = [2, 256], strides = [1, 1]} : vector<2x1024xf32> to vector<2x256xf32>
    %80 = math.tanh %79 : vector<2x256xf32>
    %81 = arith.mulf %70, %5 : vector<2x256xf32>
    %82 = arith.mulf %62, %80 : vector<2x256xf32>
    %83 = arith.addf %81, %82 : vector<2x256xf32>
    %84 = math.tanh %83 : vector<2x256xf32>
    %85 = arith.mulf %78, %84 : vector<2x256xf32>
    %86 = arith.index_cast %c0_i32 : i32 to index
    %c0_39 = arith.constant 0 : index
    %c0_40 = arith.constant 0 : index
    %87 = vector.load %arg7[%86, %c0_39, %c0_40] : memref<8x256x512xf32, #tpu.memory_space<vmem>>, vector<1x256x512xf32>
    %88 = vector.shape_cast %87 : vector<1x256x512xf32> to vector<256x512xf32>
    %cst_41 = arith.constant dense<0.000000e+00> : vector<2x512xf32>
    %89 = tpu.matmul %85, %88, %cst_41 {dimension_numbers = #tpu.dot_dimension_numbers<[1], [0], [0], [1], [0, 0, 1, 1], [], []>} : vector<2x256xf32>, vector<256x512xf32>, vector<2x512xf32> -> vector<2x512xf32>
    %90 = arith.addf %6, %89 : vector<2x512xf32>
    %c1_i32 = arith.constant 1 : i32
    %91 = arith.index_cast %c1_i32 : i32 to index
    %c0_42 = arith.constant 0 : index
    %c0_43 = arith.constant 0 : index
    %92 = vector.load %arg0[%91, %c0_42, %c0_43] : memref<8x2x16xf32, #tpu.memory_space<vmem>>, vector<1x2x16xf32>
    %93 = vector.shape_cast %92 : vector<1x2x16xf32> to vector<2x16xf32>
    %c0_44 = arith.constant 0 : index
    %c0_45 = arith.constant 0 : index
    %94 = vector.load %arg1[%c0_44, %c0_45] : memref<16x512xf32, #tpu.memory_space<vmem>>, vector<16x512xf32>
    %cst_46 = arith.constant dense<0.000000e+00> : vector<2x512xf32>
    %95 = tpu.matmul %93, %94, %cst_46 {dimension_numbers = #tpu.dot_dimension_numbers<[1], [0], [0], [1], [0, 0, 1, 1], [], []>} : vector<2x16xf32>, vector<16x512xf32>, vector<2x512xf32> -> vector<2x512xf32>
    %96 = vector.broadcast %0 : vector<1x512xf32> to vector<2x512xf32>
    %97 = arith.addf %96, %95 : vector<2x512xf32>
    %c0_47 = arith.constant 0 : index
    %c0_48 = arith.constant 0 : index
    %98 = vector.load %arg2[%c0_47, %c0_48] : memref<128x512xf32, #tpu.memory_space<vmem>>, vector<128x512xf32>
    %cst_49 = arith.constant dense<0.000000e+00> : vector<2x512xf32>
    %99 = tpu.matmul %47, %98, %cst_49 {dimension_numbers = #tpu.dot_dimension_numbers<[1], [0], [0], [1], [0, 0, 1, 1], [], []>} : vector<2x128xf32>, vector<128x512xf32>, vector<2x512xf32> -> vector<2x512xf32>
    %100 = arith.addf %97, %99 : vector<2x512xf32>
    %101 = vector.extract_strided_slice %100 {offsets = [0, 0], sizes = [2, 128], strides = [1, 1]} : vector<2x512xf32> to vector<2x128xf32>
    %cst_50 = arith.constant 5.000000e-01 : f32
    %102 = vector.broadcast %cst_50 : f32 to vector<2x128xf32>
    %103 = arith.mulf %102, %101 : vector<2x128xf32>
    %104 = math.tanh %103 : vector<2x128xf32>
    %cst_51 = arith.constant 1.000000e+00 : f32
    %105 = vector.broadcast %cst_51 : f32 to vector<2x128xf32>
    %106 = arith.addf %104, %105 : vector<2x128xf32>
    %cst_52 = arith.constant 5.000000e-01 : f32
    %107 = vector.broadcast %cst_52 : f32 to vector<2x128xf32>
    %108 = arith.mulf %107, %106 : vector<2x128xf32>
    %109 = vector.extract_strided_slice %100 {offsets = [0, 128], sizes = [2, 128], strides = [1, 1]} : vector<2x512xf32> to vector<2x128xf32>
    %cst_53 = arith.constant 5.000000e-01 : f32
    %110 = vector.broadcast %cst_53 : f32 to vector<2x128xf32>
    %111 = arith.mulf %110, %109 : vector<2x128xf32>
    %112 = math.tanh %111 : vector<2x128xf32>
    %cst_54 = arith.constant 1.000000e+00 : f32
    %113 = vector.broadcast %cst_54 : f32 to vector<2x128xf32>
    %114 = arith.addf %112, %113 : vector<2x128xf32>
    %cst_55 = arith.constant 5.000000e-01 : f32
    %115 = vector.broadcast %cst_55 : f32 to vector<2x128xf32>
    %116 = arith.mulf %115, %114 : vector<2x128xf32>
    %117 = vector.extract_strided_slice %100 {offsets = [0, 256], sizes = [2, 128], strides = [1, 1]} : vector<2x512xf32> to vector<2x128xf32>
    %cst_56 = arith.constant 5.000000e-01 : f32
    %118 = vector.broadcast %cst_56 : f32 to vector<2x128xf32>
    %119 = arith.mulf %118, %117 : vector<2x128xf32>
    %120 = math.tanh %119 : vector<2x128xf32>
    %cst_57 = arith.constant 1.000000e+00 : f32
    %121 = vector.broadcast %cst_57 : f32 to vector<2x128xf32>
    %122 = arith.addf %120, %121 : vector<2x128xf32>
    %cst_58 = arith.constant 5.000000e-01 : f32
    %123 = vector.broadcast %cst_58 : f32 to vector<2x128xf32>
    %124 = arith.mulf %123, %122 : vector<2x128xf32>
    %125 = vector.extract_strided_slice %100 {offsets = [0, 384], sizes = [2, 128], strides = [1, 1]} : vector<2x512xf32> to vector<2x128xf32>
    %126 = math.tanh %125 : vector<2x128xf32>
    %127 = arith.mulf %116, %45 : vector<2x128xf32>
    %128 = arith.mulf %108, %126 : vector<2x128xf32>
    %129 = arith.addf %127, %128 : vector<2x128xf32>
    %130 = math.tanh %129 : vector<2x128xf32>
    %131 = arith.mulf %124, %130 : vector<2x128xf32>
    %c0_59 = arith.constant 0 : index
    %c0_60 = arith.constant 0 : index
    %132 = vector.load %arg4[%c0_59, %c0_60] : memref<128x1024xf32, #tpu.memory_space<vmem>>, vector<128x1024xf32>
    %cst_61 = arith.constant dense<0.000000e+00> : vector<2x1024xf32>
    %133 = tpu.matmul %131, %132, %cst_61 {dimension_numbers = #tpu.dot_dimension_numbers<[1], [0], [0], [1], [0, 0, 1, 1], [], []>} : vector<2x128xf32>, vector<128x1024xf32>, vector<2x1024xf32> -> vector<2x1024xf32>
    %134 = vector.broadcast %1 : vector<1x1024xf32> to vector<2x1024xf32>
    %135 = arith.addf %134, %133 : vector<2x1024xf32>
    %c0_62 = arith.constant 0 : index
    %c0_63 = arith.constant 0 : index
    %136 = vector.load %arg5[%c0_62, %c0_63] : memref<256x1024xf32, #tpu.memory_space<vmem>>, vector<256x1024xf32>
    %cst_64 = arith.constant dense<0.000000e+00> : vector<2x1024xf32>
    %137 = tpu.matmul %85, %136, %cst_64 {dimension_numbers = #tpu.dot_dimension_numbers<[1], [0], [0], [1], [0, 0, 1, 1], [], []>} : vector<2x256xf32>, vector<256x1024xf32>, vector<2x1024xf32> -> vector<2x1024xf32>
    %138 = arith.addf %135, %137 : vector<2x1024xf32>
    %139 = vector.extract_strided_slice %138 {offsets = [0, 0], sizes = [2, 256], strides = [1, 1]} : vector<2x1024xf32> to vector<2x256xf32>
    %cst_65 = arith.constant 5.000000e-01 : f32
    %140 = vector.broadcast %cst_65 : f32 to vector<2x256xf32>
    %141 = arith.mulf %140, %139 : vector<2x256xf32>
    %142 = math.tanh %141 : vector<2x256xf32>
    %cst_66 = arith.constant 1.000000e+00 : f32
    %143 = vector.broadcast %cst_66 : f32 to vector<2x256xf32>
    %144 = arith.addf %142, %143 : vector<2x256xf32>
    %cst_67 = arith.constant 5.000000e-01 : f32
    %145 = vector.broadcast %cst_67 : f32 to vector<2x256xf32>
    %146 = arith.mulf %145, %144 : vector<2x256xf32>
    %147 = vector.extract_strided_slice %138 {offsets = [0, 256], sizes = [2, 256], strides = [1, 1]} : vector<2x1024xf32> to vector<2x256xf32>
    %cst_68 = arith.constant 5.000000e-01 : f32
    %148 = vector.broadcast %cst_68 : f32 to vector<2x256xf32>
    %149 = arith.mulf %148, %147 : vector<2x256xf32>
    %150 = math.tanh %149 : vector<2x256xf32>
    %cst_69 = arith.constant 1.000000e+00 : f32
    %151 = vector.broadcast %cst_69 : f32 to vector<2x256xf32>
    %152 = arith.addf %150, %151 : vector<2x256xf32>
    %cst_70 = arith.constant 5.000000e-01 : f32
    %153 = vector.broadcast %cst_70 : f32 to vector<2x256xf32>
    %154 = arith.mulf %153, %152 : vector<2x256xf32>
    %155 = vector.extract_strided_slice %138 {offsets = [0, 512], sizes = [2, 256], strides = [1, 1]} : vector<2x1024xf32> to vector<2x256xf32>
    %cst_71 = arith.constant 5.000000e-01 : f32
    %156 = vector.broadcast %cst_71 : f32 to vector<2x256xf32>
    %157 = arith.mulf %156, %155 : vector<2x256xf32>
    %158 = math.tanh %157 : vector<2x256xf32>
    %cst_72 = arith.constant 1.000000e+00 : f32
    %159 = vector.broadcast %cst_72 : f32 to vector<2x256xf32>
    %160 = arith.addf %158, %159 : vector<2x256xf32>
    %cst_73 = arith.constant 5.000000e-01 : f32
    %161 = vector.broadcast %cst_73 : f32 to vector<2x256xf32>
    %162 = arith.mulf %161, %160 : vector<2x256xf32>
    %163 = vector.extract_strided_slice %138 {offsets = [0, 768], sizes = [2, 256], strides = [1, 1]} : vector<2x1024xf32> to vector<2x256xf32>
    %164 = math.tanh %163 : vector<2x256xf32>
    %165 = arith.mulf %154, %83 : vector<2x256xf32>
    %166 = arith.mulf %146, %164 : vector<2x256xf32>
    %167 = arith.addf %165, %166 : vector<2x256xf32>
    %168 = math.tanh %167 : vector<2x256xf32>
    %169 = arith.mulf %162, %168 : vector<2x256xf32>
    %170 = arith.index_cast %c1_i32 : i32 to index
    %c0_74 = arith.constant 0 : index
    %c0_75 = arith.constant 0 : index
    %171 = vector.load %arg7[%170, %c0_74, %c0_75] : memref<8x256x512xf32, #tpu.memory_space<vmem>>, vector<1x256x512xf32>
    %172 = vector.shape_cast %171 : vector<1x256x512xf32> to vector<256x512xf32>
    %cst_76 = arith.constant dense<0.000000e+00> : vector<2x512xf32>
    %173 = tpu.matmul %169, %172, %cst_76 {dimension_numbers = #tpu.dot_dimension_numbers<[1], [0], [0], [1], [0, 0, 1, 1], [], []>} : vector<2x256xf32>, vector<256x512xf32>, vector<2x512xf32> -> vector<2x512xf32>
    %174 = arith.addf %90, %173 : vector<2x512xf32>
    %c2_i32 = arith.constant 2 : i32
    %175 = arith.index_cast %c2_i32 : i32 to index
    %c0_77 = arith.constant 0 : index
    %c0_78 = arith.constant 0 : index
    %176 = vector.load %arg0[%175, %c0_77, %c0_78] : memref<8x2x16xf32, #tpu.memory_space<vmem>>, vector<1x2x16xf32>
    %177 = vector.shape_cast %176 : vector<1x2x16xf32> to vector<2x16xf32>
    %c0_79 = arith.constant 0 : index
    %c0_80 = arith.constant 0 : index
    %178 = vector.load %arg1[%c0_79, %c0_80] : memref<16x512xf32, #tpu.memory_space<vmem>>, vector<16x512xf32>
    %cst_81 = arith.constant dense<0.000000e+00> : vector<2x512xf32>
    %179 = tpu.matmul %177, %178, %cst_81 {dimension_numbers = #tpu.dot_dimension_numbers<[1], [0], [0], [1], [0, 0, 1, 1], [], []>} : vector<2x16xf32>, vector<16x512xf32>, vector<2x512xf32> -> vector<2x512xf32>
    %180 = vector.broadcast %0 : vector<1x512xf32> to vector<2x512xf32>
    %181 = arith.addf %180, %179 : vector<2x512xf32>
    %c0_82 = arith.constant 0 : index
    %c0_83 = arith.constant 0 : index
    %182 = vector.load %arg2[%c0_82, %c0_83] : memref<128x512xf32, #tpu.memory_space<vmem>>, vector<128x512xf32>
    %cst_84 = arith.constant dense<0.000000e+00> : vector<2x512xf32>
    %183 = tpu.matmul %131, %182, %cst_84 {dimension_numbers = #tpu.dot_dimension_numbers<[1], [0], [0], [1], [0, 0, 1, 1], [], []>} : vector<2x128xf32>, vector<128x512xf32>, vector<2x512xf32> -> vector<2x512xf32>
    %184 = arith.addf %181, %183 : vector<2x512xf32>
    %185 = vector.extract_strided_slice %184 {offsets = [0, 0], sizes = [2, 128], strides = [1, 1]} : vector<2x512xf32> to vector<2x128xf32>
    %cst_85 = arith.constant 5.000000e-01 : f32
    %186 = vector.broadcast %cst_85 : f32 to vector<2x128xf32>
    %187 = arith.mulf %186, %185 : vector<2x128xf32>
    %188 = math.tanh %187 : vector<2x128xf32>
    %cst_86 = arith.constant 1.000000e+00 : f32
    %189 = vector.broadcast %cst_86 : f32 to vector<2x128xf32>
    %190 = arith.addf %188, %189 : vector<2x128xf32>
    %cst_87 = arith.constant 5.000000e-01 : f32
    %191 = vector.broadcast %cst_87 : f32 to vector<2x128xf32>
    %192 = arith.mulf %191, %190 : vector<2x128xf32>
    %193 = vector.extract_strided_slice %184 {offsets = [0, 128], sizes = [2, 128], strides = [1, 1]} : vector<2x512xf32> to vector<2x128xf32>
    %cst_88 = arith.constant 5.000000e-01 : f32
    %194 = vector.broadcast %cst_88 : f32 to vector<2x128xf32>
    %195 = arith.mulf %194, %193 : vector<2x128xf32>
    %196 = math.tanh %195 : vector<2x128xf32>
    %cst_89 = arith.constant 1.000000e+00 : f32
    %197 = vector.broadcast %cst_89 : f32 to vector<2x128xf32>
    %198 = arith.addf %196, %197 : vector<2x128xf32>
    %cst_90 = arith.constant 5.000000e-01 : f32
    %199 = vector.broadcast %cst_90 : f32 to vector<2x128xf32>
    %200 = arith.mulf %199, %198 : vector<2x128xf32>
    %201 = vector.extract_strided_slice %184 {offsets = [0, 256], sizes = [2, 128], strides = [1, 1]} : vector<2x512xf32> to vector<2x128xf32>
    %cst_91 = arith.constant 5.000000e-01 : f32
    %202 = vector.broadcast %cst_91 : f32 to vector<2x128xf32>
    %203 = arith.mulf %202, %201 : vector<2x128xf32>
    %204 = math.tanh %203 : vector<2x128xf32>
    %cst_92 = arith.constant 1.000000e+00 : f32
    %205 = vector.broadcast %cst_92 : f32 to vector<2x128xf32>
    %206 = arith.addf %204, %205 : vector<2x128xf32>
    %cst_93 = arith.constant 5.000000e-01 : f32
    %207 = vector.broadcast %cst_93 : f32 to vector<2x128xf32>
    %208 = arith.mulf %207, %206 : vector<2x128xf32>
    %209 = vector.extract_strided_slice %184 {offsets = [0, 384], sizes = [2, 128], strides = [1, 1]} : vector<2x512xf32> to vector<2x128xf32>
    %210 = math.tanh %209 : vector<2x128xf32>
    %211 = arith.mulf %200, %129 : vector<2x128xf32>
    %212 = arith.mulf %192, %210 : vector<2x128xf32>
    %213 = arith.addf %211, %212 : vector<2x128xf32>
    %214 = math.tanh %213 : vector<2x128xf32>
    %215 = arith.mulf %208, %214 : vector<2x128xf32>
    %c0_94 = arith.constant 0 : index
    %c0_95 = arith.constant 0 : index
    %216 = vector.load %arg4[%c0_94, %c0_95] : memref<128x1024xf32, #tpu.memory_space<vmem>>, vector<128x1024xf32>
    %cst_96 = arith.constant dense<0.000000e+00> : vector<2x1024xf32>
    %217 = tpu.matmul %215, %216, %cst_96 {dimension_numbers = #tpu.dot_dimension_numbers<[1], [0], [0], [1], [0, 0, 1, 1], [], []>} : vector<2x128xf32>, vector<128x1024xf32>, vector<2x1024xf32> -> vector<2x1024xf32>
    %218 = vector.broadcast %1 : vector<1x1024xf32> to vector<2x1024xf32>
    %219 = arith.addf %218, %217 : vector<2x1024xf32>
    %c0_97 = arith.constant 0 : index
    %c0_98 = arith.constant 0 : index
    %220 = vector.load %arg5[%c0_97, %c0_98] : memref<256x1024xf32, #tpu.memory_space<vmem>>, vector<256x1024xf32>
    %cst_99 = arith.constant dense<0.000000e+00> : vector<2x1024xf32>
    %221 = tpu.matmul %169, %220, %cst_99 {dimension_numbers = #tpu.dot_dimension_numbers<[1], [0], [0], [1], [0, 0, 1, 1], [], []>} : vector<2x256xf32>, vector<256x1024xf32>, vector<2x1024xf32> -> vector<2x1024xf32>
    %222 = arith.addf %219, %221 : vector<2x1024xf32>
    %223 = vector.extract_strided_slice %222 {offsets = [0, 0], sizes = [2, 256], strides = [1, 1]} : vector<2x1024xf32> to vector<2x256xf32>
    %cst_100 = arith.constant 5.000000e-01 : f32
    %224 = vector.broadcast %cst_100 : f32 to vector<2x256xf32>
    %225 = arith.mulf %224, %223 : vector<2x256xf32>
    %226 = math.tanh %225 : vector<2x256xf32>
    %cst_101 = arith.constant 1.000000e+00 : f32
    %227 = vector.broadcast %cst_101 : f32 to vector<2x256xf32>
    %228 = arith.addf %226, %227 : vector<2x256xf32>
    %cst_102 = arith.constant 5.000000e-01 : f32
    %229 = vector.broadcast %cst_102 : f32 to vector<2x256xf32>
    %230 = arith.mulf %229, %228 : vector<2x256xf32>
    %231 = vector.extract_strided_slice %222 {offsets = [0, 256], sizes = [2, 256], strides = [1, 1]} : vector<2x1024xf32> to vector<2x256xf32>
    %cst_103 = arith.constant 5.000000e-01 : f32
    %232 = vector.broadcast %cst_103 : f32 to vector<2x256xf32>
    %233 = arith.mulf %232, %231 : vector<2x256xf32>
    %234 = math.tanh %233 : vector<2x256xf32>
    %cst_104 = arith.constant 1.000000e+00 : f32
    %235 = vector.broadcast %cst_104 : f32 to vector<2x256xf32>
    %236 = arith.addf %234, %235 : vector<2x256xf32>
    %cst_105 = arith.constant 5.000000e-01 : f32
    %237 = vector.broadcast %cst_105 : f32 to vector<2x256xf32>
    %238 = arith.mulf %237, %236 : vector<2x256xf32>
    %239 = vector.extract_strided_slice %222 {offsets = [0, 512], sizes = [2, 256], strides = [1, 1]} : vector<2x1024xf32> to vector<2x256xf32>
    %cst_106 = arith.constant 5.000000e-01 : f32
    %240 = vector.broadcast %cst_106 : f32 to vector<2x256xf32>
    %241 = arith.mulf %240, %239 : vector<2x256xf32>
    %242 = math.tanh %241 : vector<2x256xf32>
    %cst_107 = arith.constant 1.000000e+00 : f32
    %243 = vector.broadcast %cst_107 : f32 to vector<2x256xf32>
    %244 = arith.addf %242, %243 : vector<2x256xf32>
    %cst_108 = arith.constant 5.000000e-01 : f32
    %245 = vector.broadcast %cst_108 : f32 to vector<2x256xf32>
    %246 = arith.mulf %245, %244 : vector<2x256xf32>
    %247 = vector.extract_strided_slice %222 {offsets = [0, 768], sizes = [2, 256], strides = [1, 1]} : vector<2x1024xf32> to vector<2x256xf32>
    %248 = math.tanh %247 : vector<2x256xf32>
    %249 = arith.mulf %238, %167 : vector<2x256xf32>
    %250 = arith.mulf %230, %248 : vector<2x256xf32>
    %251 = arith.addf %249, %250 : vector<2x256xf32>
    %252 = math.tanh %251 : vector<2x256xf32>
    %253 = arith.mulf %246, %252 : vector<2x256xf32>
    %254 = arith.index_cast %c2_i32 : i32 to index
    %c0_109 = arith.constant 0 : index
    %c0_110 = arith.constant 0 : index
    %255 = vector.load %arg7[%254, %c0_109, %c0_110] : memref<8x256x512xf32, #tpu.memory_space<vmem>>, vector<1x256x512xf32>
    %256 = vector.shape_cast %255 : vector<1x256x512xf32> to vector<256x512xf32>
    %cst_111 = arith.constant dense<0.000000e+00> : vector<2x512xf32>
    %257 = tpu.matmul %253, %256, %cst_111 {dimension_numbers = #tpu.dot_dimension_numbers<[1], [0], [0], [1], [0, 0, 1, 1], [], []>} : vector<2x256xf32>, vector<256x512xf32>, vector<2x512xf32> -> vector<2x512xf32>
    %258 = arith.addf %174, %257 : vector<2x512xf32>
    %c3_i32 = arith.constant 3 : i32
    %259 = arith.index_cast %c3_i32 : i32 to index
    %c0_112 = arith.constant 0 : index
    %c0_113 = arith.constant 0 : index
    %260 = vector.load %arg0[%259, %c0_112, %c0_113] : memref<8x2x16xf32, #tpu.memory_space<vmem>>, vector<1x2x16xf32>
    %261 = vector.shape_cast %260 : vector<1x2x16xf32> to vector<2x16xf32>
    %c0_114 = arith.constant 0 : index
    %c0_115 = arith.constant 0 : index
    %262 = vector.load %arg1[%c0_114, %c0_115] : memref<16x512xf32, #tpu.memory_space<vmem>>, vector<16x512xf32>
    %cst_116 = arith.constant dense<0.000000e+00> : vector<2x512xf32>
    %263 = tpu.matmul %261, %262, %cst_116 {dimension_numbers = #tpu.dot_dimension_numbers<[1], [0], [0], [1], [0, 0, 1, 1], [], []>} : vector<2x16xf32>, vector<16x512xf32>, vector<2x512xf32> -> vector<2x512xf32>
    %264 = vector.broadcast %0 : vector<1x512xf32> to vector<2x512xf32>
    %265 = arith.addf %264, %263 : vector<2x512xf32>
    %c0_117 = arith.constant 0 : index
    %c0_118 = arith.constant 0 : index
    %266 = vector.load %arg2[%c0_117, %c0_118] : memref<128x512xf32, #tpu.memory_space<vmem>>, vector<128x512xf32>
    %cst_119 = arith.constant dense<0.000000e+00> : vector<2x512xf32>
    %267 = tpu.matmul %215, %266, %cst_119 {dimension_numbers = #tpu.dot_dimension_numbers<[1], [0], [0], [1], [0, 0, 1, 1], [], []>} : vector<2x128xf32>, vector<128x512xf32>, vector<2x512xf32> -> vector<2x512xf32>
    %268 = arith.addf %265, %267 : vector<2x512xf32>
    %269 = vector.extract_strided_slice %268 {offsets = [0, 0], sizes = [2, 128], strides = [1, 1]} : vector<2x512xf32> to vector<2x128xf32>
    %cst_120 = arith.constant 5.000000e-01 : f32
    %270 = vector.broadcast %cst_120 : f32 to vector<2x128xf32>
    %271 = arith.mulf %270, %269 : vector<2x128xf32>
    %272 = math.tanh %271 : vector<2x128xf32>
    %cst_121 = arith.constant 1.000000e+00 : f32
    %273 = vector.broadcast %cst_121 : f32 to vector<2x128xf32>
    %274 = arith.addf %272, %273 : vector<2x128xf32>
    %cst_122 = arith.constant 5.000000e-01 : f32
    %275 = vector.broadcast %cst_122 : f32 to vector<2x128xf32>
    %276 = arith.mulf %275, %274 : vector<2x128xf32>
    %277 = vector.extract_strided_slice %268 {offsets = [0, 128], sizes = [2, 128], strides = [1, 1]} : vector<2x512xf32> to vector<2x128xf32>
    %cst_123 = arith.constant 5.000000e-01 : f32
    %278 = vector.broadcast %cst_123 : f32 to vector<2x128xf32>
    %279 = arith.mulf %278, %277 : vector<2x128xf32>
    %280 = math.tanh %279 : vector<2x128xf32>
    %cst_124 = arith.constant 1.000000e+00 : f32
    %281 = vector.broadcast %cst_124 : f32 to vector<2x128xf32>
    %282 = arith.addf %280, %281 : vector<2x128xf32>
    %cst_125 = arith.constant 5.000000e-01 : f32
    %283 = vector.broadcast %cst_125 : f32 to vector<2x128xf32>
    %284 = arith.mulf %283, %282 : vector<2x128xf32>
    %285 = vector.extract_strided_slice %268 {offsets = [0, 256], sizes = [2, 128], strides = [1, 1]} : vector<2x512xf32> to vector<2x128xf32>
    %cst_126 = arith.constant 5.000000e-01 : f32
    %286 = vector.broadcast %cst_126 : f32 to vector<2x128xf32>
    %287 = arith.mulf %286, %285 : vector<2x128xf32>
    %288 = math.tanh %287 : vector<2x128xf32>
    %cst_127 = arith.constant 1.000000e+00 : f32
    %289 = vector.broadcast %cst_127 : f32 to vector<2x128xf32>
    %290 = arith.addf %288, %289 : vector<2x128xf32>
    %cst_128 = arith.constant 5.000000e-01 : f32
    %291 = vector.broadcast %cst_128 : f32 to vector<2x128xf32>
    %292 = arith.mulf %291, %290 : vector<2x128xf32>
    %293 = vector.extract_strided_slice %268 {offsets = [0, 384], sizes = [2, 128], strides = [1, 1]} : vector<2x512xf32> to vector<2x128xf32>
    %294 = math.tanh %293 : vector<2x128xf32>
    %295 = arith.mulf %284, %213 : vector<2x128xf32>
    %296 = arith.mulf %276, %294 : vector<2x128xf32>
    %297 = arith.addf %295, %296 : vector<2x128xf32>
    %298 = math.tanh %297 : vector<2x128xf32>
    %299 = arith.mulf %292, %298 : vector<2x128xf32>
    %c0_129 = arith.constant 0 : index
    %c0_130 = arith.constant 0 : index
    %300 = vector.load %arg4[%c0_129, %c0_130] : memref<128x1024xf32, #tpu.memory_space<vmem>>, vector<128x1024xf32>
    %cst_131 = arith.constant dense<0.000000e+00> : vector<2x1024xf32>
    %301 = tpu.matmul %299, %300, %cst_131 {dimension_numbers = #tpu.dot_dimension_numbers<[1], [0], [0], [1], [0, 0, 1, 1], [], []>} : vector<2x128xf32>, vector<128x1024xf32>, vector<2x1024xf32> -> vector<2x1024xf32>
    %302 = vector.broadcast %1 : vector<1x1024xf32> to vector<2x1024xf32>
    %303 = arith.addf %302, %301 : vector<2x1024xf32>
    %c0_132 = arith.constant 0 : index
    %c0_133 = arith.constant 0 : index
    %304 = vector.load %arg5[%c0_132, %c0_133] : memref<256x1024xf32, #tpu.memory_space<vmem>>, vector<256x1024xf32>
    %cst_134 = arith.constant dense<0.000000e+00> : vector<2x1024xf32>
    %305 = tpu.matmul %253, %304, %cst_134 {dimension_numbers = #tpu.dot_dimension_numbers<[1], [0], [0], [1], [0, 0, 1, 1], [], []>} : vector<2x256xf32>, vector<256x1024xf32>, vector<2x1024xf32> -> vector<2x1024xf32>
    %306 = arith.addf %303, %305 : vector<2x1024xf32>
    %307 = vector.extract_strided_slice %306 {offsets = [0, 0], sizes = [2, 256], strides = [1, 1]} : vector<2x1024xf32> to vector<2x256xf32>
    %cst_135 = arith.constant 5.000000e-01 : f32
    %308 = vector.broadcast %cst_135 : f32 to vector<2x256xf32>
    %309 = arith.mulf %308, %307 : vector<2x256xf32>
    %310 = math.tanh %309 : vector<2x256xf32>
    %cst_136 = arith.constant 1.000000e+00 : f32
    %311 = vector.broadcast %cst_136 : f32 to vector<2x256xf32>
    %312 = arith.addf %310, %311 : vector<2x256xf32>
    %cst_137 = arith.constant 5.000000e-01 : f32
    %313 = vector.broadcast %cst_137 : f32 to vector<2x256xf32>
    %314 = arith.mulf %313, %312 : vector<2x256xf32>
    %315 = vector.extract_strided_slice %306 {offsets = [0, 256], sizes = [2, 256], strides = [1, 1]} : vector<2x1024xf32> to vector<2x256xf32>
    %cst_138 = arith.constant 5.000000e-01 : f32
    %316 = vector.broadcast %cst_138 : f32 to vector<2x256xf32>
    %317 = arith.mulf %316, %315 : vector<2x256xf32>
    %318 = math.tanh %317 : vector<2x256xf32>
    %cst_139 = arith.constant 1.000000e+00 : f32
    %319 = vector.broadcast %cst_139 : f32 to vector<2x256xf32>
    %320 = arith.addf %318, %319 : vector<2x256xf32>
    %cst_140 = arith.constant 5.000000e-01 : f32
    %321 = vector.broadcast %cst_140 : f32 to vector<2x256xf32>
    %322 = arith.mulf %321, %320 : vector<2x256xf32>
    %323 = vector.extract_strided_slice %306 {offsets = [0, 512], sizes = [2, 256], strides = [1, 1]} : vector<2x1024xf32> to vector<2x256xf32>
    %cst_141 = arith.constant 5.000000e-01 : f32
    %324 = vector.broadcast %cst_141 : f32 to vector<2x256xf32>
    %325 = arith.mulf %324, %323 : vector<2x256xf32>
    %326 = math.tanh %325 : vector<2x256xf32>
    %cst_142 = arith.constant 1.000000e+00 : f32
    %327 = vector.broadcast %cst_142 : f32 to vector<2x256xf32>
    %328 = arith.addf %326, %327 : vector<2x256xf32>
    %cst_143 = arith.constant 5.000000e-01 : f32
    %329 = vector.broadcast %cst_143 : f32 to vector<2x256xf32>
    %330 = arith.mulf %329, %328 : vector<2x256xf32>
    %331 = vector.extract_strided_slice %306 {offsets = [0, 768], sizes = [2, 256], strides = [1, 1]} : vector<2x1024xf32> to vector<2x256xf32>
    %332 = math.tanh %331 : vector<2x256xf32>
    %333 = arith.mulf %322, %251 : vector<2x256xf32>
    %334 = arith.mulf %314, %332 : vector<2x256xf32>
    %335 = arith.addf %333, %334 : vector<2x256xf32>
    %336 = math.tanh %335 : vector<2x256xf32>
    %337 = arith.mulf %330, %336 : vector<2x256xf32>
    %338 = arith.index_cast %c3_i32 : i32 to index
    %c0_144 = arith.constant 0 : index
    %c0_145 = arith.constant 0 : index
    %339 = vector.load %arg7[%338, %c0_144, %c0_145] : memref<8x256x512xf32, #tpu.memory_space<vmem>>, vector<1x256x512xf32>
    %340 = vector.shape_cast %339 : vector<1x256x512xf32> to vector<256x512xf32>
    %cst_146 = arith.constant dense<0.000000e+00> : vector<2x512xf32>
    %341 = tpu.matmul %337, %340, %cst_146 {dimension_numbers = #tpu.dot_dimension_numbers<[1], [0], [0], [1], [0, 0, 1, 1], [], []>} : vector<2x256xf32>, vector<256x512xf32>, vector<2x512xf32> -> vector<2x512xf32>
    %342 = arith.addf %258, %341 : vector<2x512xf32>
    %c4_i32 = arith.constant 4 : i32
    %343 = arith.index_cast %c4_i32 : i32 to index
    %c0_147 = arith.constant 0 : index
    %c0_148 = arith.constant 0 : index
    %344 = vector.load %arg0[%343, %c0_147, %c0_148] : memref<8x2x16xf32, #tpu.memory_space<vmem>>, vector<1x2x16xf32>
    %345 = vector.shape_cast %344 : vector<1x2x16xf32> to vector<2x16xf32>
    %c0_149 = arith.constant 0 : index
    %c0_150 = arith.constant 0 : index
    %346 = vector.load %arg1[%c0_149, %c0_150] : memref<16x512xf32, #tpu.memory_space<vmem>>, vector<16x512xf32>
    %cst_151 = arith.constant dense<0.000000e+00> : vector<2x512xf32>
    %347 = tpu.matmul %345, %346, %cst_151 {dimension_numbers = #tpu.dot_dimension_numbers<[1], [0], [0], [1], [0, 0, 1, 1], [], []>} : vector<2x16xf32>, vector<16x512xf32>, vector<2x512xf32> -> vector<2x512xf32>
    %348 = vector.broadcast %0 : vector<1x512xf32> to vector<2x512xf32>
    %349 = arith.addf %348, %347 : vector<2x512xf32>
    %c0_152 = arith.constant 0 : index
    %c0_153 = arith.constant 0 : index
    %350 = vector.load %arg2[%c0_152, %c0_153] : memref<128x512xf32, #tpu.memory_space<vmem>>, vector<128x512xf32>
    %cst_154 = arith.constant dense<0.000000e+00> : vector<2x512xf32>
    %351 = tpu.matmul %299, %350, %cst_154 {dimension_numbers = #tpu.dot_dimension_numbers<[1], [0], [0], [1], [0, 0, 1, 1], [], []>} : vector<2x128xf32>, vector<128x512xf32>, vector<2x512xf32> -> vector<2x512xf32>
    %352 = arith.addf %349, %351 : vector<2x512xf32>
    %353 = vector.extract_strided_slice %352 {offsets = [0, 0], sizes = [2, 128], strides = [1, 1]} : vector<2x512xf32> to vector<2x128xf32>
    %cst_155 = arith.constant 5.000000e-01 : f32
    %354 = vector.broadcast %cst_155 : f32 to vector<2x128xf32>
    %355 = arith.mulf %354, %353 : vector<2x128xf32>
    %356 = math.tanh %355 : vector<2x128xf32>
    %cst_156 = arith.constant 1.000000e+00 : f32
    %357 = vector.broadcast %cst_156 : f32 to vector<2x128xf32>
    %358 = arith.addf %356, %357 : vector<2x128xf32>
    %cst_157 = arith.constant 5.000000e-01 : f32
    %359 = vector.broadcast %cst_157 : f32 to vector<2x128xf32>
    %360 = arith.mulf %359, %358 : vector<2x128xf32>
    %361 = vector.extract_strided_slice %352 {offsets = [0, 128], sizes = [2, 128], strides = [1, 1]} : vector<2x512xf32> to vector<2x128xf32>
    %cst_158 = arith.constant 5.000000e-01 : f32
    %362 = vector.broadcast %cst_158 : f32 to vector<2x128xf32>
    %363 = arith.mulf %362, %361 : vector<2x128xf32>
    %364 = math.tanh %363 : vector<2x128xf32>
    %cst_159 = arith.constant 1.000000e+00 : f32
    %365 = vector.broadcast %cst_159 : f32 to vector<2x128xf32>
    %366 = arith.addf %364, %365 : vector<2x128xf32>
    %cst_160 = arith.constant 5.000000e-01 : f32
    %367 = vector.broadcast %cst_160 : f32 to vector<2x128xf32>
    %368 = arith.mulf %367, %366 : vector<2x128xf32>
    %369 = vector.extract_strided_slice %352 {offsets = [0, 256], sizes = [2, 128], strides = [1, 1]} : vector<2x512xf32> to vector<2x128xf32>
    %cst_161 = arith.constant 5.000000e-01 : f32
    %370 = vector.broadcast %cst_161 : f32 to vector<2x128xf32>
    %371 = arith.mulf %370, %369 : vector<2x128xf32>
    %372 = math.tanh %371 : vector<2x128xf32>
    %cst_162 = arith.constant 1.000000e+00 : f32
    %373 = vector.broadcast %cst_162 : f32 to vector<2x128xf32>
    %374 = arith.addf %372, %373 : vector<2x128xf32>
    %cst_163 = arith.constant 5.000000e-01 : f32
    %375 = vector.broadcast %cst_163 : f32 to vector<2x128xf32>
    %376 = arith.mulf %375, %374 : vector<2x128xf32>
    %377 = vector.extract_strided_slice %352 {offsets = [0, 384], sizes = [2, 128], strides = [1, 1]} : vector<2x512xf32> to vector<2x128xf32>
    %378 = math.tanh %377 : vector<2x128xf32>
    %379 = arith.mulf %368, %297 : vector<2x128xf32>
    %380 = arith.mulf %360, %378 : vector<2x128xf32>
    %381 = arith.addf %379, %380 : vector<2x128xf32>
    %382 = math.tanh %381 : vector<2x128xf32>
    %383 = arith.mulf %376, %382 : vector<2x128xf32>
    %c0_164 = arith.constant 0 : index
    %c0_165 = arith.constant 0 : index
    %384 = vector.load %arg4[%c0_164, %c0_165] : memref<128x1024xf32, #tpu.memory_space<vmem>>, vector<128x1024xf32>
    %cst_166 = arith.constant dense<0.000000e+00> : vector<2x1024xf32>
    %385 = tpu.matmul %383, %384, %cst_166 {dimension_numbers = #tpu.dot_dimension_numbers<[1], [0], [0], [1], [0, 0, 1, 1], [], []>} : vector<2x128xf32>, vector<128x1024xf32>, vector<2x1024xf32> -> vector<2x1024xf32>
    %386 = vector.broadcast %1 : vector<1x1024xf32> to vector<2x1024xf32>
    %387 = arith.addf %386, %385 : vector<2x1024xf32>
    %c0_167 = arith.constant 0 : index
    %c0_168 = arith.constant 0 : index
    %388 = vector.load %arg5[%c0_167, %c0_168] : memref<256x1024xf32, #tpu.memory_space<vmem>>, vector<256x1024xf32>
    %cst_169 = arith.constant dense<0.000000e+00> : vector<2x1024xf32>
    %389 = tpu.matmul %337, %388, %cst_169 {dimension_numbers = #tpu.dot_dimension_numbers<[1], [0], [0], [1], [0, 0, 1, 1], [], []>} : vector<2x256xf32>, vector<256x1024xf32>, vector<2x1024xf32> -> vector<2x1024xf32>
    %390 = arith.addf %387, %389 : vector<2x1024xf32>
    %391 = vector.extract_strided_slice %390 {offsets = [0, 0], sizes = [2, 256], strides = [1, 1]} : vector<2x1024xf32> to vector<2x256xf32>
    %cst_170 = arith.constant 5.000000e-01 : f32
    %392 = vector.broadcast %cst_170 : f32 to vector<2x256xf32>
    %393 = arith.mulf %392, %391 : vector<2x256xf32>
    %394 = math.tanh %393 : vector<2x256xf32>
    %cst_171 = arith.constant 1.000000e+00 : f32
    %395 = vector.broadcast %cst_171 : f32 to vector<2x256xf32>
    %396 = arith.addf %394, %395 : vector<2x256xf32>
    %cst_172 = arith.constant 5.000000e-01 : f32
    %397 = vector.broadcast %cst_172 : f32 to vector<2x256xf32>
    %398 = arith.mulf %397, %396 : vector<2x256xf32>
    %399 = vector.extract_strided_slice %390 {offsets = [0, 256], sizes = [2, 256], strides = [1, 1]} : vector<2x1024xf32> to vector<2x256xf32>
    %cst_173 = arith.constant 5.000000e-01 : f32
    %400 = vector.broadcast %cst_173 : f32 to vector<2x256xf32>
    %401 = arith.mulf %400, %399 : vector<2x256xf32>
    %402 = math.tanh %401 : vector<2x256xf32>
    %cst_174 = arith.constant 1.000000e+00 : f32
    %403 = vector.broadcast %cst_174 : f32 to vector<2x256xf32>
    %404 = arith.addf %402, %403 : vector<2x256xf32>
    %cst_175 = arith.constant 5.000000e-01 : f32
    %405 = vector.broadcast %cst_175 : f32 to vector<2x256xf32>
    %406 = arith.mulf %405, %404 : vector<2x256xf32>
    %407 = vector.extract_strided_slice %390 {offsets = [0, 512], sizes = [2, 256], strides = [1, 1]} : vector<2x1024xf32> to vector<2x256xf32>
    %cst_176 = arith.constant 5.000000e-01 : f32
    %408 = vector.broadcast %cst_176 : f32 to vector<2x256xf32>
    %409 = arith.mulf %408, %407 : vector<2x256xf32>
    %410 = math.tanh %409 : vector<2x256xf32>
    %cst_177 = arith.constant 1.000000e+00 : f32
    %411 = vector.broadcast %cst_177 : f32 to vector<2x256xf32>
    %412 = arith.addf %410, %411 : vector<2x256xf32>
    %cst_178 = arith.constant 5.000000e-01 : f32
    %413 = vector.broadcast %cst_178 : f32 to vector<2x256xf32>
    %414 = arith.mulf %413, %412 : vector<2x256xf32>
    %415 = vector.extract_strided_slice %390 {offsets = [0, 768], sizes = [2, 256], strides = [1, 1]} : vector<2x1024xf32> to vector<2x256xf32>
    %416 = math.tanh %415 : vector<2x256xf32>
    %417 = arith.mulf %406, %335 : vector<2x256xf32>
    %418 = arith.mulf %398, %416 : vector<2x256xf32>
    %419 = arith.addf %417, %418 : vector<2x256xf32>
    %420 = math.tanh %419 : vector<2x256xf32>
    %421 = arith.mulf %414, %420 : vector<2x256xf32>
    %422 = arith.index_cast %c4_i32 : i32 to index
    %c0_179 = arith.constant 0 : index
    %c0_180 = arith.constant 0 : index
    %423 = vector.load %arg7[%422, %c0_179, %c0_180] : memref<8x256x512xf32, #tpu.memory_space<vmem>>, vector<1x256x512xf32>
    %424 = vector.shape_cast %423 : vector<1x256x512xf32> to vector<256x512xf32>
    %cst_181 = arith.constant dense<0.000000e+00> : vector<2x512xf32>
    %425 = tpu.matmul %421, %424, %cst_181 {dimension_numbers = #tpu.dot_dimension_numbers<[1], [0], [0], [1], [0, 0, 1, 1], [], []>} : vector<2x256xf32>, vector<256x512xf32>, vector<2x512xf32> -> vector<2x512xf32>
    %426 = arith.addf %342, %425 : vector<2x512xf32>
    %c5_i32 = arith.constant 5 : i32
    %427 = arith.index_cast %c5_i32 : i32 to index
    %c0_182 = arith.constant 0 : index
    %c0_183 = arith.constant 0 : index
    %428 = vector.load %arg0[%427, %c0_182, %c0_183] : memref<8x2x16xf32, #tpu.memory_space<vmem>>, vector<1x2x16xf32>
    %429 = vector.shape_cast %428 : vector<1x2x16xf32> to vector<2x16xf32>
    %c0_184 = arith.constant 0 : index
    %c0_185 = arith.constant 0 : index
    %430 = vector.load %arg1[%c0_184, %c0_185] : memref<16x512xf32, #tpu.memory_space<vmem>>, vector<16x512xf32>
    %cst_186 = arith.constant dense<0.000000e+00> : vector<2x512xf32>
    %431 = tpu.matmul %429, %430, %cst_186 {dimension_numbers = #tpu.dot_dimension_numbers<[1], [0], [0], [1], [0, 0, 1, 1], [], []>} : vector<2x16xf32>, vector<16x512xf32>, vector<2x512xf32> -> vector<2x512xf32>
    %432 = vector.broadcast %0 : vector<1x512xf32> to vector<2x512xf32>
    %433 = arith.addf %432, %431 : vector<2x512xf32>
    %c0_187 = arith.constant 0 : index
    %c0_188 = arith.constant 0 : index
    %434 = vector.load %arg2[%c0_187, %c0_188] : memref<128x512xf32, #tpu.memory_space<vmem>>, vector<128x512xf32>
    %cst_189 = arith.constant dense<0.000000e+00> : vector<2x512xf32>
    %435 = tpu.matmul %383, %434, %cst_189 {dimension_numbers = #tpu.dot_dimension_numbers<[1], [0], [0], [1], [0, 0, 1, 1], [], []>} : vector<2x128xf32>, vector<128x512xf32>, vector<2x512xf32> -> vector<2x512xf32>
    %436 = arith.addf %433, %435 : vector<2x512xf32>
    %437 = vector.extract_strided_slice %436 {offsets = [0, 0], sizes = [2, 128], strides = [1, 1]} : vector<2x512xf32> to vector<2x128xf32>
    %cst_190 = arith.constant 5.000000e-01 : f32
    %438 = vector.broadcast %cst_190 : f32 to vector<2x128xf32>
    %439 = arith.mulf %438, %437 : vector<2x128xf32>
    %440 = math.tanh %439 : vector<2x128xf32>
    %cst_191 = arith.constant 1.000000e+00 : f32
    %441 = vector.broadcast %cst_191 : f32 to vector<2x128xf32>
    %442 = arith.addf %440, %441 : vector<2x128xf32>
    %cst_192 = arith.constant 5.000000e-01 : f32
    %443 = vector.broadcast %cst_192 : f32 to vector<2x128xf32>
    %444 = arith.mulf %443, %442 : vector<2x128xf32>
    %445 = vector.extract_strided_slice %436 {offsets = [0, 128], sizes = [2, 128], strides = [1, 1]} : vector<2x512xf32> to vector<2x128xf32>
    %cst_193 = arith.constant 5.000000e-01 : f32
    %446 = vector.broadcast %cst_193 : f32 to vector<2x128xf32>
    %447 = arith.mulf %446, %445 : vector<2x128xf32>
    %448 = math.tanh %447 : vector<2x128xf32>
    %cst_194 = arith.constant 1.000000e+00 : f32
    %449 = vector.broadcast %cst_194 : f32 to vector<2x128xf32>
    %450 = arith.addf %448, %449 : vector<2x128xf32>
    %cst_195 = arith.constant 5.000000e-01 : f32
    %451 = vector.broadcast %cst_195 : f32 to vector<2x128xf32>
    %452 = arith.mulf %451, %450 : vector<2x128xf32>
    %453 = vector.extract_strided_slice %436 {offsets = [0, 256], sizes = [2, 128], strides = [1, 1]} : vector<2x512xf32> to vector<2x128xf32>
    %cst_196 = arith.constant 5.000000e-01 : f32
    %454 = vector.broadcast %cst_196 : f32 to vector<2x128xf32>
    %455 = arith.mulf %454, %453 : vector<2x128xf32>
    %456 = math.tanh %455 : vector<2x128xf32>
    %cst_197 = arith.constant 1.000000e+00 : f32
    %457 = vector.broadcast %cst_197 : f32 to vector<2x128xf32>
    %458 = arith.addf %456, %457 : vector<2x128xf32>
    %cst_198 = arith.constant 5.000000e-01 : f32
    %459 = vector.broadcast %cst_198 : f32 to vector<2x128xf32>
    %460 = arith.mulf %459, %458 : vector<2x128xf32>
    %461 = vector.extract_strided_slice %436 {offsets = [0, 384], sizes = [2, 128], strides = [1, 1]} : vector<2x512xf32> to vector<2x128xf32>
    %462 = math.tanh %461 : vector<2x128xf32>
    %463 = arith.mulf %452, %381 : vector<2x128xf32>
    %464 = arith.mulf %444, %462 : vector<2x128xf32>
    %465 = arith.addf %463, %464 : vector<2x128xf32>
    %466 = math.tanh %465 : vector<2x128xf32>
    %467 = arith.mulf %460, %466 : vector<2x128xf32>
    %c0_199 = arith.constant 0 : index
    %c0_200 = arith.constant 0 : index
    %468 = vector.load %arg4[%c0_199, %c0_200] : memref<128x1024xf32, #tpu.memory_space<vmem>>, vector<128x1024xf32>
    %cst_201 = arith.constant dense<0.000000e+00> : vector<2x1024xf32>
    %469 = tpu.matmul %467, %468, %cst_201 {dimension_numbers = #tpu.dot_dimension_numbers<[1], [0], [0], [1], [0, 0, 1, 1], [], []>} : vector<2x128xf32>, vector<128x1024xf32>, vector<2x1024xf32> -> vector<2x1024xf32>
    %470 = vector.broadcast %1 : vector<1x1024xf32> to vector<2x1024xf32>
    %471 = arith.addf %470, %469 : vector<2x1024xf32>
    %c0_202 = arith.constant 0 : index
    %c0_203 = arith.constant 0 : index
    %472 = vector.load %arg5[%c0_202, %c0_203] : memref<256x1024xf32, #tpu.memory_space<vmem>>, vector<256x1024xf32>
    %cst_204 = arith.constant dense<0.000000e+00> : vector<2x1024xf32>
    %473 = tpu.matmul %421, %472, %cst_204 {dimension_numbers = #tpu.dot_dimension_numbers<[1], [0], [0], [1], [0, 0, 1, 1], [], []>} : vector<2x256xf32>, vector<256x1024xf32>, vector<2x1024xf32> -> vector<2x1024xf32>
    %474 = arith.addf %471, %473 : vector<2x1024xf32>
    %475 = vector.extract_strided_slice %474 {offsets = [0, 0], sizes = [2, 256], strides = [1, 1]} : vector<2x1024xf32> to vector<2x256xf32>
    %cst_205 = arith.constant 5.000000e-01 : f32
    %476 = vector.broadcast %cst_205 : f32 to vector<2x256xf32>
    %477 = arith.mulf %476, %475 : vector<2x256xf32>
    %478 = math.tanh %477 : vector<2x256xf32>
    %cst_206 = arith.constant 1.000000e+00 : f32
    %479 = vector.broadcast %cst_206 : f32 to vector<2x256xf32>
    %480 = arith.addf %478, %479 : vector<2x256xf32>
    %cst_207 = arith.constant 5.000000e-01 : f32
    %481 = vector.broadcast %cst_207 : f32 to vector<2x256xf32>
    %482 = arith.mulf %481, %480 : vector<2x256xf32>
    %483 = vector.extract_strided_slice %474 {offsets = [0, 256], sizes = [2, 256], strides = [1, 1]} : vector<2x1024xf32> to vector<2x256xf32>
    %cst_208 = arith.constant 5.000000e-01 : f32
    %484 = vector.broadcast %cst_208 : f32 to vector<2x256xf32>
    %485 = arith.mulf %484, %483 : vector<2x256xf32>
    %486 = math.tanh %485 : vector<2x256xf32>
    %cst_209 = arith.constant 1.000000e+00 : f32
    %487 = vector.broadcast %cst_209 : f32 to vector<2x256xf32>
    %488 = arith.addf %486, %487 : vector<2x256xf32>
    %cst_210 = arith.constant 5.000000e-01 : f32
    %489 = vector.broadcast %cst_210 : f32 to vector<2x256xf32>
    %490 = arith.mulf %489, %488 : vector<2x256xf32>
    %491 = vector.extract_strided_slice %474 {offsets = [0, 512], sizes = [2, 256], strides = [1, 1]} : vector<2x1024xf32> to vector<2x256xf32>
    %cst_211 = arith.constant 5.000000e-01 : f32
    %492 = vector.broadcast %cst_211 : f32 to vector<2x256xf32>
    %493 = arith.mulf %492, %491 : vector<2x256xf32>
    %494 = math.tanh %493 : vector<2x256xf32>
    %cst_212 = arith.constant 1.000000e+00 : f32
    %495 = vector.broadcast %cst_212 : f32 to vector<2x256xf32>
    %496 = arith.addf %494, %495 : vector<2x256xf32>
    %cst_213 = arith.constant 5.000000e-01 : f32
    %497 = vector.broadcast %cst_213 : f32 to vector<2x256xf32>
    %498 = arith.mulf %497, %496 : vector<2x256xf32>
    %499 = vector.extract_strided_slice %474 {offsets = [0, 768], sizes = [2, 256], strides = [1, 1]} : vector<2x1024xf32> to vector<2x256xf32>
    %500 = math.tanh %499 : vector<2x256xf32>
    %501 = arith.mulf %490, %419 : vector<2x256xf32>
    %502 = arith.mulf %482, %500 : vector<2x256xf32>
    %503 = arith.addf %501, %502 : vector<2x256xf32>
    %504 = math.tanh %503 : vector<2x256xf32>
    %505 = arith.mulf %498, %504 : vector<2x256xf32>
    %506 = arith.index_cast %c5_i32 : i32 to index
    %c0_214 = arith.constant 0 : index
    %c0_215 = arith.constant 0 : index
    %507 = vector.load %arg7[%506, %c0_214, %c0_215] : memref<8x256x512xf32, #tpu.memory_space<vmem>>, vector<1x256x512xf32>
    %508 = vector.shape_cast %507 : vector<1x256x512xf32> to vector<256x512xf32>
    %cst_216 = arith.constant dense<0.000000e+00> : vector<2x512xf32>
    %509 = tpu.matmul %505, %508, %cst_216 {dimension_numbers = #tpu.dot_dimension_numbers<[1], [0], [0], [1], [0, 0, 1, 1], [], []>} : vector<2x256xf32>, vector<256x512xf32>, vector<2x512xf32> -> vector<2x512xf32>
    %510 = arith.addf %426, %509 : vector<2x512xf32>
    %c6_i32 = arith.constant 6 : i32
    %511 = arith.index_cast %c6_i32 : i32 to index
    %c0_217 = arith.constant 0 : index
    %c0_218 = arith.constant 0 : index
    %512 = vector.load %arg0[%511, %c0_217, %c0_218] : memref<8x2x16xf32, #tpu.memory_space<vmem>>, vector<1x2x16xf32>
    %513 = vector.shape_cast %512 : vector<1x2x16xf32> to vector<2x16xf32>
    %c0_219 = arith.constant 0 : index
    %c0_220 = arith.constant 0 : index
    %514 = vector.load %arg1[%c0_219, %c0_220] : memref<16x512xf32, #tpu.memory_space<vmem>>, vector<16x512xf32>
    %cst_221 = arith.constant dense<0.000000e+00> : vector<2x512xf32>
    %515 = tpu.matmul %513, %514, %cst_221 {dimension_numbers = #tpu.dot_dimension_numbers<[1], [0], [0], [1], [0, 0, 1, 1], [], []>} : vector<2x16xf32>, vector<16x512xf32>, vector<2x512xf32> -> vector<2x512xf32>
    %516 = vector.broadcast %0 : vector<1x512xf32> to vector<2x512xf32>
    %517 = arith.addf %516, %515 : vector<2x512xf32>
    %c0_222 = arith.constant 0 : index
    %c0_223 = arith.constant 0 : index
    %518 = vector.load %arg2[%c0_222, %c0_223] : memref<128x512xf32, #tpu.memory_space<vmem>>, vector<128x512xf32>
    %cst_224 = arith.constant dense<0.000000e+00> : vector<2x512xf32>
    %519 = tpu.matmul %467, %518, %cst_224 {dimension_numbers = #tpu.dot_dimension_numbers<[1], [0], [0], [1], [0, 0, 1, 1], [], []>} : vector<2x128xf32>, vector<128x512xf32>, vector<2x512xf32> -> vector<2x512xf32>
    %520 = arith.addf %517, %519 : vector<2x512xf32>
    %521 = vector.extract_strided_slice %520 {offsets = [0, 0], sizes = [2, 128], strides = [1, 1]} : vector<2x512xf32> to vector<2x128xf32>
    %cst_225 = arith.constant 5.000000e-01 : f32
    %522 = vector.broadcast %cst_225 : f32 to vector<2x128xf32>
    %523 = arith.mulf %522, %521 : vector<2x128xf32>
    %524 = math.tanh %523 : vector<2x128xf32>
    %cst_226 = arith.constant 1.000000e+00 : f32
    %525 = vector.broadcast %cst_226 : f32 to vector<2x128xf32>
    %526 = arith.addf %524, %525 : vector<2x128xf32>
    %cst_227 = arith.constant 5.000000e-01 : f32
    %527 = vector.broadcast %cst_227 : f32 to vector<2x128xf32>
    %528 = arith.mulf %527, %526 : vector<2x128xf32>
    %529 = vector.extract_strided_slice %520 {offsets = [0, 128], sizes = [2, 128], strides = [1, 1]} : vector<2x512xf32> to vector<2x128xf32>
    %cst_228 = arith.constant 5.000000e-01 : f32
    %530 = vector.broadcast %cst_228 : f32 to vector<2x128xf32>
    %531 = arith.mulf %530, %529 : vector<2x128xf32>
    %532 = math.tanh %531 : vector<2x128xf32>
    %cst_229 = arith.constant 1.000000e+00 : f32
    %533 = vector.broadcast %cst_229 : f32 to vector<2x128xf32>
    %534 = arith.addf %532, %533 : vector<2x128xf32>
    %cst_230 = arith.constant 5.000000e-01 : f32
    %535 = vector.broadcast %cst_230 : f32 to vector<2x128xf32>
    %536 = arith.mulf %535, %534 : vector<2x128xf32>
    %537 = vector.extract_strided_slice %520 {offsets = [0, 256], sizes = [2, 128], strides = [1, 1]} : vector<2x512xf32> to vector<2x128xf32>
    %cst_231 = arith.constant 5.000000e-01 : f32
    %538 = vector.broadcast %cst_231 : f32 to vector<2x128xf32>
    %539 = arith.mulf %538, %537 : vector<2x128xf32>
    %540 = math.tanh %539 : vector<2x128xf32>
    %cst_232 = arith.constant 1.000000e+00 : f32
    %541 = vector.broadcast %cst_232 : f32 to vector<2x128xf32>
    %542 = arith.addf %540, %541 : vector<2x128xf32>
    %cst_233 = arith.constant 5.000000e-01 : f32
    %543 = vector.broadcast %cst_233 : f32 to vector<2x128xf32>
    %544 = arith.mulf %543, %542 : vector<2x128xf32>
    %545 = vector.extract_strided_slice %520 {offsets = [0, 384], sizes = [2, 128], strides = [1, 1]} : vector<2x512xf32> to vector<2x128xf32>
    %546 = math.tanh %545 : vector<2x128xf32>
    %547 = arith.mulf %536, %465 : vector<2x128xf32>
    %548 = arith.mulf %528, %546 : vector<2x128xf32>
    %549 = arith.addf %547, %548 : vector<2x128xf32>
    %550 = math.tanh %549 : vector<2x128xf32>
    %551 = arith.mulf %544, %550 : vector<2x128xf32>
    %c0_234 = arith.constant 0 : index
    %c0_235 = arith.constant 0 : index
    %552 = vector.load %arg4[%c0_234, %c0_235] : memref<128x1024xf32, #tpu.memory_space<vmem>>, vector<128x1024xf32>
    %cst_236 = arith.constant dense<0.000000e+00> : vector<2x1024xf32>
    %553 = tpu.matmul %551, %552, %cst_236 {dimension_numbers = #tpu.dot_dimension_numbers<[1], [0], [0], [1], [0, 0, 1, 1], [], []>} : vector<2x128xf32>, vector<128x1024xf32>, vector<2x1024xf32> -> vector<2x1024xf32>
    %554 = vector.broadcast %1 : vector<1x1024xf32> to vector<2x1024xf32>
    %555 = arith.addf %554, %553 : vector<2x1024xf32>
    %c0_237 = arith.constant 0 : index
    %c0_238 = arith.constant 0 : index
    %556 = vector.load %arg5[%c0_237, %c0_238] : memref<256x1024xf32, #tpu.memory_space<vmem>>, vector<256x1024xf32>
    %cst_239 = arith.constant dense<0.000000e+00> : vector<2x1024xf32>
    %557 = tpu.matmul %505, %556, %cst_239 {dimension_numbers = #tpu.dot_dimension_numbers<[1], [0], [0], [1], [0, 0, 1, 1], [], []>} : vector<2x256xf32>, vector<256x1024xf32>, vector<2x1024xf32> -> vector<2x1024xf32>
    %558 = arith.addf %555, %557 : vector<2x1024xf32>
    %559 = vector.extract_strided_slice %558 {offsets = [0, 0], sizes = [2, 256], strides = [1, 1]} : vector<2x1024xf32> to vector<2x256xf32>
    %cst_240 = arith.constant 5.000000e-01 : f32
    %560 = vector.broadcast %cst_240 : f32 to vector<2x256xf32>
    %561 = arith.mulf %560, %559 : vector<2x256xf32>
    %562 = math.tanh %561 : vector<2x256xf32>
    %cst_241 = arith.constant 1.000000e+00 : f32
    %563 = vector.broadcast %cst_241 : f32 to vector<2x256xf32>
    %564 = arith.addf %562, %563 : vector<2x256xf32>
    %cst_242 = arith.constant 5.000000e-01 : f32
    %565 = vector.broadcast %cst_242 : f32 to vector<2x256xf32>
    %566 = arith.mulf %565, %564 : vector<2x256xf32>
    %567 = vector.extract_strided_slice %558 {offsets = [0, 256], sizes = [2, 256], strides = [1, 1]} : vector<2x1024xf32> to vector<2x256xf32>
    %cst_243 = arith.constant 5.000000e-01 : f32
    %568 = vector.broadcast %cst_243 : f32 to vector<2x256xf32>
    %569 = arith.mulf %568, %567 : vector<2x256xf32>
    %570 = math.tanh %569 : vector<2x256xf32>
    %cst_244 = arith.constant 1.000000e+00 : f32
    %571 = vector.broadcast %cst_244 : f32 to vector<2x256xf32>
    %572 = arith.addf %570, %571 : vector<2x256xf32>
    %cst_245 = arith.constant 5.000000e-01 : f32
    %573 = vector.broadcast %cst_245 : f32 to vector<2x256xf32>
    %574 = arith.mulf %573, %572 : vector<2x256xf32>
    %575 = vector.extract_strided_slice %558 {offsets = [0, 512], sizes = [2, 256], strides = [1, 1]} : vector<2x1024xf32> to vector<2x256xf32>
    %cst_246 = arith.constant 5.000000e-01 : f32
    %576 = vector.broadcast %cst_246 : f32 to vector<2x256xf32>
    %577 = arith.mulf %576, %575 : vector<2x256xf32>
    %578 = math.tanh %577 : vector<2x256xf32>
    %cst_247 = arith.constant 1.000000e+00 : f32
    %579 = vector.broadcast %cst_247 : f32 to vector<2x256xf32>
    %580 = arith.addf %578, %579 : vector<2x256xf32>
    %cst_248 = arith.constant 5.000000e-01 : f32
    %581 = vector.broadcast %cst_248 : f32 to vector<2x256xf32>
    %582 = arith.mulf %581, %580 : vector<2x256xf32>
    %583 = vector.extract_strided_slice %558 {offsets = [0, 768], sizes = [2, 256], strides = [1, 1]} : vector<2x1024xf32> to vector<2x256xf32>
    %584 = math.tanh %583 : vector<2x256xf32>
    %585 = arith.mulf %574, %503 : vector<2x256xf32>
    %586 = arith.mulf %566, %584 : vector<2x256xf32>
    %587 = arith.addf %585, %586 : vector<2x256xf32>
    %588 = math.tanh %587 : vector<2x256xf32>
    %589 = arith.mulf %582, %588 : vector<2x256xf32>
    %590 = arith.index_cast %c6_i32 : i32 to index
    %c0_249 = arith.constant 0 : index
    %c0_250 = arith.constant 0 : index
    %591 = vector.load %arg7[%590, %c0_249, %c0_250] : memref<8x256x512xf32, #tpu.memory_space<vmem>>, vector<1x256x512xf32>
    %592 = vector.shape_cast %591 : vector<1x256x512xf32> to vector<256x512xf32>
    %cst_251 = arith.constant dense<0.000000e+00> : vector<2x512xf32>
    %593 = tpu.matmul %589, %592, %cst_251 {dimension_numbers = #tpu.dot_dimension_numbers<[1], [0], [0], [1], [0, 0, 1, 1], [], []>} : vector<2x256xf32>, vector<256x512xf32>, vector<2x512xf32> -> vector<2x512xf32>
    %594 = arith.addf %510, %593 : vector<2x512xf32>
    %c7_i32 = arith.constant 7 : i32
    %595 = arith.index_cast %c7_i32 : i32 to index
    %c0_252 = arith.constant 0 : index
    %c0_253 = arith.constant 0 : index
    %596 = vector.load %arg0[%595, %c0_252, %c0_253] : memref<8x2x16xf32, #tpu.memory_space<vmem>>, vector<1x2x16xf32>
    %597 = vector.shape_cast %596 : vector<1x2x16xf32> to vector<2x16xf32>
    %c0_254 = arith.constant 0 : index
    %c0_255 = arith.constant 0 : index
    %598 = vector.load %arg1[%c0_254, %c0_255] : memref<16x512xf32, #tpu.memory_space<vmem>>, vector<16x512xf32>
    %cst_256 = arith.constant dense<0.000000e+00> : vector<2x512xf32>
    %599 = tpu.matmul %597, %598, %cst_256 {dimension_numbers = #tpu.dot_dimension_numbers<[1], [0], [0], [1], [0, 0, 1, 1], [], []>} : vector<2x16xf32>, vector<16x512xf32>, vector<2x512xf32> -> vector<2x512xf32>
    %600 = vector.broadcast %0 : vector<1x512xf32> to vector<2x512xf32>
    %601 = arith.addf %600, %599 : vector<2x512xf32>
    %c0_257 = arith.constant 0 : index
    %c0_258 = arith.constant 0 : index
    %602 = vector.load %arg2[%c0_257, %c0_258] : memref<128x512xf32, #tpu.memory_space<vmem>>, vector<128x512xf32>
    %cst_259 = arith.constant dense<0.000000e+00> : vector<2x512xf32>
    %603 = tpu.matmul %551, %602, %cst_259 {dimension_numbers = #tpu.dot_dimension_numbers<[1], [0], [0], [1], [0, 0, 1, 1], [], []>} : vector<2x128xf32>, vector<128x512xf32>, vector<2x512xf32> -> vector<2x512xf32>
    %604 = arith.addf %601, %603 : vector<2x512xf32>
    %605 = vector.extract_strided_slice %604 {offsets = [0, 0], sizes = [2, 128], strides = [1, 1]} : vector<2x512xf32> to vector<2x128xf32>
    %cst_260 = arith.constant 5.000000e-01 : f32
    %606 = vector.broadcast %cst_260 : f32 to vector<2x128xf32>
    %607 = arith.mulf %606, %605 : vector<2x128xf32>
    %608 = math.tanh %607 : vector<2x128xf32>
    %cst_261 = arith.constant 1.000000e+00 : f32
    %609 = vector.broadcast %cst_261 : f32 to vector<2x128xf32>
    %610 = arith.addf %608, %609 : vector<2x128xf32>
    %cst_262 = arith.constant 5.000000e-01 : f32
    %611 = vector.broadcast %cst_262 : f32 to vector<2x128xf32>
    %612 = arith.mulf %611, %610 : vector<2x128xf32>
    %613 = vector.extract_strided_slice %604 {offsets = [0, 128], sizes = [2, 128], strides = [1, 1]} : vector<2x512xf32> to vector<2x128xf32>
    %cst_263 = arith.constant 5.000000e-01 : f32
    %614 = vector.broadcast %cst_263 : f32 to vector<2x128xf32>
    %615 = arith.mulf %614, %613 : vector<2x128xf32>
    %616 = math.tanh %615 : vector<2x128xf32>
    %cst_264 = arith.constant 1.000000e+00 : f32
    %617 = vector.broadcast %cst_264 : f32 to vector<2x128xf32>
    %618 = arith.addf %616, %617 : vector<2x128xf32>
    %cst_265 = arith.constant 5.000000e-01 : f32
    %619 = vector.broadcast %cst_265 : f32 to vector<2x128xf32>
    %620 = arith.mulf %619, %618 : vector<2x128xf32>
    %621 = vector.extract_strided_slice %604 {offsets = [0, 256], sizes = [2, 128], strides = [1, 1]} : vector<2x512xf32> to vector<2x128xf32>
    %cst_266 = arith.constant 5.000000e-01 : f32
    %622 = vector.broadcast %cst_266 : f32 to vector<2x128xf32>
    %623 = arith.mulf %622, %621 : vector<2x128xf32>
    %624 = math.tanh %623 : vector<2x128xf32>
    %cst_267 = arith.constant 1.000000e+00 : f32
    %625 = vector.broadcast %cst_267 : f32 to vector<2x128xf32>
    %626 = arith.addf %624, %625 : vector<2x128xf32>
    %cst_268 = arith.constant 5.000000e-01 : f32
    %627 = vector.broadcast %cst_268 : f32 to vector<2x128xf32>
    %628 = arith.mulf %627, %626 : vector<2x128xf32>
    %629 = vector.extract_strided_slice %604 {offsets = [0, 384], sizes = [2, 128], strides = [1, 1]} : vector<2x512xf32> to vector<2x128xf32>
    %630 = math.tanh %629 : vector<2x128xf32>
    %631 = arith.mulf %620, %549 : vector<2x128xf32>
    %632 = arith.mulf %612, %630 : vector<2x128xf32>
    %633 = arith.addf %631, %632 : vector<2x128xf32>
    %634 = math.tanh %633 : vector<2x128xf32>
    %635 = arith.mulf %628, %634 : vector<2x128xf32>
    %c0_269 = arith.constant 0 : index
    %c0_270 = arith.constant 0 : index
    %636 = vector.load %arg4[%c0_269, %c0_270] : memref<128x1024xf32, #tpu.memory_space<vmem>>, vector<128x1024xf32>
    %cst_271 = arith.constant dense<0.000000e+00> : vector<2x1024xf32>
    %637 = tpu.matmul %635, %636, %cst_271 {dimension_numbers = #tpu.dot_dimension_numbers<[1], [0], [0], [1], [0, 0, 1, 1], [], []>} : vector<2x128xf32>, vector<128x1024xf32>, vector<2x1024xf32> -> vector<2x1024xf32>
    %638 = vector.broadcast %1 : vector<1x1024xf32> to vector<2x1024xf32>
    %639 = arith.addf %638, %637 : vector<2x1024xf32>
    %c0_272 = arith.constant 0 : index
    %c0_273 = arith.constant 0 : index
    %640 = vector.load %arg5[%c0_272, %c0_273] : memref<256x1024xf32, #tpu.memory_space<vmem>>, vector<256x1024xf32>
    %cst_274 = arith.constant dense<0.000000e+00> : vector<2x1024xf32>
    %641 = tpu.matmul %589, %640, %cst_274 {dimension_numbers = #tpu.dot_dimension_numbers<[1], [0], [0], [1], [0, 0, 1, 1], [], []>} : vector<2x256xf32>, vector<256x1024xf32>, vector<2x1024xf32> -> vector<2x1024xf32>
    %642 = arith.addf %639, %641 : vector<2x1024xf32>
    %643 = vector.extract_strided_slice %642 {offsets = [0, 0], sizes = [2, 256], strides = [1, 1]} : vector<2x1024xf32> to vector<2x256xf32>
    %cst_275 = arith.constant 5.000000e-01 : f32
    %644 = vector.broadcast %cst_275 : f32 to vector<2x256xf32>
    %645 = arith.mulf %644, %643 : vector<2x256xf32>
    %646 = math.tanh %645 : vector<2x256xf32>
    %cst_276 = arith.constant 1.000000e+00 : f32
    %647 = vector.broadcast %cst_276 : f32 to vector<2x256xf32>
    %648 = arith.addf %646, %647 : vector<2x256xf32>
    %cst_277 = arith.constant 5.000000e-01 : f32
    %649 = vector.broadcast %cst_277 : f32 to vector<2x256xf32>
    %650 = arith.mulf %649, %648 : vector<2x256xf32>
    %651 = vector.extract_strided_slice %642 {offsets = [0, 256], sizes = [2, 256], strides = [1, 1]} : vector<2x1024xf32> to vector<2x256xf32>
    %cst_278 = arith.constant 5.000000e-01 : f32
    %652 = vector.broadcast %cst_278 : f32 to vector<2x256xf32>
    %653 = arith.mulf %652, %651 : vector<2x256xf32>
    %654 = math.tanh %653 : vector<2x256xf32>
    %cst_279 = arith.constant 1.000000e+00 : f32
    %655 = vector.broadcast %cst_279 : f32 to vector<2x256xf32>
    %656 = arith.addf %654, %655 : vector<2x256xf32>
    %cst_280 = arith.constant 5.000000e-01 : f32
    %657 = vector.broadcast %cst_280 : f32 to vector<2x256xf32>
    %658 = arith.mulf %657, %656 : vector<2x256xf32>
    %659 = vector.extract_strided_slice %642 {offsets = [0, 512], sizes = [2, 256], strides = [1, 1]} : vector<2x1024xf32> to vector<2x256xf32>
    %cst_281 = arith.constant 5.000000e-01 : f32
    %660 = vector.broadcast %cst_281 : f32 to vector<2x256xf32>
    %661 = arith.mulf %660, %659 : vector<2x256xf32>
    %662 = math.tanh %661 : vector<2x256xf32>
    %cst_282 = arith.constant 1.000000e+00 : f32
    %663 = vector.broadcast %cst_282 : f32 to vector<2x256xf32>
    %664 = arith.addf %662, %663 : vector<2x256xf32>
    %cst_283 = arith.constant 5.000000e-01 : f32
    %665 = vector.broadcast %cst_283 : f32 to vector<2x256xf32>
    %666 = arith.mulf %665, %664 : vector<2x256xf32>
    %667 = vector.extract_strided_slice %642 {offsets = [0, 768], sizes = [2, 256], strides = [1, 1]} : vector<2x1024xf32> to vector<2x256xf32>
    %668 = math.tanh %667 : vector<2x256xf32>
    %669 = arith.mulf %658, %587 : vector<2x256xf32>
    %670 = arith.mulf %650, %668 : vector<2x256xf32>
    %671 = arith.addf %669, %670 : vector<2x256xf32>
    %672 = math.tanh %671 : vector<2x256xf32>
    %673 = arith.mulf %666, %672 : vector<2x256xf32>
    %674 = arith.index_cast %c7_i32 : i32 to index
    %c0_284 = arith.constant 0 : index
    %c0_285 = arith.constant 0 : index
    %675 = vector.load %arg7[%674, %c0_284, %c0_285] : memref<8x256x512xf32, #tpu.memory_space<vmem>>, vector<1x256x512xf32>
    %676 = vector.shape_cast %675 : vector<1x256x512xf32> to vector<256x512xf32>
    %cst_286 = arith.constant dense<0.000000e+00> : vector<2x512xf32>
    %677 = tpu.matmul %673, %676, %cst_286 {dimension_numbers = #tpu.dot_dimension_numbers<[1], [0], [0], [1], [0, 0, 1, 1], [], []>} : vector<2x256xf32>, vector<256x512xf32>, vector<2x512xf32> -> vector<2x512xf32>
    %678 = arith.addf %594, %677 : vector<2x512xf32>
    %c8_i32 = arith.constant 8 : i32
    %c0_287 = arith.constant 0 : index
    %c0_288 = arith.constant 0 : index
    %679 = vector.load %arg8[%c0_287, %c0_288] : memref<1x512xf32, #tpu.memory_space<vmem>>, vector<1x512xf32>
    %680 = vector.broadcast %679 : vector<1x512xf32> to vector<2x512xf32>
    %681 = arith.addf %678, %680 : vector<2x512xf32>
    %cst_289 = arith.constant 0.000000e+00 : f32
    %682 = vector.broadcast %cst_289 : f32 to vector<2x512xf32>
    %683 = arith.maximumf %681, %682 : vector<2x512xf32>
    %c0_290 = arith.constant 0 : index
    %c0_291 = arith.constant 0 : index
    %684 = vector.load %arg9[%c0_290, %c0_291] : memref<512x4xf32, #tpu.memory_space<vmem>>, vector<512x4xf32>
    %cst_292 = arith.constant dense<0.000000e+00> : vector<2x4xf32>
    %685 = tpu.matmul %683, %684, %cst_292 {dimension_numbers = #tpu.dot_dimension_numbers<[1], [0], [0], [1], [0, 0, 1, 1], [], []>} : vector<2x512xf32>, vector<512x4xf32>, vector<2x4xf32> -> vector<2x4xf32>
    %c0_293 = arith.constant 0 : index
    %c0_294 = arith.constant 0 : index
    %686 = vector.load %arg10[%c0_293, %c0_294] : memref<1x4xf32, #tpu.memory_space<vmem>>, vector<1x4xf32>
    %687 = vector.broadcast %686 : vector<1x4xf32> to vector<2x4xf32>
    %688 = arith.addf %685, %687 : vector<2x4xf32>
    %689 = tpu.iota {dimensions = array<i32: 1>} : vector<2x4xi32>
    %c2_i32_295 = arith.constant 2 : i32
    %690 = vector.broadcast %c2_i32_295 : i32 to vector<2x4xi32>
    %691 = arith.cmpi slt, %689, %690 : vector<2x4xi32>
    %cst_296 = arith.constant 5.000000e-01 : f32
    %692 = vector.broadcast %cst_296 : f32 to vector<2x4xf32>
    %693 = arith.mulf %692, %688 : vector<2x4xf32>
    %694 = math.tanh %693 : vector<2x4xf32>
    %cst_297 = arith.constant 1.000000e+00 : f32
    %695 = vector.broadcast %cst_297 : f32 to vector<2x4xf32>
    %696 = arith.addf %694, %695 : vector<2x4xf32>
    %cst_298 = arith.constant 5.000000e-01 : f32
    %697 = vector.broadcast %cst_298 : f32 to vector<2x4xf32>
    %698 = arith.mulf %697, %696 : vector<2x4xf32>
    %699 = arith.select %691, %688, %698 : vector<2x4xi1>, vector<2x4xf32>
    %c0_299 = arith.constant 0 : index
    %c0_300 = arith.constant 0 : index
    %700 = vector.load %arg11[%c0_299, %c0_300] : memref<2x4xf32, #tpu.memory_space<vmem>>, vector<2x4xf32>
    tpu.vector_store %arg11[%c0_299, %c0_300], %699 {strides = array<i32>} : memref<2x4xf32, #tpu.memory_space<vmem>>, vector<2x4xf32>,
    return
  }
}

</mosaic_0001>

<llo_original>
// kernel: modified_seismic_convlstm.1
$region0: #{modified_seismic_convlstm.1}
  #allocation0 [shape = 'u32[]', space=smem, size = 0x4, offset = 0x4, fixed_abs, tag = 'smem constant byte address 0x4 - core index']
  #allocation1 [shape = 'u32[72,128]{1,0:T(1,128)}', space=vmem, size = 0x9000, scoped, tag = 'internal scratch']
  %s0 = inlined_call_operand.vmem [shape: f32[8,2,16], index: 0, kind: input, shape index: {}]
  %s1 = inlined_call_operand.vmem [shape: f32[16,512], index: 1, kind: input, shape index: {}]
  %s2 = inlined_call_operand.vmem [shape: f32[128,512], index: 2, kind: input, shape index: {}]
  %s3 = inlined_call_operand.vmem [shape: f32[1,512], index: 3, kind: input, shape index: {}]
  %s4 = inlined_call_operand.vmem [shape: f32[128,1024], index: 4, kind: input, shape index: {}]
  %s5 = inlined_call_operand.vmem [shape: f32[256,1024], index: 5, kind: input, shape index: {}]
  %s6 = inlined_call_operand.vmem [shape: f32[1,1024], index: 6, kind: input, shape index: {}]
  %s7 = inlined_call_operand.vmem [shape: f32[8,256,512], index: 7, kind: input, shape index: {}]
  %s8 = inlined_call_operand.vmem [shape: f32[1,512], index: 8, kind: input, shape index: {}]
  %s9 = inlined_call_operand.vmem [shape: f32[512,4], index: 9, kind: input, shape index: {}]
  %s10 = inlined_call_operand.vmem [shape: f32[1,4], index: 10, kind: input, shape index: {}]
  %s11 = inlined_call_operand.hbm [shape: f32[2,4], index: 11, kind: output, shape index: {}]
  %s12 = sld [smem:[#allocation0]]
  $region54: #{modified_seismic_convlstm.1} parent=0
    _
  %s14 = ssub.s32 1, %s12
  %s15 = scalar_select 0, %s14, %s12
  $region1: #{modified_seismic_convlstm.1} parent=0
    #allocation2 [shape = 'u8[1024]{0}', space=vmem, size = 0x400, scoped, tag = 'output window, operand 0, single buffered']
    #allocation3 [shape = 's32[1]{0}', space=sflag, size = 0x4, scoped, tag = 'scoped memory for modified_seismic_convlstm.1']
    %16 = vsyncpa [#allocation3], 0
    // Predicated region
    $region2: #{modified_seismic_convlstm.1} parent=1 // pred_check
      _
    $region3: #{modified_seismic_convlstm.1} parent=1 // pred_check_branch
      %18 = sbr.rel (0) target = $region5
    $region4: #{modified_seismic_convlstm.1} parent=1 // pred_region
      _
    $region5: #{modified_seismic_convlstm.1} parent=1 // pred_fallthru
      _
    // Predicated region
    $region6: #{modified_seismic_convlstm.1} parent=1 // pred_check
      _
    $region7: #{modified_seismic_convlstm.1} parent=1 // pred_check_branch
      %20 = sbr.rel (0) target = $region9
    $region8: #{modified_seismic_convlstm.1} parent=1 // pred_region
      _
    $region9: #{modified_seismic_convlstm.1} parent=1 // pred_fallthru
      _
    // Predicated region
    $region10: #{modified_seismic_convlstm.1} parent=1 // pred_check
      _
    $region11: #{modified_seismic_convlstm.1} parent=1 // pred_check_branch
      %22 = sbr.rel (0) target = $region13
    $region12: #{modified_seismic_convlstm.1} parent=1 // pred_region
      _
    $region13: #{modified_seismic_convlstm.1} parent=1 // pred_fallthru
      _
    // Predicated region
    $region14: #{modified_seismic_convlstm.1} parent=1 // pred_check
      _
    $region15: #{modified_seismic_convlstm.1} parent=1 // pred_check_branch
      %24 = sbr.rel (0) target = $region17
    $region16: #{modified_seismic_convlstm.1} parent=1 // pred_region
      _
    $region17: #{modified_seismic_convlstm.1} parent=1 // pred_fallthru
      _
    // Predicated region
    $region18: #{modified_seismic_convlstm.1} parent=1 // pred_check
      _
    $region19: #{modified_seismic_convlstm.1} parent=1 // pred_check_branch
      %26 = sbr.rel (0) target = $region21
    $region20: #{modified_seismic_convlstm.1} parent=1 // pred_region
      _
    $region21: #{modified_seismic_convlstm.1} parent=1 // pred_fallthru
      _
    // Predicated region
    $region22: #{modified_seismic_convlstm.1} parent=1 // pred_check
      _
    $region23: #{modified_seismic_convlstm.1} parent=1 // pred_check_branch
      %28 = sbr.rel (0) target = $region25
    $region24: #{modified_seismic_convlstm.1} parent=1 // pred_region
      _
    $region25: #{modified_seismic_convlstm.1} parent=1 // pred_fallthru
      _
    // Predicated region
    $region26: #{modified_seismic_convlstm.1} parent=1 // pred_check
      _
    $region27: #{modified_seismic_convlstm.1} parent=1 // pred_check_branch
      %30 = sbr.rel (0) target = $region29
    $region28: #{modified_seismic_convlstm.1} parent=1 // pred_region
      _
    $region29: #{modified_seismic_convlstm.1} parent=1 // pred_fallthru
      _
    // Predicated region
    $region30: #{modified_seismic_convlstm.1} parent=1 // pred_check
      _
    $region31: #{modified_seismic_convlstm.1} parent=1 // pred_check_branch
      %32 = sbr.rel (0) target = $region33
    $region32: #{modified_seismic_convlstm.1} parent=1 // pred_region
      _
    $region33: #{modified_seismic_convlstm.1} parent=1 // pred_fallthru
      _
    // Predicated region
    $region34: #{modified_seismic_convlstm.1} parent=1 // pred_check
      _
    $region35: #{modified_seismic_convlstm.1} parent=1 // pred_check_branch
      %34 = sbr.rel (0) target = $region37
    $region36: #{modified_seismic_convlstm.1} parent=1 // pred_region
      _
    $region37: #{modified_seismic_convlstm.1} parent=1 // pred_fallthru
      _
    // Predicated region
    $region38: #{modified_seismic_convlstm.1} parent=1 // pred_check
      _
    $region39: #{modified_seismic_convlstm.1} parent=1 // pred_check_branch
      %36 = sbr.rel (0) target = $region41
    $region40: #{modified_seismic_convlstm.1} parent=1 // pred_region
      _
    $region41: #{modified_seismic_convlstm.1} parent=1 // pred_fallthru
      _
    // Predicated region
    $region42: #{modified_seismic_convlstm.1} parent=1 // pred_check
      _
    $region43: #{modified_seismic_convlstm.1} parent=1 // pred_check_branch
      %38 = sbr.rel (0) target = $region45
    $region44: #{modified_seismic_convlstm.1} parent=1 // pred_region
      _
    $region45: #{modified_seismic_convlstm.1} parent=1 // pred_fallthru
      _
    %v39 = vld [vmem:[%s3] sm:$0xf]
    %v40 = vld [vmem:[%s6] sm:$0xff]
    %v41 = vld [vmem:[%s0] sm:$0x3]
    %v42 = vld [vmem:[%s1] sm:$0xff]
    %v43 = vld [vmem:[%s1 + $0x8] sm:$0xff]
    %v44 = vld [vmem:[%s1 + $0x10] sm:$0xff]
    %v45 = vld [vmem:[%s1 + $0x18] sm:$0xff]
    %v46 = vld [vmem:[%s1 + $0x20] sm:$0xff]
    %v47 = vld [vmem:[%s1 + $0x28] sm:$0xff]
    %v48 = vld [vmem:[%s1 + $0x30] sm:$0xff]
    %v49 = vld [vmem:[%s1 + $0x38] sm:$0xff]
    %vm50 = vcmask 130048
    %v52 = vsel %vm50, %v41, 0
    %54 = vmatpush.msra.mxu0 0.0
    %55 = vmatpush.msra.mxu0 0.0
    %56 = vmatpush.msra.mxu0 0.0
    %57 = vmatpush.msra.mxu0 0.0
    %58 = vmatpush.msra.mxu0 0.0
    %59 = vmatpush.msra.mxu0 0.0
    %60 = vmatpush.msra.mxu0 0.0
    %61 = vmatpush.msra.mxu0 0.0
    %62 = vmatpush.msra.mxu0 0.0
    %63 = vmatpush.msra.mxu0 0.0
    %64 = vmatpush.msra.mxu0 0.0
    %65 = vmatpush.msra.mxu0 0.0
    %66 = vmatpush.msra.mxu0 0.0
    %67 = vmatpush.msra.mxu0 0.0
    %68 = vmatpush.msra.mxu0 %v46
    %69 = vmatpush.msra.mxu0 %v42
    %70 = vmatmul.f32.gmra.mxu0 %v52
    %v71 = vpop.f32.mrf.mxu0
    %v72 = vadd.f32 0.0, %v71
    %73 = vdwg.mxu0
    %74 = vmatpush.msra.mxu0 0.0
    %75 = vmatpush.msra.mxu0 0.0
    %76 = vmatpush.msra.mxu0 0.0
    %77 = vmatpush.msra.mxu0 0.0
    %78 = vmatpush.msra.mxu0 0.0
    %79 = vmatpush.msra.mxu0 0.0
    %80 = vmatpush.msra.mxu0 0.0
    %81 = vmatpush.msra.mxu0 0.0
    %82 = vmatpush.msra.mxu0 0.0
    %83 = vmatpush.msra.mxu0 0.0
    %84 = vmatpush.msra.mxu0 0.0
    %85 = vmatpush.msra.mxu0 0.0
    %86 = vmatpush.msra.mxu0 0.0
    %87 = vmatpush.msra.mxu0 0.0
    %88 = vmatpush.msra.mxu0 %v47
    %89 = vmatpush.msra.mxu0 %v43
    %90 = vmatmul.f32.gmra.mxu0 %v52
    %v91 = vpop.f32.mrf.mxu0
    %v92 = vadd.f32 0.0, %v91
    %93 = vdwg.mxu0
    %94 = vmatpush.msra.mxu0 0.0
    %95 = vmatpush.msra.mxu0 0.0
    %96 = vmatpush.msra.mxu0 0.0
    %97 = vmatpush.msra.mxu0 0.0
    %98 = vmatpush.msra.mxu0 0.0
    %99 = vmatpush.msra.mxu0 0.0
    %100 = vmatpush.msra.mxu0 0.0
    %101 = vmatpush.msra.mxu0 0.0
    %102 = vmatpush.msra.mxu0 0.0
    %103 = vmatpush.msra.mxu0 0.0
    %104 = vmatpush.msra.mxu0 0.0
    %105 = vmatpush.msra.mxu0 0.0
    %106 = vmatpush.msra.mxu0 0.0
    %107 = vmatpush.msra.mxu0 0.0
    %108 = vmatpush.msra.mxu0 %v48
    %109 = vmatpush.msra.mxu0 %v44
    %110 = vmatmul.f32.gmra.mxu0 %v52
    %v111 = vpop.f32.mrf.mxu0
    %v112 = vadd.f32 0.0, %v111
    %113 = vdwg.mxu0
    %114 = vmatpush.msra.mxu0 0.0
    %115 = vmatpush.msra.mxu0 0.0
    %116 = vmatpush.msra.mxu0 0.0
    %117 = vmatpush.msra.mxu0 0.0
    %118 = vmatpush.msra.mxu0 0.0
    %119 = vmatpush.msra.mxu0 0.0
    %120 = vmatpush.msra.mxu0 0.0
    %121 = vmatpush.msra.mxu0 0.0
    %122 = vmatpush.msra.mxu0 0.0
    %123 = vmatpush.msra.mxu0 0.0
    %124 = vmatpush.msra.mxu0 0.0
    %125 = vmatpush.msra.mxu0 0.0
    %126 = vmatpush.msra.mxu0 0.0
    %127 = vmatpush.msra.mxu0 0.0
    %128 = vmatpush.msra.mxu0 %v49
    %129 = vmatpush.msra.mxu0 %v45
    %130 = vmatmul.f32.gmra.mxu0 %v52
    %v131 = vpop.f32.mrf.mxu0
    %v132 = vadd.f32 0.0, %v131
    %133 = vdwg.mxu0
    %v135 = vperm.slane %v39, 0
    %v136 = vperm.slane %v39, 1
    %v137 = vperm.slane %v39, 2
    %v138 = vperm.slane %v39, 3
    %v143 = vadd.f32 %v135, %v72
    %v144 = vadd.f32 %v136, %v92
    %v145 = vadd.f32 %v137, %v112
    %v146 = vadd.f32 %v138, %v132
    %v147 = vld [vmem:[%s2] sm:$0xff]
    %v148 = vld [vmem:[%s2 + $0x8] sm:$0xff]
    %v149 = vld [vmem:[%s2 + $0x10] sm:$0xff]
    %v150 = vld [vmem:[%s2 + $0x18] sm:$0xff]
    %v151 = vld [vmem:[%s2 + $0x20] sm:$0xff]
    %v152 = vld [vmem:[%s2 + $0x28] sm:$0xff]
    %v153 = vld [vmem:[%s2 + $0x30] sm:$0xff]
    %v154 = vld [vmem:[%s2 + $0x38] sm:$0xff]
    %v155 = vld [vmem:[%s2 + $0x40] sm:$0xff]
    %v156 = vld [vmem:[%s2 + $0x48] sm:$0xff]
    %v157 = vld [vmem:[%s2 + $0x50] sm:$0xff]
    %v158 = vld [vmem:[%s2 + $0x58] sm:$0xff]
    %v159 = vld [vmem:[%s2 + $0x60] sm:$0xff]
    %v160 = vld [vmem:[%s2 + $0x68] sm:$0xff]
    %v161 = vld [vmem:[%s2 + $0x70] sm:$0xff]
    %v162 = vld [vmem:[%s2 + $0x78] sm:$0xff]
    %v163 = vld [vmem:[%s2 + $0x80] sm:$0xff]
    %v164 = vld [vmem:[%s2 + $0x88] sm:$0xff]
    %v165 = vld [vmem:[%s2 + $0x90] sm:$0xff]
    %v166 = vld [vmem:[%s2 + $0x98] sm:$0xff]
    %v167 = vld [vmem:[%s2 + $0xa0] sm:$0xff]
    %v168 = vld [vmem:[%s2 + $0xa8] sm:$0xff]
    %v169 = vld [vmem:[%s2 + $0xb0] sm:$0xff]
    %v170 = vld [vmem:[%s2 + $0xb8] sm:$0xff]
    %v171 = vld [vmem:[%s2 + $0xc0] sm:$0xff]
    %v172 = vld [vmem:[%s2 + $0xc8] sm:$0xff]
    %v173 = vld [vmem:[%s2 + $0xd0] sm:$0xff]
    %v174 = vld [vmem:[%s2 + $0xd8] sm:$0xff]
    %v175 = vld [vmem:[%s2 + $0xe0] sm:$0xff]
    %v176 = vld [vmem:[%s2 + $0xe8] sm:$0xff]
    %v177 = vld [vmem:[%s2 + $0xf0] sm:$0xff]
    %v178 = vld [vmem:[%s2 + $0xf8] sm:$0xff]
    %v179 = vld [vmem:[%s2 + $0x100] sm:$0xff]
    %v180 = vld [vmem:[%s2 + $0x108] sm:$0xff]
    %v181 = vld [vmem:[%s2 + $0x110] sm:$0xff]
    %v182 = vld [vmem:[%s2 + $0x118] sm:$0xff]
    %v183 = vld [vmem:[%s2 + $0x120] sm:$0xff]
    %v184 = vld [vmem:[%s2 + $0x128] sm:$0xff]
    %v185 = vld [vmem:[%s2 + $0x130] sm:$0xff]
    %v186 = vld [vmem:[%s2 + $0x138] sm:$0xff]
    %v187 = vld [vmem:[%s2 + $0x140] sm:$0xff]
    %v188 = vld [vmem:[%s2 + $0x148] sm:$0xff]
    %v189 = vld [vmem:[%s2 + $0x150] sm:$0xff]
    %v190 = vld [vmem:[%s2 + $0x158] sm:$0xff]
    %v191 = vld [vmem:[%s2 + $0x160] sm:$0xff]
    %v192 = vld [vmem:[%s2 + $0x168] sm:$0xff]
    %v193 = vld [vmem:[%s2 + $0x170] sm:$0xff]
    %v194 = vld [vmem:[%s2 + $0x178] sm:$0xff]
    %v195 = vld [vmem:[%s2 + $0x180] sm:$0xff]
    %v196 = vld [vmem:[%s2 + $0x188] sm:$0xff]
    %v197 = vld [vmem:[%s2 + $0x190] sm:$0xff]
    %v198 = vld [vmem:[%s2 + $0x198] sm:$0xff]
    %v199 = vld [vmem:[%s2 + $0x1a0] sm:$0xff]
    %v200 = vld [vmem:[%s2 + $0x1a8] sm:$0xff]
    %v201 = vld [vmem:[%s2 + $0x1b0] sm:$0xff]
    %v202 = vld [vmem:[%s2 + $0x1b8] sm:$0xff]
    %v203 = vld [vmem:[%s2 + $0x1c0] sm:$0xff]
    %v204 = vld [vmem:[%s2 + $0x1c8] sm:$0xff]
    %v205 = vld [vmem:[%s2 + $0x1d0] sm:$0xff]
    %v206 = vld [vmem:[%s2 + $0x1d8] sm:$0xff]
    %v207 = vld [vmem:[%s2 + $0x1e0] sm:$0xff]
    %v208 = vld [vmem:[%s2 + $0x1e8] sm:$0xff]
    %v209 = vld [vmem:[%s2 + $0x1f0] sm:$0xff]
    %v210 = vld [vmem:[%s2 + $0x1f8] sm:$0xff]
    %211 = vmatpush.msra.mxu0 %v207
    %212 = vmatpush.msra.mxu0 %v203
    %213 = vmatpush.msra.mxu0 %v199
    %214 = vmatpush.msra.mxu0 %v195
    %215 = vmatpush.msra.mxu0 %v191
    %216 = vmatpush.msra.mxu0 %v187
    %217 = vmatpush.msra.mxu0 %v183
    %218 = vmatpush.msra.mxu0 %v179
    %219 = vmatpush.msra.mxu0 %v175
    %220 = vmatpush.msra.mxu0 %v171
    %221 = vmatpush.msra.mxu0 %v167
    %222 = vmatpush.msra.mxu0 %v163
    %223 = vmatpush.msra.mxu0 %v159
    %224 = vmatpush.msra.mxu0 %v155
    %225 = vmatpush.msra.mxu0 %v151
    %226 = vmatpush.msra.mxu0 %v147
    %227 = vmatmul.f32.gmra.mxu0 0.0
    %v228 = vpop.f32.mrf.mxu0
    %v229 = vadd.f32 0.0, %v228
    %230 = vdwg.mxu0
    %231 = vmatpush.msra.mxu0 %v208
    %232 = vmatpush.msra.mxu0 %v204
    %233 = vmatpush.msra.mxu0 %v200
    %234 = vmatpush.msra.mxu0 %v196
    %235 = vmatpush.msra.mxu0 %v192
    %236 = vmatpush.msra.mxu0 %v188
    %237 = vmatpush.msra.mxu0 %v184
    %238 = vmatpush.msra.mxu0 %v180
    %239 = vmatpush.msra.mxu0 %v176
    %240 = vmatpush.msra.mxu0 %v172
    %241 = vmatpush.msra.mxu0 %v168
    %242 = vmatpush.msra.mxu0 %v164
    %243 = vmatpush.msra.mxu0 %v160
    %244 = vmatpush.msra.mxu0 %v156
    %245 = vmatpush.msra.mxu0 %v152
    %246 = vmatpush.msra.mxu0 %v148
    %247 = vmatmul.f32.gmra.mxu0 0.0
    %v248 = vpop.f32.mrf.mxu0
    %v249 = vadd.f32 0.0, %v248
    %250 = vdwg.mxu0
    %251 = vmatpush.msra.mxu0 %v209
    %252 = vmatpush.msra.mxu0 %v205
    %253 = vmatpush.msra.mxu0 %v201
    %254 = vmatpush.msra.mxu0 %v197
    %255 = vmatpush.msra.mxu0 %v193
    %256 = vmatpush.msra.mxu0 %v189
    %257 = vmatpush.msra.mxu0 %v185
    %258 = vmatpush.msra.mxu0 %v181
    %259 = vmatpush.msra.mxu0 %v177
    %260 = vmatpush.msra.mxu0 %v173
    %261 = vmatpush.msra.mxu0 %v169
    %262 = vmatpush.msra.mxu0 %v165
    %263 = vmatpush.msra.mxu0 %v161
    %264 = vmatpush.msra.mxu0 %v157
    %265 = vmatpush.msra.mxu0 %v153
    %266 = vmatpush.msra.mxu0 %v149
    %267 = vmatmul.f32.gmra.mxu0 0.0
    %v268 = vpop.f32.mrf.mxu0
    %v269 = vadd.f32 0.0, %v268
    %270 = vdwg.mxu0
    %271 = vmatpush.msra.mxu0 %v210
    %272 = vmatpush.msra.mxu0 %v206
    %273 = vmatpush.msra.mxu0 %v202
    %274 = vmatpush.msra.mxu0 %v198
    %275 = vmatpush.msra.mxu0 %v194
    %276 = vmatpush.msra.mxu0 %v190
    %277 = vmatpush.msra.mxu0 %v186
    %278 = vmatpush.msra.mxu0 %v182
    %279 = vmatpush.msra.mxu0 %v178
    %280 = vmatpush.msra.mxu0 %v174
    %281 = vmatpush.msra.mxu0 %v170
    %282 = vmatpush.msra.mxu0 %v166
    %283 = vmatpush.msra.mxu0 %v162
    %284 = vmatpush.msra.mxu0 %v158
    %285 = vmatpush.msra.mxu0 %v154
    %286 = vmatpush.msra.mxu0 %v150
    %287 = vmatmul.f32.gmra.mxu0 0.0
    %v288 = vpop.f32.mrf.mxu0
    %v289 = vadd.f32 0.0, %v288
    %290 = vdwg.mxu0
    %v291 = vadd.f32 %v143, %v229
    %v292 = vadd.f32 %v144, %v249
    %v293 = vadd.f32 %v145, %v269
    %v294 = vadd.f32 %v146, %v289
    %v295 = vmul.f32 %v291, 0.5
    %v296 = vtanh.pop %v295
    %v297 = vadd.f32 %v296, 1.0
    %v298 = vmul.f32 %v297, 0.5
    %v299 = vmul.f32 %v292, 0.5
    %v300 = vtanh.pop %v299
    %v301 = vadd.f32 %v300, 1.0
    %v302 = vmul.f32 %v301, 0.5
    %v303 = vmul.f32 %v293, 0.5
    %v304 = vtanh.pop %v303
    %v305 = vadd.f32 %v304, 1.0
    %v306 = vmul.f32 %v305, 0.5
    %v307 = vtanh.pop %v294
    %v308 = vmul.f32 %v302, 0.0
    %v309 = vmul.f32 %v298, %v307
    %v310 = vadd.f32 %v308, %v309
    %v311 = vtanh.pop %v310
    %v312 = vmul.f32 %v306, %v311
    %v313 = vld [vmem:[%s4] sm:$0xff]
    %v314 = vld [vmem:[%s4 + $0x8] sm:$0xff]
    %v315 = vld [vmem:[%s4 + $0x10] sm:$0xff]
    %v316 = vld [vmem:[%s4 + $0x18] sm:$0xff]
    %v317 = vld [vmem:[%s4 + $0x20] sm:$0xff]
    %v318 = vld [vmem:[%s4 + $0x28] sm:$0xff]
    %v319 = vld [vmem:[%s4 + $0x30] sm:$0xff]
    %v320 = vld [vmem:[%s4 + $0x38] sm:$0xff]
    %v321 = vld [vmem:[%s4 + $0x40] sm:$0xff]
    %v322 = vld [vmem:[%s4 + $0x48] sm:$0xff]
    %v323 = vld [vmem:[%s4 + $0x50] sm:$0xff]
    %v324 = vld [vmem:[%s4 + $0x58] sm:$0xff]
    %v325 = vld [vmem:[%s4 + $0x60] sm:$0xff]
    %v326 = vld [vmem:[%s4 + $0x68] sm:$0xff]
    %v327 = vld [vmem:[%s4 + $0x70] sm:$0xff]
    %v328 = vld [vmem:[%s4 + $0x78] sm:$0xff]
    %v329 = vld [vmem:[%s4 + $0x80] sm:$0xff]
    %v330 = vld [vmem:[%s4 + $0x88] sm:$0xff]
    %v331 = vld [vmem:[%s4 + $0x90] sm:$0xff]
    %v332 = vld [vmem:[%s4 + $0x98] sm:$0xff]
    %v333 = vld [vmem:[%s4 + $0xa0] sm:$0xff]
    %v334 = vld [vmem:[%s4 + $0xa8] sm:$0xff]
    %v335 = vld [vmem:[%s4 + $0xb0] sm:$0xff]
    %v336 = vld [vmem:[%s4 + $0xb8] sm:$0xff]
    %v337 = vld [vmem:[%s4 + $0xc0] sm:$0xff]
    %v338 = vld [vmem:[%s4 + $0xc8] sm:$0xff]
    %v339 = vld [vmem:[%s4 + $0xd0] sm:$0xff]
    %v340 = vld [vmem:[%s4 + $0xd8] sm:$0xff]
    %v341 = vld [vmem:[%s4 + $0xe0] sm:$0xff]
    %v342 = vld [vmem:[%s4 + $0xe8] sm:$0xff]
    %v343 = vld [vmem:[%s4 + $0xf0] sm:$0xff]
    %v344 = vld [vmem:[%s4 + $0xf8] sm:$0xff]
    %v345 = vld [vmem:[%s4 + $0x100] sm:$0xff]
    %v346 = vld [vmem:[%s4 + $0x108] sm:$0xff]
    %v347 = vld [vmem:[%s4 + $0x110] sm:$0xff]
    %v348 = vld [vmem:[%s4 + $0x118] sm:$0xff]
    %v349 = vld [vmem:[%s4 + $0x120] sm:$0xff]
    %v350 = vld [vmem:[%s4 + $0x128] sm:$0xff]
    %v351 = vld [vmem:[%s4 + $0x130] sm:$0xff]
    %v352 = vld [vmem:[%s4 + $0x138] sm:$0xff]
    %v353 = vld [vmem:[%s4 + $0x140] sm:$0xff]
    %v354 = vld [vmem:[%s4 + $0x148] sm:$0xff]
    %v355 = vld [vmem:[%s4 + $0x150] sm:$0xff]
    %v356 = vld [vmem:[%s4 + $0x158] sm:$0xff]
    %v357 = vld [vmem:[%s4 + $0x160] sm:$0xff]
    %v358 = vld [vmem:[%s4 + $0x168] sm:$0xff]
    %v359 = vld [vmem:[%s4 + $0x170] sm:$0xff]
    %v360 = vld [vmem:[%s4 + $0x178] sm:$0xff]
    %v361 = vld [vmem:[%s4 + $0x180] sm:$0xff]
    %v362 = vld [vmem:[%s4 + $0x188] sm:$0xff]
    %v363 = vld [vmem:[%s4 + $0x190] sm:$0xff]
    %v364 = vld [vmem:[%s4 + $0x198] sm:$0xff]
    %v365 = vld [vmem:[%s4 + $0x1a0] sm:$0xff]
    %v366 = vld [vmem:[%s4 + $0x1a8] sm:$0xff]
    %v367 = vld [vmem:[%s4 + $0x1b0] sm:$0xff]
    %v368 = vld [vmem:[%s4 + $0x1b8] sm:$0xff]
    %v369 = vld [vmem:[%s4 + $0x1c0] sm:$0xff]
    %v370 = vld [vmem:[%s4 + $0x1c8] sm:$0xff]
    %v371 = vld [vmem:[%s4 + $0x1d0] sm:$0xff]
    %v372 = vld [vmem:[%s4 + $0x1d8] sm:$0xff]
    %v373 = vld [vmem:[%s4 + $0x1e0] sm:$0xff]
    %v374 = vld [vmem:[%s4 + $0x1e8] sm:$0xff]
    %v375 = vld [vmem:[%s4 + $0x1f0] sm:$0xff]
    %v376 = vld [vmem:[%s4 + $0x1f8] sm:$0xff]
    %v377 = vld [vmem:[%s4 + $0x200] sm:$0xff]
    %v378 = vld [vmem:[%s4 + $0x208] sm:$0xff]
    %v379 = vld [vmem:[%s4 + $0x210] sm:$0xff]
    %v380 = vld [vmem:[%s4 + $0x218] sm:$0xff]
    %v381 = vld [vmem:[%s4 + $0x220] sm:$0xff]
    %v382 = vld [vmem:[%s4 + $0x228] sm:$0xff]
    %v383 = vld [vmem:[%s4 + $0x230] sm:$0xff]
    %v384 = vld [vmem:[%s4 + $0x238] sm:$0xff]
    %v385 = vld [vmem:[%s4 + $0x240] sm:$0xff]
    %v386 = vld [vmem:[%s4 + $0x248] sm:$0xff]
    %v387 = vld [vmem:[%s4 + $0x250] sm:$0xff]
    %v388 = vld [vmem:[%s4 + $0x258] sm:$0xff]
    %v389 = vld [vmem:[%s4 + $0x260] sm:$0xff]
    %v390 = vld [vmem:[%s4 + $0x268] sm:$0xff]
    %v391 = vld [vmem:[%s4 + $0x270] sm:$0xff]
    %v392 = vld [vmem:[%s4 + $0x278] sm:$0xff]
    %v393 = vld [vmem:[%s4 + $0x280] sm:$0xff]
    %v394 = vld [vmem:[%s4 + $0x288] sm:$0xff]
    %v395 = vld [vmem:[%s4 + $0x290] sm:$0xff]
    %v396 = vld [vmem:[%s4 + $0x298] sm:$0xff]
    %v397 = vld [vmem:[%s4 + $0x2a0] sm:$0xff]
    %v398 = vld [vmem:[%s4 + $0x2a8] sm:$0xff]
    %v399 = vld [vmem:[%s4 + $0x2b0] sm:$0xff]
    %v400 = vld [vmem:[%s4 + $0x2b8] sm:$0xff]
    %v401 = vld [vmem:[%s4 + $0x2c0] sm:$0xff]
    %v402 = vld [vmem:[%s4 + $0x2c8] sm:$0xff]
    %v403 = vld [vmem:[%s4 + $0x2d0] sm:$0xff]
    %v404 = vld [vmem:[%s4 + $0x2d8] sm:$0xff]
    %v405 = vld [vmem:[%s4 + $0x2e0] sm:$0xff]
    %v406 = vld [vmem:[%s4 + $0x2e8] sm:$0xff]
    %v407 = vld [vmem:[%s4 + $0x2f0] sm:$0xff]
    %v408 = vld [vmem:[%s4 + $0x2f8] sm:$0xff]
    %v409 = vld [vmem:[%s4 + $0x300] sm:$0xff]
    %v410 = vld [vmem:[%s4 + $0x308] sm:$0xff]
    %v411 = vld [vmem:[%s4 + $0x310] sm:$0xff]
    %v412 = vld [vmem:[%s4 + $0x318] sm:$0xff]
    %v413 = vld [vmem:[%s4 + $0x320] sm:$0xff]
    %v414 = vld [vmem:[%s4 + $0x328] sm:$0xff]
    %v415 = vld [vmem:[%s4 + $0x330] sm:$0xff]
    %v416 = vld [vmem:[%s4 + $0x338] sm:$0xff]
    %v417 = vld [vmem:[%s4 + $0x340] sm:$0xff]
    %v418 = vld [vmem:[%s4 + $0x348] sm:$0xff]
    %v419 = vld [vmem:[%s4 + $0x350] sm:$0xff]
    %v420 = vld [vmem:[%s4 + $0x358] sm:$0xff]
    %v421 = vld [vmem:[%s4 + $0x360] sm:$0xff]
    %v422 = vld [vmem:[%s4 + $0x368] sm:$0xff]
    %v423 = vld [vmem:[%s4 + $0x370] sm:$0xff]
    %v424 = vld [vmem:[%s4 + $0x378] sm:$0xff]
    %v425 = vld [vmem:[%s4 + $0x380] sm:$0xff]
    %v426 = vld [vmem:[%s4 + $0x388] sm:$0xff]
    %v427 = vld [vmem:[%s4 + $0x390] sm:$0xff]
    %v428 = vld [vmem:[%s4 + $0x398] sm:$0xff]
    %v429 = vld [vmem:[%s4 + $0x3a0] sm:$0xff]
    %v430 = vld [vmem:[%s4 + $0x3a8] sm:$0xff]
    %v431 = vld [vmem:[%s4 + $0x3b0] sm:$0xff]
    %v432 = vld [vmem:[%s4 + $0x3b8] sm:$0xff]
    %v433 = vld [vmem:[%s4 + $0x3c0] sm:$0xff]
    %v434 = vld [vmem:[%s4 + $0x3c8] sm:$0xff]
    %v435 = vld [vmem:[%s4 + $0x3d0] sm:$0xff]
    %v436 = vld [vmem:[%s4 + $0x3d8] sm:$0xff]
    %v437 = vld [vmem:[%s4 + $0x3e0] sm:$0xff]
    %v438 = vld [vmem:[%s4 + $0x3e8] sm:$0xff]
    %v439 = vld [vmem:[%s4 + $0x3f0] sm:$0xff]
    %v440 = vld [vmem:[%s4 + $0x3f8] sm:$0xff]
    %441 = vmatpush.msra.mxu0 %v433
    %442 = vmatpush.msra.mxu0 %v425
    %443 = vmatpush.msra.mxu0 %v417
    %444 = vmatpush.msra.mxu0 %v409
    %445 = vmatpush.msra.mxu0 %v401
    %446 = vmatpush.msra.mxu0 %v393
    %447 = vmatpush.msra.mxu0 %v385
    %448 = vmatpush.msra.mxu0 %v377
    %449 = vmatpush.msra.mxu0 %v369
    %450 = vmatpush.msra.mxu0 %v361
    %451 = vmatpush.msra.mxu0 %v353
    %452 = vmatpush.msra.mxu0 %v345
    %453 = vmatpush.msra.mxu0 %v337
    %454 = vmatpush.msra.mxu0 %v329
    %455 = vmatpush.msra.mxu0 %v321
    %456 = vmatpush.msra.mxu0 %v313
    %457 = vmatmul.f32.gmra.mxu0 %v312
    %v458 = vpop.f32.mrf.mxu0
    %v459 = vadd.f32 0.0, %v458
    %460 = vdwg.mxu0
    %461 = vmatpush.msra.mxu0 %v434
    %462 = vmatpush.msra.mxu0 %v426
    %463 = vmatpush.msra.mxu0 %v418
    %464 = vmatpush.msra.mxu0 %v410
    %465 = vmatpush.msra.mxu0 %v402
    %466 = vmatpush.msra.mxu0 %v394
    %467 = vmatpush.msra.mxu0 %v386
    %468 = vmatpush.msra.mxu0 %v378
    %469 = vmatpush.msra.mxu0 %v370
    %470 = vmatpush.msra.mxu0 %v362
    %471 = vmatpush.msra.mxu0 %v354
    %472 = vmatpush.msra.mxu0 %v346
    %473 = vmatpush.msra.mxu0 %v338
    %474 = vmatpush.msra.mxu0 %v330
    %475 = vmatpush.msra.mxu0 %v322
    %476 = vmatpush.msra.mxu0 %v314
    %477 = vmatmul.f32.gmra.mxu0 %v312
    %v478 = vpop.f32.mrf.mxu0
    %v479 = vadd.f32 0.0, %v478
    %480 = vdwg.mxu0
    %481 = vmatpush.msra.mxu0 %v435
    %482 = vmatpush.msra.mxu0 %v427
    %483 = vmatpush.msra.mxu0 %v419
    %484 = vmatpush.msra.mxu0 %v411
    %485 = vmatpush.msra.mxu0 %v403
    %486 = vmatpush.msra.mxu0 %v395
    %487 = vmatpush.msra.mxu0 %v387
    %488 = vmatpush.msra.mxu0 %v379
    %489 = vmatpush.msra.mxu0 %v371
    %490 = vmatpush.msra.mxu0 %v363
    %491 = vmatpush.msra.mxu0 %v355
    %492 = vmatpush.msra.mxu0 %v347
    %493 = vmatpush.msra.mxu0 %v339
    %494 = vmatpush.msra.mxu0 %v331
    %495 = vmatpush.msra.mxu0 %v323
    %496 = vmatpush.msra.mxu0 %v315
    %497 = vmatmul.f32.gmra.mxu0 %v312
    %v498 = vpop.f32.mrf.mxu0
    %v499 = vadd.f32 0.0, %v498
    %500 = vdwg.mxu0
    %501 = vmatpush.msra.mxu0 %v436
    %502 = vmatpush.msra.mxu0 %v428
    %503 = vmatpush.msra.mxu0 %v420
    %504 = vmatpush.msra.mxu0 %v412
    %505 = vmatpush.msra.mxu0 %v404
    %506 = vmatpush.msra.mxu0 %v396
    %507 = vmatpush.msra.mxu0 %v388
    %508 = vmatpush.msra.mxu0 %v380
    %509 = vmatpush.msra.mxu0 %v372
    %510 = vmatpush.msra.mxu0 %v364
    %511 = vmatpush.msra.mxu0 %v356
    %512 = vmatpush.msra.mxu0 %v348
    %513 = vmatpush.msra.mxu0 %v340
    %514 = vmatpush.msra.mxu0 %v332
    %515 = vmatpush.msra.mxu0 %v324
    %516 = vmatpush.msra.mxu0 %v316
    %517 = vmatmul.f32.gmra.mxu0 %v312
    %v518 = vpop.f32.mrf.mxu0
    %v519 = vadd.f32 0.0, %v518
    %520 = vdwg.mxu0
    %521 = vmatpush.msra.mxu0 %v437
    %522 = vmatpush.msra.mxu0 %v429
    %523 = vmatpush.msra.mxu0 %v421
    %524 = vmatpush.msra.mxu0 %v413
    %525 = vmatpush.msra.mxu0 %v405
    %526 = vmatpush.msra.mxu0 %v397
    %527 = vmatpush.msra.mxu0 %v389
    %528 = vmatpush.msra.mxu0 %v381
    %529 = vmatpush.msra.mxu0 %v373
    %530 = vmatpush.msra.mxu0 %v365
    %531 = vmatpush.msra.mxu0 %v357
    %532 = vmatpush.msra.mxu0 %v349
    %533 = vmatpush.msra.mxu0 %v341
    %534 = vmatpush.msra.mxu0 %v333
    %535 = vmatpush.msra.mxu0 %v325
    %536 = vmatpush.msra.mxu0 %v317
    %537 = vmatmul.f32.gmra.mxu0 %v312
    %v538 = vpop.f32.mrf.mxu0
    %v539 = vadd.f32 0.0, %v538
    %540 = vdwg.mxu0
    %541 = vmatpush.msra.mxu0 %v438
    %542 = vmatpush.msra.mxu0 %v430
    %543 = vmatpush.msra.mxu0 %v422
    %544 = vmatpush.msra.mxu0 %v414
    %545 = vmatpush.msra.mxu0 %v406
    %546 = vmatpush.msra.mxu0 %v398
    %547 = vmatpush.msra.mxu0 %v390
    %548 = vmatpush.msra.mxu0 %v382
    %549 = vmatpush.msra.mxu0 %v374
    %550 = vmatpush.msra.mxu0 %v366
    %551 = vmatpush.msra.mxu0 %v358
    %552 = vmatpush.msra.mxu0 %v350
    %553 = vmatpush.msra.mxu0 %v342
    %554 = vmatpush.msra.mxu0 %v334
    %555 = vmatpush.msra.mxu0 %v326
    %556 = vmatpush.msra.mxu0 %v318
    %557 = vmatmul.f32.gmra.mxu0 %v312
    %v558 = vpop.f32.mrf.mxu0
    %v559 = vadd.f32 0.0, %v558
    %560 = vdwg.mxu0
    %561 = vmatpush.msra.mxu0 %v439
    %562 = vmatpush.msra.mxu0 %v431
    %563 = vmatpush.msra.mxu0 %v423
    %564 = vmatpush.msra.mxu0 %v415
    %565 = vmatpush.msra.mxu0 %v407
    %566 = vmatpush.msra.mxu0 %v399
    %567 = vmatpush.msra.mxu0 %v391
    %568 = vmatpush.msra.mxu0 %v383
    %569 = vmatpush.msra.mxu0 %v375
    %570 = vmatpush.msra.mxu0 %v367
    %571 = vmatpush.msra.mxu0 %v359
    %572 = vmatpush.msra.mxu0 %v351
    %573 = vmatpush.msra.mxu0 %v343
    %574 = vmatpush.msra.mxu0 %v335
    %575 = vmatpush.msra.mxu0 %v327
    %576 = vmatpush.msra.mxu0 %v319
    %577 = vmatmul.f32.gmra.mxu0 %v312
    %v578 = vpop.f32.mrf.mxu0
    %v579 = vadd.f32 0.0, %v578
    %580 = vdwg.mxu0
    %581 = vmatpush.msra.mxu0 %v440
    %582 = vmatpush.msra.mxu0 %v432
    %583 = vmatpush.msra.mxu0 %v424
    %584 = vmatpush.msra.mxu0 %v416
    %585 = vmatpush.msra.mxu0 %v408
    %586 = vmatpush.msra.mxu0 %v400
    %587 = vmatpush.msra.mxu0 %v392
    %588 = vmatpush.msra.mxu0 %v384
    %589 = vmatpush.msra.mxu0 %v376
    %590 = vmatpush.msra.mxu0 %v368
    %591 = vmatpush.msra.mxu0 %v360
    %592 = vmatpush.msra.mxu0 %v352
    %593 = vmatpush.msra.mxu0 %v344
    %594 = vmatpush.msra.mxu0 %v336
    %595 = vmatpush.msra.mxu0 %v328
    %596 = vmatpush.msra.mxu0 %v320
    %597 = vmatmul.f32.gmra.mxu0 %v312
    %v598 = vpop.f32.mrf.mxu0
    %v599 = vadd.f32 0.0, %v598
    %600 = vdwg.mxu0
    %v602 = vperm.slane %v40, 0
    %v603 = vperm.slane %v40, 1
    %v604 = vperm.slane %v40, 2
    %v605 = vperm.slane %v40, 3
    %v606 = vperm.slane %v40, 4
    %v607 = vperm.slane %v40, 5
    %v608 = vperm.slane %v40, 6
    %v609 = vperm.slane %v40, 7
    %v618 = vadd.f32 %v602, %v459
    %v619 = vadd.f32 %v603, %v479
    %v620 = vadd.f32 %v604, %v499
    %v621 = vadd.f32 %v605, %v519
    %v622 = vadd.f32 %v606, %v539
    %v623 = vadd.f32 %v607, %v559
    %v624 = vadd.f32 %v608, %v579
    %v625 = vadd.f32 %v609, %v599
    %v626 = vld [vmem:[%s5] sm:$0xff]
    %v627 = vld [vmem:[%s5 + $0x8] sm:$0xff]
    %v628 = vld [vmem:[%s5 + $0x10] sm:$0xff]
    %v629 = vld [vmem:[%s5 + $0x18] sm:$0xff]
    %v630 = vld [vmem:[%s5 + $0x20] sm:$0xff]
    %v631 = vld [vmem:[%s5 + $0x28] sm:$0xff]
    %v632 = vld [vmem:[%s5 + $0x30] sm:$0xff]
    %v633 = vld [vmem:[%s5 + $0x38] sm:$0xff]
    %v634 = vld [vmem:[%s5 + $0x40] sm:$0xff]
    %v635 = vld [vmem:[%s5 + $0x48] sm:$0xff]
    %v636 = vld [vmem:[%s5 + $0x50] sm:$0xff]
    %v637 = vld [vmem:[%s5 + $0x58] sm:$0xff]
    %v638 = vld [vmem:[%s5 + $0x60] sm:$0xff]
    %v639 = vld [vmem:[%s5 + $0x68] sm:$0xff]
    %v640 = vld [vmem:[%s5 + $0x70] sm:$0xff]
    %v641 = vld [vmem:[%s5 + $0x78] sm:$0xff]
    %v642 = vld [vmem:[%s5 + $0x80] sm:$0xff]
    %v643 = vld [vmem:[%s5 + $0x88] sm:$0xff]
    %v644 = vld [vmem:[%s5 + $0x90] sm:$0xff]
    %v645 = vld [vmem:[%s5 + $0x98] sm:$0xff]
    %v646 = vld [vmem:[%s5 + $0xa0] sm:$0xff]
    %v647 = vld [vmem:[%s5 + $0xa8] sm:$0xff]
    %v648 = vld [vmem:[%s5 + $0xb0] sm:$0xff]
    %v649 = vld [vmem:[%s5 + $0xb8] sm:$0xff]
    %v650 = vld [vmem:[%s5 + $0xc0] sm:$0xff]
    %v651 = vld [vmem:[%s5 + $0xc8] sm:$0xff]
    %v652 = vld [vmem:[%s5 + $0xd0] sm:$0xff]
    %v653 = vld [vmem:[%s5 + $0xd8] sm:$0xff]
    %v654 = vld [vmem:[%s5 + $0xe0] sm:$0xff]
    %v655 = vld [vmem:[%s5 + $0xe8] sm:$0xff]
    %v656 = vld [vmem:[%s5 + $0xf0] sm:$0xff]
    %v657 = vld [vmem:[%s5 + $0xf8] sm:$0xff]
    %v658 = vld [vmem:[%s5 + $0x100] sm:$0xff]
    %v659 = vld [vmem:[%s5 + $0x108] sm:$0xff]
    %v660 = vld [vmem:[%s5 + $0x110] sm:$0xff]
    %v661 = vld [vmem:[%s5 + $0x118] sm:$0xff]
    %v662 = vld [vmem:[%s5 + $0x120] sm:$0xff]
    %v663 = vld [vmem:[%s5 + $0x128] sm:$0xff]
    %v664 = vld [vmem:[%s5 + $0x130] sm:$0xff]
    %v665 = vld [vmem:[%s5 + $0x138] sm:$0xff]
    %v666 = vld [vmem:[%s5 + $0x140] sm:$0xff]
    %v667 = vld [vmem:[%s5 + $0x148] sm:$0xff]
    %v668 = vld [vmem:[%s5 + $0x150] sm:$0xff]
    %v669 = vld [vmem:[%s5 + $0x158] sm:$0xff]
    %v670 = vld [vmem:[%s5 + $0x160] sm:$0xff]
    %v671 = vld [vmem:[%s5 + $0x168] sm:$0xff]
    %v672 = vld [vmem:[%s5 + $0x170] sm:$0xff]
    %v673 = vld [vmem:[%s5 + $0x178] sm:$0xff]
    %v674 = vld [vmem:[%s5 + $0x180] sm:$0xff]
    %v675 = vld [vmem:[%s5 + $0x188] sm:$0xff]
    %v676 = vld [vmem:[%s5 + $0x190] sm:$0xff]
    %v677 = vld [vmem:[%s5 + $0x198] sm:$0xff]
    %v678 = vld [vmem:[%s5 + $0x1a0] sm:$0xff]
    %v679 = vld [vmem:[%s5 + $0x1a8] sm:$0xff]
    %v680 = vld [vmem:[%s5 + $0x1b0] sm:$0xff]
    %v681 = vld [vmem:[%s5 + $0x1b8] sm:$0xff]
    %v682 = vld [vmem:[%s5 + $0x1c0] sm:$0xff]
    %v683 = vld [vmem:[%s5 + $0x1c8] sm:$0xff]
    %v684 = vld [vmem:[%s5 + $0x1d0] sm:$0xff]
    %v685 = vld [vmem:[%s5 + $0x1d8] sm:$0xff]
    %v686 = vld [vmem:[%s5 + $0x1e0] sm:$0xff]
    %v687 = vld [vmem:[%s5 + $0x1e8] sm:$0xff]
    %v688 = vld [vmem:[%s5 + $0x1f0] sm:$0xff]
    %v689 = vld [vmem:[%s5 + $0x1f8] sm:$0xff]
    %v690 = vld [vmem:[%s5 + $0x200] sm:$0xff]
    %v691 = vld [vmem:[%s5 + $0x208] sm:$0xff]
    %v692 = vld [vmem:[%s5 + $0x210] sm:$0xff]
    %v693 = vld [vmem:[%s5 + $0x218] sm:$0xff]
    %v694 = vld [vmem:[%s5 + $0x220] sm:$0xff]
    %v695 = vld [vmem:[%s5 + $0x228] sm:$0xff]
    %v696 = vld [vmem:[%s5 + $0x230] sm:$0xff]
    %v697 = vld [vmem:[%s5 + $0x238] sm:$0xff]
    %v698 = vld [vmem:[%s5 + $0x240] sm:$0xff]
    %v699 = vld [vmem:[%s5 + $0x248] sm:$0xff]
    %v700 = vld [vmem:[%s5 + $0x250] sm:$0xff]
    %v701 = vld [vmem:[%s5 + $0x258] sm:$0xff]
    %v702 = vld [vmem:[%s5 + $0x260] sm:$0xff]
    %v703 = vld [vmem:[%s5 + $0x268] sm:$0xff]
    %v704 = vld [vmem:[%s5 + $0x270] sm:$0xff]
    %v705 = vld [vmem:[%s5 + $0x278] sm:$0xff]
    %v706 = vld [vmem:[%s5 + $0x280] sm:$0xff]
    %v707 = vld [vmem:[%s5 + $0x288] sm:$0xff]
    %v708 = vld [vmem:[%s5 + $0x290] sm:$0xff]
    %v709 = vld [vmem:[%s5 + $0x298] sm:$0xff]
    %v710 = vld [vmem:[%s5 + $0x2a0] sm:$0xff]
    %v711 = vld [vmem:[%s5 + $0x2a8] sm:$0xff]
    %v712 = vld [vmem:[%s5 + $0x2b0] sm:$0xff]
    %v713 = vld [vmem:[%s5 + $0x2b8] sm:$0xff]
    %v714 = vld [vmem:[%s5 + $0x2c0] sm:$0xff]
    %v715 = vld [vmem:[%s5 + $0x2c8] sm:$0xff]
    %v716 = vld [vmem:[%s5 + $0x2d0] sm:$0xff]
    %v717 = vld [vmem:[%s5 + $0x2d8] sm:$0xff]
    %v718 = vld [vmem:[%s5 + $0x2e0] sm:$0xff]
    %v719 = vld [vmem:[%s5 + $0x2e8] sm:$0xff]
    %v720 = vld [vmem:[%s5 + $0x2f0] sm:$0xff]
    %v721 = vld [vmem:[%s5 + $0x2f8] sm:$0xff]
    %v722 = vld [vmem:[%s5 + $0x300] sm:$0xff]
    %v723 = vld [vmem:[%s5 + $0x308] sm:$0xff]
    %v724 = vld [vmem:[%s5 + $0x310] sm:$0xff]
    %v725 = vld [vmem:[%s5 + $0x318] sm:$0xff]
    %v726 = vld [vmem:[%s5 + $0x320] sm:$0xff]
    %v727 = vld [vmem:[%s5 + $0x328] sm:$0xff]
    %v728 = vld [vmem:[%s5 + $0x330] sm:$0xff]
    %v729 = vld [vmem:[%s5 + $0x338] sm:$0xff]
    %v730 = vld [vmem:[%s5 + $0x340] sm:$0xff]
    %v731 = vld [vmem:[%s5 + $0x348] sm:$0xff]
    %v732 = vld [vmem:[%s5 + $0x350] sm:$0xff]
    %v733 = vld [vmem:[%s5 + $0x358] sm:$0xff]
    %v734 = vld [vmem:[%s5 + $0x360] sm:$0xff]
    %v735 = vld [vmem:[%s5 + $0x368] sm:$0xff]
    %v736 = vld [vmem:[%s5 + $0x370] sm:$0xff]
    %v737 = vld [vmem:[%s5 + $0x378] sm:$0xff]
    %v738 = vld [vmem:[%s5 + $0x380] sm:$0xff]
    %v739 = vld [vmem:[%s5 + $0x388] sm:$0xff]
    %v740 = vld [vmem:[%s5 + $0x390] sm:$0xff]
    %v741 = vld [vmem:[%s5 + $0x398] sm:$0xff]
    %v742 = vld [vmem:[%s5 + $0x3a0] sm:$0xff]
    %v743 = vld [vmem:[%s5 + $0x3a8] sm:$0xff]
    %v744 = vld [vmem:[%s5 + $0x3b0] sm:$0xff]
    %v745 = vld [vmem:[%s5 + $0x3b8] sm:$0xff]
    %v746 = vld [vmem:[%s5 + $0x3c0] sm:$0xff]
    %v747 = vld [vmem:[%s5 + $0x3c8] sm:$0xff]
    %v748 = vld [vmem:[%s5 + $0x3d0] sm:$0xff]
    %v749 = vld [vmem:[%s5 + $0x3d8] sm:$0xff]
    %v750 = vld [vmem:[%s5 + $0x3e0] sm:$0xff]
    %v751 = vld [vmem:[%s5 + $0x3e8] sm:$0xff]
    %v752 = vld [vmem:[%s5 + $0x3f0] sm:$0xff]
    %v753 = vld [vmem:[%s5 + $0x3f8] sm:$0xff]
    %v754 = vld [vmem:[%s5 + $0x400] sm:$0xff]
    %v755 = vld [vmem:[%s5 + $0x408] sm:$0xff]
    %v756 = vld [vmem:[%s5 + $0x410] sm:$0xff]
    %v757 = vld [vmem:[%s5 + $0x418] sm:$0xff]
    %v758 = vld [vmem:[%s5 + $0x420] sm:$0xff]
    %v759 = vld [vmem:[%s5 + $0x428] sm:$0xff]
    %v760 = vld [vmem:[%s5 + $0x430] sm:$0xff]
    %v761 = vld [vmem:[%s5 + $0x438] sm:$0xff]
    %v762 = vld [vmem:[%s5 + $0x440] sm:$0xff]
    %v763 = vld [vmem:[%s5 + $0x448] sm:$0xff]
    %v764 = vld [vmem:[%s5 + $0x450] sm:$0xff]
    %v765 = vld [vmem:[%s5 + $0x458] sm:$0xff]
    %v766 = vld [vmem:[%s5 + $0x460] sm:$0xff]
    %v767 = vld [vmem:[%s5 + $0x468] sm:$0xff]
    %v768 = vld [vmem:[%s5 + $0x470] sm:$0xff]
    %v769 = vld [vmem:[%s5 + $0x478] sm:$0xff]
    %v770 = vld [vmem:[%s5 + $0x480] sm:$0xff]
    %v771 = vld [vmem:[%s5 + $0x488] sm:$0xff]
    %v772 = vld [vmem:[%s5 + $0x490] sm:$0xff]
    %v773 = vld [vmem:[%s5 + $0x498] sm:$0xff]
    %v774 = vld [vmem:[%s5 + $0x4a0] sm:$0xff]
    %v775 = vld [vmem:[%s5 + $0x4a8] sm:$0xff]
    %v776 = vld [vmem:[%s5 + $0x4b0] sm:$0xff]
    %v777 = vld [vmem:[%s5 + $0x4b8] sm:$0xff]
    %v778 = vld [vmem:[%s5 + $0x4c0] sm:$0xff]
    %v779 = vld [vmem:[%s5 + $0x4c8] sm:$0xff]
    %v780 = vld [vmem:[%s5 + $0x4d0] sm:$0xff]
    %v781 = vld [vmem:[%s5 + $0x4d8] sm:$0xff]
    %v782 = vld [vmem:[%s5 + $0x4e0] sm:$0xff]
    %v783 = vld [vmem:[%s5 + $0x4e8] sm:$0xff]
    %v784 = vld [vmem:[%s5 + $0x4f0] sm:$0xff]
    %v785 = vld [vmem:[%s5 + $0x4f8] sm:$0xff]
    %v786 = vld [vmem:[%s5 + $0x500] sm:$0xff]
    %v787 = vld [vmem:[%s5 + $0x508] sm:$0xff]
    %v788 = vld [vmem:[%s5 + $0x510] sm:$0xff]
    %v789 = vld [vmem:[%s5 + $0x518] sm:$0xff]
    %v790 = vld [vmem:[%s5 + $0x520] sm:$0xff]
    %v791 = vld [vmem:[%s5 + $0x528] sm:$0xff]
    %v792 = vld [vmem:[%s5 + $0x530] sm:$0xff]
    %v793 = vld [vmem:[%s5 + $0x538] sm:$0xff]
    %v794 = vld [vmem:[%s5 + $0x540] sm:$0xff]
    %v795 = vld [vmem:[%s5 + $0x548] sm:$0xff]
    %v796 = vld [vmem:[%s5 + $0x550] sm:$0xff]
    %v797 = vld [vmem:[%s5 + $0x558] sm:$0xff]
    %v798 = vld [vmem:[%s5 + $0x560] sm:$0xff]
    %v799 = vld [vmem:[%s5 + $0x568] sm:$0xff]
    %v800 = vld [vmem:[%s5 + $0x570] sm:$0xff]
    %v801 = vld [vmem:[%s5 + $0x578] sm:$0xff]
    %v802 = vld [vmem:[%s5 + $0x580] sm:$0xff]
    %v803 = vld [vmem:[%s5 + $0x588] sm:$0xff]
    %v804 = vld [vmem:[%s5 + $0x590] sm:$0xff]
    %v805 = vld [vmem:[%s5 + $0x598] sm:$0xff]
    %v806 = vld [vmem:[%s5 + $0x5a0] sm:$0xff]
    %v807 = vld [vmem:[%s5 + $0x5a8] sm:$0xff]
    %v808 = vld [vmem:[%s5 + $0x5b0] sm:$0xff]
    %v809 = vld [vmem:[%s5 + $0x5b8] sm:$0xff]
    %v810 = vld [vmem:[%s5 + $0x5c0] sm:$0xff]
    %v811 = vld [vmem:[%s5 + $0x5c8] sm:$0xff]
    %v812 = vld [vmem:[%s5 + $0x5d0] sm:$0xff]
    %v813 = vld [vmem:[%s5 + $0x5d8] sm:$0xff]
    %v814 = vld [vmem:[%s5 + $0x5e0] sm:$0xff]
    %v815 = vld [vmem:[%s5 + $0x5e8] sm:$0xff]
    %v816 = vld [vmem:[%s5 + $0x5f0] sm:$0xff]
    %v817 = vld [vmem:[%s5 + $0x5f8] sm:$0xff]
    %v818 = vld [vmem:[%s5 + $0x600] sm:$0xff]
    %v819 = vld [vmem:[%s5 + $0x608] sm:$0xff]
    %v820 = vld [vmem:[%s5 + $0x610] sm:$0xff]
    %v821 = vld [vmem:[%s5 + $0x618] sm:$0xff]
    %v822 = vld [vmem:[%s5 + $0x620] sm:$0xff]
    %v823 = vld [vmem:[%s5 + $0x628] sm:$0xff]
    %v824 = vld [vmem:[%s5 + $0x630] sm:$0xff]
    %v825 = vld [vmem:[%s5 + $0x638] sm:$0xff]
    %v826 = vld [vmem:[%s5 + $0x640] sm:$0xff]
    %v827 = vld [vmem:[%s5 + $0x648] sm:$0xff]
    %v828 = vld [vmem:[%s5 + $0x650] sm:$0xff]
    %v829 = vld [vmem:[%s5 + $0x658] sm:$0xff]
    %v830 = vld [vmem:[%s5 + $0x660] sm:$0xff]
    %v831 = vld [vmem:[%s5 + $0x668] sm:$0xff]
    %v832 = vld [vmem:[%s5 + $0x670] sm:$0xff]
    %v833 = vld [vmem:[%s5 + $0x678] sm:$0xff]
    %v834 = vld [vmem:[%s5 + $0x680] sm:$0xff]
    %v835 = vld [vmem:[%s5 + $0x688] sm:$0xff]
    %v836 = vld [vmem:[%s5 + $0x690] sm:$0xff]
    %v837 = vld [vmem:[%s5 + $0x698] sm:$0xff]
    %v838 = vld [vmem:[%s5 + $0x6a0] sm:$0xff]
    %v839 = vld [vmem:[%s5 + $0x6a8] sm:$0xff]
    %v840 = vld [vmem:[%s5 + $0x6b0] sm:$0xff]
    %v841 = vld [vmem:[%s5 + $0x6b8] sm:$0xff]
    %v842 = vld [vmem:[%s5 + $0x6c0] sm:$0xff]
    %v843 = vld [vmem:[%s5 + $0x6c8] sm:$0xff]
    %v844 = vld [vmem:[%s5 + $0x6d0] sm:$0xff]
    %v845 = vld [vmem:[%s5 + $0x6d8] sm:$0xff]
    %v846 = vld [vmem:[%s5 + $0x6e0] sm:$0xff]
    %v847 = vld [vmem:[%s5 + $0x6e8] sm:$0xff]
    %v848 = vld [vmem:[%s5 + $0x6f0] sm:$0xff]
    %v849 = vld [vmem:[%s5 + $0x6f8] sm:$0xff]
    %v850 = vld [vmem:[%s5 + $0x700] sm:$0xff]
    %v851 = vld [vmem:[%s5 + $0x708] sm:$0xff]
    %v852 = vld [vmem:[%s5 + $0x710] sm:$0xff]
    %v853 = vld [vmem:[%s5 + $0x718] sm:$0xff]
    %v854 = vld [vmem:[%s5 + $0x720] sm:$0xff]
    %v855 = vld [vmem:[%s5 + $0x728] sm:$0xff]
    %v856 = vld [vmem:[%s5 + $0x730] sm:$0xff]
    %v857 = vld [vmem:[%s5 + $0x738] sm:$0xff]
    %v858 = vld [vmem:[%s5 + $0x740] sm:$0xff]
    %v859 = vld [vmem:[%s5 + $0x748] sm:$0xff]
    %v860 = vld [vmem:[%s5 + $0x750] sm:$0xff]
    %v861 = vld [vmem:[%s5 + $0x758] sm:$0xff]
    %v862 = vld [vmem:[%s5 + $0x760] sm:$0xff]
    %v863 = vld [vmem:[%s5 + $0x768] sm:$0xff]
    %v864 = vld [vmem:[%s5 + $0x770] sm:$0xff]
    %v865 = vld [vmem:[%s5 + $0x778] sm:$0xff]
    %v866 = vld [vmem:[%s5 + $0x780] sm:$0xff]
    %v867 = vld [vmem:[%s5 + $0x788] sm:$0xff]
    %v868 = vld [vmem:[%s5 + $0x790] sm:$0xff]
    %v869 = vld [vmem:[%s5 + $0x798] sm:$0xff]
    %v870 = vld [vmem:[%s5 + $0x7a0] sm:$0xff]
    %v871 = vld [vmem:[%s5 + $0x7a8] sm:$0xff]
    %v872 = vld [vmem:[%s5 + $0x7b0] sm:$0xff]
    %v873 = vld [vmem:[%s5 + $0x7b8] sm:$0xff]
    %v874 = vld [vmem:[%s5 + $0x7c0] sm:$0xff]
    %v875 = vld [vmem:[%s5 + $0x7c8] sm:$0xff]
    %v876 = vld [vmem:[%s5 + $0x7d0] sm:$0xff]
    %v877 = vld [vmem:[%s5 + $0x7d8] sm:$0xff]
    %v878 = vld [vmem:[%s5 + $0x7e0] sm:$0xff]
    %v879 = vld [vmem:[%s5 + $0x7e8] sm:$0xff]
    %v880 = vld [vmem:[%s5 + $0x7f0] sm:$0xff]
    %v881 = vld [vmem:[%s5 + $0x7f8] sm:$0xff]
    %882 = vmatpush.msra.mxu0 %v746
    %883 = vmatpush.msra.mxu0 %v738
    %884 = vmatpush.msra.mxu0 %v730
    %885 = vmatpush.msra.mxu0 %v722
    %886 = vmatpush.msra.mxu0 %v714
    %887 = vmatpush.msra.mxu0 %v706
    %888 = vmatpush.msra.mxu0 %v698
    %889 = vmatpush.msra.mxu0 %v690
    %890 = vmatpush.msra.mxu0 %v682
    %891 = vmatpush.msra.mxu0 %v674
    %892 = vmatpush.msra.mxu0 %v666
    %893 = vmatpush.msra.mxu0 %v658
    %894 = vmatpush.msra.mxu0 %v650
    %895 = vmatpush.msra.mxu0 %v642
    %896 = vmatpush.msra.mxu0 %v634
    %897 = vmatpush.msra.mxu0 %v626
    %898 = vmatmul.f32.gmra.mxu0 0.0
    %v899 = vpop.f32.mrf.mxu0
    %v900 = vadd.f32 0.0, %v899
    %901 = vdwg.mxu0
    %902 = vmatpush.msra.mxu0 %v874
    %903 = vmatpush.msra.mxu0 %v866
    %904 = vmatpush.msra.mxu0 %v858
    %905 = vmatpush.msra.mxu0 %v850
    %906 = vmatpush.msra.mxu0 %v842
    %907 = vmatpush.msra.mxu0 %v834
    %908 = vmatpush.msra.mxu0 %v826
    %909 = vmatpush.msra.mxu0 %v818
    %910 = vmatpush.msra.mxu0 %v810
    %911 = vmatpush.msra.mxu0 %v802
    %912 = vmatpush.msra.mxu0 %v794
    %913 = vmatpush.msra.mxu0 %v786
    %914 = vmatpush.msra.mxu0 %v778
    %915 = vmatpush.msra.mxu0 %v770
    %916 = vmatpush.msra.mxu0 %v762
    %917 = vmatpush.msra.mxu0 %v754
    %918 = vmatmul.f32.gmra.mxu0 0.0
    %v919 = vpop.f32.mrf.mxu0
    %v920 = vadd.f32 %v900, %v919
    %921 = vdwg.mxu0
    %922 = vmatpush.msra.mxu0 %v747
    %923 = vmatpush.msra.mxu0 %v739
    %924 = vmatpush.msra.mxu0 %v731
    %925 = vmatpush.msra.mxu0 %v723
    %926 = vmatpush.msra.mxu0 %v715
    %927 = vmatpush.msra.mxu0 %v707
    %928 = vmatpush.msra.mxu0 %v699
    %929 = vmatpush.msra.mxu0 %v691
    %930 = vmatpush.msra.mxu0 %v683
    %931 = vmatpush.msra.mxu0 %v675
    %932 = vmatpush.msra.mxu0 %v667
    %933 = vmatpush.msra.mxu0 %v659
    %934 = vmatpush.msra.mxu0 %v651
    %935 = vmatpush.msra.mxu0 %v643
    %936 = vmatpush.msra.mxu0 %v635
    %937 = vmatpush.msra.mxu0 %v627
    %938 = vmatmul.f32.gmra.mxu0 0.0
    %v939 = vpop.f32.mrf.mxu0
    %v940 = vadd.f32 0.0, %v939
    %941 = vdwg.mxu0
    %942 = vmatpush.msra.mxu0 %v875
    %943 = vmatpush.msra.mxu0 %v867
    %944 = vmatpush.msra.mxu0 %v859
    %945 = vmatpush.msra.mxu0 %v851
    %946 = vmatpush.msra.mxu0 %v843
    %947 = vmatpush.msra.mxu0 %v835
    %948 = vmatpush.msra.mxu0 %v827
    %949 = vmatpush.msra.mxu0 %v819
    %950 = vmatpush.msra.mxu0 %v811
    %951 = vmatpush.msra.mxu0 %v803
    %952 = vmatpush.msra.mxu0 %v795
    %953 = vmatpush.msra.mxu0 %v787
    %954 = vmatpush.msra.mxu0 %v779
    %955 = vmatpush.msra.mxu0 %v771
    %956 = vmatpush.msra.mxu0 %v763
    %957 = vmatpush.msra.mxu0 %v755
    %958 = vmatmul.f32.gmra.mxu0 0.0
    %v959 = vpop.f32.mrf.mxu0
    %v960 = vadd.f32 %v940, %v959
    %961 = vdwg.mxu0
    %962 = vmatpush.msra.mxu0 %v748
    %963 = vmatpush.msra.mxu0 %v740
    %964 = vmatpush.msra.mxu0 %v732
    %965 = vmatpush.msra.mxu0 %v724
    %966 = vmatpush.msra.mxu0 %v716
    %967 = vmatpush.msra.mxu0 %v708
    %968 = vmatpush.msra.mxu0 %v700
    %969 = vmatpush.msra.mxu0 %v692
    %970 = vmatpush.msra.mxu0 %v684
    %971 = vmatpush.msra.mxu0 %v676
    %972 = vmatpush.msra.mxu0 %v668
    %973 = vmatpush.msra.mxu0 %v660
    %974 = vmatpush.msra.mxu0 %v652
    %975 = vmatpush.msra.mxu0 %v644
    %976 = vmatpush.msra.mxu0 %v636
    %977 = vmatpush.msra.mxu0 %v628
    %978 = vmatmul.f32.gmra.mxu0 0.0
    %v979 = vpop.f32.mrf.mxu0
    %v980 = vadd.f32 0.0, %v979
    %981 = vdwg.mxu0
    %982 = vmatpush.msra.mxu0 %v876
    %983 = vmatpush.msra.mxu0 %v868
    %984 = vmatpush.msra.mxu0 %v860
    %985 = vmatpush.msra.mxu0 %v852
    %986 = vmatpush.msra.mxu0 %v844
    %987 = vmatpush.msra.mxu0 %v836
    %988 = vmatpush.msra.mxu0 %v828
    %989 = vmatpush.msra.mxu0 %v820
    %990 = vmatpush.msra.mxu0 %v812
    %991 = vmatpush.msra.mxu0 %v804
    %992 = vmatpush.msra.mxu0 %v796
    %993 = vmatpush.msra.mxu0 %v788
    %994 = vmatpush.msra.mxu0 %v780
    %995 = vmatpush.msra.mxu0 %v772
    %996 = vmatpush.msra.mxu0 %v764
    %997 = vmatpush.msra.mxu0 %v756
    %998 = vmatmul.f32.gmra.mxu0 0.0
    %v999 = vpop.f32.mrf.mxu0
    %v1000 = vadd.f32 %v980, %v999
    %1001 = vdwg.mxu0
    %1002 = vmatpush.msra.mxu0 %v749
    %1003 = vmatpush.msra.mxu0 %v741
    %1004 = vmatpush.msra.mxu0 %v733
    %1005 = vmatpush.msra.mxu0 %v725
    %1006 = vmatpush.msra.mxu0 %v717
    %1007 = vmatpush.msra.mxu0 %v709
    %1008 = vmatpush.msra.mxu0 %v701
    %1009 = vmatpush.msra.mxu0 %v693
    %1010 = vmatpush.msra.mxu0 %v685
    %1011 = vmatpush.msra.mxu0 %v677
    %1012 = vmatpush.msra.mxu0 %v669
    %1013 = vmatpush.msra.mxu0 %v661
    %1014 = vmatpush.msra.mxu0 %v653
    %1015 = vmatpush.msra.mxu0 %v645
    %1016 = vmatpush.msra.mxu0 %v637
    %1017 = vmatpush.msra.mxu0 %v629
    %1018 = vmatmul.f32.gmra.mxu0 0.0
    %v1019 = vpop.f32.mrf.mxu0
    %v1020 = vadd.f32 0.0, %v1019
    %1021 = vdwg.mxu0
    %1022 = vmatpush.msra.mxu0 %v877
    %1023 = vmatpush.msra.mxu0 %v869
    %1024 = vmatpush.msra.mxu0 %v861
    %1025 = vmatpush.msra.mxu0 %v853
    %1026 = vmatpush.msra.mxu0 %v845
    %1027 = vmatpush.msra.mxu0 %v837
    %1028 = vmatpush.msra.mxu0 %v829
    %1029 = vmatpush.msra.mxu0 %v821
    %1030 = vmatpush.msra.mxu0 %v813
    %1031 = vmatpush.msra.mxu0 %v805
    %1032 = vmatpush.msra.mxu0 %v797
    %1033 = vmatpush.msra.mxu0 %v789
    %1034 = vmatpush.msra.mxu0 %v781
    %1035 = vmatpush.msra.mxu0 %v773
    %1036 = vmatpush.msra.mxu0 %v765
    %1037 = vmatpush.msra.mxu0 %v757
    %1038 = vmatmul.f32.gmra.mxu0 0.0
    %v1039 = vpop.f32.mrf.mxu0
    %v1040 = vadd.f32 %v1020, %v1039
    %1041 = vdwg.mxu0
    %1042 = vmatpush.msra.mxu0 %v750
    %1043 = vmatpush.msra.mxu0 %v742
    %1044 = vmatpush.msra.mxu0 %v734
    %1045 = vmatpush.msra.mxu0 %v726
    %1046 = vmatpush.msra.mxu0 %v718
    %1047 = vmatpush.msra.mxu0 %v710
    %1048 = vmatpush.msra.mxu0 %v702
    %1049 = vmatpush.msra.mxu0 %v694
    %1050 = vmatpush.msra.mxu0 %v686
    %1051 = vmatpush.msra.mxu0 %v678
    %1052 = vmatpush.msra.mxu0 %v670
    %1053 = vmatpush.msra.mxu0 %v662
    %1054 = vmatpush.msra.mxu0 %v654
    %1055 = vmatpush.msra.mxu0 %v646
    %1056 = vmatpush.msra.mxu0 %v638
    %1057 = vmatpush.msra.mxu0 %v630
    %1058 = vmatmul.f32.gmra.mxu0 0.0
    %v1059 = vpop.f32.mrf.mxu0
    %v1060 = vadd.f32 0.0, %v1059
    %1061 = vdwg.mxu0
    %1062 = vmatpush.msra.mxu0 %v878
    %1063 = vmatpush.msra.mxu0 %v870
    %1064 = vmatpush.msra.mxu0 %v862
    %1065 = vmatpush.msra.mxu0 %v854
    %1066 = vmatpush.msra.mxu0 %v846
    %1067 = vmatpush.msra.mxu0 %v838
    %1068 = vmatpush.msra.mxu0 %v830
    %1069 = vmatpush.msra.mxu0 %v822
    %1070 = vmatpush.msra.mxu0 %v814
    %1071 = vmatpush.msra.mxu0 %v806
    %1072 = vmatpush.msra.mxu0 %v798
    %1073 = vmatpush.msra.mxu0 %v790
    %1074 = vmatpush.msra.mxu0 %v782
    %1075 = vmatpush.msra.mxu0 %v774
    %1076 = vmatpush.msra.mxu0 %v766
    %1077 = vmatpush.msra.mxu0 %v758
    %1078 = vmatmul.f32.gmra.mxu0 0.0
    %v1079 = vpop.f32.mrf.mxu0
    %v1080 = vadd.f32 %v1060, %v1079
    %1081 = vdwg.mxu0
    %1082 = vmatpush.msra.mxu0 %v751
    %1083 = vmatpush.msra.mxu0 %v743
    %1084 = vmatpush.msra.mxu0 %v735
    %1085 = vmatpush.msra.mxu0 %v727
    %1086 = vmatpush.msra.mxu0 %v719
    %1087 = vmatpush.msra.mxu0 %v711
    %1088 = vmatpush.msra.mxu0 %v703
    %1089 = vmatpush.msra.mxu0 %v695
    %1090 = vmatpush.msra.mxu0 %v687
    %1091 = vmatpush.msra.mxu0 %v679
    %1092 = vmatpush.msra.mxu0 %v671
    %1093 = vmatpush.msra.mxu0 %v663
    %1094 = vmatpush.msra.mxu0 %v655
    %1095 = vmatpush.msra.mxu0 %v647
    %1096 = vmatpush.msra.mxu0 %v639
    %1097 = vmatpush.msra.mxu0 %v631
    %1098 = vmatmul.f32.gmra.mxu0 0.0
    %v1099 = vpop.f32.mrf.mxu0
    %v1100 = vadd.f32 0.0, %v1099
    %1101 = vdwg.mxu0
    %1102 = vmatpush.msra.mxu0 %v879
    %1103 = vmatpush.msra.mxu0 %v871
    %1104 = vmatpush.msra.mxu0 %v863
    %1105 = vmatpush.msra.mxu0 %v855
    %1106 = vmatpush.msra.mxu0 %v847
    %1107 = vmatpush.msra.mxu0 %v839
    %1108 = vmatpush.msra.mxu0 %v831
    %1109 = vmatpush.msra.mxu0 %v823
    %1110 = vmatpush.msra.mxu0 %v815
    %1111 = vmatpush.msra.mxu0 %v807
    %1112 = vmatpush.msra.mxu0 %v799
    %1113 = vmatpush.msra.mxu0 %v791
    %1114 = vmatpush.msra.mxu0 %v783
    %1115 = vmatpush.msra.mxu0 %v775
    %1116 = vmatpush.msra.mxu0 %v767
    %1117 = vmatpush.msra.mxu0 %v759
    %1118 = vmatmul.f32.gmra.mxu0 0.0
    %v1119 = vpop.f32.mrf.mxu0
    %v1120 = vadd.f32 %v1100, %v1119
    %1121 = vdwg.mxu0
    %1122 = vmatpush.msra.mxu0 %v752
    %1123 = vmatpush.msra.mxu0 %v744
    %1124 = vmatpush.msra.mxu0 %v736
    %1125 = vmatpush.msra.mxu0 %v728
    %1126 = vmatpush.msra.mxu0 %v720
    %1127 = vmatpush.msra.mxu0 %v712
    %1128 = vmatpush.msra.mxu0 %v704
    %1129 = vmatpush.msra.mxu0 %v696
    %1130 = vmatpush.msra.mxu0 %v688
    %1131 = vmatpush.msra.mxu0 %v680
    %1132 = vmatpush.msra.mxu0 %v672
    %1133 = vmatpush.msra.mxu0 %v664
    %1134 = vmatpush.msra.mxu0 %v656
    %1135 = vmatpush.msra.mxu0 %v648
    %1136 = vmatpush.msra.mxu0 %v640
    %1137 = vmatpush.msra.mxu0 %v632
    %1138 = vmatmul.f32.gmra.mxu0 0.0
    %v1139 = vpop.f32.mrf.mxu0
    %v1140 = vadd.f32 0.0, %v1139
    %1141 = vdwg.mxu0
    %1142 = vmatpush.msra.mxu0 %v880
    %1143 = vmatpush.msra.mxu0 %v872
    %1144 = vmatpush.msra.mxu0 %v864
    %1145 = vmatpush.msra.mxu0 %v856
    %1146 = vmatpush.msra.mxu0 %v848
    %1147 = vmatpush.msra.mxu0 %v840
    %1148 = vmatpush.msra.mxu0 %v832
    %1149 = vmatpush.msra.mxu0 %v824
    %1150 = vmatpush.msra.mxu0 %v816
    %1151 = vmatpush.msra.mxu0 %v808
    %1152 = vmatpush.msra.mxu0 %v800
    %1153 = vmatpush.msra.mxu0 %v792
    %1154 = vmatpush.msra.mxu0 %v784
    %1155 = vmatpush.msra.mxu0 %v776
    %1156 = vmatpush.msra.mxu0 %v768
    %1157 = vmatpush.msra.mxu0 %v760
    %1158 = vmatmul.f32.gmra.mxu0 0.0
    %v1159 = vpop.f32.mrf.mxu0
    %v1160 = vadd.f32 %v1140, %v1159
    %1161 = vdwg.mxu0
    %1162 = vmatpush.msra.mxu0 %v753
    %1163 = vmatpush.msra.mxu0 %v745
    %1164 = vmatpush.msra.mxu0 %v737
    %1165 = vmatpush.msra.mxu0 %v729
    %1166 = vmatpush.msra.mxu0 %v721
    %1167 = vmatpush.msra.mxu0 %v713
    %1168 = vmatpush.msra.mxu0 %v705
    %1169 = vmatpush.msra.mxu0 %v697
    %1170 = vmatpush.msra.mxu0 %v689
    %1171 = vmatpush.msra.mxu0 %v681
    %1172 = vmatpush.msra.mxu0 %v673
    %1173 = vmatpush.msra.mxu0 %v665
    %1174 = vmatpush.msra.mxu0 %v657
    %1175 = vmatpush.msra.mxu0 %v649
    %1176 = vmatpush.msra.mxu0 %v641
    %1177 = vmatpush.msra.mxu0 %v633
    %1178 = vmatmul.f32.gmra.mxu0 0.0
    %v1179 = vpop.f32.mrf.mxu0
    %v1180 = vadd.f32 0.0, %v1179
    %1181 = vdwg.mxu0
    %1182 = vmatpush.msra.mxu0 %v881
    %1183 = vmatpush.msra.mxu0 %v873
    %1184 = vmatpush.msra.mxu0 %v865
    %1185 = vmatpush.msra.mxu0 %v857
    %1186 = vmatpush.msra.mxu0 %v849
    %1187 = vmatpush.msra.mxu0 %v841
    %1188 = vmatpush.msra.mxu0 %v833
    %1189 = vmatpush.msra.mxu0 %v825
    %1190 = vmatpush.msra.mxu0 %v817
    %1191 = vmatpush.msra.mxu0 %v809
    %1192 = vmatpush.msra.mxu0 %v801
    %1193 = vmatpush.msra.mxu0 %v793
    %1194 = vmatpush.msra.mxu0 %v785
    %1195 = vmatpush.msra.mxu0 %v777
    %1196 = vmatpush.msra.mxu0 %v769
    %1197 = vmatpush.msra.mxu0 %v761
    %1198 = vmatmul.f32.gmra.mxu0 0.0
    %v1199 = vpop.f32.mrf.mxu0
    %v1200 = vadd.f32 %v1180, %v1199
    %1201 = vdwg.mxu0
    %v1202 = vadd.f32 %v618, %v920
    %v1203 = vadd.f32 %v619, %v960
    %v1204 = vadd.f32 %v620, %v1000
    %v1205 = vadd.f32 %v621, %v1040
    %v1206 = vadd.f32 %v622, %v1080
    %v1207 = vadd.f32 %v623, %v1120
    %v1208 = vadd.f32 %v624, %v1160
    %v1209 = vadd.f32 %v625, %v1200
    %v1210 = vmul.f32 %v1202, 0.5
    %v1211 = vmul.f32 %v1203, 0.5
    %v1212 = vtanh.pop %v1210
    %v1213 = vtanh.pop %v1211
    %v1214 = vadd.f32 %v1212, 1.0
    %v1215 = vadd.f32 %v1213, 1.0
    %v1216 = vmul.f32 %v1214, 0.5
    %v1217 = vmul.f32 %v1215, 0.5
    %v1218 = vmul.f32 %v1204, 0.5
    %v1219 = vmul.f32 %v1205, 0.5
    %v1220 = vtanh.pop %v1218
    %v1221 = vtanh.pop %v1219
    %v1222 = vadd.f32 %v1220, 1.0
    %v1223 = vadd.f32 %v1221, 1.0
    %v1224 = vmul.f32 %v1222, 0.5
    %v1225 = vmul.f32 %v1223, 0.5
    %v1226 = vmul.f32 %v1206, 0.5
    %v1227 = vmul.f32 %v1207, 0.5
    %v1228 = vtanh.pop %v1226
    %v1229 = vtanh.pop %v1227
    %v1230 = vadd.f32 %v1228, 1.0
    %v1231 = vadd.f32 %v1229, 1.0
    %v1232 = vmul.f32 %v1230, 0.5
    %v1233 = vmul.f32 %v1231, 0.5
    %v1234 = vtanh.pop %v1208
    %v1235 = vtanh.pop %v1209
    %v1236 = vmul.f32 %v1224, 0.0
    %v1237 = vmul.f32 %v1225, 0.0
    %v1238 = vmul.f32 %v1216, %v1234
    %v1239 = vmul.f32 %v1217, %v1235
    %v1240 = vadd.f32 %v1236, %v1238
    %v1241 = vadd.f32 %v1237, %v1239
    %v1242 = vtanh.pop %v1240
    %v1243 = vtanh.pop %v1241
    %v1244 = vmul.f32 %v1232, %v1242
    %v1245 = vmul.f32 %v1233, %v1243
    %v1246 = vld [vmem:[%s7] sm:$0xff]
    %v1247 = vld [vmem:[%s7 + $0x8] sm:$0xff]
    %v1248 = vld [vmem:[%s7 + $0x10] sm:$0xff]
    %v1249 = vld [vmem:[%s7 + $0x18] sm:$0xff]
    %v1250 = vld [vmem:[%s7 + $0x20] sm:$0xff]
    %v1251 = vld [vmem:[%s7 + $0x28] sm:$0xff]
    %v1252 = vld [vmem:[%s7 + $0x30] sm:$0xff]
    %v1253 = vld [vmem:[%s7 + $0x38] sm:$0xff]
    %v1254 = vld [vmem:[%s7 + $0x40] sm:$0xff]
    %v1255 = vld [vmem:[%s7 + $0x48] sm:$0xff]
    %v1256 = vld [vmem:[%s7 + $0x50] sm:$0xff]
    %v1257 = vld [vmem:[%s7 + $0x58] sm:$0xff]
    %v1258 = vld [vmem:[%s7 + $0x60] sm:$0xff]
    %v1259 = vld [vmem:[%s7 + $0x68] sm:$0xff]
    %v1260 = vld [vmem:[%s7 + $0x70] sm:$0xff]
    %v1261 = vld [vmem:[%s7 + $0x78] sm:$0xff]
    %v1262 = vld [vmem:[%s7 + $0x80] sm:$0xff]
    %v1263 = vld [vmem:[%s7 + $0x88] sm:$0xff]
    %v1264 = vld [vmem:[%s7 + $0x90] sm:$0xff]
    %v1265 = vld [vmem:[%s7 + $0x98] sm:$0xff]
    %v1266 = vld [vmem:[%s7 + $0xa0] sm:$0xff]
    %v1267 = vld [vmem:[%s7 + $0xa8] sm:$0xff]
    %v1268 = vld [vmem:[%s7 + $0xb0] sm:$0xff]
    %v1269 = vld [vmem:[%s7 + $0xb8] sm:$0xff]
    %v1270 = vld [vmem:[%s7 + $0xc0] sm:$0xff]
    %v1271 = vld [vmem:[%s7 + $0xc8] sm:$0xff]
    %v1272 = vld [vmem:[%s7 + $0xd0] sm:$0xff]
    %v1273 = vld [vmem:[%s7 + $0xd8] sm:$0xff]
    %v1274 = vld [vmem:[%s7 + $0xe0] sm:$0xff]
    %v1275 = vld [vmem:[%s7 + $0xe8] sm:$0xff]
    %v1276 = vld [vmem:[%s7 + $0xf0] sm:$0xff]
    %v1277 = vld [vmem:[%s7 + $0xf8] sm:$0xff]
    %v1278 = vld [vmem:[%s7 + $0x100] sm:$0xff]
    %v1279 = vld [vmem:[%s7 + $0x108] sm:$0xff]
    %v1280 = vld [vmem:[%s7 + $0x110] sm:$0xff]
    %v1281 = vld [vmem:[%s7 + $0x118] sm:$0xff]
    %v1282 = vld [vmem:[%s7 + $0x120] sm:$0xff]
    %v1283 = vld [vmem:[%s7 + $0x128] sm:$0xff]
    %v1284 = vld [vmem:[%s7 + $0x130] sm:$0xff]
    %v1285 = vld [vmem:[%s7 + $0x138] sm:$0xff]
    %v1286 = vld [vmem:[%s7 + $0x140] sm:$0xff]
    %v1287 = vld [vmem:[%s7 + $0x148] sm:$0xff]
    %v1288 = vld [vmem:[%s7 + $0x150] sm:$0xff]
    %v1289 = vld [vmem:[%s7 + $0x158] sm:$0xff]
    %v1290 = vld [vmem:[%s7 + $0x160] sm:$0xff]
    %v1291 = vld [vmem:[%s7 + $0x168] sm:$0xff]
    %v1292 = vld [vmem:[%s7 + $0x170] sm:$0xff]
    %v1293 = vld [vmem:[%s7 + $0x178] sm:$0xff]
    %v1294 = vld [vmem:[%s7 + $0x180] sm:$0xff]
    %v1295 = vld [vmem:[%s7 + $0x188] sm:$0xff]
    %v1296 = vld [vmem:[%s7 + $0x190] sm:$0xff]
    %v1297 = vld [vmem:[%s7 + $0x198] sm:$0xff]
    %v1298 = vld [vmem:[%s7 + $0x1a0] sm:$0xff]
    %v1299 = vld [vmem:[%s7 + $0x1a8] sm:$0xff]
    %v1300 = vld [vmem:[%s7 + $0x1b0] sm:$0xff]
    %v1301 = vld [vmem:[%s7 + $0x1b8] sm:$0xff]
    %v1302 = vld [vmem:[%s7 + $0x1c0] sm:$0xff]
    %v1303 = vld [vmem:[%s7 + $0x1c8] sm:$0xff]
    %v1304 = vld [vmem:[%s7 + $0x1d0] sm:$0xff]
    %v1305 = vld [vmem:[%s7 + $0x1d8] sm:$0xff]
    %v1306 = vld [vmem:[%s7 + $0x1e0] sm:$0xff]
    %v1307 = vld [vmem:[%s7 + $0x1e8] sm:$0xff]
    %v1308 = vld [vmem:[%s7 + $0x1f0] sm:$0xff]
    %v1309 = vld [vmem:[%s7 + $0x1f8] sm:$0xff]
    %v1310 = vld [vmem:[%s7 + $0x200] sm:$0xff]
    %v1311 = vld [vmem:[%s7 + $0x208] sm:$0xff]
    %v1312 = vld [vmem:[%s7 + $0x210] sm:$0xff]
    %v1313 = vld [vmem:[%s7 + $0x218] sm:$0xff]
    %v1314 = vld [vmem:[%s7 + $0x220] sm:$0xff]
    %v1315 = vld [vmem:[%s7 + $0x228] sm:$0xff]
    %v1316 = vld [vmem:[%s7 + $0x230] sm:$0xff]
    %v1317 = vld [vmem:[%s7 + $0x238] sm:$0xff]
    %v1318 = vld [vmem:[%s7 + $0x240] sm:$0xff]
    %v1319 = vld [vmem:[%s7 + $0x248] sm:$0xff]
    %v1320 = vld [vmem:[%s7 + $0x250] sm:$0xff]
    %v1321 = vld [vmem:[%s7 + $0x258] sm:$0xff]
    %v1322 = vld [vmem:[%s7 + $0x260] sm:$0xff]
    %v1323 = vld [vmem:[%s7 + $0x268] sm:$0xff]
    %v1324 = vld [vmem:[%s7 + $0x270] sm:$0xff]
    %v1325 = vld [vmem:[%s7 + $0x278] sm:$0xff]
    %v1326 = vld [vmem:[%s7 + $0x280] sm:$0xff]
    %v1327 = vld [vmem:[%s7 + $0x288] sm:$0xff]
    %v1328 = vld [vmem:[%s7 + $0x290] sm:$0xff]
    %v1329 = vld [vmem:[%s7 + $0x298] sm:$0xff]
    %v1330 = vld [vmem:[%s7 + $0x2a0] sm:$0xff]
    %v1331 = vld [vmem:[%s7 + $0x2a8] sm:$0xff]
    %v1332 = vld [vmem:[%s7 + $0x2b0] sm:$0xff]
    %v1333 = vld [vmem:[%s7 + $0x2b8] sm:$0xff]
    %v1334 = vld [vmem:[%s7 + $0x2c0] sm:$0xff]
    %v1335 = vld [vmem:[%s7 + $0x2c8] sm:$0xff]
    %v1336 = vld [vmem:[%s7 + $0x2d0] sm:$0xff]
    %v1337 = vld [vmem:[%s7 + $0x2d8] sm:$0xff]
    %v1338 = vld [vmem:[%s7 + $0x2e0] sm:$0xff]
    %v1339 = vld [vmem:[%s7 + $0x2e8] sm:$0xff]
    %v1340 = vld [vmem:[%s7 + $0x2f0] sm:$0xff]
    %v1341 = vld [vmem:[%s7 + $0x2f8] sm:$0xff]
    %v1342 = vld [vmem:[%s7 + $0x300] sm:$0xff]
    %v1343 = vld [vmem:[%s7 + $0x308] sm:$0xff]
    %v1344 = vld [vmem:[%s7 + $0x310] sm:$0xff]
    %v1345 = vld [vmem:[%s7 + $0x318] sm:$0xff]
    %v1346 = vld [vmem:[%s7 + $0x320] sm:$0xff]
    %v1347 = vld [vmem:[%s7 + $0x328] sm:$0xff]
    %v1348 = vld [vmem:[%s7 + $0x330] sm:$0xff]
    %v1349 = vld [vmem:[%s7 + $0x338] sm:$0xff]
    %v1350 = vld [vmem:[%s7 + $0x340] sm:$0xff]
    %v1351 = vld [vmem:[%s7 + $0x348] sm:$0xff]
    %v1352 = vld [vmem:[%s7 + $0x350] sm:$0xff]
    %v1353 = vld [vmem:[%s7 + $0x358] sm:$0xff]
    %v1354 = vld [vmem:[%s7 + $0x360] sm:$0xff]
    %v1355 = vld [vmem:[%s7 + $0x368] sm:$0xff]
    %v1356 = vld [vmem:[%s7 + $0x370] sm:$0xff]
    %v1357 = vld [vmem:[%s7 + $0x378] sm:$0xff]
    %v1358 = vld [vmem:[%s7 + $0x380] sm:$0xff]
    %v1359 = vld [vmem:[%s7 + $0x388] sm:$0xff]
    %v1360 = vld [vmem:[%s7 + $0x390] sm:$0xff]
    %v1361 = vld [vmem:[%s7 + $0x398] sm:$0xff]
    %v1362 = vld [vmem:[%s7 + $0x3a0] sm:$0xff]
    %v1363 = vld [vmem:[%s7 + $0x3a8] sm:$0xff]
    %v1364 = vld [vmem:[%s7 + $0x3b0] sm:$0xff]
    %v1365 = vld [vmem:[%s7 + $0x3b8] sm:$0xff]
    %v1366 = vld [vmem:[%s7 + $0x3c0] sm:$0xff]
    %v1367 = vld [vmem:[%s7 + $0x3c8] sm:$0xff]
    %v1368 = vld [vmem:[%s7 + $0x3d0] sm:$0xff]
    %v1369 = vld [vmem:[%s7 + $0x3d8] sm:$0xff]
    %v1370 = vld [vmem:[%s7 + $0x3e0] sm:$0xff]
    %v1371 = vld [vmem:[%s7 + $0x3e8] sm:$0xff]
    %v1372 = vld [vmem:[%s7 + $0x3f0] sm:$0xff]
    %v1373 = vld [vmem:[%s7 + $0x3f8] sm:$0xff]
    %s1374 = scalar_lea.vmem %s0, 2
    %v1375 = vld [vmem:[%s1374] sm:$0x3]
    %v1377 = vsel %vm50, %v1375, 0
    %1379 = vmatpush.msra.mxu0 0.0
    %1380 = vmatpush.msra.mxu0 0.0
    %1381 = vmatpush.msra.mxu0 0.0
    %1382 = vmatpush.msra.mxu0 0.0
    %1383 = vmatpush.msra.mxu0 0.0
    %1384 = vmatpush.msra.mxu0 0.0
    %1385 = vmatpush.msra.mxu0 0.0
    %1386 = vmatpush.msra.mxu0 0.0
    %1387 = vmatpush.msra.mxu0 0.0
    %1388 = vmatpush.msra.mxu0 0.0
    %1389 = vmatpush.msra.mxu0 0.0
    %1390 = vmatpush.msra.mxu0 0.0
    %1391 = vmatpush.msra.mxu0 0.0
    %1392 = vmatpush.msra.mxu0 0.0
    %1393 = vmatpush.msra.mxu0 %v46
    %1394 = vmatpush.msra.mxu0 %v42
    %1395 = vmatmul.f32.gmra.mxu0 %v1377
    %v1396 = vpop.f32.mrf.mxu0
    %v1397 = vadd.f32 0.0, %v1396
    %1398 = vdwg.mxu0
    %1399 = vmatpush.msra.mxu0 0.0
    %1400 = vmatpush.msra.mxu0 0.0
    %1401 = vmatpush.msra.mxu0 0.0
    %1402 = vmatpush.msra.mxu0 0.0
    %1403 = vmatpush.msra.mxu0 0.0
    %1404 = vmatpush.msra.mxu0 0.0
    %1405 = vmatpush.msra.mxu0 0.0
    %1406 = vmatpush.msra.mxu0 0.0
    %1407 = vmatpush.msra.mxu0 0.0
    %1408 = vmatpush.msra.mxu0 0.0
    %1409 = vmatpush.msra.mxu0 0.0
    %1410 = vmatpush.msra.mxu0 0.0
    %1411 = vmatpush.msra.mxu0 0.0
    %1412 = vmatpush.msra.mxu0 0.0
    %1413 = vmatpush.msra.mxu0 %v47
    %1414 = vmatpush.msra.mxu0 %v43
    %1415 = vmatmul.f32.gmra.mxu0 %v1377
    %v1416 = vpop.f32.mrf.mxu0
    %v1417 = vadd.f32 0.0, %v1416
    %1418 = vdwg.mxu0
    %1419 = vmatpush.msra.mxu0 0.0
    %1420 = vmatpush.msra.mxu0 0.0
    %1421 = vmatpush.msra.mxu0 0.0
    %1422 = vmatpush.msra.mxu0 0.0
    %1423 = vmatpush.msra.mxu0 0.0
    %1424 = vmatpush.msra.mxu0 0.0
    %1425 = vmatpush.msra.mxu0 0.0
    %1426 = vmatpush.msra.mxu0 0.0
    %1427 = vmatpush.msra.mxu0 0.0
    %1428 = vmatpush.msra.mxu0 0.0
    %1429 = vmatpush.msra.mxu0 0.0
    %1430 = vmatpush.msra.mxu0 0.0
    %1431 = vmatpush.msra.mxu0 0.0
    %1432 = vmatpush.msra.mxu0 0.0
    %1433 = vmatpush.msra.mxu0 %v48
    %1434 = vmatpush.msra.mxu0 %v44
    %1435 = vmatmul.f32.gmra.mxu0 %v1377
    %v1436 = vpop.f32.mrf.mxu0
    %v1437 = vadd.f32 0.0, %v1436
    %1438 = vdwg.mxu0
    %1439 = vmatpush.msra.mxu0 0.0
    %1440 = vmatpush.msra.mxu0 0.0
    %1441 = vmatpush.msra.mxu0 0.0
    %1442 = vmatpush.msra.mxu0 0.0
    %1443 = vmatpush.msra.mxu0 0.0
    %1444 = vmatpush.msra.mxu0 0.0
    %1445 = vmatpush.msra.mxu0 0.0
    %1446 = vmatpush.msra.mxu0 0.0
    %1447 = vmatpush.msra.mxu0 0.0
    %1448 = vmatpush.msra.mxu0 0.0
    %1449 = vmatpush.msra.mxu0 0.0
    %1450 = vmatpush.msra.mxu0 0.0
    %1451 = vmatpush.msra.mxu0 0.0
    %1452 = vmatpush.msra.mxu0 0.0
    %1453 = vmatpush.msra.mxu0 %v49
    %1454 = vmatpush.msra.mxu0 %v45
    %1455 = vmatmul.f32.gmra.mxu0 %v1377
    %v1456 = vpop.f32.mrf.mxu0
    %v1457 = vadd.f32 0.0, %v1456
    %1458 = vdwg.mxu0
    %v1459 = vadd.f32 %v135, %v1397
    %v1460 = vadd.f32 %v136, %v1417
    %v1461 = vadd.f32 %v137, %v1437
    %v1462 = vadd.f32 %v138, %v1457
    %1463 = vmatpush.msra.mxu0 %v207
    %1464 = vmatpush.msra.mxu0 %v203
    %1465 = vmatpush.msra.mxu0 %v199
    %1466 = vmatpush.msra.mxu0 %v195
    %1467 = vmatpush.msra.mxu0 %v191
    %1468 = vmatpush.msra.mxu0 %v187
    %1469 = vmatpush.msra.mxu0 %v183
    %1470 = vmatpush.msra.mxu0 %v179
    %1471 = vmatpush.msra.mxu0 %v175
    %1472 = vmatpush.msra.mxu0 %v171
    %1473 = vmatpush.msra.mxu0 %v167
    %1474 = vmatpush.msra.mxu0 %v163
    %1475 = vmatpush.msra.mxu0 %v159
    %1476 = vmatpush.msra.mxu0 %v155
    %1477 = vmatpush.msra.mxu0 %v151
    %1478 = vmatpush.msra.mxu0 %v147
    %1479 = vmatmul.f32.gmra.mxu0 %v312
    %v1480 = vpop.f32.mrf.mxu0
    %v1481 = vadd.f32 0.0, %v1480
    %1482 = vdwg.mxu0
    %1483 = vmatpush.msra.mxu0 %v208
    %1484 = vmatpush.msra.mxu0 %v204
    %1485 = vmatpush.msra.mxu0 %v200
    %1486 = vmatpush.msra.mxu0 %v196
    %1487 = vmatpush.msra.mxu0 %v192
    %1488 = vmatpush.msra.mxu0 %v188
    %1489 = vmatpush.msra.mxu0 %v184
    %1490 = vmatpush.msra.mxu0 %v180
    %1491 = vmatpush.msra.mxu0 %v176
    %1492 = vmatpush.msra.mxu0 %v172
    %1493 = vmatpush.msra.mxu0 %v168
    %1494 = vmatpush.msra.mxu0 %v164
    %1495 = vmatpush.msra.mxu0 %v160
    %1496 = vmatpush.msra.mxu0 %v156
    %1497 = vmatpush.msra.mxu0 %v152
    %1498 = vmatpush.msra.mxu0 %v148
    %1499 = vmatmul.f32.gmra.mxu0 %v312
    %v1500 = vpop.f32.mrf.mxu0
    %v1501 = vadd.f32 0.0, %v1500
    %1502 = vdwg.mxu0
    %1503 = vmatpush.msra.mxu0 %v209
    %1504 = vmatpush.msra.mxu0 %v205
    %1505 = vmatpush.msra.mxu0 %v201
    %1506 = vmatpush.msra.mxu0 %v197
    %1507 = vmatpush.msra.mxu0 %v193
    %1508 = vmatpush.msra.mxu0 %v189
    %1509 = vmatpush.msra.mxu0 %v185
    %1510 = vmatpush.msra.mxu0 %v181
    %1511 = vmatpush.msra.mxu0 %v177
    %1512 = vmatpush.msra.mxu0 %v173
    %1513 = vmatpush.msra.mxu0 %v169
    %1514 = vmatpush.msra.mxu0 %v165
    %1515 = vmatpush.msra.mxu0 %v161
    %1516 = vmatpush.msra.mxu0 %v157
    %1517 = vmatpush.msra.mxu0 %v153
    %1518 = vmatpush.msra.mxu0 %v149
    %1519 = vmatmul.f32.gmra.mxu0 %v312
    %v1520 = vpop.f32.mrf.mxu0
    %v1521 = vadd.f32 0.0, %v1520
    %1522 = vdwg.mxu0
    %1523 = vmatpush.msra.mxu0 %v210
    %1524 = vmatpush.msra.mxu0 %v206
    %1525 = vmatpush.msra.mxu0 %v202
    %1526 = vmatpush.msra.mxu0 %v198
    %1527 = vmatpush.msra.mxu0 %v194
    %1528 = vmatpush.msra.mxu0 %v190
    %1529 = vmatpush.msra.mxu0 %v186
    %1530 = vmatpush.msra.mxu0 %v182
    %1531 = vmatpush.msra.mxu0 %v178
    %1532 = vmatpush.msra.mxu0 %v174
    %1533 = vmatpush.msra.mxu0 %v170
    %1534 = vmatpush.msra.mxu0 %v166
    %1535 = vmatpush.msra.mxu0 %v162
    %1536 = vmatpush.msra.mxu0 %v158
    %1537 = vmatpush.msra.mxu0 %v154
    %1538 = vmatpush.msra.mxu0 %v150
    %1539 = vmatmul.f32.gmra.mxu0 %v312
    %v1540 = vpop.f32.mrf.mxu0
    %v1541 = vadd.f32 0.0, %v1540
    %1542 = vdwg.mxu0
    %v1543 = vadd.f32 %v1459, %v1481
    %v1544 = vadd.f32 %v1460, %v1501
    %v1545 = vadd.f32 %v1461, %v1521
    %v1546 = vadd.f32 %v1462, %v1541
    %v1547 = vmul.f32 %v1543, 0.5
    %v1548 = vtanh.pop %v1547
    %v1549 = vadd.f32 %v1548, 1.0
    %v1550 = vmul.f32 %v1549, 0.5
    %v1551 = vmul.f32 %v1544, 0.5
    %v1552 = vtanh.pop %v1551
    %v1553 = vadd.f32 %v1552, 1.0
    %v1554 = vmul.f32 %v1553, 0.5
    %v1555 = vmul.f32 %v1545, 0.5
    %v1556 = vtanh.pop %v1555
    %v1557 = vadd.f32 %v1556, 1.0
    %v1558 = vmul.f32 %v1557, 0.5
    %v1559 = vtanh.pop %v1546
    %v1560 = vmul.f32 %v1554, %v310
    %v1561 = vmul.f32 %v1550, %v1559
    %v1562 = vadd.f32 %v1560, %v1561
    %v1563 = vtanh.pop %v1562
    %v1564 = vmul.f32 %v1558, %v1563
    %1565 = vmatpush.msra.mxu0 %v433
    %1566 = vmatpush.msra.mxu0 %v425
    %1567 = vmatpush.msra.mxu0 %v417
    %1568 = vmatpush.msra.mxu0 %v409
    %1569 = vmatpush.msra.mxu0 %v401
    %1570 = vmatpush.msra.mxu0 %v393
    %1571 = vmatpush.msra.mxu0 %v385
    %1572 = vmatpush.msra.mxu0 %v377
    %1573 = vmatpush.msra.mxu0 %v369
    %1574 = vmatpush.msra.mxu0 %v361
    %1575 = vmatpush.msra.mxu0 %v353
    %1576 = vmatpush.msra.mxu0 %v345
    %1577 = vmatpush.msra.mxu0 %v337
    %1578 = vmatpush.msra.mxu0 %v329
    %1579 = vmatpush.msra.mxu0 %v321
    %1580 = vmatpush.msra.mxu0 %v313
    %1581 = vmatmul.f32.gmra.mxu0 %v1564
    %v1582 = vpop.f32.mrf.mxu0
    %v1583 = vadd.f32 0.0, %v1582
    %1584 = vdwg.mxu0
    %1585 = vmatpush.msra.mxu0 %v434
    %1586 = vmatpush.msra.mxu0 %v426
    %1587 = vmatpush.msra.mxu0 %v418
    %1588 = vmatpush.msra.mxu0 %v410
    %1589 = vmatpush.msra.mxu0 %v402
    %1590 = vmatpush.msra.mxu0 %v394
    %1591 = vmatpush.msra.mxu0 %v386
    %1592 = vmatpush.msra.mxu0 %v378
    %1593 = vmatpush.msra.mxu0 %v370
    %1594 = vmatpush.msra.mxu0 %v362
    %1595 = vmatpush.msra.mxu0 %v354
    %1596 = vmatpush.msra.mxu0 %v346
    %1597 = vmatpush.msra.mxu0 %v338
    %1598 = vmatpush.msra.mxu0 %v330
    %1599 = vmatpush.msra.mxu0 %v322
    %1600 = vmatpush.msra.mxu0 %v314
    %1601 = vmatmul.f32.gmra.mxu0 %v1564
    %v1602 = vpop.f32.mrf.mxu0
    %v1603 = vadd.f32 0.0, %v1602
    %1604 = vdwg.mxu0
    %1605 = vmatpush.msra.mxu0 %v435
    %1606 = vmatpush.msra.mxu0 %v427
    %1607 = vmatpush.msra.mxu0 %v419
    %1608 = vmatpush.msra.mxu0 %v411
    %1609 = vmatpush.msra.mxu0 %v403
    %1610 = vmatpush.msra.mxu0 %v395
    %1611 = vmatpush.msra.mxu0 %v387
    %1612 = vmatpush.msra.mxu0 %v379
    %1613 = vmatpush.msra.mxu0 %v371
    %1614 = vmatpush.msra.mxu0 %v363
    %1615 = vmatpush.msra.mxu0 %v355
    %1616 = vmatpush.msra.mxu0 %v347
    %1617 = vmatpush.msra.mxu0 %v339
    %1618 = vmatpush.msra.mxu0 %v331
    %1619 = vmatpush.msra.mxu0 %v323
    %1620 = vmatpush.msra.mxu0 %v315
    %1621 = vmatmul.f32.gmra.mxu0 %v1564
    %v1622 = vpop.f32.mrf.mxu0
    %v1623 = vadd.f32 0.0, %v1622
    %1624 = vdwg.mxu0
    %1625 = vmatpush.msra.mxu0 %v436
    %1626 = vmatpush.msra.mxu0 %v428
    %1627 = vmatpush.msra.mxu0 %v420
    %1628 = vmatpush.msra.mxu0 %v412
    %1629 = vmatpush.msra.mxu0 %v404
    %1630 = vmatpush.msra.mxu0 %v396
    %1631 = vmatpush.msra.mxu0 %v388
    %1632 = vmatpush.msra.mxu0 %v380
    %1633 = vmatpush.msra.mxu0 %v372
    %1634 = vmatpush.msra.mxu0 %v364
    %1635 = vmatpush.msra.mxu0 %v356
    %1636 = vmatpush.msra.mxu0 %v348
    %1637 = vmatpush.msra.mxu0 %v340
    %1638 = vmatpush.msra.mxu0 %v332
    %1639 = vmatpush.msra.mxu0 %v324
    %1640 = vmatpush.msra.mxu0 %v316
    %1641 = vmatmul.f32.gmra.mxu0 %v1564
    %v1642 = vpop.f32.mrf.mxu0
    %v1643 = vadd.f32 0.0, %v1642
    %1644 = vdwg.mxu0
    %1645 = vmatpush.msra.mxu0 %v437
    %1646 = vmatpush.msra.mxu0 %v429
    %1647 = vmatpush.msra.mxu0 %v421
    %1648 = vmatpush.msra.mxu0 %v413
    %1649 = vmatpush.msra.mxu0 %v405
    %1650 = vmatpush.msra.mxu0 %v397
    %1651 = vmatpush.msra.mxu0 %v389
    %1652 = vmatpush.msra.mxu0 %v381
    %1653 = vmatpush.msra.mxu0 %v373
    %1654 = vmatpush.msra.mxu0 %v365
    %1655 = vmatpush.msra.mxu0 %v357
    %1656 = vmatpush.msra.mxu0 %v349
    %1657 = vmatpush.msra.mxu0 %v341
    %1658 = vmatpush.msra.mxu0 %v333
    %1659 = vmatpush.msra.mxu0 %v325
    %1660 = vmatpush.msra.mxu0 %v317
    %1661 = vmatmul.f32.gmra.mxu0 %v1564
    %v1662 = vpop.f32.mrf.mxu0
    %v1663 = vadd.f32 0.0, %v1662
    %1664 = vdwg.mxu0
    %1665 = vmatpush.msra.mxu0 %v438
    %1666 = vmatpush.msra.mxu0 %v430
    %1667 = vmatpush.msra.mxu0 %v422
    %1668 = vmatpush.msra.mxu0 %v414
    %1669 = vmatpush.msra.mxu0 %v406
    %1670 = vmatpush.msra.mxu0 %v398
    %1671 = vmatpush.msra.mxu0 %v390
    %1672 = vmatpush.msra.mxu0 %v382
    %1673 = vmatpush.msra.mxu0 %v374
    %1674 = vmatpush.msra.mxu0 %v366
    %1675 = vmatpush.msra.mxu0 %v358
    %1676 = vmatpush.msra.mxu0 %v350
    %1677 = vmatpush.msra.mxu0 %v342
    %1678 = vmatpush.msra.mxu0 %v334
    %1679 = vmatpush.msra.mxu0 %v326
    %1680 = vmatpush.msra.mxu0 %v318
    %1681 = vmatmul.f32.gmra.mxu0 %v1564
    %v1682 = vpop.f32.mrf.mxu0
    %v1683 = vadd.f32 0.0, %v1682
    %1684 = vdwg.mxu0
    %1685 = vmatpush.msra.mxu0 %v439
    %1686 = vmatpush.msra.mxu0 %v431
    %1687 = vmatpush.msra.mxu0 %v423
    %1688 = vmatpush.msra.mxu0 %v415
    %1689 = vmatpush.msra.mxu0 %v407
    %1690 = vmatpush.msra.mxu0 %v399
    %1691 = vmatpush.msra.mxu0 %v391
    %1692 = vmatpush.msra.mxu0 %v383
    %1693 = vmatpush.msra.mxu0 %v375
    %1694 = vmatpush.msra.mxu0 %v367
    %1695 = vmatpush.msra.mxu0 %v359
    %1696 = vmatpush.msra.mxu0 %v351
    %1697 = vmatpush.msra.mxu0 %v343
    %1698 = vmatpush.msra.mxu0 %v335
    %1699 = vmatpush.msra.mxu0 %v327
    %1700 = vmatpush.msra.mxu0 %v319
    %1701 = vmatmul.f32.gmra.mxu0 %v1564
    %v1702 = vpop.f32.mrf.mxu0
    %v1703 = vadd.f32 0.0, %v1702
    %1704 = vdwg.mxu0
    %1705 = vmatpush.msra.mxu0 %v440
    %1706 = vmatpush.msra.mxu0 %v432
    %1707 = vmatpush.msra.mxu0 %v424
    %1708 = vmatpush.msra.mxu0 %v416
    %1709 = vmatpush.msra.mxu0 %v408
    %1710 = vmatpush.msra.mxu0 %v400
    %1711 = vmatpush.msra.mxu0 %v392
    %1712 = vmatpush.msra.mxu0 %v384
    %1713 = vmatpush.msra.mxu0 %v376
    %1714 = vmatpush.msra.mxu0 %v368
    %1715 = vmatpush.msra.mxu0 %v360
    %1716 = vmatpush.msra.mxu0 %v352
    %1717 = vmatpush.msra.mxu0 %v344
    %1718 = vmatpush.msra.mxu0 %v336
    %1719 = vmatpush.msra.mxu0 %v328
    %1720 = vmatpush.msra.mxu0 %v320
    %1721 = vmatmul.f32.gmra.mxu0 %v1564
    %v1722 = vpop.f32.mrf.mxu0
    %v1723 = vadd.f32 0.0, %v1722
    %1724 = vdwg.mxu0
    %v1725 = vadd.f32 %v602, %v1583
    %v1726 = vadd.f32 %v603, %v1603
    %v1727 = vadd.f32 %v604, %v1623
    %v1728 = vadd.f32 %v605, %v1643
    %v1729 = vadd.f32 %v606, %v1663
    %v1730 = vadd.f32 %v607, %v1683
    %v1731 = vadd.f32 %v608, %v1703
    %v1732 = vadd.f32 %v609, %v1723
    %1733 = vmatpush.msra.mxu0 %v746
    %1734 = vmatpush.msra.mxu0 %v738
    %1735 = vmatpush.msra.mxu0 %v730
    %1736 = vmatpush.msra.mxu0 %v722
    %1737 = vmatpush.msra.mxu0 %v714
    %1738 = vmatpush.msra.mxu0 %v706
    %1739 = vmatpush.msra.mxu0 %v698
    %1740 = vmatpush.msra.mxu0 %v690
    %1741 = vmatpush.msra.mxu0 %v682
    %1742 = vmatpush.msra.mxu0 %v674
    %1743 = vmatpush.msra.mxu0 %v666
    %1744 = vmatpush.msra.mxu0 %v658
    %1745 = vmatpush.msra.mxu0 %v650
    %1746 = vmatpush.msra.mxu0 %v642
    %1747 = vmatpush.msra.mxu0 %v634
    %1748 = vmatpush.msra.mxu0 %v626
    %1749 = vmatmul.f32.gmra.mxu0 %v1244
    %v1750 = vpop.f32.mrf.mxu0
    %v1751 = vadd.f32 0.0, %v1750
    %1752 = vdwg.mxu0
    %1753 = vmatpush.msra.mxu0 %v874
    %1754 = vmatpush.msra.mxu0 %v866
    %1755 = vmatpush.msra.mxu0 %v858
    %1756 = vmatpush.msra.mxu0 %v850
    %1757 = vmatpush.msra.mxu0 %v842
    %1758 = vmatpush.msra.mxu0 %v834
    %1759 = vmatpush.msra.mxu0 %v826
    %1760 = vmatpush.msra.mxu0 %v818
    %1761 = vmatpush.msra.mxu0 %v810
    %1762 = vmatpush.msra.mxu0 %v802
    %1763 = vmatpush.msra.mxu0 %v794
    %1764 = vmatpush.msra.mxu0 %v786
    %1765 = vmatpush.msra.mxu0 %v778
    %1766 = vmatpush.msra.mxu0 %v770
    %1767 = vmatpush.msra.mxu0 %v762
    %1768 = vmatpush.msra.mxu0 %v754
    %1769 = vmatmul.f32.gmra.mxu0 %v1245
    %v1770 = vpop.f32.mrf.mxu0
    %v1771 = vadd.f32 %v1751, %v1770
    %1772 = vdwg.mxu0
    %1773 = vmatpush.msra.mxu0 %v747
    %1774 = vmatpush.msra.mxu0 %v739
    %1775 = vmatpush.msra.mxu0 %v731
    %1776 = vmatpush.msra.mxu0 %v723
    %1777 = vmatpush.msra.mxu0 %v715
    %1778 = vmatpush.msra.mxu0 %v707
    %1779 = vmatpush.msra.mxu0 %v699
    %1780 = vmatpush.msra.mxu0 %v691
    %1781 = vmatpush.msra.mxu0 %v683
    %1782 = vmatpush.msra.mxu0 %v675
    %1783 = vmatpush.msra.mxu0 %v667
    %1784 = vmatpush.msra.mxu0 %v659
    %1785 = vmatpush.msra.mxu0 %v651
    %1786 = vmatpush.msra.mxu0 %v643
    %1787 = vmatpush.msra.mxu0 %v635
    %1788 = vmatpush.msra.mxu0 %v627
    %1789 = vmatmul.f32.gmra.mxu0 %v1244
    %v1790 = vpop.f32.mrf.mxu0
    %v1791 = vadd.f32 0.0, %v1790
    %1792 = vdwg.mxu0
    %1793 = vmatpush.msra.mxu0 %v875
    %1794 = vmatpush.msra.mxu0 %v867
    %1795 = vmatpush.msra.mxu0 %v859
    %1796 = vmatpush.msra.mxu0 %v851
    %1797 = vmatpush.msra.mxu0 %v843
    %1798 = vmatpush.msra.mxu0 %v835
    %1799 = vmatpush.msra.mxu0 %v827
    %1800 = vmatpush.msra.mxu0 %v819
    %1801 = vmatpush.msra.mxu0 %v811
    %1802 = vmatpush.msra.mxu0 %v803
    %1803 = vmatpush.msra.mxu0 %v795
    %1804 = vmatpush.msra.mxu0 %v787
    %1805 = vmatpush.msra.mxu0 %v779
    %1806 = vmatpush.msra.mxu0 %v771
    %1807 = vmatpush.msra.mxu0 %v763
    %1808 = vmatpush.msra.mxu0 %v755
    %1809 = vmatmul.f32.gmra.mxu0 %v1245
    %v1810 = vpop.f32.mrf.mxu0
    %v1811 = vadd.f32 %v1791, %v1810
    %1812 = vdwg.mxu0
    %1813 = vmatpush.msra.mxu0 %v748
    %1814 = vmatpush.msra.mxu0 %v740
    %1815 = vmatpush.msra.mxu0 %v732
    %1816 = vmatpush.msra.mxu0 %v724
    %1817 = vmatpush.msra.mxu0 %v716
    %1818 = vmatpush.msra.mxu0 %v708
    %1819 = vmatpush.msra.mxu0 %v700
    %1820 = vmatpush.msra.mxu0 %v692
    %1821 = vmatpush.msra.mxu0 %v684
    %1822 = vmatpush.msra.mxu0 %v676
    %1823 = vmatpush.msra.mxu0 %v668
    %1824 = vmatpush.msra.mxu0 %v660
    %1825 = vmatpush.msra.mxu0 %v652
    %1826 = vmatpush.msra.mxu0 %v644
    %1827 = vmatpush.msra.mxu0 %v636
    %1828 = vmatpush.msra.mxu0 %v628
    %1829 = vmatmul.f32.gmra.mxu0 %v1244
    %v1830 = vpop.f32.mrf.mxu0
    %v1831 = vadd.f32 0.0, %v1830
    %1832 = vdwg.mxu0
    %1833 = vmatpush.msra.mxu0 %v876
    %1834 = vmatpush.msra.mxu0 %v868
    %1835 = vmatpush.msra.mxu0 %v860
    %1836 = vmatpush.msra.mxu0 %v852
    %1837 = vmatpush.msra.mxu0 %v844
    %1838 = vmatpush.msra.mxu0 %v836
    %1839 = vmatpush.msra.mxu0 %v828
    %1840 = vmatpush.msra.mxu0 %v820
    %1841 = vmatpush.msra.mxu0 %v812
    %1842 = vmatpush.msra.mxu0 %v804
    %1843 = vmatpush.msra.mxu0 %v796
    %1844 = vmatpush.msra.mxu0 %v788
    %1845 = vmatpush.msra.mxu0 %v780
    %1846 = vmatpush.msra.mxu0 %v772
    %1847 = vmatpush.msra.mxu0 %v764
    %1848 = vmatpush.msra.mxu0 %v756
    %1849 = vmatmul.f32.gmra.mxu0 %v1245
    %v1850 = vpop.f32.mrf.mxu0
    %v1851 = vadd.f32 %v1831, %v1850
    %1852 = vdwg.mxu0
    %1853 = vmatpush.msra.mxu0 %v749
    %1854 = vmatpush.msra.mxu0 %v741
    %1855 = vmatpush.msra.mxu0 %v733
    %1856 = vmatpush.msra.mxu0 %v725
    %1857 = vmatpush.msra.mxu0 %v717
    %1858 = vmatpush.msra.mxu0 %v709
    %1859 = vmatpush.msra.mxu0 %v701
    %1860 = vmatpush.msra.mxu0 %v693
    %1861 = vmatpush.msra.mxu0 %v685
    %1862 = vmatpush.msra.mxu0 %v677
    %1863 = vmatpush.msra.mxu0 %v669
    %1864 = vmatpush.msra.mxu0 %v661
    %1865 = vmatpush.msra.mxu0 %v653
    %1866 = vmatpush.msra.mxu0 %v645
    %1867 = vmatpush.msra.mxu0 %v637
    %1868 = vmatpush.msra.mxu0 %v629
    %1869 = vmatmul.f32.gmra.mxu0 %v1244
    %v1870 = vpop.f32.mrf.mxu0
    %v1871 = vadd.f32 0.0, %v1870
    %1872 = vdwg.mxu0
    %1873 = vmatpush.msra.mxu0 %v877
    %1874 = vmatpush.msra.mxu0 %v869
    %1875 = vmatpush.msra.mxu0 %v861
    %1876 = vmatpush.msra.mxu0 %v853
    %1877 = vmatpush.msra.mxu0 %v845
    %1878 = vmatpush.msra.mxu0 %v837
    %1879 = vmatpush.msra.mxu0 %v829
    %1880 = vmatpush.msra.mxu0 %v821
    %1881 = vmatpush.msra.mxu0 %v813
    %1882 = vmatpush.msra.mxu0 %v805
    %1883 = vmatpush.msra.mxu0 %v797
    %1884 = vmatpush.msra.mxu0 %v789
    %1885 = vmatpush.msra.mxu0 %v781
    %1886 = vmatpush.msra.mxu0 %v773
    %1887 = vmatpush.msra.mxu0 %v765
    %1888 = vmatpush.msra.mxu0 %v757
    %1889 = vmatmul.f32.gmra.mxu0 %v1245
    %v1890 = vpop.f32.mrf.mxu0
    %v1891 = vadd.f32 %v1871, %v1890
    %1892 = vdwg.mxu0
    %1893 = vmatpush.msra.mxu0 %v750
    %1894 = vmatpush.msra.mxu0 %v742
    %1895 = vmatpush.msra.mxu0 %v734
    %1896 = vmatpush.msra.mxu0 %v726
    %1897 = vmatpush.msra.mxu0 %v718
    %1898 = vmatpush.msra.mxu0 %v710
    %1899 = vmatpush.msra.mxu0 %v702
    %1900 = vmatpush.msra.mxu0 %v694
    %1901 = vmatpush.msra.mxu0 %v686
    %1902 = vmatpush.msra.mxu0 %v678
    %1903 = vmatpush.msra.mxu0 %v670
    %1904 = vmatpush.msra.mxu0 %v662
    %1905 = vmatpush.msra.mxu0 %v654
    %1906 = vmatpush.msra.mxu0 %v646
    %1907 = vmatpush.msra.mxu0 %v638
    %1908 = vmatpush.msra.mxu0 %v630
    %1909 = vmatmul.f32.gmra.mxu0 %v1244
    %v1910 = vpop.f32.mrf.mxu0
    %v1911 = vadd.f32 0.0, %v1910
    %1912 = vdwg.mxu0
    %1913 = vmatpush.msra.mxu0 %v878
    %1914 = vmatpush.msra.mxu0 %v870
    %1915 = vmatpush.msra.mxu0 %v862
    %1916 = vmatpush.msra.mxu0 %v854
    %1917 = vmatpush.msra.mxu0 %v846
    %1918 = vmatpush.msra.mxu0 %v838
    %1919 = vmatpush.msra.mxu0 %v830
    %1920 = vmatpush.msra.mxu0 %v822
    %1921 = vmatpush.msra.mxu0 %v814
    %1922 = vmatpush.msra.mxu0 %v806
    %1923 = vmatpush.msra.mxu0 %v798
    %1924 = vmatpush.msra.mxu0 %v790
    %1925 = vmatpush.msra.mxu0 %v782
    %1926 = vmatpush.msra.mxu0 %v774
    %1927 = vmatpush.msra.mxu0 %v766
    %1928 = vmatpush.msra.mxu0 %v758
    %1929 = vmatmul.f32.gmra.mxu0 %v1245
    %v1930 = vpop.f32.mrf.mxu0
    %v1931 = vadd.f32 %v1911, %v1930
    %1932 = vdwg.mxu0
    %1933 = vmatpush.msra.mxu0 %v751
    %1934 = vmatpush.msra.mxu0 %v743
    %1935 = vmatpush.msra.mxu0 %v735
    %1936 = vmatpush.msra.mxu0 %v727
    %1937 = vmatpush.msra.mxu0 %v719
    %1938 = vmatpush.msra.mxu0 %v711
    %1939 = vmatpush.msra.mxu0 %v703
    %1940 = vmatpush.msra.mxu0 %v695
    %1941 = vmatpush.msra.mxu0 %v687
    %1942 = vmatpush.msra.mxu0 %v679
    %1943 = vmatpush.msra.mxu0 %v671
    %1944 = vmatpush.msra.mxu0 %v663
    %1945 = vmatpush.msra.mxu0 %v655
    %1946 = vmatpush.msra.mxu0 %v647
    %1947 = vmatpush.msra.mxu0 %v639
    %1948 = vmatpush.msra.mxu0 %v631
    %1949 = vmatmul.f32.gmra.mxu0 %v1244
    %v1950 = vpop.f32.mrf.mxu0
    %v1951 = vadd.f32 0.0, %v1950
    %1952 = vdwg.mxu0
    %1953 = vmatpush.msra.mxu0 %v879
    %1954 = vmatpush.msra.mxu0 %v871
    %1955 = vmatpush.msra.mxu0 %v863
    %1956 = vmatpush.msra.mxu0 %v855
    %1957 = vmatpush.msra.mxu0 %v847
    %1958 = vmatpush.msra.mxu0 %v839
    %1959 = vmatpush.msra.mxu0 %v831
    %1960 = vmatpush.msra.mxu0 %v823
    %1961 = vmatpush.msra.mxu0 %v815
    %1962 = vmatpush.msra.mxu0 %v807
    %1963 = vmatpush.msra.mxu0 %v799
    %1964 = vmatpush.msra.mxu0 %v791
    %1965 = vmatpush.msra.mxu0 %v783
    %1966 = vmatpush.msra.mxu0 %v775
    %1967 = vmatpush.msra.mxu0 %v767
    %1968 = vmatpush.msra.mxu0 %v759
    %1969 = vmatmul.f32.gmra.mxu0 %v1245
    %v1970 = vpop.f32.mrf.mxu0
    %v1971 = vadd.f32 %v1951, %v1970
    %1972 = vdwg.mxu0
    %1973 = vmatpush.msra.mxu0 %v752
    %1974 = vmatpush.msra.mxu0 %v744
    %1975 = vmatpush.msra.mxu0 %v736
    %1976 = vmatpush.msra.mxu0 %v728
    %1977 = vmatpush.msra.mxu0 %v720
    %1978 = vmatpush.msra.mxu0 %v712
    %1979 = vmatpush.msra.mxu0 %v704
    %1980 = vmatpush.msra.mxu0 %v696
    %1981 = vmatpush.msra.mxu0 %v688
    %1982 = vmatpush.msra.mxu0 %v680
    %1983 = vmatpush.msra.mxu0 %v672
    %1984 = vmatpush.msra.mxu0 %v664
    %1985 = vmatpush.msra.mxu0 %v656
    %1986 = vmatpush.msra.mxu0 %v648
    %1987 = vmatpush.msra.mxu0 %v640
    %1988 = vmatpush.msra.mxu0 %v632
    %1989 = vmatmul.f32.gmra.mxu0 %v1244
    %v1990 = vpop.f32.mrf.mxu0
    %v1991 = vadd.f32 0.0, %v1990
    %1992 = vdwg.mxu0
    %1993 = vmatpush.msra.mxu0 %v880
    %1994 = vmatpush.msra.mxu0 %v872
    %1995 = vmatpush.msra.mxu0 %v864
    %1996 = vmatpush.msra.mxu0 %v856
    %1997 = vmatpush.msra.mxu0 %v848
    %1998 = vmatpush.msra.mxu0 %v840
    %1999 = vmatpush.msra.mxu0 %v832
    %2000 = vmatpush.msra.mxu0 %v824
    %2001 = vmatpush.msra.mxu0 %v816
    %2002 = vmatpush.msra.mxu0 %v808
    %2003 = vmatpush.msra.mxu0 %v800
    %2004 = vmatpush.msra.mxu0 %v792
    %2005 = vmatpush.msra.mxu0 %v784
    %2006 = vmatpush.msra.mxu0 %v776
    %2007 = vmatpush.msra.mxu0 %v768
    %2008 = vmatpush.msra.mxu0 %v760
    %2009 = vmatmul.f32.gmra.mxu0 %v1245
    %v2010 = vpop.f32.mrf.mxu0
    %v2011 = vadd.f32 %v1991, %v2010
    %2012 = vdwg.mxu0
    %2013 = vmatpush.msra.mxu0 %v753
    %2014 = vmatpush.msra.mxu0 %v745
    %2015 = vmatpush.msra.mxu0 %v737
    %2016 = vmatpush.msra.mxu0 %v729
    %2017 = vmatpush.msra.mxu0 %v721
    %2018 = vmatpush.msra.mxu0 %v713
    %2019 = vmatpush.msra.mxu0 %v705
    %2020 = vmatpush.msra.mxu0 %v697
    %2021 = vmatpush.msra.mxu0 %v689
    %2022 = vmatpush.msra.mxu0 %v681
    %2023 = vmatpush.msra.mxu0 %v673
    %2024 = vmatpush.msra.mxu0 %v665
    %2025 = vmatpush.msra.mxu0 %v657
    %2026 = vmatpush.msra.mxu0 %v649
    %2027 = vmatpush.msra.mxu0 %v641
    %2028 = vmatpush.msra.mxu0 %v633
    %2029 = vmatmul.f32.gmra.mxu0 %v1244
    %v2030 = vpop.f32.mrf.mxu0
    %v2031 = vadd.f32 0.0, %v2030
    %2032 = vdwg.mxu0
    %2033 = vmatpush.msra.mxu0 %v881
    %2034 = vmatpush.msra.mxu0 %v873
    %2035 = vmatpush.msra.mxu0 %v865
    %2036 = vmatpush.msra.mxu0 %v857
    %2037 = vmatpush.msra.mxu0 %v849
    %2038 = vmatpush.msra.mxu0 %v841
    %2039 = vmatpush.msra.mxu0 %v833
    %2040 = vmatpush.msra.mxu0 %v825
    %2041 = vmatpush.msra.mxu0 %v817
    %2042 = vmatpush.msra.mxu0 %v809
    %2043 = vmatpush.msra.mxu0 %v801
    %2044 = vmatpush.msra.mxu0 %v793
    %2045 = vmatpush.msra.mxu0 %v785
    %2046 = vmatpush.msra.mxu0 %v777
    %2047 = vmatpush.msra.mxu0 %v769
    %2048 = vmatpush.msra.mxu0 %v761
    %2049 = vmatmul.f32.gmra.mxu0 %v1245
    %v2050 = vpop.f32.mrf.mxu0
    %v2051 = vadd.f32 %v2031, %v2050
    %2052 = vdwg.mxu0
    %v2053 = vadd.f32 %v1725, %v1771
    %v2054 = vadd.f32 %v1726, %v1811
    %v2055 = vadd.f32 %v1727, %v1851
    %v2056 = vadd.f32 %v1728, %v1891
    %v2057 = vadd.f32 %v1729, %v1931
    %v2058 = vadd.f32 %v1730, %v1971
    %v2059 = vadd.f32 %v1731, %v2011
    %v2060 = vadd.f32 %v1732, %v2051
    %v2061 = vmul.f32 %v2053, 0.5
    %v2062 = vmul.f32 %v2054, 0.5
    %v2063 = vtanh.pop %v2061
    %v2064 = vtanh.pop %v2062
    %v2065 = vadd.f32 %v2063, 1.0
    %v2066 = vadd.f32 %v2064, 1.0
    %v2067 = vmul.f32 %v2065, 0.5
    %v2068 = vmul.f32 %v2066, 0.5
    %v2069 = vmul.f32 %v2055, 0.5
    %v2070 = vmul.f32 %v2056, 0.5
    %v2071 = vtanh.pop %v2069
    %v2072 = vtanh.pop %v2070
    %v2073 = vadd.f32 %v2071, 1.0
    %v2074 = vadd.f32 %v2072, 1.0
    %v2075 = vmul.f32 %v2073, 0.5
    %v2076 = vmul.f32 %v2074, 0.5
    %v2077 = vmul.f32 %v2057, 0.5
    %v2078 = vmul.f32 %v2058, 0.5
    %v2079 = vtanh.pop %v2077
    %v2080 = vtanh.pop %v2078
    %v2081 = vadd.f32 %v2079, 1.0
    %v2082 = vadd.f32 %v2080, 1.0
    %v2083 = vmul.f32 %v2081, 0.5
    %v2084 = vmul.f32 %v2082, 0.5
    %v2085 = vtanh.pop %v2059
    %v2086 = vtanh.pop %v2060
    %v2087 = vmul.f32 %v2075, %v1240
    %v2088 = vmul.f32 %v2076, %v1241
    %v2089 = vmul.f32 %v2067, %v2085
    %v2090 = vmul.f32 %v2068, %v2086
    %v2091 = vadd.f32 %v2087, %v2089
    %v2092 = vadd.f32 %v2088, %v2090
    %v2093 = vtanh.pop %v2091
    %v2094 = vtanh.pop %v2092
    %v2095 = vmul.f32 %v2083, %v2093
    %v2096 = vmul.f32 %v2084, %v2094
    %s2097 = scalar_lea.vmem %s7, 1024
    %v2098 = vld [vmem:[%s2097] sm:$0xff]
    %v2099 = vld [vmem:[%s2097 + $0x8] sm:$0xff]
    %v2100 = vld [vmem:[%s2097 + $0x10] sm:$0xff]
    %v2101 = vld [vmem:[%s2097 + $0x18] sm:$0xff]
    %v2102 = vld [vmem:[%s2097 + $0x20] sm:$0xff]
    %v2103 = vld [vmem:[%s2097 + $0x28] sm:$0xff]
    %v2104 = vld [vmem:[%s2097 + $0x30] sm:$0xff]
    %v2105 = vld [vmem:[%s2097 + $0x38] sm:$0xff]
    %v2106 = vld [vmem:[%s2097 + $0x40] sm:$0xff]
    %v2107 = vld [vmem:[%s2097 + $0x48] sm:$0xff]
    %v2108 = vld [vmem:[%s2097 + $0x50] sm:$0xff]
    %v2109 = vld [vmem:[%s2097 + $0x58] sm:$0xff]
    %v2110 = vld [vmem:[%s2097 + $0x60] sm:$0xff]
    %v2111 = vld [vmem:[%s2097 + $0x68] sm:$0xff]
    %v2112 = vld [vmem:[%s2097 + $0x70] sm:$0xff]
    %v2113 = vld [vmem:[%s2097 + $0x78] sm:$0xff]
    %v2114 = vld [vmem:[%s2097 + $0x80] sm:$0xff]
    %v2115 = vld [vmem:[%s2097 + $0x88] sm:$0xff]
    %v2116 = vld [vmem:[%s2097 + $0x90] sm:$0xff]
    %v2117 = vld [vmem:[%s2097 + $0x98] sm:$0xff]
    %v2118 = vld [vmem:[%s2097 + $0xa0] sm:$0xff]
    %v2119 = vld [vmem:[%s2097 + $0xa8] sm:$0xff]
    %v2120 = vld [vmem:[%s2097 + $0xb0] sm:$0xff]
    %v2121 = vld [vmem:[%s2097 + $0xb8] sm:$0xff]
    %v2122 = vld [vmem:[%s2097 + $0xc0] sm:$0xff]
    %v2123 = vld [vmem:[%s2097 + $0xc8] sm:$0xff]
    %v2124 = vld [vmem:[%s2097 + $0xd0] sm:$0xff]
    %v2125 = vld [vmem:[%s2097 + $0xd8] sm:$0xff]
    %v2126 = vld [vmem:[%s2097 + $0xe0] sm:$0xff]
    %v2127 = vld [vmem:[%s2097 + $0xe8] sm:$0xff]
    %v2128 = vld [vmem:[%s2097 + $0xf0] sm:$0xff]
    %v2129 = vld [vmem:[%s2097 + $0xf8] sm:$0xff]
    %v2130 = vld [vmem:[%s2097 + $0x100] sm:$0xff]
    %v2131 = vld [vmem:[%s2097 + $0x108] sm:$0xff]
    %v2132 = vld [vmem:[%s2097 + $0x110] sm:$0xff]
    %v2133 = vld [vmem:[%s2097 + $0x118] sm:$0xff]
    %v2134 = vld [vmem:[%s2097 + $0x120] sm:$0xff]
    %v2135 = vld [vmem:[%s2097 + $0x128] sm:$0xff]
    %v2136 = vld [vmem:[%s2097 + $0x130] sm:$0xff]
    %v2137 = vld [vmem:[%s2097 + $0x138] sm:$0xff]
    %v2138 = vld [vmem:[%s2097 + $0x140] sm:$0xff]
    %v2139 = vld [vmem:[%s2097 + $0x148] sm:$0xff]
    %v2140 = vld [vmem:[%s2097 + $0x150] sm:$0xff]
    %v2141 = vld [vmem:[%s2097 + $0x158] sm:$0xff]
    %v2142 = vld [vmem:[%s2097 + $0x160] sm:$0xff]
    %v2143 = vld [vmem:[%s2097 + $0x168] sm:$0xff]
    %v2144 = vld [vmem:[%s2097 + $0x170] sm:$0xff]
    %v2145 = vld [vmem:[%s2097 + $0x178] sm:$0xff]
    %v2146 = vld [vmem:[%s2097 + $0x180] sm:$0xff]
    %v2147 = vld [vmem:[%s2097 + $0x188] sm:$0xff]
    %v2148 = vld [vmem:[%s2097 + $0x190] sm:$0xff]
    %v2149 = vld [vmem:[%s2097 + $0x198] sm:$0xff]
    %v2150 = vld [vmem:[%s2097 + $0x1a0] sm:$0xff]
    %v2151 = vld [vmem:[%s2097 + $0x1a8] sm:$0xff]
    %v2152 = vld [vmem:[%s2097 + $0x1b0] sm:$0xff]
    %v2153 = vld [vmem:[%s2097 + $0x1b8] sm:$0xff]
    %v2154 = vld [vmem:[%s2097 + $0x1c0] sm:$0xff]
    %v2155 = vld [vmem:[%s2097 + $0x1c8] sm:$0xff]
    %v2156 = vld [vmem:[%s2097 + $0x1d0] sm:$0xff]
    %v2157 = vld [vmem:[%s2097 + $0x1d8] sm:$0xff]
    %v2158 = vld [vmem:[%s2097 + $0x1e0] sm:$0xff]
    %v2159 = vld [vmem:[%s2097 + $0x1e8] sm:$0xff]
    %v2160 = vld [vmem:[%s2097 + $0x1f0] sm:$0xff]
    %v2161 = vld [vmem:[%s2097 + $0x1f8] sm:$0xff]
    %v2162 = vld [vmem:[%s2097 + $0x200] sm:$0xff]
    %v2163 = vld [vmem:[%s2097 + $0x208] sm:$0xff]
    %v2164 = vld [vmem:[%s2097 + $0x210] sm:$0xff]
    %v2165 = vld [vmem:[%s2097 + $0x218] sm:$0xff]
    %v2166 = vld [vmem:[%s2097 + $0x220] sm:$0xff]
    %v2167 = vld [vmem:[%s2097 + $0x228] sm:$0xff]
    %v2168 = vld [vmem:[%s2097 + $0x230] sm:$0xff]
    %v2169 = vld [vmem:[%s2097 + $0x238] sm:$0xff]
    %v2170 = vld [vmem:[%s2097 + $0x240] sm:$0xff]
    %v2171 = vld [vmem:[%s2097 + $0x248] sm:$0xff]
    %v2172 = vld [vmem:[%s2097 + $0x250] sm:$0xff]
    %v2173 = vld [vmem:[%s2097 + $0x258] sm:$0xff]
    %v2174 = vld [vmem:[%s2097 + $0x260] sm:$0xff]
    %v2175 = vld [vmem:[%s2097 + $0x268] sm:$0xff]
    %v2176 = vld [vmem:[%s2097 + $0x270] sm:$0xff]
    %v2177 = vld [vmem:[%s2097 + $0x278] sm:$0xff]
    %v2178 = vld [vmem:[%s2097 + $0x280] sm:$0xff]
    %v2179 = vld [vmem:[%s2097 + $0x288] sm:$0xff]
    %v2180 = vld [vmem:[%s2097 + $0x290] sm:$0xff]
    %v2181 = vld [vmem:[%s2097 + $0x298] sm:$0xff]
    %v2182 = vld [vmem:[%s2097 + $0x2a0] sm:$0xff]
    %v2183 = vld [vmem:[%s2097 + $0x2a8] sm:$0xff]
    %v2184 = vld [vmem:[%s2097 + $0x2b0] sm:$0xff]
    %v2185 = vld [vmem:[%s2097 + $0x2b8] sm:$0xff]
    %v2186 = vld [vmem:[%s2097 + $0x2c0] sm:$0xff]
    %v2187 = vld [vmem:[%s2097 + $0x2c8] sm:$0xff]
    %v2188 = vld [vmem:[%s2097 + $0x2d0] sm:$0xff]
    %v2189 = vld [vmem:[%s2097 + $0x2d8] sm:$0xff]
    %v2190 = vld [vmem:[%s2097 + $0x2e0] sm:$0xff]
    %v2191 = vld [vmem:[%s2097 + $0x2e8] sm:$0xff]
    %v2192 = vld [vmem:[%s2097 + $0x2f0] sm:$0xff]
    %v2193 = vld [vmem:[%s2097 + $0x2f8] sm:$0xff]
    %v2194 = vld [vmem:[%s2097 + $0x300] sm:$0xff]
    %v2195 = vld [vmem:[%s2097 + $0x308] sm:$0xff]
    %v2196 = vld [vmem:[%s2097 + $0x310] sm:$0xff]
    %v2197 = vld [vmem:[%s2097 + $0x318] sm:$0xff]
    %v2198 = vld [vmem:[%s2097 + $0x320] sm:$0xff]
    %v2199 = vld [vmem:[%s2097 + $0x328] sm:$0xff]
    %v2200 = vld [vmem:[%s2097 + $0x330] sm:$0xff]
    %v2201 = vld [vmem:[%s2097 + $0x338] sm:$0xff]
    %v2202 = vld [vmem:[%s2097 + $0x340] sm:$0xff]
    %v2203 = vld [vmem:[%s2097 + $0x348] sm:$0xff]
    %v2204 = vld [vmem:[%s2097 + $0x350] sm:$0xff]
    %v2205 = vld [vmem:[%s2097 + $0x358] sm:$0xff]
    %v2206 = vld [vmem:[%s2097 + $0x360] sm:$0xff]
    %v2207 = vld [vmem:[%s2097 + $0x368] sm:$0xff]
    %v2208 = vld [vmem:[%s2097 + $0x370] sm:$0xff]
    %v2209 = vld [vmem:[%s2097 + $0x378] sm:$0xff]
    %v2210 = vld [vmem:[%s2097 + $0x380] sm:$0xff]
    %v2211 = vld [vmem:[%s2097 + $0x388] sm:$0xff]
    %v2212 = vld [vmem:[%s2097 + $0x390] sm:$0xff]
    %v2213 = vld [vmem:[%s2097 + $0x398] sm:$0xff]
    %v2214 = vld [vmem:[%s2097 + $0x3a0] sm:$0xff]
    %v2215 = vld [vmem:[%s2097 + $0x3a8] sm:$0xff]
    %v2216 = vld [vmem:[%s2097 + $0x3b0] sm:$0xff]
    %v2217 = vld [vmem:[%s2097 + $0x3b8] sm:$0xff]
    %v2218 = vld [vmem:[%s2097 + $0x3c0] sm:$0xff]
    %v2219 = vld [vmem:[%s2097 + $0x3c8] sm:$0xff]
    %v2220 = vld [vmem:[%s2097 + $0x3d0] sm:$0xff]
    %v2221 = vld [vmem:[%s2097 + $0x3d8] sm:$0xff]
    %v2222 = vld [vmem:[%s2097 + $0x3e0] sm:$0xff]
    %v2223 = vld [vmem:[%s2097 + $0x3e8] sm:$0xff]
    %v2224 = vld [vmem:[%s2097 + $0x3f0] sm:$0xff]
    %v2225 = vld [vmem:[%s2097 + $0x3f8] sm:$0xff]
    %2226 = vmatpush.msra.mxu0 %v2158
    %2227 = vmatpush.msra.mxu0 %v2154
    %2228 = vmatpush.msra.mxu0 %v2150
    %2229 = vmatpush.msra.mxu0 %v2146
    %2230 = vmatpush.msra.mxu0 %v2142
    %2231 = vmatpush.msra.mxu0 %v2138
    %2232 = vmatpush.msra.mxu0 %v2134
    %2233 = vmatpush.msra.mxu0 %v2130
    %2234 = vmatpush.msra.mxu0 %v2126
    %2235 = vmatpush.msra.mxu0 %v2122
    %2236 = vmatpush.msra.mxu0 %v2118
    %2237 = vmatpush.msra.mxu0 %v2114
    %2238 = vmatpush.msra.mxu0 %v2110
    %2239 = vmatpush.msra.mxu0 %v2106
    %2240 = vmatpush.msra.mxu0 %v2102
    %2241 = vmatpush.msra.mxu0 %v2098
    %2242 = vmatmul.f32.gmra.mxu0 %v2095
    %v2243 = vpop.f32.mrf.mxu0
    %v2244 = vadd.f32 0.0, %v2243
    %2245 = vdwg.mxu0
    %2246 = vmatpush.msra.mxu0 %v2222
    %2247 = vmatpush.msra.mxu0 %v2218
    %2248 = vmatpush.msra.mxu0 %v2214
    %2249 = vmatpush.msra.mxu0 %v2210
    %2250 = vmatpush.msra.mxu0 %v2206
    %2251 = vmatpush.msra.mxu0 %v2202
    %2252 = vmatpush.msra.mxu0 %v2198
    %2253 = vmatpush.msra.mxu0 %v2194
    %2254 = vmatpush.msra.mxu0 %v2190
    %2255 = vmatpush.msra.mxu0 %v2186
    %2256 = vmatpush.msra.mxu0 %v2182
    %2257 = vmatpush.msra.mxu0 %v2178
    %2258 = vmatpush.msra.mxu0 %v2174
    %2259 = vmatpush.msra.mxu0 %v2170
    %2260 = vmatpush.msra.mxu0 %v2166
    %2261 = vmatpush.msra.mxu0 %v2162
    %2262 = vmatmul.f32.gmra.mxu0 %v2096
    %v2263 = vpop.f32.mrf.mxu0
    %v2264 = vadd.f32 %v2244, %v2263
    %2265 = vdwg.mxu0
    %2266 = vmatpush.msra.mxu0 %v2159
    %2267 = vmatpush.msra.mxu0 %v2155
    %2268 = vmatpush.msra.mxu0 %v2151
    %2269 = vmatpush.msra.mxu0 %v2147
    %2270 = vmatpush.msra.mxu0 %v2143
    %2271 = vmatpush.msra.mxu0 %v2139
    %2272 = vmatpush.msra.mxu0 %v2135
    %2273 = vmatpush.msra.mxu0 %v2131
    %2274 = vmatpush.msra.mxu0 %v2127
    %2275 = vmatpush.msra.mxu0 %v2123
    %2276 = vmatpush.msra.mxu0 %v2119
    %2277 = vmatpush.msra.mxu0 %v2115
    %2278 = vmatpush.msra.mxu0 %v2111
    %2279 = vmatpush.msra.mxu0 %v2107
    %2280 = vmatpush.msra.mxu0 %v2103
    %2281 = vmatpush.msra.mxu0 %v2099
    %2282 = vmatmul.f32.gmra.mxu0 %v2095
    %v2283 = vpop.f32.mrf.mxu0
    %v2284 = vadd.f32 0.0, %v2283
    %2285 = vdwg.mxu0
    %2286 = vmatpush.msra.mxu0 %v2223
    %2287 = vmatpush.msra.mxu0 %v2219
    %2288 = vmatpush.msra.mxu0 %v2215
    %2289 = vmatpush.msra.mxu0 %v2211
    %2290 = vmatpush.msra.mxu0 %v2207
    %2291 = vmatpush.msra.mxu0 %v2203
    %2292 = vmatpush.msra.mxu0 %v2199
    %2293 = vmatpush.msra.mxu0 %v2195
    %2294 = vmatpush.msra.mxu0 %v2191
    %2295 = vmatpush.msra.mxu0 %v2187
    %2296 = vmatpush.msra.mxu0 %v2183
    %2297 = vmatpush.msra.mxu0 %v2179
    %2298 = vmatpush.msra.mxu0 %v2175
    %2299 = vmatpush.msra.mxu0 %v2171
    %2300 = vmatpush.msra.mxu0 %v2167
    %2301 = vmatpush.msra.mxu0 %v2163
    %2302 = vmatmul.f32.gmra.mxu0 %v2096
    %v2303 = vpop.f32.mrf.mxu0
    %v2304 = vadd.f32 %v2284, %v2303
    %2305 = vdwg.mxu0
    %2306 = vmatpush.msra.mxu0 %v2160
    %2307 = vmatpush.msra.mxu0 %v2156
    %2308 = vmatpush.msra.mxu0 %v2152
    %2309 = vmatpush.msra.mxu0 %v2148
    %2310 = vmatpush.msra.mxu0 %v2144
    %2311 = vmatpush.msra.mxu0 %v2140
    %2312 = vmatpush.msra.mxu0 %v2136
    %2313 = vmatpush.msra.mxu0 %v2132
    %2314 = vmatpush.msra.mxu0 %v2128
    %2315 = vmatpush.msra.mxu0 %v2124
    %2316 = vmatpush.msra.mxu0 %v2120
    %2317 = vmatpush.msra.mxu0 %v2116
    %2318 = vmatpush.msra.mxu0 %v2112
    %2319 = vmatpush.msra.mxu0 %v2108
    %2320 = vmatpush.msra.mxu0 %v2104
    %2321 = vmatpush.msra.mxu0 %v2100
    %2322 = vmatmul.f32.gmra.mxu0 %v2095
    %v2323 = vpop.f32.mrf.mxu0
    %v2324 = vadd.f32 0.0, %v2323
    %2325 = vdwg.mxu0
    %2326 = vmatpush.msra.mxu0 %v2224
    %2327 = vmatpush.msra.mxu0 %v2220
    %2328 = vmatpush.msra.mxu0 %v2216
    %2329 = vmatpush.msra.mxu0 %v2212
    %2330 = vmatpush.msra.mxu0 %v2208
    %2331 = vmatpush.msra.mxu0 %v2204
    %2332 = vmatpush.msra.mxu0 %v2200
    %2333 = vmatpush.msra.mxu0 %v2196
    %2334 = vmatpush.msra.mxu0 %v2192
    %2335 = vmatpush.msra.mxu0 %v2188
    %2336 = vmatpush.msra.mxu0 %v2184
    %2337 = vmatpush.msra.mxu0 %v2180
    %2338 = vmatpush.msra.mxu0 %v2176
    %2339 = vmatpush.msra.mxu0 %v2172
    %2340 = vmatpush.msra.mxu0 %v2168
    %2341 = vmatpush.msra.mxu0 %v2164
    %2342 = vmatmul.f32.gmra.mxu0 %v2096
    %v2343 = vpop.f32.mrf.mxu0
    %v2344 = vadd.f32 %v2324, %v2343
    %2345 = vdwg.mxu0
    %2346 = vmatpush.msra.mxu0 %v2161
    %2347 = vmatpush.msra.mxu0 %v2157
    %2348 = vmatpush.msra.mxu0 %v2153
    %2349 = vmatpush.msra.mxu0 %v2149
    %2350 = vmatpush.msra.mxu0 %v2145
    %2351 = vmatpush.msra.mxu0 %v2141
    %2352 = vmatpush.msra.mxu0 %v2137
    %2353 = vmatpush.msra.mxu0 %v2133
    %2354 = vmatpush.msra.mxu0 %v2129
    %2355 = vmatpush.msra.mxu0 %v2125
    %2356 = vmatpush.msra.mxu0 %v2121
    %2357 = vmatpush.msra.mxu0 %v2117
    %2358 = vmatpush.msra.mxu0 %v2113
    %2359 = vmatpush.msra.mxu0 %v2109
    %2360 = vmatpush.msra.mxu0 %v2105
    %2361 = vmatpush.msra.mxu0 %v2101
    %2362 = vmatmul.f32.gmra.mxu0 %v2095
    %v2363 = vpop.f32.mrf.mxu0
    %v2364 = vadd.f32 0.0, %v2363
    %2365 = vdwg.mxu0
    %2366 = vmatpush.msra.mxu0 %v2225
    %2367 = vmatpush.msra.mxu0 %v2221
    %2368 = vmatpush.msra.mxu0 %v2217
    %2369 = vmatpush.msra.mxu0 %v2213
    %2370 = vmatpush.msra.mxu0 %v2209
    %2371 = vmatpush.msra.mxu0 %v2205
    %2372 = vmatpush.msra.mxu0 %v2201
    %2373 = vmatpush.msra.mxu0 %v2197
    %2374 = vmatpush.msra.mxu0 %v2193
    %2375 = vmatpush.msra.mxu0 %v2189
    %2376 = vmatpush.msra.mxu0 %v2185
    %2377 = vmatpush.msra.mxu0 %v2181
    %2378 = vmatpush.msra.mxu0 %v2177
    %2379 = vmatpush.msra.mxu0 %v2173
    %2380 = vmatpush.msra.mxu0 %v2169
    %2381 = vmatpush.msra.mxu0 %v2165
    %2382 = vmatmul.f32.gmra.mxu0 %v2096
    %v2383 = vpop.f32.mrf.mxu0
    %v2384 = vadd.f32 %v2364, %v2383
    %2385 = vdwg.mxu0
    %2386 = vmatpush.msra.mxu0 %v1306
    %2387 = vmatpush.msra.mxu0 %v1302
    %2388 = vmatpush.msra.mxu0 %v1298
    %2389 = vmatpush.msra.mxu0 %v1294
    %2390 = vmatpush.msra.mxu0 %v1290
    %2391 = vmatpush.msra.mxu0 %v1286
    %2392 = vmatpush.msra.mxu0 %v1282
    %2393 = vmatpush.msra.mxu0 %v1278
    %2394 = vmatpush.msra.mxu0 %v1274
    %2395 = vmatpush.msra.mxu0 %v1270
    %2396 = vmatpush.msra.mxu0 %v1266
    %2397 = vmatpush.msra.mxu0 %v1262
    %2398 = vmatpush.msra.mxu0 %v1258
    %2399 = vmatpush.msra.mxu0 %v1254
    %2400 = vmatpush.msra.mxu0 %v1250
    %2401 = vmatpush.msra.mxu0 %v1246
    %2402 = vmatmul.f32.gmra.mxu0 %v1244
    %v2403 = vpop.f32.mrf.mxu0
    %v2404 = vadd.f32 %v2264, %v2403
    %2405 = vdwg.mxu0
    %2406 = vmatpush.msra.mxu0 %v1370
    %2407 = vmatpush.msra.mxu0 %v1366
    %2408 = vmatpush.msra.mxu0 %v1362
    %2409 = vmatpush.msra.mxu0 %v1358
    %2410 = vmatpush.msra.mxu0 %v1354
    %2411 = vmatpush.msra.mxu0 %v1350
    %2412 = vmatpush.msra.mxu0 %v1346
    %2413 = vmatpush.msra.mxu0 %v1342
    %2414 = vmatpush.msra.mxu0 %v1338
    %2415 = vmatpush.msra.mxu0 %v1334
    %2416 = vmatpush.msra.mxu0 %v1330
    %2417 = vmatpush.msra.mxu0 %v1326
    %2418 = vmatpush.msra.mxu0 %v1322
    %2419 = vmatpush.msra.mxu0 %v1318
    %2420 = vmatpush.msra.mxu0 %v1314
    %2421 = vmatpush.msra.mxu0 %v1310
    %2422 = vmatmul.f32.gmra.mxu0 %v1245
    %v2423 = vpop.f32.mrf.mxu0
    %v2424 = vadd.f32 %v2404, %v2423
    %2425 = vdwg.mxu0
    %2426 = vmatpush.msra.mxu0 %v1307
    %2427 = vmatpush.msra.mxu0 %v1303
    %2428 = vmatpush.msra.mxu0 %v1299
    %2429 = vmatpush.msra.mxu0 %v1295
    %2430 = vmatpush.msra.mxu0 %v1291
    %2431 = vmatpush.msra.mxu0 %v1287
    %2432 = vmatpush.msra.mxu0 %v1283
    %2433 = vmatpush.msra.mxu0 %v1279
    %2434 = vmatpush.msra.mxu0 %v1275
    %2435 = vmatpush.msra.mxu0 %v1271
    %2436 = vmatpush.msra.mxu0 %v1267
    %2437 = vmatpush.msra.mxu0 %v1263
    %2438 = vmatpush.msra.mxu0 %v1259
    %2439 = vmatpush.msra.mxu0 %v1255
    %2440 = vmatpush.msra.mxu0 %v1251
    %2441 = vmatpush.msra.mxu0 %v1247
    %2442 = vmatmul.f32.gmra.mxu0 %v1244
    %v2443 = vpop.f32.mrf.mxu0
    %v2444 = vadd.f32 %v2304, %v2443
    %2445 = vdwg.mxu0
    %2446 = vmatpush.msra.mxu0 %v1371
    %2447 = vmatpush.msra.mxu0 %v1367
    %2448 = vmatpush.msra.mxu0 %v1363
    %2449 = vmatpush.msra.mxu0 %v1359
    %2450 = vmatpush.msra.mxu0 %v1355
    %2451 = vmatpush.msra.mxu0 %v1351
    %2452 = vmatpush.msra.mxu0 %v1347
    %2453 = vmatpush.msra.mxu0 %v1343
    %2454 = vmatpush.msra.mxu0 %v1339
    %2455 = vmatpush.msra.mxu0 %v1335
    %2456 = vmatpush.msra.mxu0 %v1331
    %2457 = vmatpush.msra.mxu0 %v1327
    %2458 = vmatpush.msra.mxu0 %v1323
    %2459 = vmatpush.msra.mxu0 %v1319
    %2460 = vmatpush.msra.mxu0 %v1315
    %2461 = vmatpush.msra.mxu0 %v1311
    %2462 = vmatmul.f32.gmra.mxu0 %v1245
    %v2463 = vpop.f32.mrf.mxu0
    %v2464 = vadd.f32 %v2444, %v2463
    %2465 = vdwg.mxu0
    %2466 = vmatpush.msra.mxu0 %v1308
    %2467 = vmatpush.msra.mxu0 %v1304
    %2468 = vmatpush.msra.mxu0 %v1300
    %2469 = vmatpush.msra.mxu0 %v1296
    %2470 = vmatpush.msra.mxu0 %v1292
    %2471 = vmatpush.msra.mxu0 %v1288
    %2472 = vmatpush.msra.mxu0 %v1284
    %2473 = vmatpush.msra.mxu0 %v1280
    %2474 = vmatpush.msra.mxu0 %v1276
    %2475 = vmatpush.msra.mxu0 %v1272
    %2476 = vmatpush.msra.mxu0 %v1268
    %2477 = vmatpush.msra.mxu0 %v1264
    %2478 = vmatpush.msra.mxu0 %v1260
    %2479 = vmatpush.msra.mxu0 %v1256
    %2480 = vmatpush.msra.mxu0 %v1252
    %2481 = vmatpush.msra.mxu0 %v1248
    %2482 = vmatmul.f32.gmra.mxu0 %v1244
    %v2483 = vpop.f32.mrf.mxu0
    %v2484 = vadd.f32 %v2344, %v2483
    %2485 = vdwg.mxu0
    %2486 = vmatpush.msra.mxu0 %v1372
    %2487 = vmatpush.msra.mxu0 %v1368
    %2488 = vmatpush.msra.mxu0 %v1364
    %2489 = vmatpush.msra.mxu0 %v1360
    %2490 = vmatpush.msra.mxu0 %v1356
    %2491 = vmatpush.msra.mxu0 %v1352
    %2492 = vmatpush.msra.mxu0 %v1348
    %2493 = vmatpush.msra.mxu0 %v1344
    %2494 = vmatpush.msra.mxu0 %v1340
    %2495 = vmatpush.msra.mxu0 %v1336
    %2496 = vmatpush.msra.mxu0 %v1332
    %2497 = vmatpush.msra.mxu0 %v1328
    %2498 = vmatpush.msra.mxu0 %v1324
    %2499 = vmatpush.msra.mxu0 %v1320
    %2500 = vmatpush.msra.mxu0 %v1316
    %2501 = vmatpush.msra.mxu0 %v1312
    %2502 = vmatmul.f32.gmra.mxu0 %v1245
    %v2503 = vpop.f32.mrf.mxu0
    %v2504 = vadd.f32 %v2484, %v2503
    %2505 = vdwg.mxu0
    %2506 = vmatpush.msra.mxu0 %v1309
    %2507 = vmatpush.msra.mxu0 %v1305
    %2508 = vmatpush.msra.mxu0 %v1301
    %2509 = vmatpush.msra.mxu0 %v1297
    %2510 = vmatpush.msra.mxu0 %v1293
    %2511 = vmatpush.msra.mxu0 %v1289
    %2512 = vmatpush.msra.mxu0 %v1285
    %2513 = vmatpush.msra.mxu0 %v1281
    %2514 = vmatpush.msra.mxu0 %v1277
    %2515 = vmatpush.msra.mxu0 %v1273
    %2516 = vmatpush.msra.mxu0 %v1269
    %2517 = vmatpush.msra.mxu0 %v1265
    %2518 = vmatpush.msra.mxu0 %v1261
    %2519 = vmatpush.msra.mxu0 %v1257
    %2520 = vmatpush.msra.mxu0 %v1253
    %2521 = vmatpush.msra.mxu0 %v1249
    %2522 = vmatmul.f32.gmra.mxu0 %v1244
    %v2523 = vpop.f32.mrf.mxu0
    %v2524 = vadd.f32 %v2384, %v2523
    %2525 = vdwg.mxu0
    %2526 = vmatpush.msra.mxu0 %v1373
    %2527 = vmatpush.msra.mxu0 %v1369
    %2528 = vmatpush.msra.mxu0 %v1365
    %2529 = vmatpush.msra.mxu0 %v1361
    %2530 = vmatpush.msra.mxu0 %v1357
    %2531 = vmatpush.msra.mxu0 %v1353
    %2532 = vmatpush.msra.mxu0 %v1349
    %2533 = vmatpush.msra.mxu0 %v1345
    %2534 = vmatpush.msra.mxu0 %v1341
    %2535 = vmatpush.msra.mxu0 %v1337
    %2536 = vmatpush.msra.mxu0 %v1333
    %2537 = vmatpush.msra.mxu0 %v1329
    %2538 = vmatpush.msra.mxu0 %v1325
    %2539 = vmatpush.msra.mxu0 %v1321
    %2540 = vmatpush.msra.mxu0 %v1317
    %2541 = vmatpush.msra.mxu0 %v1313
    %2542 = vmatmul.f32.gmra.mxu0 %v1245
    %v2543 = vpop.f32.mrf.mxu0
    %v2544 = vadd.f32 %v2524, %v2543
    %2545 = vdwg.mxu0
    %s2546 = scalar_lea.vmem %s0, 4
    %v2547 = vld [vmem:[%s2546] sm:$0x3]
    %v2549 = vsel %vm50, %v2547, 0
    %2551 = vmatpush.msra.mxu0 0.0
    %2552 = vmatpush.msra.mxu0 0.0
    %2553 = vmatpush.msra.mxu0 0.0
    %2554 = vmatpush.msra.mxu0 0.0
    %2555 = vmatpush.msra.mxu0 0.0
    %2556 = vmatpush.msra.mxu0 0.0
    %2557 = vmatpush.msra.mxu0 0.0
    %2558 = vmatpush.msra.mxu0 0.0
    %2559 = vmatpush.msra.mxu0 0.0
    %2560 = vmatpush.msra.mxu0 0.0
    %2561 = vmatpush.msra.mxu0 0.0
    %2562 = vmatpush.msra.mxu0 0.0
    %2563 = vmatpush.msra.mxu0 0.0
    %2564 = vmatpush.msra.mxu0 0.0
    %2565 = vmatpush.msra.mxu0 %v46
    %2566 = vmatpush.msra.mxu0 %v42
    %2567 = vmatmul.f32.gmra.mxu0 %v2549
    %v2568 = vpop.f32.mrf.mxu0
    %v2569 = vadd.f32 0.0, %v2568
    %2570 = vdwg.mxu0
    %2571 = vmatpush.msra.mxu0 0.0
    %2572 = vmatpush.msra.mxu0 0.0
    %2573 = vmatpush.msra.mxu0 0.0
    %2574 = vmatpush.msra.mxu0 0.0
    %2575 = vmatpush.msra.mxu0 0.0
    %2576 = vmatpush.msra.mxu0 0.0
    %2577 = vmatpush.msra.mxu0 0.0
    %2578 = vmatpush.msra.mxu0 0.0
    %2579 = vmatpush.msra.mxu0 0.0
    %2580 = vmatpush.msra.mxu0 0.0
    %2581 = vmatpush.msra.mxu0 0.0
    %2582 = vmatpush.msra.mxu0 0.0
    %2583 = vmatpush.msra.mxu0 0.0
    %2584 = vmatpush.msra.mxu0 0.0
    %2585 = vmatpush.msra.mxu0 %v47
    %2586 = vmatpush.msra.mxu0 %v43
    %2587 = vmatmul.f32.gmra.mxu0 %v2549
    %v2588 = vpop.f32.mrf.mxu0
    %v2589 = vadd.f32 0.0, %v2588
    %2590 = vdwg.mxu0
    %2591 = vmatpush.msra.mxu0 0.0
    %2592 = vmatpush.msra.mxu0 0.0
    %2593 = vmatpush.msra.mxu0 0.0
    %2594 = vmatpush.msra.mxu0 0.0
    %2595 = vmatpush.msra.mxu0 0.0
    %2596 = vmatpush.msra.mxu0 0.0
    %2597 = vmatpush.msra.mxu0 0.0
    %2598 = vmatpush.msra.mxu0 0.0
    %2599 = vmatpush.msra.mxu0 0.0
    %2600 = vmatpush.msra.mxu0 0.0
    %2601 = vmatpush.msra.mxu0 0.0
    %2602 = vmatpush.msra.mxu0 0.0
    %2603 = vmatpush.msra.mxu0 0.0
    %2604 = vmatpush.msra.mxu0 0.0
    %2605 = vmatpush.msra.mxu0 %v48
    %2606 = vmatpush.msra.mxu0 %v44
    %2607 = vmatmul.f32.gmra.mxu0 %v2549
    %v2608 = vpop.f32.mrf.mxu0
    %v2609 = vadd.f32 0.0, %v2608
    %2610 = vdwg.mxu0
    %2611 = vmatpush.msra.mxu0 0.0
    %2612 = vmatpush.msra.mxu0 0.0
    %2613 = vmatpush.msra.mxu0 0.0
    %2614 = vmatpush.msra.mxu0 0.0
    %2615 = vmatpush.msra.mxu0 0.0
    %2616 = vmatpush.msra.mxu0 0.0
    %2617 = vmatpush.msra.mxu0 0.0
    %2618 = vmatpush.msra.mxu0 0.0
    %2619 = vmatpush.msra.mxu0 0.0
    %2620 = vmatpush.msra.mxu0 0.0
    %2621 = vmatpush.msra.mxu0 0.0
    %2622 = vmatpush.msra.mxu0 0.0
    %2623 = vmatpush.msra.mxu0 0.0
    %2624 = vmatpush.msra.mxu0 0.0
    %2625 = vmatpush.msra.mxu0 %v49
    %2626 = vmatpush.msra.mxu0 %v45
    %2627 = vmatmul.f32.gmra.mxu0 %v2549
    %v2628 = vpop.f32.mrf.mxu0
    %v2629 = vadd.f32 0.0, %v2628
    %2630 = vdwg.mxu0
    %v2631 = vadd.f32 %v135, %v2569
    %v2632 = vadd.f32 %v136, %v2589
    %v2633 = vadd.f32 %v137, %v2609
    %v2634 = vadd.f32 %v138, %v2629
    %2635 = vmatpush.msra.mxu0 %v207
    %2636 = vmatpush.msra.mxu0 %v203
    %2637 = vmatpush.msra.mxu0 %v199
    %2638 = vmatpush.msra.mxu0 %v195
    %2639 = vmatpush.msra.mxu0 %v191
    %2640 = vmatpush.msra.mxu0 %v187
    %2641 = vmatpush.msra.mxu0 %v183
    %2642 = vmatpush.msra.mxu0 %v179
    %2643 = vmatpush.msra.mxu0 %v175
    %2644 = vmatpush.msra.mxu0 %v171
    %2645 = vmatpush.msra.mxu0 %v167
    %2646 = vmatpush.msra.mxu0 %v163
    %2647 = vmatpush.msra.mxu0 %v159
    %2648 = vmatpush.msra.mxu0 %v155
    %2649 = vmatpush.msra.mxu0 %v151
    %2650 = vmatpush.msra.mxu0 %v147
    %2651 = vmatmul.f32.gmra.mxu0 %v1564
    %v2652 = vpop.f32.mrf.mxu0
    %v2653 = vadd.f32 0.0, %v2652
    %2654 = vdwg.mxu0
    %2655 = vmatpush.msra.mxu0 %v208
    %2656 = vmatpush.msra.mxu0 %v204
    %2657 = vmatpush.msra.mxu0 %v200
    %2658 = vmatpush.msra.mxu0 %v196
    %2659 = vmatpush.msra.mxu0 %v192
    %2660 = vmatpush.msra.mxu0 %v188
    %2661 = vmatpush.msra.mxu0 %v184
    %2662 = vmatpush.msra.mxu0 %v180
    %2663 = vmatpush.msra.mxu0 %v176
    %2664 = vmatpush.msra.mxu0 %v172
    %2665 = vmatpush.msra.mxu0 %v168
    %2666 = vmatpush.msra.mxu0 %v164
    %2667 = vmatpush.msra.mxu0 %v160
    %2668 = vmatpush.msra.mxu0 %v156
    %2669 = vmatpush.msra.mxu0 %v152
    %2670 = vmatpush.msra.mxu0 %v148
    %2671 = vmatmul.f32.gmra.mxu0 %v1564
    %v2672 = vpop.f32.mrf.mxu0
    %v2673 = vadd.f32 0.0, %v2672
    %2674 = vdwg.mxu0
    %2675 = vmatpush.msra.mxu0 %v209
    %2676 = vmatpush.msra.mxu0 %v205
    %2677 = vmatpush.msra.mxu0 %v201
    %2678 = vmatpush.msra.mxu0 %v197
    %2679 = vmatpush.msra.mxu0 %v193
    %2680 = vmatpush.msra.mxu0 %v189
    %2681 = vmatpush.msra.mxu0 %v185
    %2682 = vmatpush.msra.mxu0 %v181
    %2683 = vmatpush.msra.mxu0 %v177
    %2684 = vmatpush.msra.mxu0 %v173
    %2685 = vmatpush.msra.mxu0 %v169
    %2686 = vmatpush.msra.mxu0 %v165
    %2687 = vmatpush.msra.mxu0 %v161
    %2688 = vmatpush.msra.mxu0 %v157
    %2689 = vmatpush.msra.mxu0 %v153
    %2690 = vmatpush.msra.mxu0 %v149
    %2691 = vmatmul.f32.gmra.mxu0 %v1564
    %v2692 = vpop.f32.mrf.mxu0
    %v2693 = vadd.f32 0.0, %v2692
    %2694 = vdwg.mxu0
    %2695 = vmatpush.msra.mxu0 %v210
    %2696 = vmatpush.msra.mxu0 %v206
    %2697 = vmatpush.msra.mxu0 %v202
    %2698 = vmatpush.msra.mxu0 %v198
    %2699 = vmatpush.msra.mxu0 %v194
    %2700 = vmatpush.msra.mxu0 %v190
    %2701 = vmatpush.msra.mxu0 %v186
    %2702 = vmatpush.msra.mxu0 %v182
    %2703 = vmatpush.msra.mxu0 %v178
    %2704 = vmatpush.msra.mxu0 %v174
    %2705 = vmatpush.msra.mxu0 %v170
    %2706 = vmatpush.msra.mxu0 %v166
    %2707 = vmatpush.msra.mxu0 %v162
    %2708 = vmatpush.msra.mxu0 %v158
    %2709 = vmatpush.msra.mxu0 %v154
    %2710 = vmatpush.msra.mxu0 %v150
    %2711 = vmatmul.f32.gmra.mxu0 %v1564
    %v2712 = vpop.f32.mrf.mxu0
    %v2713 = vadd.f32 0.0, %v2712
    %2714 = vdwg.mxu0
    %v2715 = vadd.f32 %v2631, %v2653
    %v2716 = vadd.f32 %v2632, %v2673
    %v2717 = vadd.f32 %v2633, %v2693
    %v2718 = vadd.f32 %v2634, %v2713
    %v2719 = vmul.f32 %v2715, 0.5
    %v2720 = vtanh.pop %v2719
    %v2721 = vadd.f32 %v2720, 1.0
    %v2722 = vmul.f32 %v2721, 0.5
    %v2723 = vmul.f32 %v2716, 0.5
    %v2724 = vtanh.pop %v2723
    %v2725 = vadd.f32 %v2724, 1.0
    %v2726 = vmul.f32 %v2725, 0.5
    %v2727 = vmul.f32 %v2717, 0.5
    %v2728 = vtanh.pop %v2727
    %v2729 = vadd.f32 %v2728, 1.0
    %v2730 = vmul.f32 %v2729, 0.5
    %v2731 = vtanh.pop %v2718
    %v2732 = vmul.f32 %v2726, %v1562
    %v2733 = vmul.f32 %v2722, %v2731
    %v2734 = vadd.f32 %v2732, %v2733
    %v2735 = vtanh.pop %v2734
    %v2736 = vmul.f32 %v2730, %v2735
    %2737 = vmatpush.msra.mxu0 %v433
    %2738 = vmatpush.msra.mxu0 %v425
    %2739 = vmatpush.msra.mxu0 %v417
    %2740 = vmatpush.msra.mxu0 %v409
    %2741 = vmatpush.msra.mxu0 %v401
    %2742 = vmatpush.msra.mxu0 %v393
    %2743 = vmatpush.msra.mxu0 %v385
    %2744 = vmatpush.msra.mxu0 %v377
    %2745 = vmatpush.msra.mxu0 %v369
    %2746 = vmatpush.msra.mxu0 %v361
    %2747 = vmatpush.msra.mxu0 %v353
    %2748 = vmatpush.msra.mxu0 %v345
    %2749 = vmatpush.msra.mxu0 %v337
    %2750 = vmatpush.msra.mxu0 %v329
    %2751 = vmatpush.msra.mxu0 %v321
    %2752 = vmatpush.msra.mxu0 %v313
    %2753 = vmatmul.f32.gmra.mxu0 %v2736
    %v2754 = vpop.f32.mrf.mxu0
    %v2755 = vadd.f32 0.0, %v2754
    %2756 = vdwg.mxu0
    %2757 = vmatpush.msra.mxu0 %v434
    %2758 = vmatpush.msra.mxu0 %v426
    %2759 = vmatpush.msra.mxu0 %v418
    %2760 = vmatpush.msra.mxu0 %v410
    %2761 = vmatpush.msra.mxu0 %v402
    %2762 = vmatpush.msra.mxu0 %v394
    %2763 = vmatpush.msra.mxu0 %v386
    %2764 = vmatpush.msra.mxu0 %v378
    %2765 = vmatpush.msra.mxu0 %v370
    %2766 = vmatpush.msra.mxu0 %v362
    %2767 = vmatpush.msra.mxu0 %v354
    %2768 = vmatpush.msra.mxu0 %v346
    %2769 = vmatpush.msra.mxu0 %v338
    %2770 = vmatpush.msra.mxu0 %v330
    %2771 = vmatpush.msra.mxu0 %v322
    %2772 = vmatpush.msra.mxu0 %v314
    %2773 = vmatmul.f32.gmra.mxu0 %v2736
    %v2774 = vpop.f32.mrf.mxu0
    %v2775 = vadd.f32 0.0, %v2774
    %2776 = vdwg.mxu0
    %2777 = vmatpush.msra.mxu0 %v435
    %2778 = vmatpush.msra.mxu0 %v427
    %2779 = vmatpush.msra.mxu0 %v419
    %2780 = vmatpush.msra.mxu0 %v411
    %2781 = vmatpush.msra.mxu0 %v403
    %2782 = vmatpush.msra.mxu0 %v395
    %2783 = vmatpush.msra.mxu0 %v387
    %2784 = vmatpush.msra.mxu0 %v379
    %2785 = vmatpush.msra.mxu0 %v371
    %2786 = vmatpush.msra.mxu0 %v363
    %2787 = vmatpush.msra.mxu0 %v355
    %2788 = vmatpush.msra.mxu0 %v347
    %2789 = vmatpush.msra.mxu0 %v339
    %2790 = vmatpush.msra.mxu0 %v331
    %2791 = vmatpush.msra.mxu0 %v323
    %2792 = vmatpush.msra.mxu0 %v315
    %2793 = vmatmul.f32.gmra.mxu0 %v2736
    %v2794 = vpop.f32.mrf.mxu0
    %v2795 = vadd.f32 0.0, %v2794
    %2796 = vdwg.mxu0
    %2797 = vmatpush.msra.mxu0 %v436
    %2798 = vmatpush.msra.mxu0 %v428
    %2799 = vmatpush.msra.mxu0 %v420
    %2800 = vmatpush.msra.mxu0 %v412
    %2801 = vmatpush.msra.mxu0 %v404
    %2802 = vmatpush.msra.mxu0 %v396
    %2803 = vmatpush.msra.mxu0 %v388
    %2804 = vmatpush.msra.mxu0 %v380
    %2805 = vmatpush.msra.mxu0 %v372
    %2806 = vmatpush.msra.mxu0 %v364
    %2807 = vmatpush.msra.mxu0 %v356
    %2808 = vmatpush.msra.mxu0 %v348
    %2809 = vmatpush.msra.mxu0 %v340
    %2810 = vmatpush.msra.mxu0 %v332
    %2811 = vmatpush.msra.mxu0 %v324
    %2812 = vmatpush.msra.mxu0 %v316
    %2813 = vmatmul.f32.gmra.mxu0 %v2736
    %v2814 = vpop.f32.mrf.mxu0
    %v2815 = vadd.f32 0.0, %v2814
    %2816 = vdwg.mxu0
    %2817 = vmatpush.msra.mxu0 %v437
    %2818 = vmatpush.msra.mxu0 %v429
    %2819 = vmatpush.msra.mxu0 %v421
    %2820 = vmatpush.msra.mxu0 %v413
    %2821 = vmatpush.msra.mxu0 %v405
    %2822 = vmatpush.msra.mxu0 %v397
    %2823 = vmatpush.msra.mxu0 %v389
    %2824 = vmatpush.msra.mxu0 %v381
    %2825 = vmatpush.msra.mxu0 %v373
    %2826 = vmatpush.msra.mxu0 %v365
    %2827 = vmatpush.msra.mxu0 %v357
    %2828 = vmatpush.msra.mxu0 %v349
    %2829 = vmatpush.msra.mxu0 %v341
    %2830 = vmatpush.msra.mxu0 %v333
    %2831 = vmatpush.msra.mxu0 %v325
    %2832 = vmatpush.msra.mxu0 %v317
    %2833 = vmatmul.f32.gmra.mxu0 %v2736
    %v2834 = vpop.f32.mrf.mxu0
    %v2835 = vadd.f32 0.0, %v2834
    %2836 = vdwg.mxu0
    %2837 = vmatpush.msra.mxu0 %v438
    %2838 = vmatpush.msra.mxu0 %v430
    %2839 = vmatpush.msra.mxu0 %v422
    %2840 = vmatpush.msra.mxu0 %v414
    %2841 = vmatpush.msra.mxu0 %v406
    %2842 = vmatpush.msra.mxu0 %v398
    %2843 = vmatpush.msra.mxu0 %v390
    %2844 = vmatpush.msra.mxu0 %v382
    %2845 = vmatpush.msra.mxu0 %v374
    %2846 = vmatpush.msra.mxu0 %v366
    %2847 = vmatpush.msra.mxu0 %v358
    %2848 = vmatpush.msra.mxu0 %v350
    %2849 = vmatpush.msra.mxu0 %v342
    %2850 = vmatpush.msra.mxu0 %v334
    %2851 = vmatpush.msra.mxu0 %v326
    %2852 = vmatpush.msra.mxu0 %v318
    %2853 = vmatmul.f32.gmra.mxu0 %v2736
    %v2854 = vpop.f32.mrf.mxu0
    %v2855 = vadd.f32 0.0, %v2854
    %2856 = vdwg.mxu0
    %2857 = vmatpush.msra.mxu0 %v439
    %2858 = vmatpush.msra.mxu0 %v431
    %2859 = vmatpush.msra.mxu0 %v423
    %2860 = vmatpush.msra.mxu0 %v415
    %2861 = vmatpush.msra.mxu0 %v407
    %2862 = vmatpush.msra.mxu0 %v399
    %2863 = vmatpush.msra.mxu0 %v391
    %2864 = vmatpush.msra.mxu0 %v383
    %2865 = vmatpush.msra.mxu0 %v375
    %2866 = vmatpush.msra.mxu0 %v367
    %2867 = vmatpush.msra.mxu0 %v359
    %2868 = vmatpush.msra.mxu0 %v351
    %2869 = vmatpush.msra.mxu0 %v343
    %2870 = vmatpush.msra.mxu0 %v335
    %2871 = vmatpush.msra.mxu0 %v327
    %2872 = vmatpush.msra.mxu0 %v319
    %2873 = vmatmul.f32.gmra.mxu0 %v2736
    %v2874 = vpop.f32.mrf.mxu0
    %v2875 = vadd.f32 0.0, %v2874
    %2876 = vdwg.mxu0
    %2877 = vmatpush.msra.mxu0 %v440
    %2878 = vmatpush.msra.mxu0 %v432
    %2879 = vmatpush.msra.mxu0 %v424
    %2880 = vmatpush.msra.mxu0 %v416
    %2881 = vmatpush.msra.mxu0 %v408
    %2882 = vmatpush.msra.mxu0 %v400
    %2883 = vmatpush.msra.mxu0 %v392
    %2884 = vmatpush.msra.mxu0 %v384
    %2885 = vmatpush.msra.mxu0 %v376
    %2886 = vmatpush.msra.mxu0 %v368
    %2887 = vmatpush.msra.mxu0 %v360
    %2888 = vmatpush.msra.mxu0 %v352
    %2889 = vmatpush.msra.mxu0 %v344
    %2890 = vmatpush.msra.mxu0 %v336
    %2891 = vmatpush.msra.mxu0 %v328
    %2892 = vmatpush.msra.mxu0 %v320
    %2893 = vmatmul.f32.gmra.mxu0 %v2736
    %v2894 = vpop.f32.mrf.mxu0
    %v2895 = vadd.f32 0.0, %v2894
    %2896 = vdwg.mxu0
    %v2897 = vadd.f32 %v602, %v2755
    %v2898 = vadd.f32 %v603, %v2775
    %v2899 = vadd.f32 %v604, %v2795
    %v2900 = vadd.f32 %v605, %v2815
    %v2901 = vadd.f32 %v606, %v2835
    %v2902 = vadd.f32 %v607, %v2855
    %v2903 = vadd.f32 %v608, %v2875
    %v2904 = vadd.f32 %v609, %v2895
    %2905 = vmatpush.msra.mxu0 %v746
    %2906 = vmatpush.msra.mxu0 %v738
    %2907 = vmatpush.msra.mxu0 %v730
    %2908 = vmatpush.msra.mxu0 %v722
    %2909 = vmatpush.msra.mxu0 %v714
    %2910 = vmatpush.msra.mxu0 %v706
    %2911 = vmatpush.msra.mxu0 %v698
    %2912 = vmatpush.msra.mxu0 %v690
    %2913 = vmatpush.msra.mxu0 %v682
    %2914 = vmatpush.msra.mxu0 %v674
    %2915 = vmatpush.msra.mxu0 %v666
    %2916 = vmatpush.msra.mxu0 %v658
    %2917 = vmatpush.msra.mxu0 %v650
    %2918 = vmatpush.msra.mxu0 %v642
    %2919 = vmatpush.msra.mxu0 %v634
    %2920 = vmatpush.msra.mxu0 %v626
    %2921 = vmatmul.f32.gmra.mxu0 %v2095
    %v2922 = vpop.f32.mrf.mxu0
    %v2923 = vadd.f32 0.0, %v2922
    %2924 = vdwg.mxu0
    %2925 = vmatpush.msra.mxu0 %v874
    %2926 = vmatpush.msra.mxu0 %v866
    %2927 = vmatpush.msra.mxu0 %v858
    %2928 = vmatpush.msra.mxu0 %v850
    %2929 = vmatpush.msra.mxu0 %v842
    %2930 = vmatpush.msra.mxu0 %v834
    %2931 = vmatpush.msra.mxu0 %v826
    %2932 = vmatpush.msra.mxu0 %v818
    %2933 = vmatpush.msra.mxu0 %v810
    %2934 = vmatpush.msra.mxu0 %v802
    %2935 = vmatpush.msra.mxu0 %v794
    %2936 = vmatpush.msra.mxu0 %v786
    %2937 = vmatpush.msra.mxu0 %v778
    %2938 = vmatpush.msra.mxu0 %v770
    %2939 = vmatpush.msra.mxu0 %v762
    %2940 = vmatpush.msra.mxu0 %v754
    %2941 = vmatmul.f32.gmra.mxu0 %v2096
    %v2942 = vpop.f32.mrf.mxu0
    %v2943 = vadd.f32 %v2923, %v2942
    %2944 = vdwg.mxu0
    %2945 = vmatpush.msra.mxu0 %v747
    %2946 = vmatpush.msra.mxu0 %v739
    %2947 = vmatpush.msra.mxu0 %v731
    %2948 = vmatpush.msra.mxu0 %v723
    %2949 = vmatpush.msra.mxu0 %v715
    %2950 = vmatpush.msra.mxu0 %v707
    %2951 = vmatpush.msra.mxu0 %v699
    %2952 = vmatpush.msra.mxu0 %v691
    %2953 = vmatpush.msra.mxu0 %v683
    %2954 = vmatpush.msra.mxu0 %v675
    %2955 = vmatpush.msra.mxu0 %v667
    %2956 = vmatpush.msra.mxu0 %v659
    %2957 = vmatpush.msra.mxu0 %v651
    %2958 = vmatpush.msra.mxu0 %v643
    %2959 = vmatpush.msra.mxu0 %v635
    %2960 = vmatpush.msra.mxu0 %v627
    %2961 = vmatmul.f32.gmra.mxu0 %v2095
    %v2962 = vpop.f32.mrf.mxu0
    %v2963 = vadd.f32 0.0, %v2962
    %2964 = vdwg.mxu0
    %2965 = vmatpush.msra.mxu0 %v875
    %2966 = vmatpush.msra.mxu0 %v867
    %2967 = vmatpush.msra.mxu0 %v859
    %2968 = vmatpush.msra.mxu0 %v851
    %2969 = vmatpush.msra.mxu0 %v843
    %2970 = vmatpush.msra.mxu0 %v835
    %2971 = vmatpush.msra.mxu0 %v827
    %2972 = vmatpush.msra.mxu0 %v819
    %2973 = vmatpush.msra.mxu0 %v811
    %2974 = vmatpush.msra.mxu0 %v803
    %2975 = vmatpush.msra.mxu0 %v795
    %2976 = vmatpush.msra.mxu0 %v787
    %2977 = vmatpush.msra.mxu0 %v779
    %2978 = vmatpush.msra.mxu0 %v771
    %2979 = vmatpush.msra.mxu0 %v763
    %2980 = vmatpush.msra.mxu0 %v755
    %2981 = vmatmul.f32.gmra.mxu0 %v2096
    %v2982 = vpop.f32.mrf.mxu0
    %v2983 = vadd.f32 %v2963, %v2982
    %2984 = vdwg.mxu0
    %2985 = vmatpush.msra.mxu0 %v748
    %2986 = vmatpush.msra.mxu0 %v740
    %2987 = vmatpush.msra.mxu0 %v732
    %2988 = vmatpush.msra.mxu0 %v724
    %2989 = vmatpush.msra.mxu0 %v716
    %2990 = vmatpush.msra.mxu0 %v708
    %2991 = vmatpush.msra.mxu0 %v700
    %2992 = vmatpush.msra.mxu0 %v692
    %2993 = vmatpush.msra.mxu0 %v684
    %2994 = vmatpush.msra.mxu0 %v676
    %2995 = vmatpush.msra.mxu0 %v668
    %2996 = vmatpush.msra.mxu0 %v660
    %2997 = vmatpush.msra.mxu0 %v652
    %2998 = vmatpush.msra.mxu0 %v644
    %2999 = vmatpush.msra.mxu0 %v636
    %3000 = vmatpush.msra.mxu0 %v628
    %3001 = vmatmul.f32.gmra.mxu0 %v2095
    %v3002 = vpop.f32.mrf.mxu0
    %v3003 = vadd.f32 0.0, %v3002
    %3004 = vdwg.mxu0
    %3005 = vmatpush.msra.mxu0 %v876
    %3006 = vmatpush.msra.mxu0 %v868
    %3007 = vmatpush.msra.mxu0 %v860
    %3008 = vmatpush.msra.mxu0 %v852
    %3009 = vmatpush.msra.mxu0 %v844
    %3010 = vmatpush.msra.mxu0 %v836
    %3011 = vmatpush.msra.mxu0 %v828
    %3012 = vmatpush.msra.mxu0 %v820
    %3013 = vmatpush.msra.mxu0 %v812
    %3014 = vmatpush.msra.mxu0 %v804
    %3015 = vmatpush.msra.mxu0 %v796
    %3016 = vmatpush.msra.mxu0 %v788
    %3017 = vmatpush.msra.mxu0 %v780
    %3018 = vmatpush.msra.mxu0 %v772
    %3019 = vmatpush.msra.mxu0 %v764
    %3020 = vmatpush.msra.mxu0 %v756
    %3021 = vmatmul.f32.gmra.mxu0 %v2096
    %v3022 = vpop.f32.mrf.mxu0
    %v3023 = vadd.f32 %v3003, %v3022
    %3024 = vdwg.mxu0
    %3025 = vmatpush.msra.mxu0 %v749
    %3026 = vmatpush.msra.mxu0 %v741
    %3027 = vmatpush.msra.mxu0 %v733
    %3028 = vmatpush.msra.mxu0 %v725
    %3029 = vmatpush.msra.mxu0 %v717
    %3030 = vmatpush.msra.mxu0 %v709
    %3031 = vmatpush.msra.mxu0 %v701
    %3032 = vmatpush.msra.mxu0 %v693
    %3033 = vmatpush.msra.mxu0 %v685
    %3034 = vmatpush.msra.mxu0 %v677
    %3035 = vmatpush.msra.mxu0 %v669
    %3036 = vmatpush.msra.mxu0 %v661
    %3037 = vmatpush.msra.mxu0 %v653
    %3038 = vmatpush.msra.mxu0 %v645
    %3039 = vmatpush.msra.mxu0 %v637
    %3040 = vmatpush.msra.mxu0 %v629
    %3041 = vmatmul.f32.gmra.mxu0 %v2095
    %v3042 = vpop.f32.mrf.mxu0
    %v3043 = vadd.f32 0.0, %v3042
    %3044 = vdwg.mxu0
    %3045 = vmatpush.msra.mxu0 %v877
    %3046 = vmatpush.msra.mxu0 %v869
    %3047 = vmatpush.msra.mxu0 %v861
    %3048 = vmatpush.msra.mxu0 %v853
    %3049 = vmatpush.msra.mxu0 %v845
    %3050 = vmatpush.msra.mxu0 %v837
    %3051 = vmatpush.msra.mxu0 %v829
    %3052 = vmatpush.msra.mxu0 %v821
    %3053 = vmatpush.msra.mxu0 %v813
    %3054 = vmatpush.msra.mxu0 %v805
    %3055 = vmatpush.msra.mxu0 %v797
    %3056 = vmatpush.msra.mxu0 %v789
    %3057 = vmatpush.msra.mxu0 %v781
    %3058 = vmatpush.msra.mxu0 %v773
    %3059 = vmatpush.msra.mxu0 %v765
    %3060 = vmatpush.msra.mxu0 %v757
    %3061 = vmatmul.f32.gmra.mxu0 %v2096
    %v3062 = vpop.f32.mrf.mxu0
    %v3063 = vadd.f32 %v3043, %v3062
    %3064 = vdwg.mxu0
    %3065 = vmatpush.msra.mxu0 %v750
    %3066 = vmatpush.msra.mxu0 %v742
    %3067 = vmatpush.msra.mxu0 %v734
    %3068 = vmatpush.msra.mxu0 %v726
    %3069 = vmatpush.msra.mxu0 %v718
    %3070 = vmatpush.msra.mxu0 %v710
    %3071 = vmatpush.msra.mxu0 %v702
    %3072 = vmatpush.msra.mxu0 %v694
    %3073 = vmatpush.msra.mxu0 %v686
    %3074 = vmatpush.msra.mxu0 %v678
    %3075 = vmatpush.msra.mxu0 %v670
    %3076 = vmatpush.msra.mxu0 %v662
    %3077 = vmatpush.msra.mxu0 %v654
    %3078 = vmatpush.msra.mxu0 %v646
    %3079 = vmatpush.msra.mxu0 %v638
    %3080 = vmatpush.msra.mxu0 %v630
    %3081 = vmatmul.f32.gmra.mxu0 %v2095
    %v3082 = vpop.f32.mrf.mxu0
    %v3083 = vadd.f32 0.0, %v3082
    %3084 = vdwg.mxu0
    %3085 = vmatpush.msra.mxu0 %v878
    %3086 = vmatpush.msra.mxu0 %v870
    %3087 = vmatpush.msra.mxu0 %v862
    %3088 = vmatpush.msra.mxu0 %v854
    %3089 = vmatpush.msra.mxu0 %v846
    %3090 = vmatpush.msra.mxu0 %v838
    %3091 = vmatpush.msra.mxu0 %v830
    %3092 = vmatpush.msra.mxu0 %v822
    %3093 = vmatpush.msra.mxu0 %v814
    %3094 = vmatpush.msra.mxu0 %v806
    %3095 = vmatpush.msra.mxu0 %v798
    %3096 = vmatpush.msra.mxu0 %v790
    %3097 = vmatpush.msra.mxu0 %v782
    %3098 = vmatpush.msra.mxu0 %v774
    %3099 = vmatpush.msra.mxu0 %v766
    %3100 = vmatpush.msra.mxu0 %v758
    %3101 = vmatmul.f32.gmra.mxu0 %v2096
    %v3102 = vpop.f32.mrf.mxu0
    %v3103 = vadd.f32 %v3083, %v3102
    %3104 = vdwg.mxu0
    %3105 = vmatpush.msra.mxu0 %v751
    %3106 = vmatpush.msra.mxu0 %v743
    %3107 = vmatpush.msra.mxu0 %v735
    %3108 = vmatpush.msra.mxu0 %v727
    %3109 = vmatpush.msra.mxu0 %v719
    %3110 = vmatpush.msra.mxu0 %v711
    %3111 = vmatpush.msra.mxu0 %v703
    %3112 = vmatpush.msra.mxu0 %v695
    %3113 = vmatpush.msra.mxu0 %v687
    %3114 = vmatpush.msra.mxu0 %v679
    %3115 = vmatpush.msra.mxu0 %v671
    %3116 = vmatpush.msra.mxu0 %v663
    %3117 = vmatpush.msra.mxu0 %v655
    %3118 = vmatpush.msra.mxu0 %v647
    %3119 = vmatpush.msra.mxu0 %v639
    %3120 = vmatpush.msra.mxu0 %v631
    %3121 = vmatmul.f32.gmra.mxu0 %v2095
    %v3122 = vpop.f32.mrf.mxu0
    %v3123 = vadd.f32 0.0, %v3122
    %3124 = vdwg.mxu0
    %3125 = vmatpush.msra.mxu0 %v879
    %3126 = vmatpush.msra.mxu0 %v871
    %3127 = vmatpush.msra.mxu0 %v863
    %3128 = vmatpush.msra.mxu0 %v855
    %3129 = vmatpush.msra.mxu0 %v847
    %3130 = vmatpush.msra.mxu0 %v839
    %3131 = vmatpush.msra.mxu0 %v831
    %3132 = vmatpush.msra.mxu0 %v823
    %3133 = vmatpush.msra.mxu0 %v815
    %3134 = vmatpush.msra.mxu0 %v807
    %3135 = vmatpush.msra.mxu0 %v799
    %3136 = vmatpush.msra.mxu0 %v791
    %3137 = vmatpush.msra.mxu0 %v783
    %3138 = vmatpush.msra.mxu0 %v775
    %3139 = vmatpush.msra.mxu0 %v767
    %3140 = vmatpush.msra.mxu0 %v759
    %3141 = vmatmul.f32.gmra.mxu0 %v2096
    %v3142 = vpop.f32.mrf.mxu0
    %v3143 = vadd.f32 %v3123, %v3142
    %3144 = vdwg.mxu0
    %3145 = vmatpush.msra.mxu0 %v752
    %3146 = vmatpush.msra.mxu0 %v744
    %3147 = vmatpush.msra.mxu0 %v736
    %3148 = vmatpush.msra.mxu0 %v728
    %3149 = vmatpush.msra.mxu0 %v720
    %3150 = vmatpush.msra.mxu0 %v712
    %3151 = vmatpush.msra.mxu0 %v704
    %3152 = vmatpush.msra.mxu0 %v696
    %3153 = vmatpush.msra.mxu0 %v688
    %3154 = vmatpush.msra.mxu0 %v680
    %3155 = vmatpush.msra.mxu0 %v672
    %3156 = vmatpush.msra.mxu0 %v664
    %3157 = vmatpush.msra.mxu0 %v656
    %3158 = vmatpush.msra.mxu0 %v648
    %3159 = vmatpush.msra.mxu0 %v640
    %3160 = vmatpush.msra.mxu0 %v632
    %3161 = vmatmul.f32.gmra.mxu0 %v2095
    %v3162 = vpop.f32.mrf.mxu0
    %v3163 = vadd.f32 0.0, %v3162
    %3164 = vdwg.mxu0
    %3165 = vmatpush.msra.mxu0 %v880
    %3166 = vmatpush.msra.mxu0 %v872
    %3167 = vmatpush.msra.mxu0 %v864
    %3168 = vmatpush.msra.mxu0 %v856
    %3169 = vmatpush.msra.mxu0 %v848
    %3170 = vmatpush.msra.mxu0 %v840
    %3171 = vmatpush.msra.mxu0 %v832
    %3172 = vmatpush.msra.mxu0 %v824
    %3173 = vmatpush.msra.mxu0 %v816
    %3174 = vmatpush.msra.mxu0 %v808
    %3175 = vmatpush.msra.mxu0 %v800
    %3176 = vmatpush.msra.mxu0 %v792
    %3177 = vmatpush.msra.mxu0 %v784
    %3178 = vmatpush.msra.mxu0 %v776
    %3179 = vmatpush.msra.mxu0 %v768
    %3180 = vmatpush.msra.mxu0 %v760
    %3181 = vmatmul.f32.gmra.mxu0 %v2096
    %v3182 = vpop.f32.mrf.mxu0
    %v3183 = vadd.f32 %v3163, %v3182
    %3184 = vdwg.mxu0
    %3185 = vmatpush.msra.mxu0 %v753
    %3186 = vmatpush.msra.mxu0 %v745
    %3187 = vmatpush.msra.mxu0 %v737
    %3188 = vmatpush.msra.mxu0 %v729
    %3189 = vmatpush.msra.mxu0 %v721
    %3190 = vmatpush.msra.mxu0 %v713
    %3191 = vmatpush.msra.mxu0 %v705
    %3192 = vmatpush.msra.mxu0 %v697
    %3193 = vmatpush.msra.mxu0 %v689
    %3194 = vmatpush.msra.mxu0 %v681
    %3195 = vmatpush.msra.mxu0 %v673
    %3196 = vmatpush.msra.mxu0 %v665
    %3197 = vmatpush.msra.mxu0 %v657
    %3198 = vmatpush.msra.mxu0 %v649
    %3199 = vmatpush.msra.mxu0 %v641
    %3200 = vmatpush.msra.mxu0 %v633
    %3201 = vmatmul.f32.gmra.mxu0 %v2095
    %v3202 = vpop.f32.mrf.mxu0
    %v3203 = vadd.f32 0.0, %v3202
    %3204 = vdwg.mxu0
    %3205 = vmatpush.msra.mxu0 %v881
    %3206 = vmatpush.msra.mxu0 %v873
    %3207 = vmatpush.msra.mxu0 %v865
    %3208 = vmatpush.msra.mxu0 %v857
    %3209 = vmatpush.msra.mxu0 %v849
    %3210 = vmatpush.msra.mxu0 %v841
    %3211 = vmatpush.msra.mxu0 %v833
    %3212 = vmatpush.msra.mxu0 %v825
    %3213 = vmatpush.msra.mxu0 %v817
    %3214 = vmatpush.msra.mxu0 %v809
    %3215 = vmatpush.msra.mxu0 %v801
    %3216 = vmatpush.msra.mxu0 %v793
    %3217 = vmatpush.msra.mxu0 %v785
    %3218 = vmatpush.msra.mxu0 %v777
    %3219 = vmatpush.msra.mxu0 %v769
    %3220 = vmatpush.msra.mxu0 %v761
    %3221 = vmatmul.f32.gmra.mxu0 %v2096
    %v3222 = vpop.f32.mrf.mxu0
    %v3223 = vadd.f32 %v3203, %v3222
    %3224 = vdwg.mxu0
    %v3225 = vadd.f32 %v2897, %v2943
    %v3226 = vadd.f32 %v2898, %v2983
    %v3227 = vadd.f32 %v2899, %v3023
    %v3228 = vadd.f32 %v2900, %v3063
    %v3229 = vadd.f32 %v2901, %v3103
    %v3230 = vadd.f32 %v2902, %v3143
    %v3231 = vadd.f32 %v2903, %v3183
    %v3232 = vadd.f32 %v2904, %v3223
    %v3233 = vmul.f32 %v3225, 0.5
    %v3234 = vmul.f32 %v3226, 0.5
    %v3235 = vtanh.pop %v3233
    %v3236 = vtanh.pop %v3234
    %v3237 = vadd.f32 %v3235, 1.0
    %v3238 = vadd.f32 %v3236, 1.0
    %v3239 = vmul.f32 %v3237, 0.5
    %v3240 = vmul.f32 %v3238, 0.5
    %v3241 = vmul.f32 %v3227, 0.5
    %v3242 = vmul.f32 %v3228, 0.5
    %v3243 = vtanh.pop %v3241
    %v3244 = vtanh.pop %v3242
    %v3245 = vadd.f32 %v3243, 1.0
    %v3246 = vadd.f32 %v3244, 1.0
    %v3247 = vmul.f32 %v3245, 0.5
    %v3248 = vmul.f32 %v3246, 0.5
    %v3249 = vmul.f32 %v3229, 0.5
    %v3250 = vmul.f32 %v3230, 0.5
    %v3251 = vtanh.pop %v3249
    %v3252 = vtanh.pop %v3250
    %v3253 = vadd.f32 %v3251, 1.0
    %v3254 = vadd.f32 %v3252, 1.0
    %v3255 = vmul.f32 %v3253, 0.5
    %v3256 = vmul.f32 %v3254, 0.5
    %v3257 = vtanh.pop %v3231
    %v3258 = vtanh.pop %v3232
    %v3259 = vmul.f32 %v3247, %v2091
    %v3260 = vmul.f32 %v3248, %v2092
    %v3261 = vmul.f32 %v3239, %v3257
    %v3262 = vmul.f32 %v3240, %v3258
    %v3263 = vadd.f32 %v3259, %v3261
    %v3264 = vadd.f32 %v3260, %v3262
    %v3265 = vtanh.pop %v3263
    %v3266 = vtanh.pop %v3264
    %v3267 = vmul.f32 %v3255, %v3265
    %v3268 = vmul.f32 %v3256, %v3266
    %s3269 = scalar_lea.vmem %s7, 2048
    %v3270 = vld [vmem:[%s3269] sm:$0xff]
    %v3271 = vld [vmem:[%s3269 + $0x8] sm:$0xff]
    %v3272 = vld [vmem:[%s3269 + $0x10] sm:$0xff]
    %v3273 = vld [vmem:[%s3269 + $0x18] sm:$0xff]
    %v3274 = vld [vmem:[%s3269 + $0x20] sm:$0xff]
    %v3275 = vld [vmem:[%s3269 + $0x28] sm:$0xff]
    %v3276 = vld [vmem:[%s3269 + $0x30] sm:$0xff]
    %v3277 = vld [vmem:[%s3269 + $0x38] sm:$0xff]
    %v3278 = vld [vmem:[%s3269 + $0x40] sm:$0xff]
    %v3279 = vld [vmem:[%s3269 + $0x48] sm:$0xff]
    %v3280 = vld [vmem:[%s3269 + $0x50] sm:$0xff]
    %v3281 = vld [vmem:[%s3269 + $0x58] sm:$0xff]
    %v3282 = vld [vmem:[%s3269 + $0x60] sm:$0xff]
    %v3283 = vld [vmem:[%s3269 + $0x68] sm:$0xff]
    %v3284 = vld [vmem:[%s3269 + $0x70] sm:$0xff]
    %v3285 = vld [vmem:[%s3269 + $0x78] sm:$0xff]
    %v3286 = vld [vmem:[%s3269 + $0x80] sm:$0xff]
    %v3287 = vld [vmem:[%s3269 + $0x88] sm:$0xff]
    %v3288 = vld [vmem:[%s3269 + $0x90] sm:$0xff]
    %v3289 = vld [vmem:[%s3269 + $0x98] sm:$0xff]
    %v3290 = vld [vmem:[%s3269 + $0xa0] sm:$0xff]
    %v3291 = vld [vmem:[%s3269 + $0xa8] sm:$0xff]
    %v3292 = vld [vmem:[%s3269 + $0xb0] sm:$0xff]
    %v3293 = vld [vmem:[%s3269 + $0xb8] sm:$0xff]
    %v3294 = vld [vmem:[%s3269 + $0xc0] sm:$0xff]
    %v3295 = vld [vmem:[%s3269 + $0xc8] sm:$0xff]
    %v3296 = vld [vmem:[%s3269 + $0xd0] sm:$0xff]
    %v3297 = vld [vmem:[%s3269 + $0xd8] sm:$0xff]
    %v3298 = vld [vmem:[%s3269 + $0xe0] sm:$0xff]
    %v3299 = vld [vmem:[%s3269 + $0xe8] sm:$0xff]
    %v3300 = vld [vmem:[%s3269 + $0xf0] sm:$0xff]
    %v3301 = vld [vmem:[%s3269 + $0xf8] sm:$0xff]
    %v3302 = vld [vmem:[%s3269 + $0x100] sm:$0xff]
    %v3303 = vld [vmem:[%s3269 + $0x108] sm:$0xff]
    %v3304 = vld [vmem:[%s3269 + $0x110] sm:$0xff]
    %v3305 = vld [vmem:[%s3269 + $0x118] sm:$0xff]
    %v3306 = vld [vmem:[%s3269 + $0x120] sm:$0xff]
    %v3307 = vld [vmem:[%s3269 + $0x128] sm:$0xff]
    %v3308 = vld [vmem:[%s3269 + $0x130] sm:$0xff]
    %v3309 = vld [vmem:[%s3269 + $0x138] sm:$0xff]
    %v3310 = vld [vmem:[%s3269 + $0x140] sm:$0xff]
    %v3311 = vld [vmem:[%s3269 + $0x148] sm:$0xff]
    %v3312 = vld [vmem:[%s3269 + $0x150] sm:$0xff]
    %v3313 = vld [vmem:[%s3269 + $0x158] sm:$0xff]
    %v3314 = vld [vmem:[%s3269 + $0x160] sm:$0xff]
    %v3315 = vld [vmem:[%s3269 + $0x168] sm:$0xff]
    %v3316 = vld [vmem:[%s3269 + $0x170] sm:$0xff]
    %v3317 = vld [vmem:[%s3269 + $0x178] sm:$0xff]
    %v3318 = vld [vmem:[%s3269 + $0x180] sm:$0xff]
    %v3319 = vld [vmem:[%s3269 + $0x188] sm:$0xff]
    %v3320 = vld [vmem:[%s3269 + $0x190] sm:$0xff]
    %v3321 = vld [vmem:[%s3269 + $0x198] sm:$0xff]
    %v3322 = vld [vmem:[%s3269 + $0x1a0] sm:$0xff]
    %v3323 = vld [vmem:[%s3269 + $0x1a8] sm:$0xff]
    %v3324 = vld [vmem:[%s3269 + $0x1b0] sm:$0xff]
    %v3325 = vld [vmem:[%s3269 + $0x1b8] sm:$0xff]
    %v3326 = vld [vmem:[%s3269 + $0x1c0] sm:$0xff]
    %v3327 = vld [vmem:[%s3269 + $0x1c8] sm:$0xff]
    %v3328 = vld [vmem:[%s3269 + $0x1d0] sm:$0xff]
    %v3329 = vld [vmem:[%s3269 + $0x1d8] sm:$0xff]
    %v3330 = vld [vmem:[%s3269 + $0x1e0] sm:$0xff]
    %v3331 = vld [vmem:[%s3269 + $0x1e8] sm:$0xff]
    %v3332 = vld [vmem:[%s3269 + $0x1f0] sm:$0xff]
    %v3333 = vld [vmem:[%s3269 + $0x1f8] sm:$0xff]
    %v3334 = vld [vmem:[%s3269 + $0x200] sm:$0xff]
    %v3335 = vld [vmem:[%s3269 + $0x208] sm:$0xff]
    %v3336 = vld [vmem:[%s3269 + $0x210] sm:$0xff]
    %v3337 = vld [vmem:[%s3269 + $0x218] sm:$0xff]
    %v3338 = vld [vmem:[%s3269 + $0x220] sm:$0xff]
    %v3339 = vld [vmem:[%s3269 + $0x228] sm:$0xff]
    %v3340 = vld [vmem:[%s3269 + $0x230] sm:$0xff]
    %v3341 = vld [vmem:[%s3269 + $0x238] sm:$0xff]
    %v3342 = vld [vmem:[%s3269 + $0x240] sm:$0xff]
    %v3343 = vld [vmem:[%s3269 + $0x248] sm:$0xff]
    %v3344 = vld [vmem:[%s3269 + $0x250] sm:$0xff]
    %v3345 = vld [vmem:[%s3269 + $0x258] sm:$0xff]
    %v3346 = vld [vmem:[%s3269 + $0x260] sm:$0xff]
    %v3347 = vld [vmem:[%s3269 + $0x268] sm:$0xff]
    %v3348 = vld [vmem:[%s3269 + $0x270] sm:$0xff]
    %v3349 = vld [vmem:[%s3269 + $0x278] sm:$0xff]
    %v3350 = vld [vmem:[%s3269 + $0x280] sm:$0xff]
    %v3351 = vld [vmem:[%s3269 + $0x288] sm:$0xff]
    %v3352 = vld [vmem:[%s3269 + $0x290] sm:$0xff]
    %v3353 = vld [vmem:[%s3269 + $0x298] sm:$0xff]
    %v3354 = vld [vmem:[%s3269 + $0x2a0] sm:$0xff]
    %v3355 = vld [vmem:[%s3269 + $0x2a8] sm:$0xff]
    %v3356 = vld [vmem:[%s3269 + $0x2b0] sm:$0xff]
    %v3357 = vld [vmem:[%s3269 + $0x2b8] sm:$0xff]
    %v3358 = vld [vmem:[%s3269 + $0x2c0] sm:$0xff]
    %v3359 = vld [vmem:[%s3269 + $0x2c8] sm:$0xff]
    %v3360 = vld [vmem:[%s3269 + $0x2d0] sm:$0xff]
    %v3361 = vld [vmem:[%s3269 + $0x2d8] sm:$0xff]
    %v3362 = vld [vmem:[%s3269 + $0x2e0] sm:$0xff]
    %v3363 = vld [vmem:[%s3269 + $0x2e8] sm:$0xff]
    %v3364 = vld [vmem:[%s3269 + $0x2f0] sm:$0xff]
    %v3365 = vld [vmem:[%s3269 + $0x2f8] sm:$0xff]
    %v3366 = vld [vmem:[%s3269 + $0x300] sm:$0xff]
    %v3367 = vld [vmem:[%s3269 + $0x308] sm:$0xff]
    %v3368 = vld [vmem:[%s3269 + $0x310] sm:$0xff]
    %v3369 = vld [vmem:[%s3269 + $0x318] sm:$0xff]
    %v3370 = vld [vmem:[%s3269 + $0x320] sm:$0xff]
    %v3371 = vld [vmem:[%s3269 + $0x328] sm:$0xff]
    %v3372 = vld [vmem:[%s3269 + $0x330] sm:$0xff]
    %v3373 = vld [vmem:[%s3269 + $0x338] sm:$0xff]
    %v3374 = vld [vmem:[%s3269 + $0x340] sm:$0xff]
    %v3375 = vld [vmem:[%s3269 + $0x348] sm:$0xff]
    %v3376 = vld [vmem:[%s3269 + $0x350] sm:$0xff]
    %v3377 = vld [vmem:[%s3269 + $0x358] sm:$0xff]
    %v3378 = vld [vmem:[%s3269 + $0x360] sm:$0xff]
    %v3379 = vld [vmem:[%s3269 + $0x368] sm:$0xff]
    %v3380 = vld [vmem:[%s3269 + $0x370] sm:$0xff]
    %v3381 = vld [vmem:[%s3269 + $0x378] sm:$0xff]
    %v3382 = vld [vmem:[%s3269 + $0x380] sm:$0xff]
    %v3383 = vld [vmem:[%s3269 + $0x388] sm:$0xff]
    %v3384 = vld [vmem:[%s3269 + $0x390] sm:$0xff]
    %v3385 = vld [vmem:[%s3269 + $0x398] sm:$0xff]
    %v3386 = vld [vmem:[%s3269 + $0x3a0] sm:$0xff]
    %v3387 = vld [vmem:[%s3269 + $0x3a8] sm:$0xff]
    %v3388 = vld [vmem:[%s3269 + $0x3b0] sm:$0xff]
    %v3389 = vld [vmem:[%s3269 + $0x3b8] sm:$0xff]
    %v3390 = vld [vmem:[%s3269 + $0x3c0] sm:$0xff]
    %v3391 = vld [vmem:[%s3269 + $0x3c8] sm:$0xff]
    %v3392 = vld [vmem:[%s3269 + $0x3d0] sm:$0xff]
    %v3393 = vld [vmem:[%s3269 + $0x3d8] sm:$0xff]
    %v3394 = vld [vmem:[%s3269 + $0x3e0] sm:$0xff]
    %v3395 = vld [vmem:[%s3269 + $0x3e8] sm:$0xff]
    %v3396 = vld [vmem:[%s3269 + $0x3f0] sm:$0xff]
    %v3397 = vld [vmem:[%s3269 + $0x3f8] sm:$0xff]
    %3398 = vmatpush.msra.mxu0 %v3330
    %3399 = vmatpush.msra.mxu0 %v3326
    %3400 = vmatpush.msra.mxu0 %v3322
    %3401 = vmatpush.msra.mxu0 %v3318
    %3402 = vmatpush.msra.mxu0 %v3314
    %3403 = vmatpush.msra.mxu0 %v3310
    %3404 = vmatpush.msra.mxu0 %v3306
    %3405 = vmatpush.msra.mxu0 %v3302
    %3406 = vmatpush.msra.mxu0 %v3298
    %3407 = vmatpush.msra.mxu0 %v3294
    %3408 = vmatpush.msra.mxu0 %v3290
    %3409 = vmatpush.msra.mxu0 %v3286
    %3410 = vmatpush.msra.mxu0 %v3282
    %3411 = vmatpush.msra.mxu0 %v3278
    %3412 = vmatpush.msra.mxu0 %v3274
    %3413 = vmatpush.msra.mxu0 %v3270
    %3414 = vmatmul.f32.gmra.mxu0 %v3267
    %v3415 = vpop.f32.mrf.mxu0
    %v3416 = vadd.f32 0.0, %v3415
    %3417 = vdwg.mxu0
    %3418 = vmatpush.msra.mxu0 %v3394
    %3419 = vmatpush.msra.mxu0 %v3390
    %3420 = vmatpush.msra.mxu0 %v3386
    %3421 = vmatpush.msra.mxu0 %v3382
    %3422 = vmatpush.msra.mxu0 %v3378
    %3423 = vmatpush.msra.mxu0 %v3374
    %3424 = vmatpush.msra.mxu0 %v3370
    %3425 = vmatpush.msra.mxu0 %v3366
    %3426 = vmatpush.msra.mxu0 %v3362
    %3427 = vmatpush.msra.mxu0 %v3358
    %3428 = vmatpush.msra.mxu0 %v3354
    %3429 = vmatpush.msra.mxu0 %v3350
    %3430 = vmatpush.msra.mxu0 %v3346
    %3431 = vmatpush.msra.mxu0 %v3342
    %3432 = vmatpush.msra.mxu0 %v3338
    %3433 = vmatpush.msra.mxu0 %v3334
    %3434 = vmatmul.f32.gmra.mxu0 %v3268
    %v3435 = vpop.f32.mrf.mxu0
    %v3436 = vadd.f32 %v3416, %v3435
    %3437 = vdwg.mxu0
    %3438 = vmatpush.msra.mxu0 %v3331
    %3439 = vmatpush.msra.mxu0 %v3327
    %3440 = vmatpush.msra.mxu0 %v3323
    %3441 = vmatpush.msra.mxu0 %v3319
    %3442 = vmatpush.msra.mxu0 %v3315
    %3443 = vmatpush.msra.mxu0 %v3311
    %3444 = vmatpush.msra.mxu0 %v3307
    %3445 = vmatpush.msra.mxu0 %v3303
    %3446 = vmatpush.msra.mxu0 %v3299
    %3447 = vmatpush.msra.mxu0 %v3295
    %3448 = vmatpush.msra.mxu0 %v3291
    %3449 = vmatpush.msra.mxu0 %v3287
    %3450 = vmatpush.msra.mxu0 %v3283
    %3451 = vmatpush.msra.mxu0 %v3279
    %3452 = vmatpush.msra.mxu0 %v3275
    %3453 = vmatpush.msra.mxu0 %v3271
    %3454 = vmatmul.f32.gmra.mxu0 %v3267
    %v3455 = vpop.f32.mrf.mxu0
    %v3456 = vadd.f32 0.0, %v3455
    %3457 = vdwg.mxu0
    %3458 = vmatpush.msra.mxu0 %v3395
    %3459 = vmatpush.msra.mxu0 %v3391
    %3460 = vmatpush.msra.mxu0 %v3387
    %3461 = vmatpush.msra.mxu0 %v3383
    %3462 = vmatpush.msra.mxu0 %v3379
    %3463 = vmatpush.msra.mxu0 %v3375
    %3464 = vmatpush.msra.mxu0 %v3371
    %3465 = vmatpush.msra.mxu0 %v3367
    %3466 = vmatpush.msra.mxu0 %v3363
    %3467 = vmatpush.msra.mxu0 %v3359
    %3468 = vmatpush.msra.mxu0 %v3355
    %3469 = vmatpush.msra.mxu0 %v3351
    %3470 = vmatpush.msra.mxu0 %v3347
    %3471 = vmatpush.msra.mxu0 %v3343
    %3472 = vmatpush.msra.mxu0 %v3339
    %3473 = vmatpush.msra.mxu0 %v3335
    %3474 = vmatmul.f32.gmra.mxu0 %v3268
    %v3475 = vpop.f32.mrf.mxu0
    %v3476 = vadd.f32 %v3456, %v3475
    %3477 = vdwg.mxu0
    %3478 = vmatpush.msra.mxu0 %v3332
    %3479 = vmatpush.msra.mxu0 %v3328
    %3480 = vmatpush.msra.mxu0 %v3324
    %3481 = vmatpush.msra.mxu0 %v3320
    %3482 = vmatpush.msra.mxu0 %v3316
    %3483 = vmatpush.msra.mxu0 %v3312
    %3484 = vmatpush.msra.mxu0 %v3308
    %3485 = vmatpush.msra.mxu0 %v3304
    %3486 = vmatpush.msra.mxu0 %v3300
    %3487 = vmatpush.msra.mxu0 %v3296
    %3488 = vmatpush.msra.mxu0 %v3292
    %3489 = vmatpush.msra.mxu0 %v3288
    %3490 = vmatpush.msra.mxu0 %v3284
    %3491 = vmatpush.msra.mxu0 %v3280
    %3492 = vmatpush.msra.mxu0 %v3276
    %3493 = vmatpush.msra.mxu0 %v3272
    %3494 = vmatmul.f32.gmra.mxu0 %v3267
    %v3495 = vpop.f32.mrf.mxu0
    %v3496 = vadd.f32 0.0, %v3495
    %3497 = vdwg.mxu0
    %3498 = vmatpush.msra.mxu0 %v3396
    %3499 = vmatpush.msra.mxu0 %v3392
    %3500 = vmatpush.msra.mxu0 %v3388
    %3501 = vmatpush.msra.mxu0 %v3384
    %3502 = vmatpush.msra.mxu0 %v3380
    %3503 = vmatpush.msra.mxu0 %v3376
    %3504 = vmatpush.msra.mxu0 %v3372
    %3505 = vmatpush.msra.mxu0 %v3368
    %3506 = vmatpush.msra.mxu0 %v3364
    %3507 = vmatpush.msra.mxu0 %v3360
    %3508 = vmatpush.msra.mxu0 %v3356
    %3509 = vmatpush.msra.mxu0 %v3352
    %3510 = vmatpush.msra.mxu0 %v3348
    %3511 = vmatpush.msra.mxu0 %v3344
    %3512 = vmatpush.msra.mxu0 %v3340
    %3513 = vmatpush.msra.mxu0 %v3336
    %3514 = vmatmul.f32.gmra.mxu0 %v3268
    %v3515 = vpop.f32.mrf.mxu0
    %v3516 = vadd.f32 %v3496, %v3515
    %3517 = vdwg.mxu0
    %3518 = vmatpush.msra.mxu0 %v3333
    %3519 = vmatpush.msra.mxu0 %v3329
    %3520 = vmatpush.msra.mxu0 %v3325
    %3521 = vmatpush.msra.mxu0 %v3321
    %3522 = vmatpush.msra.mxu0 %v3317
    %3523 = vmatpush.msra.mxu0 %v3313
    %3524 = vmatpush.msra.mxu0 %v3309
    %3525 = vmatpush.msra.mxu0 %v3305
    %3526 = vmatpush.msra.mxu0 %v3301
    %3527 = vmatpush.msra.mxu0 %v3297
    %3528 = vmatpush.msra.mxu0 %v3293
    %3529 = vmatpush.msra.mxu0 %v3289
    %3530 = vmatpush.msra.mxu0 %v3285
    %3531 = vmatpush.msra.mxu0 %v3281
    %3532 = vmatpush.msra.mxu0 %v3277
    %3533 = vmatpush.msra.mxu0 %v3273
    %3534 = vmatmul.f32.gmra.mxu0 %v3267
    %v3535 = vpop.f32.mrf.mxu0
    %v3536 = vadd.f32 0.0, %v3535
    %3537 = vdwg.mxu0
    %3538 = vmatpush.msra.mxu0 %v3397
    %3539 = vmatpush.msra.mxu0 %v3393
    %3540 = vmatpush.msra.mxu0 %v3389
    %3541 = vmatpush.msra.mxu0 %v3385
    %3542 = vmatpush.msra.mxu0 %v3381
    %3543 = vmatpush.msra.mxu0 %v3377
    %3544 = vmatpush.msra.mxu0 %v3373
    %3545 = vmatpush.msra.mxu0 %v3369
    %3546 = vmatpush.msra.mxu0 %v3365
    %3547 = vmatpush.msra.mxu0 %v3361
    %3548 = vmatpush.msra.mxu0 %v3357
    %3549 = vmatpush.msra.mxu0 %v3353
    %3550 = vmatpush.msra.mxu0 %v3349
    %3551 = vmatpush.msra.mxu0 %v3345
    %3552 = vmatpush.msra.mxu0 %v3341
    %3553 = vmatpush.msra.mxu0 %v3337
    %3554 = vmatmul.f32.gmra.mxu0 %v3268
    %v3555 = vpop.f32.mrf.mxu0
    %v3556 = vadd.f32 %v3536, %v3555
    %3557 = vdwg.mxu0
    %v3558 = vadd.f32 %v2424, %v3436
    %v3559 = vadd.f32 %v2464, %v3476
    %v3560 = vadd.f32 %v2504, %v3516
    %v3561 = vadd.f32 %v2544, %v3556
    %s3562 = scalar_lea.vmem %s0, 6
    %v3563 = vld [vmem:[%s3562] sm:$0x3]
    %v3565 = vsel %vm50, %v3563, 0
    %3567 = vmatpush.msra.mxu0 0.0
    %3568 = vmatpush.msra.mxu0 0.0
    %3569 = vmatpush.msra.mxu0 0.0
    %3570 = vmatpush.msra.mxu0 0.0
    %3571 = vmatpush.msra.mxu0 0.0
    %3572 = vmatpush.msra.mxu0 0.0
    %3573 = vmatpush.msra.mxu0 0.0
    %3574 = vmatpush.msra.mxu0 0.0
    %3575 = vmatpush.msra.mxu0 0.0
    %3576 = vmatpush.msra.mxu0 0.0
    %3577 = vmatpush.msra.mxu0 0.0
    %3578 = vmatpush.msra.mxu0 0.0
    %3579 = vmatpush.msra.mxu0 0.0
    %3580 = vmatpush.msra.mxu0 0.0
    %3581 = vmatpush.msra.mxu0 %v46
    %3582 = vmatpush.msra.mxu0 %v42
    %3583 = vmatmul.f32.gmra.mxu0 %v3565
    %v3584 = vpop.f32.mrf.mxu0
    %v3585 = vadd.f32 0.0, %v3584
    %3586 = vdwg.mxu0
    %3587 = vmatpush.msra.mxu0 0.0
    %3588 = vmatpush.msra.mxu0 0.0
    %3589 = vmatpush.msra.mxu0 0.0
    %3590 = vmatpush.msra.mxu0 0.0
    %3591 = vmatpush.msra.mxu0 0.0
    %3592 = vmatpush.msra.mxu0 0.0
    %3593 = vmatpush.msra.mxu0 0.0
    %3594 = vmatpush.msra.mxu0 0.0
    %3595 = vmatpush.msra.mxu0 0.0
    %3596 = vmatpush.msra.mxu0 0.0
    %3597 = vmatpush.msra.mxu0 0.0
    %3598 = vmatpush.msra.mxu0 0.0
    %3599 = vmatpush.msra.mxu0 0.0
    %3600 = vmatpush.msra.mxu0 0.0
    %3601 = vmatpush.msra.mxu0 %v47
    %3602 = vmatpush.msra.mxu0 %v43
    %3603 = vmatmul.f32.gmra.mxu0 %v3565
    %v3604 = vpop.f32.mrf.mxu0
    %v3605 = vadd.f32 0.0, %v3604
    %3606 = vdwg.mxu0
    %3607 = vmatpush.msra.mxu0 0.0
    %3608 = vmatpush.msra.mxu0 0.0
    %3609 = vmatpush.msra.mxu0 0.0
    %3610 = vmatpush.msra.mxu0 0.0
    %3611 = vmatpush.msra.mxu0 0.0
    %3612 = vmatpush.msra.mxu0 0.0
    %3613 = vmatpush.msra.mxu0 0.0
    %3614 = vmatpush.msra.mxu0 0.0
    %3615 = vmatpush.msra.mxu0 0.0
    %3616 = vmatpush.msra.mxu0 0.0
    %3617 = vmatpush.msra.mxu0 0.0
    %3618 = vmatpush.msra.mxu0 0.0
    %3619 = vmatpush.msra.mxu0 0.0
    %3620 = vmatpush.msra.mxu0 0.0
    %3621 = vmatpush.msra.mxu0 %v48
    %3622 = vmatpush.msra.mxu0 %v44
    %3623 = vmatmul.f32.gmra.mxu0 %v3565
    %v3624 = vpop.f32.mrf.mxu0
    %v3625 = vadd.f32 0.0, %v3624
    %3626 = vdwg.mxu0
    %3627 = vmatpush.msra.mxu0 0.0
    %3628 = vmatpush.msra.mxu0 0.0
    %3629 = vmatpush.msra.mxu0 0.0
    %3630 = vmatpush.msra.mxu0 0.0
    %3631 = vmatpush.msra.mxu0 0.0
    %3632 = vmatpush.msra.mxu0 0.0
    %3633 = vmatpush.msra.mxu0 0.0
    %3634 = vmatpush.msra.mxu0 0.0
    %3635 = vmatpush.msra.mxu0 0.0
    %3636 = vmatpush.msra.mxu0 0.0
    %3637 = vmatpush.msra.mxu0 0.0
    %3638 = vmatpush.msra.mxu0 0.0
    %3639 = vmatpush.msra.mxu0 0.0
    %3640 = vmatpush.msra.mxu0 0.0
    %3641 = vmatpush.msra.mxu0 %v49
    %3642 = vmatpush.msra.mxu0 %v45
    %3643 = vmatmul.f32.gmra.mxu0 %v3565
    %v3644 = vpop.f32.mrf.mxu0
    %v3645 = vadd.f32 0.0, %v3644
    %3646 = vdwg.mxu0
    %v3647 = vadd.f32 %v135, %v3585
    %v3648 = vadd.f32 %v136, %v3605
    %v3649 = vadd.f32 %v137, %v3625
    %v3650 = vadd.f32 %v138, %v3645
    %3651 = vmatpush.msra.mxu0 %v207
    %3652 = vmatpush.msra.mxu0 %v203
    %3653 = vmatpush.msra.mxu0 %v199
    %3654 = vmatpush.msra.mxu0 %v195
    %3655 = vmatpush.msra.mxu0 %v191
    %3656 = vmatpush.msra.mxu0 %v187
    %3657 = vmatpush.msra.mxu0 %v183
    %3658 = vmatpush.msra.mxu0 %v179
    %3659 = vmatpush.msra.mxu0 %v175
    %3660 = vmatpush.msra.mxu0 %v171
    %3661 = vmatpush.msra.mxu0 %v167
    %3662 = vmatpush.msra.mxu0 %v163
    %3663 = vmatpush.msra.mxu0 %v159
    %3664 = vmatpush.msra.mxu0 %v155
    %3665 = vmatpush.msra.mxu0 %v151
    %3666 = vmatpush.msra.mxu0 %v147
    %3667 = vmatmul.f32.gmra.mxu0 %v2736
    %v3668 = vpop.f32.mrf.mxu0
    %v3669 = vadd.f32 0.0, %v3668
    %3670 = vdwg.mxu0
    %3671 = vmatpush.msra.mxu0 %v208
    %3672 = vmatpush.msra.mxu0 %v204
    %3673 = vmatpush.msra.mxu0 %v200
    %3674 = vmatpush.msra.mxu0 %v196
    %3675 = vmatpush.msra.mxu0 %v192
    %3676 = vmatpush.msra.mxu0 %v188
    %3677 = vmatpush.msra.mxu0 %v184
    %3678 = vmatpush.msra.mxu0 %v180
    %3679 = vmatpush.msra.mxu0 %v176
    %3680 = vmatpush.msra.mxu0 %v172
    %3681 = vmatpush.msra.mxu0 %v168
    %3682 = vmatpush.msra.mxu0 %v164
    %3683 = vmatpush.msra.mxu0 %v160
    %3684 = vmatpush.msra.mxu0 %v156
    %3685 = vmatpush.msra.mxu0 %v152
    %3686 = vmatpush.msra.mxu0 %v148
    %3687 = vmatmul.f32.gmra.mxu0 %v2736
    %v3688 = vpop.f32.mrf.mxu0
    %v3689 = vadd.f32 0.0, %v3688
    %3690 = vdwg.mxu0
    %3691 = vmatpush.msra.mxu0 %v209
    %3692 = vmatpush.msra.mxu0 %v205
    %3693 = vmatpush.msra.mxu0 %v201
    %3694 = vmatpush.msra.mxu0 %v197
    %3695 = vmatpush.msra.mxu0 %v193
    %3696 = vmatpush.msra.mxu0 %v189
    %3697 = vmatpush.msra.mxu0 %v185
    %3698 = vmatpush.msra.mxu0 %v181
    %3699 = vmatpush.msra.mxu0 %v177
    %3700 = vmatpush.msra.mxu0 %v173
    %3701 = vmatpush.msra.mxu0 %v169
    %3702 = vmatpush.msra.mxu0 %v165
    %3703 = vmatpush.msra.mxu0 %v161
    %3704 = vmatpush.msra.mxu0 %v157
    %3705 = vmatpush.msra.mxu0 %v153
    %3706 = vmatpush.msra.mxu0 %v149
    %3707 = vmatmul.f32.gmra.mxu0 %v2736
    %v3708 = vpop.f32.mrf.mxu0
    %v3709 = vadd.f32 0.0, %v3708
    %3710 = vdwg.mxu0
    %3711 = vmatpush.msra.mxu0 %v210
    %3712 = vmatpush.msra.mxu0 %v206
    %3713 = vmatpush.msra.mxu0 %v202
    %3714 = vmatpush.msra.mxu0 %v198
    %3715 = vmatpush.msra.mxu0 %v194
    %3716 = vmatpush.msra.mxu0 %v190
    %3717 = vmatpush.msra.mxu0 %v186
    %3718 = vmatpush.msra.mxu0 %v182
    %3719 = vmatpush.msra.mxu0 %v178
    %3720 = vmatpush.msra.mxu0 %v174
    %3721 = vmatpush.msra.mxu0 %v170
    %3722 = vmatpush.msra.mxu0 %v166
    %3723 = vmatpush.msra.mxu0 %v162
    %3724 = vmatpush.msra.mxu0 %v158
    %3725 = vmatpush.msra.mxu0 %v154
    %3726 = vmatpush.msra.mxu0 %v150
    %3727 = vmatmul.f32.gmra.mxu0 %v2736
    %v3728 = vpop.f32.mrf.mxu0
    %v3729 = vadd.f32 0.0, %v3728
    %3730 = vdwg.mxu0
    %v3731 = vadd.f32 %v3647, %v3669
    %v3732 = vadd.f32 %v3648, %v3689
    %v3733 = vadd.f32 %v3649, %v3709
    %v3734 = vadd.f32 %v3650, %v3729
    %v3735 = vmul.f32 %v3731, 0.5
    %v3736 = vtanh.pop %v3735
    %v3737 = vadd.f32 %v3736, 1.0
    %v3738 = vmul.f32 %v3737, 0.5
    %v3739 = vmul.f32 %v3732, 0.5
    %v3740 = vtanh.pop %v3739
    %v3741 = vadd.f32 %v3740, 1.0
    %v3742 = vmul.f32 %v3741, 0.5
    %v3743 = vmul.f32 %v3733, 0.5
    %v3744 = vtanh.pop %v3743
    %v3745 = vadd.f32 %v3744, 1.0
    %v3746 = vmul.f32 %v3745, 0.5
    %v3747 = vtanh.pop %v3734
    %v3748 = vmul.f32 %v3742, %v2734
    %v3749 = vmul.f32 %v3738, %v3747
    %v3750 = vadd.f32 %v3748, %v3749
    %v3751 = vtanh.pop %v3750
    %v3752 = vmul.f32 %v3746, %v3751
    %3753 = vmatpush.msra.mxu0 %v433
    %3754 = vmatpush.msra.mxu0 %v425
    %3755 = vmatpush.msra.mxu0 %v417
    %3756 = vmatpush.msra.mxu0 %v409
    %3757 = vmatpush.msra.mxu0 %v401
    %3758 = vmatpush.msra.mxu0 %v393
    %3759 = vmatpush.msra.mxu0 %v385
    %3760 = vmatpush.msra.mxu0 %v377
    %3761 = vmatpush.msra.mxu0 %v369
    %3762 = vmatpush.msra.mxu0 %v361
    %3763 = vmatpush.msra.mxu0 %v353
    %3764 = vmatpush.msra.mxu0 %v345
    %3765 = vmatpush.msra.mxu0 %v337
    %3766 = vmatpush.msra.mxu0 %v329
    %3767 = vmatpush.msra.mxu0 %v321
    %3768 = vmatpush.msra.mxu0 %v313
    %3769 = vmatmul.f32.gmra.mxu0 %v3752
    %v3770 = vpop.f32.mrf.mxu0
    %v3771 = vadd.f32 0.0, %v3770
    %3772 = vdwg.mxu0
    %3773 = vmatpush.msra.mxu0 %v434
    %3774 = vmatpush.msra.mxu0 %v426
    %3775 = vmatpush.msra.mxu0 %v418
    %3776 = vmatpush.msra.mxu0 %v410
    %3777 = vmatpush.msra.mxu0 %v402
    %3778 = vmatpush.msra.mxu0 %v394
    %3779 = vmatpush.msra.mxu0 %v386
    %3780 = vmatpush.msra.mxu0 %v378
    %3781 = vmatpush.msra.mxu0 %v370
    %3782 = vmatpush.msra.mxu0 %v362
    %3783 = vmatpush.msra.mxu0 %v354
    %3784 = vmatpush.msra.mxu0 %v346
    %3785 = vmatpush.msra.mxu0 %v338
    %3786 = vmatpush.msra.mxu0 %v330
    %3787 = vmatpush.msra.mxu0 %v322
    %3788 = vmatpush.msra.mxu0 %v314
    %3789 = vmatmul.f32.gmra.mxu0 %v3752
    %v3790 = vpop.f32.mrf.mxu0
    %v3791 = vadd.f32 0.0, %v3790
    %3792 = vdwg.mxu0
    %3793 = vmatpush.msra.mxu0 %v435
    %3794 = vmatpush.msra.mxu0 %v427
    %3795 = vmatpush.msra.mxu0 %v419
    %3796 = vmatpush.msra.mxu0 %v411
    %3797 = vmatpush.msra.mxu0 %v403
    %3798 = vmatpush.msra.mxu0 %v395
    %3799 = vmatpush.msra.mxu0 %v387
    %3800 = vmatpush.msra.mxu0 %v379
    %3801 = vmatpush.msra.mxu0 %v371
    %3802 = vmatpush.msra.mxu0 %v363
    %3803 = vmatpush.msra.mxu0 %v355
    %3804 = vmatpush.msra.mxu0 %v347
    %3805 = vmatpush.msra.mxu0 %v339
    %3806 = vmatpush.msra.mxu0 %v331
    %3807 = vmatpush.msra.mxu0 %v323
    %3808 = vmatpush.msra.mxu0 %v315
    %3809 = vmatmul.f32.gmra.mxu0 %v3752
    %v3810 = vpop.f32.mrf.mxu0
    %v3811 = vadd.f32 0.0, %v3810
    %3812 = vdwg.mxu0
    %3813 = vmatpush.msra.mxu0 %v436
    %3814 = vmatpush.msra.mxu0 %v428
    %3815 = vmatpush.msra.mxu0 %v420
    %3816 = vmatpush.msra.mxu0 %v412
    %3817 = vmatpush.msra.mxu0 %v404
    %3818 = vmatpush.msra.mxu0 %v396
    %3819 = vmatpush.msra.mxu0 %v388
    %3820 = vmatpush.msra.mxu0 %v380
    %3821 = vmatpush.msra.mxu0 %v372
    %3822 = vmatpush.msra.mxu0 %v364
    %3823 = vmatpush.msra.mxu0 %v356
    %3824 = vmatpush.msra.mxu0 %v348
    %3825 = vmatpush.msra.mxu0 %v340
    %3826 = vmatpush.msra.mxu0 %v332
    %3827 = vmatpush.msra.mxu0 %v324
    %3828 = vmatpush.msra.mxu0 %v316
    %3829 = vmatmul.f32.gmra.mxu0 %v3752
    %v3830 = vpop.f32.mrf.mxu0
    %v3831 = vadd.f32 0.0, %v3830
    %3832 = vdwg.mxu0
    %3833 = vmatpush.msra.mxu0 %v437
    %3834 = vmatpush.msra.mxu0 %v429
    %3835 = vmatpush.msra.mxu0 %v421
    %3836 = vmatpush.msra.mxu0 %v413
    %3837 = vmatpush.msra.mxu0 %v405
    %3838 = vmatpush.msra.mxu0 %v397
    %3839 = vmatpush.msra.mxu0 %v389
    %3840 = vmatpush.msra.mxu0 %v381
    %3841 = vmatpush.msra.mxu0 %v373
    %3842 = vmatpush.msra.mxu0 %v365
    %3843 = vmatpush.msra.mxu0 %v357
    %3844 = vmatpush.msra.mxu0 %v349
    %3845 = vmatpush.msra.mxu0 %v341
    %3846 = vmatpush.msra.mxu0 %v333
    %3847 = vmatpush.msra.mxu0 %v325
    %3848 = vmatpush.msra.mxu0 %v317
    %3849 = vmatmul.f32.gmra.mxu0 %v3752
    %v3850 = vpop.f32.mrf.mxu0
    %v3851 = vadd.f32 0.0, %v3850
    %3852 = vdwg.mxu0
    %3853 = vmatpush.msra.mxu0 %v438
    %3854 = vmatpush.msra.mxu0 %v430
    %3855 = vmatpush.msra.mxu0 %v422
    %3856 = vmatpush.msra.mxu0 %v414
    %3857 = vmatpush.msra.mxu0 %v406
    %3858 = vmatpush.msra.mxu0 %v398
    %3859 = vmatpush.msra.mxu0 %v390
    %3860 = vmatpush.msra.mxu0 %v382
    %3861 = vmatpush.msra.mxu0 %v374
    %3862 = vmatpush.msra.mxu0 %v366
    %3863 = vmatpush.msra.mxu0 %v358
    %3864 = vmatpush.msra.mxu0 %v350
    %3865 = vmatpush.msra.mxu0 %v342
    %3866 = vmatpush.msra.mxu0 %v334
    %3867 = vmatpush.msra.mxu0 %v326
    %3868 = vmatpush.msra.mxu0 %v318
    %3869 = vmatmul.f32.gmra.mxu0 %v3752
    %v3870 = vpop.f32.mrf.mxu0
    %v3871 = vadd.f32 0.0, %v3870
    %3872 = vdwg.mxu0
    %3873 = vmatpush.msra.mxu0 %v439
    %3874 = vmatpush.msra.mxu0 %v431
    %3875 = vmatpush.msra.mxu0 %v423
    %3876 = vmatpush.msra.mxu0 %v415
    %3877 = vmatpush.msra.mxu0 %v407
    %3878 = vmatpush.msra.mxu0 %v399
    %3879 = vmatpush.msra.mxu0 %v391
    %3880 = vmatpush.msra.mxu0 %v383
    %3881 = vmatpush.msra.mxu0 %v375
    %3882 = vmatpush.msra.mxu0 %v367
    %3883 = vmatpush.msra.mxu0 %v359
    %3884 = vmatpush.msra.mxu0 %v351
    %3885 = vmatpush.msra.mxu0 %v343
    %3886 = vmatpush.msra.mxu0 %v335
    %3887 = vmatpush.msra.mxu0 %v327
    %3888 = vmatpush.msra.mxu0 %v319
    %3889 = vmatmul.f32.gmra.mxu0 %v3752
    %v3890 = vpop.f32.mrf.mxu0
    %v3891 = vadd.f32 0.0, %v3890
    %3892 = vdwg.mxu0
    %3893 = vmatpush.msra.mxu0 %v440
    %3894 = vmatpush.msra.mxu0 %v432
    %3895 = vmatpush.msra.mxu0 %v424
    %3896 = vmatpush.msra.mxu0 %v416
    %3897 = vmatpush.msra.mxu0 %v408
    %3898 = vmatpush.msra.mxu0 %v400
    %3899 = vmatpush.msra.mxu0 %v392
    %3900 = vmatpush.msra.mxu0 %v384
    %3901 = vmatpush.msra.mxu0 %v376
    %3902 = vmatpush.msra.mxu0 %v368
    %3903 = vmatpush.msra.mxu0 %v360
    %3904 = vmatpush.msra.mxu0 %v352
    %3905 = vmatpush.msra.mxu0 %v344
    %3906 = vmatpush.msra.mxu0 %v336
    %3907 = vmatpush.msra.mxu0 %v328
    %3908 = vmatpush.msra.mxu0 %v320
    %3909 = vmatmul.f32.gmra.mxu0 %v3752
    %v3910 = vpop.f32.mrf.mxu0
    %v3911 = vadd.f32 0.0, %v3910
    %3912 = vdwg.mxu0
    %v3913 = vadd.f32 %v602, %v3771
    %v3914 = vadd.f32 %v603, %v3791
    %v3915 = vadd.f32 %v604, %v3811
    %v3916 = vadd.f32 %v605, %v3831
    %v3917 = vadd.f32 %v606, %v3851
    %v3918 = vadd.f32 %v607, %v3871
    %v3919 = vadd.f32 %v608, %v3891
    %v3920 = vadd.f32 %v609, %v3911
    %3921 = vmatpush.msra.mxu0 %v746
    %3922 = vmatpush.msra.mxu0 %v738
    %3923 = vmatpush.msra.mxu0 %v730
    %3924 = vmatpush.msra.mxu0 %v722
    %3925 = vmatpush.msra.mxu0 %v714
    %3926 = vmatpush.msra.mxu0 %v706
    %3927 = vmatpush.msra.mxu0 %v698
    %3928 = vmatpush.msra.mxu0 %v690
    %3929 = vmatpush.msra.mxu0 %v682
    %3930 = vmatpush.msra.mxu0 %v674
    %3931 = vmatpush.msra.mxu0 %v666
    %3932 = vmatpush.msra.mxu0 %v658
    %3933 = vmatpush.msra.mxu0 %v650
    %3934 = vmatpush.msra.mxu0 %v642
    %3935 = vmatpush.msra.mxu0 %v634
    %3936 = vmatpush.msra.mxu0 %v626
    %3937 = vmatmul.f32.gmra.mxu0 %v3267
    %v3938 = vpop.f32.mrf.mxu0
    %v3939 = vadd.f32 0.0, %v3938
    %3940 = vdwg.mxu0
    %3941 = vmatpush.msra.mxu0 %v874
    %3942 = vmatpush.msra.mxu0 %v866
    %3943 = vmatpush.msra.mxu0 %v858
    %3944 = vmatpush.msra.mxu0 %v850
    %3945 = vmatpush.msra.mxu0 %v842
    %3946 = vmatpush.msra.mxu0 %v834
    %3947 = vmatpush.msra.mxu0 %v826
    %3948 = vmatpush.msra.mxu0 %v818
    %3949 = vmatpush.msra.mxu0 %v810
    %3950 = vmatpush.msra.mxu0 %v802
    %3951 = vmatpush.msra.mxu0 %v794
    %3952 = vmatpush.msra.mxu0 %v786
    %3953 = vmatpush.msra.mxu0 %v778
    %3954 = vmatpush.msra.mxu0 %v770
    %3955 = vmatpush.msra.mxu0 %v762
    %3956 = vmatpush.msra.mxu0 %v754
    %3957 = vmatmul.f32.gmra.mxu0 %v3268
    %v3958 = vpop.f32.mrf.mxu0
    %v3959 = vadd.f32 %v3939, %v3958
    %3960 = vdwg.mxu0
    %3961 = vmatpush.msra.mxu0 %v747
    %3962 = vmatpush.msra.mxu0 %v739
    %3963 = vmatpush.msra.mxu0 %v731
    %3964 = vmatpush.msra.mxu0 %v723
    %3965 = vmatpush.msra.mxu0 %v715
    %3966 = vmatpush.msra.mxu0 %v707
    %3967 = vmatpush.msra.mxu0 %v699
    %3968 = vmatpush.msra.mxu0 %v691
    %3969 = vmatpush.msra.mxu0 %v683
    %3970 = vmatpush.msra.mxu0 %v675
    %3971 = vmatpush.msra.mxu0 %v667
    %3972 = vmatpush.msra.mxu0 %v659
    %3973 = vmatpush.msra.mxu0 %v651
    %3974 = vmatpush.msra.mxu0 %v643
    %3975 = vmatpush.msra.mxu0 %v635
    %3976 = vmatpush.msra.mxu0 %v627
    %3977 = vmatmul.f32.gmra.mxu0 %v3267
    %v3978 = vpop.f32.mrf.mxu0
    %v3979 = vadd.f32 0.0, %v3978
    %3980 = vdwg.mxu0
    %3981 = vmatpush.msra.mxu0 %v875
    %3982 = vmatpush.msra.mxu0 %v867
    %3983 = vmatpush.msra.mxu0 %v859
    %3984 = vmatpush.msra.mxu0 %v851
    %3985 = vmatpush.msra.mxu0 %v843
    %3986 = vmatpush.msra.mxu0 %v835
    %3987 = vmatpush.msra.mxu0 %v827
    %3988 = vmatpush.msra.mxu0 %v819
    %3989 = vmatpush.msra.mxu0 %v811
    %3990 = vmatpush.msra.mxu0 %v803
    %3991 = vmatpush.msra.mxu0 %v795
    %3992 = vmatpush.msra.mxu0 %v787
    %3993 = vmatpush.msra.mxu0 %v779
    %3994 = vmatpush.msra.mxu0 %v771
    %3995 = vmatpush.msra.mxu0 %v763
    %3996 = vmatpush.msra.mxu0 %v755
    %3997 = vmatmul.f32.gmra.mxu0 %v3268
    %v3998 = vpop.f32.mrf.mxu0
    %v3999 = vadd.f32 %v3979, %v3998
    %4000 = vdwg.mxu0
    %4001 = vmatpush.msra.mxu0 %v748
    %4002 = vmatpush.msra.mxu0 %v740
    %4003 = vmatpush.msra.mxu0 %v732
    %4004 = vmatpush.msra.mxu0 %v724
    %4005 = vmatpush.msra.mxu0 %v716
    %4006 = vmatpush.msra.mxu0 %v708
    %4007 = vmatpush.msra.mxu0 %v700
    %4008 = vmatpush.msra.mxu0 %v692
    %4009 = vmatpush.msra.mxu0 %v684
    %4010 = vmatpush.msra.mxu0 %v676
    %4011 = vmatpush.msra.mxu0 %v668
    %4012 = vmatpush.msra.mxu0 %v660
    %4013 = vmatpush.msra.mxu0 %v652
    %4014 = vmatpush.msra.mxu0 %v644
    %4015 = vmatpush.msra.mxu0 %v636
    %4016 = vmatpush.msra.mxu0 %v628
    %4017 = vmatmul.f32.gmra.mxu0 %v3267
    %v4018 = vpop.f32.mrf.mxu0
    %v4019 = vadd.f32 0.0, %v4018
    %4020 = vdwg.mxu0
    %4021 = vmatpush.msra.mxu0 %v876
    %4022 = vmatpush.msra.mxu0 %v868
    %4023 = vmatpush.msra.mxu0 %v860
    %4024 = vmatpush.msra.mxu0 %v852
    %4025 = vmatpush.msra.mxu0 %v844
    %4026 = vmatpush.msra.mxu0 %v836
    %4027 = vmatpush.msra.mxu0 %v828
    %4028 = vmatpush.msra.mxu0 %v820
    %4029 = vmatpush.msra.mxu0 %v812
    %4030 = vmatpush.msra.mxu0 %v804
    %4031 = vmatpush.msra.mxu0 %v796
    %4032 = vmatpush.msra.mxu0 %v788
    %4033 = vmatpush.msra.mxu0 %v780
    %4034 = vmatpush.msra.mxu0 %v772
    %4035 = vmatpush.msra.mxu0 %v764
    %4036 = vmatpush.msra.mxu0 %v756
    %4037 = vmatmul.f32.gmra.mxu0 %v3268
    %v4038 = vpop.f32.mrf.mxu0
    %v4039 = vadd.f32 %v4019, %v4038
    %4040 = vdwg.mxu0
    %4041 = vmatpush.msra.mxu0 %v749
    %4042 = vmatpush.msra.mxu0 %v741
    %4043 = vmatpush.msra.mxu0 %v733
    %4044 = vmatpush.msra.mxu0 %v725
    %4045 = vmatpush.msra.mxu0 %v717
    %4046 = vmatpush.msra.mxu0 %v709
    %4047 = vmatpush.msra.mxu0 %v701
    %4048 = vmatpush.msra.mxu0 %v693
    %4049 = vmatpush.msra.mxu0 %v685
    %4050 = vmatpush.msra.mxu0 %v677
    %4051 = vmatpush.msra.mxu0 %v669
    %4052 = vmatpush.msra.mxu0 %v661
    %4053 = vmatpush.msra.mxu0 %v653
    %4054 = vmatpush.msra.mxu0 %v645
    %4055 = vmatpush.msra.mxu0 %v637
    %4056 = vmatpush.msra.mxu0 %v629
    %4057 = vmatmul.f32.gmra.mxu0 %v3267
    %v4058 = vpop.f32.mrf.mxu0
    %v4059 = vadd.f32 0.0, %v4058
    %4060 = vdwg.mxu0
    %4061 = vmatpush.msra.mxu0 %v877
    %4062 = vmatpush.msra.mxu0 %v869
    %4063 = vmatpush.msra.mxu0 %v861
    %4064 = vmatpush.msra.mxu0 %v853
    %4065 = vmatpush.msra.mxu0 %v845
    %4066 = vmatpush.msra.mxu0 %v837
    %4067 = vmatpush.msra.mxu0 %v829
    %4068 = vmatpush.msra.mxu0 %v821
    %4069 = vmatpush.msra.mxu0 %v813
    %4070 = vmatpush.msra.mxu0 %v805
    %4071 = vmatpush.msra.mxu0 %v797
    %4072 = vmatpush.msra.mxu0 %v789
    %4073 = vmatpush.msra.mxu0 %v781
    %4074 = vmatpush.msra.mxu0 %v773
    %4075 = vmatpush.msra.mxu0 %v765
    %4076 = vmatpush.msra.mxu0 %v757
    %4077 = vmatmul.f32.gmra.mxu0 %v3268
    %v4078 = vpop.f32.mrf.mxu0
    %v4079 = vadd.f32 %v4059, %v4078
    %4080 = vdwg.mxu0
    %4081 = vmatpush.msra.mxu0 %v750
    %4082 = vmatpush.msra.mxu0 %v742
    %4083 = vmatpush.msra.mxu0 %v734
    %4084 = vmatpush.msra.mxu0 %v726
    %4085 = vmatpush.msra.mxu0 %v718
    %4086 = vmatpush.msra.mxu0 %v710
    %4087 = vmatpush.msra.mxu0 %v702
    %4088 = vmatpush.msra.mxu0 %v694
    %4089 = vmatpush.msra.mxu0 %v686
    %4090 = vmatpush.msra.mxu0 %v678
    %4091 = vmatpush.msra.mxu0 %v670
    %4092 = vmatpush.msra.mxu0 %v662
    %4093 = vmatpush.msra.mxu0 %v654
    %4094 = vmatpush.msra.mxu0 %v646
    %4095 = vmatpush.msra.mxu0 %v638
    %4096 = vmatpush.msra.mxu0 %v630
    %4097 = vmatmul.f32.gmra.mxu0 %v3267
    %v4098 = vpop.f32.mrf.mxu0
    %v4099 = vadd.f32 0.0, %v4098
    %4100 = vdwg.mxu0
    %4101 = vmatpush.msra.mxu0 %v878
    %4102 = vmatpush.msra.mxu0 %v870
    %4103 = vmatpush.msra.mxu0 %v862
    %4104 = vmatpush.msra.mxu0 %v854
    %4105 = vmatpush.msra.mxu0 %v846
    %4106 = vmatpush.msra.mxu0 %v838
    %4107 = vmatpush.msra.mxu0 %v830
    %4108 = vmatpush.msra.mxu0 %v822
    %4109 = vmatpush.msra.mxu0 %v814
    %4110 = vmatpush.msra.mxu0 %v806
    %4111 = vmatpush.msra.mxu0 %v798
    %4112 = vmatpush.msra.mxu0 %v790
    %4113 = vmatpush.msra.mxu0 %v782
    %4114 = vmatpush.msra.mxu0 %v774
    %4115 = vmatpush.msra.mxu0 %v766
    %4116 = vmatpush.msra.mxu0 %v758
    %4117 = vmatmul.f32.gmra.mxu0 %v3268
    %v4118 = vpop.f32.mrf.mxu0
    %v4119 = vadd.f32 %v4099, %v4118
    %4120 = vdwg.mxu0
    %4121 = vmatpush.msra.mxu0 %v751
    %4122 = vmatpush.msra.mxu0 %v743
    %4123 = vmatpush.msra.mxu0 %v735
    %4124 = vmatpush.msra.mxu0 %v727
    %4125 = vmatpush.msra.mxu0 %v719
    %4126 = vmatpush.msra.mxu0 %v711
    %4127 = vmatpush.msra.mxu0 %v703
    %4128 = vmatpush.msra.mxu0 %v695
    %4129 = vmatpush.msra.mxu0 %v687
    %4130 = vmatpush.msra.mxu0 %v679
    %4131 = vmatpush.msra.mxu0 %v671
    %4132 = vmatpush.msra.mxu0 %v663
    %4133 = vmatpush.msra.mxu0 %v655
    %4134 = vmatpush.msra.mxu0 %v647
    %4135 = vmatpush.msra.mxu0 %v639
    %4136 = vmatpush.msra.mxu0 %v631
    %4137 = vmatmul.f32.gmra.mxu0 %v3267
    %v4138 = vpop.f32.mrf.mxu0
    %v4139 = vadd.f32 0.0, %v4138
    %4140 = vdwg.mxu0
    %4141 = vmatpush.msra.mxu0 %v879
    %4142 = vmatpush.msra.mxu0 %v871
    %4143 = vmatpush.msra.mxu0 %v863
    %4144 = vmatpush.msra.mxu0 %v855
    %4145 = vmatpush.msra.mxu0 %v847
    %4146 = vmatpush.msra.mxu0 %v839
    %4147 = vmatpush.msra.mxu0 %v831
    %4148 = vmatpush.msra.mxu0 %v823
    %4149 = vmatpush.msra.mxu0 %v815
    %4150 = vmatpush.msra.mxu0 %v807
    %4151 = vmatpush.msra.mxu0 %v799
    %4152 = vmatpush.msra.mxu0 %v791
    %4153 = vmatpush.msra.mxu0 %v783
    %4154 = vmatpush.msra.mxu0 %v775
    %4155 = vmatpush.msra.mxu0 %v767
    %4156 = vmatpush.msra.mxu0 %v759
    %4157 = vmatmul.f32.gmra.mxu0 %v3268
    %v4158 = vpop.f32.mrf.mxu0
    %v4159 = vadd.f32 %v4139, %v4158
    %4160 = vdwg.mxu0
    %4161 = vmatpush.msra.mxu0 %v752
    %4162 = vmatpush.msra.mxu0 %v744
    %4163 = vmatpush.msra.mxu0 %v736
    %4164 = vmatpush.msra.mxu0 %v728
    %4165 = vmatpush.msra.mxu0 %v720
    %4166 = vmatpush.msra.mxu0 %v712
    %4167 = vmatpush.msra.mxu0 %v704
    %4168 = vmatpush.msra.mxu0 %v696
    %4169 = vmatpush.msra.mxu0 %v688
    %4170 = vmatpush.msra.mxu0 %v680
    %4171 = vmatpush.msra.mxu0 %v672
    %4172 = vmatpush.msra.mxu0 %v664
    %4173 = vmatpush.msra.mxu0 %v656
    %4174 = vmatpush.msra.mxu0 %v648
    %4175 = vmatpush.msra.mxu0 %v640
    %4176 = vmatpush.msra.mxu0 %v632
    %4177 = vmatmul.f32.gmra.mxu0 %v3267
    %v4178 = vpop.f32.mrf.mxu0
    %v4179 = vadd.f32 0.0, %v4178
    %4180 = vdwg.mxu0
    %4181 = vmatpush.msra.mxu0 %v880
    %4182 = vmatpush.msra.mxu0 %v872
    %4183 = vmatpush.msra.mxu0 %v864
    %4184 = vmatpush.msra.mxu0 %v856
    %4185 = vmatpush.msra.mxu0 %v848
    %4186 = vmatpush.msra.mxu0 %v840
    %4187 = vmatpush.msra.mxu0 %v832
    %4188 = vmatpush.msra.mxu0 %v824
    %4189 = vmatpush.msra.mxu0 %v816
    %4190 = vmatpush.msra.mxu0 %v808
    %4191 = vmatpush.msra.mxu0 %v800
    %4192 = vmatpush.msra.mxu0 %v792
    %4193 = vmatpush.msra.mxu0 %v784
    %4194 = vmatpush.msra.mxu0 %v776
    %4195 = vmatpush.msra.mxu0 %v768
    %4196 = vmatpush.msra.mxu0 %v760
    %4197 = vmatmul.f32.gmra.mxu0 %v3268
    %v4198 = vpop.f32.mrf.mxu0
    %v4199 = vadd.f32 %v4179, %v4198
    %4200 = vdwg.mxu0
    %4201 = vmatpush.msra.mxu0 %v753
    %4202 = vmatpush.msra.mxu0 %v745
    %4203 = vmatpush.msra.mxu0 %v737
    %4204 = vmatpush.msra.mxu0 %v729
    %4205 = vmatpush.msra.mxu0 %v721
    %4206 = vmatpush.msra.mxu0 %v713
    %4207 = vmatpush.msra.mxu0 %v705
    %4208 = vmatpush.msra.mxu0 %v697
    %4209 = vmatpush.msra.mxu0 %v689
    %4210 = vmatpush.msra.mxu0 %v681
    %4211 = vmatpush.msra.mxu0 %v673
    %4212 = vmatpush.msra.mxu0 %v665
    %4213 = vmatpush.msra.mxu0 %v657
    %4214 = vmatpush.msra.mxu0 %v649
    %4215 = vmatpush.msra.mxu0 %v641
    %4216 = vmatpush.msra.mxu0 %v633
    %4217 = vmatmul.f32.gmra.mxu0 %v3267
    %v4218 = vpop.f32.mrf.mxu0
    %v4219 = vadd.f32 0.0, %v4218
    %4220 = vdwg.mxu0
    %4221 = vmatpush.msra.mxu0 %v881
    %4222 = vmatpush.msra.mxu0 %v873
    %4223 = vmatpush.msra.mxu0 %v865
    %4224 = vmatpush.msra.mxu0 %v857
    %4225 = vmatpush.msra.mxu0 %v849
    %4226 = vmatpush.msra.mxu0 %v841
    %4227 = vmatpush.msra.mxu0 %v833
    %4228 = vmatpush.msra.mxu0 %v825
    %4229 = vmatpush.msra.mxu0 %v817
    %4230 = vmatpush.msra.mxu0 %v809
    %4231 = vmatpush.msra.mxu0 %v801
    %4232 = vmatpush.msra.mxu0 %v793
    %4233 = vmatpush.msra.mxu0 %v785
    %4234 = vmatpush.msra.mxu0 %v777
    %4235 = vmatpush.msra.mxu0 %v769
    %4236 = vmatpush.msra.mxu0 %v761
    %4237 = vmatmul.f32.gmra.mxu0 %v3268
    %v4238 = vpop.f32.mrf.mxu0
    %v4239 = vadd.f32 %v4219, %v4238
    %4240 = vdwg.mxu0
    %v4241 = vadd.f32 %v3913, %v3959
    %v4242 = vadd.f32 %v3914, %v3999
    %v4243 = vadd.f32 %v3915, %v4039
    %v4244 = vadd.f32 %v3916, %v4079
    %v4245 = vadd.f32 %v3917, %v4119
    %v4246 = vadd.f32 %v3918, %v4159
    %v4247 = vadd.f32 %v3919, %v4199
    %v4248 = vadd.f32 %v3920, %v4239
    %v4249 = vmul.f32 %v4241, 0.5
    %v4250 = vmul.f32 %v4242, 0.5
    %v4251 = vtanh.pop %v4249
    %v4252 = vtanh.pop %v4250
    %v4253 = vadd.f32 %v4251, 1.0
    %v4254 = vadd.f32 %v4252, 1.0
    %v4255 = vmul.f32 %v4253, 0.5
    %v4256 = vmul.f32 %v4254, 0.5
    %v4257 = vmul.f32 %v4243, 0.5
    %v4258 = vmul.f32 %v4244, 0.5
    %v4259 = vtanh.pop %v4257
    %v4260 = vtanh.pop %v4258
    %v4261 = vadd.f32 %v4259, 1.0
    %v4262 = vadd.f32 %v4260, 1.0
    %v4263 = vmul.f32 %v4261, 0.5
    %v4264 = vmul.f32 %v4262, 0.5
    %v4265 = vmul.f32 %v4245, 0.5
    %v4266 = vmul.f32 %v4246, 0.5
    %v4267 = vtanh.pop %v4265
    %v4268 = vtanh.pop %v4266
    %v4269 = vadd.f32 %v4267, 1.0
    %v4270 = vadd.f32 %v4268, 1.0
    %v4271 = vmul.f32 %v4269, 0.5
    %v4272 = vmul.f32 %v4270, 0.5
    %v4273 = vtanh.pop %v4247
    %v4274 = vtanh.pop %v4248
    %v4275 = vmul.f32 %v4263, %v3263
    %v4276 = vmul.f32 %v4264, %v3264
    %v4277 = vmul.f32 %v4255, %v4273
    %v4278 = vmul.f32 %v4256, %v4274
    %v4279 = vadd.f32 %v4275, %v4277
    %v4280 = vadd.f32 %v4276, %v4278
    %v4281 = vtanh.pop %v4279
    %v4282 = vtanh.pop %v4280
    %v4283 = vmul.f32 %v4271, %v4281
    %v4284 = vmul.f32 %v4272, %v4282
    %s4285 = scalar_lea.vmem %s7, 3072
    %v4286 = vld [vmem:[%s4285] sm:$0xff]
    %v4287 = vld [vmem:[%s4285 + $0x8] sm:$0xff]
    %v4288 = vld [vmem:[%s4285 + $0x10] sm:$0xff]
    %v4289 = vld [vmem:[%s4285 + $0x18] sm:$0xff]
    %v4290 = vld [vmem:[%s4285 + $0x20] sm:$0xff]
    %v4291 = vld [vmem:[%s4285 + $0x28] sm:$0xff]
    %v4292 = vld [vmem:[%s4285 + $0x30] sm:$0xff]
    %v4293 = vld [vmem:[%s4285 + $0x38] sm:$0xff]
    %v4294 = vld [vmem:[%s4285 + $0x40] sm:$0xff]
    %v4295 = vld [vmem:[%s4285 + $0x48] sm:$0xff]
    %v4296 = vld [vmem:[%s4285 + $0x50] sm:$0xff]
    %v4297 = vld [vmem:[%s4285 + $0x58] sm:$0xff]
    %v4298 = vld [vmem:[%s4285 + $0x60] sm:$0xff]
    %v4299 = vld [vmem:[%s4285 + $0x68] sm:$0xff]
    %v4300 = vld [vmem:[%s4285 + $0x70] sm:$0xff]
    %v4301 = vld [vmem:[%s4285 + $0x78] sm:$0xff]
    %v4302 = vld [vmem:[%s4285 + $0x80] sm:$0xff]
    %v4303 = vld [vmem:[%s4285 + $0x88] sm:$0xff]
    %v4304 = vld [vmem:[%s4285 + $0x90] sm:$0xff]
    %v4305 = vld [vmem:[%s4285 + $0x98] sm:$0xff]
    %v4306 = vld [vmem:[%s4285 + $0xa0] sm:$0xff]
    %v4307 = vld [vmem:[%s4285 + $0xa8] sm:$0xff]
    %v4308 = vld [vmem:[%s4285 + $0xb0] sm:$0xff]
    %v4309 = vld [vmem:[%s4285 + $0xb8] sm:$0xff]
    %v4310 = vld [vmem:[%s4285 + $0xc0] sm:$0xff]
    %v4311 = vld [vmem:[%s4285 + $0xc8] sm:$0xff]
    %v4312 = vld [vmem:[%s4285 + $0xd0] sm:$0xff]
    %v4313 = vld [vmem:[%s4285 + $0xd8] sm:$0xff]
    %v4314 = vld [vmem:[%s4285 + $0xe0] sm:$0xff]
    %v4315 = vld [vmem:[%s4285 + $0xe8] sm:$0xff]
    %v4316 = vld [vmem:[%s4285 + $0xf0] sm:$0xff]
    %v4317 = vld [vmem:[%s4285 + $0xf8] sm:$0xff]
    %v4318 = vld [vmem:[%s4285 + $0x100] sm:$0xff]
    %v4319 = vld [vmem:[%s4285 + $0x108] sm:$0xff]
    %v4320 = vld [vmem:[%s4285 + $0x110] sm:$0xff]
    %v4321 = vld [vmem:[%s4285 + $0x118] sm:$0xff]
    %v4322 = vld [vmem:[%s4285 + $0x120] sm:$0xff]
    %v4323 = vld [vmem:[%s4285 + $0x128] sm:$0xff]
    %v4324 = vld [vmem:[%s4285 + $0x130] sm:$0xff]
    %v4325 = vld [vmem:[%s4285 + $0x138] sm:$0xff]
    %v4326 = vld [vmem:[%s4285 + $0x140] sm:$0xff]
    %v4327 = vld [vmem:[%s4285 + $0x148] sm:$0xff]
    %v4328 = vld [vmem:[%s4285 + $0x150] sm:$0xff]
    %v4329 = vld [vmem:[%s4285 + $0x158] sm:$0xff]
    %v4330 = vld [vmem:[%s4285 + $0x160] sm:$0xff]
    %v4331 = vld [vmem:[%s4285 + $0x168] sm:$0xff]
    %v4332 = vld [vmem:[%s4285 + $0x170] sm:$0xff]
    %v4333 = vld [vmem:[%s4285 + $0x178] sm:$0xff]
    %v4334 = vld [vmem:[%s4285 + $0x180] sm:$0xff]
    %v4335 = vld [vmem:[%s4285 + $0x188] sm:$0xff]
    %v4336 = vld [vmem:[%s4285 + $0x190] sm:$0xff]
    %v4337 = vld [vmem:[%s4285 + $0x198] sm:$0xff]
    %v4338 = vld [vmem:[%s4285 + $0x1a0] sm:$0xff]
    %v4339 = vld [vmem:[%s4285 + $0x1a8] sm:$0xff]
    %v4340 = vld [vmem:[%s4285 + $0x1b0] sm:$0xff]
    %v4341 = vld [vmem:[%s4285 + $0x1b8] sm:$0xff]
    %v4342 = vld [vmem:[%s4285 + $0x1c0] sm:$0xff]
    %v4343 = vld [vmem:[%s4285 + $0x1c8] sm:$0xff]
    %v4344 = vld [vmem:[%s4285 + $0x1d0] sm:$0xff]
    %v4345 = vld [vmem:[%s4285 + $0x1d8] sm:$0xff]
    %v4346 = vld [vmem:[%s4285 + $0x1e0] sm:$0xff]
    %v4347 = vld [vmem:[%s4285 + $0x1e8] sm:$0xff]
    %v4348 = vld [vmem:[%s4285 + $0x1f0] sm:$0xff]
    %v4349 = vld [vmem:[%s4285 + $0x1f8] sm:$0xff]
    %v4350 = vld [vmem:[%s4285 + $0x200] sm:$0xff]
    %v4351 = vld [vmem:[%s4285 + $0x208] sm:$0xff]
    %v4352 = vld [vmem:[%s4285 + $0x210] sm:$0xff]
    %v4353 = vld [vmem:[%s4285 + $0x218] sm:$0xff]
    %v4354 = vld [vmem:[%s4285 + $0x220] sm:$0xff]
    %v4355 = vld [vmem:[%s4285 + $0x228] sm:$0xff]
    %v4356 = vld [vmem:[%s4285 + $0x230] sm:$0xff]
    %v4357 = vld [vmem:[%s4285 + $0x238] sm:$0xff]
    %v4358 = vld [vmem:[%s4285 + $0x240] sm:$0xff]
    %v4359 = vld [vmem:[%s4285 + $0x248] sm:$0xff]
    %v4360 = vld [vmem:[%s4285 + $0x250] sm:$0xff]
    %v4361 = vld [vmem:[%s4285 + $0x258] sm:$0xff]
    %v4362 = vld [vmem:[%s4285 + $0x260] sm:$0xff]
    %v4363 = vld [vmem:[%s4285 + $0x268] sm:$0xff]
    %v4364 = vld [vmem:[%s4285 + $0x270] sm:$0xff]
    %v4365 = vld [vmem:[%s4285 + $0x278] sm:$0xff]
    %v4366 = vld [vmem:[%s4285 + $0x280] sm:$0xff]
    %v4367 = vld [vmem:[%s4285 + $0x288] sm:$0xff]
    %v4368 = vld [vmem:[%s4285 + $0x290] sm:$0xff]
    %v4369 = vld [vmem:[%s4285 + $0x298] sm:$0xff]
    %v4370 = vld [vmem:[%s4285 + $0x2a0] sm:$0xff]
    %v4371 = vld [vmem:[%s4285 + $0x2a8] sm:$0xff]
    %v4372 = vld [vmem:[%s4285 + $0x2b0] sm:$0xff]
    %v4373 = vld [vmem:[%s4285 + $0x2b8] sm:$0xff]
    %v4374 = vld [vmem:[%s4285 + $0x2c0] sm:$0xff]
    %v4375 = vld [vmem:[%s4285 + $0x2c8] sm:$0xff]
    %v4376 = vld [vmem:[%s4285 + $0x2d0] sm:$0xff]
    %v4377 = vld [vmem:[%s4285 + $0x2d8] sm:$0xff]
    %v4378 = vld [vmem:[%s4285 + $0x2e0] sm:$0xff]
    %v4379 = vld [vmem:[%s4285 + $0x2e8] sm:$0xff]
    %v4380 = vld [vmem:[%s4285 + $0x2f0] sm:$0xff]
    %v4381 = vld [vmem:[%s4285 + $0x2f8] sm:$0xff]
    %v4382 = vld [vmem:[%s4285 + $0x300] sm:$0xff]
    %v4383 = vld [vmem:[%s4285 + $0x308] sm:$0xff]
    %v4384 = vld [vmem:[%s4285 + $0x310] sm:$0xff]
    %v4385 = vld [vmem:[%s4285 + $0x318] sm:$0xff]
    %v4386 = vld [vmem:[%s4285 + $0x320] sm:$0xff]
    %v4387 = vld [vmem:[%s4285 + $0x328] sm:$0xff]
    %v4388 = vld [vmem:[%s4285 + $0x330] sm:$0xff]
    %v4389 = vld [vmem:[%s4285 + $0x338] sm:$0xff]
    %v4390 = vld [vmem:[%s4285 + $0x340] sm:$0xff]
    %v4391 = vld [vmem:[%s4285 + $0x348] sm:$0xff]
    %v4392 = vld [vmem:[%s4285 + $0x350] sm:$0xff]
    %v4393 = vld [vmem:[%s4285 + $0x358] sm:$0xff]
    %v4394 = vld [vmem:[%s4285 + $0x360] sm:$0xff]
    %v4395 = vld [vmem:[%s4285 + $0x368] sm:$0xff]
    %v4396 = vld [vmem:[%s4285 + $0x370] sm:$0xff]
    %v4397 = vld [vmem:[%s4285 + $0x378] sm:$0xff]
    %v4398 = vld [vmem:[%s4285 + $0x380] sm:$0xff]
    %v4399 = vld [vmem:[%s4285 + $0x388] sm:$0xff]
    %v4400 = vld [vmem:[%s4285 + $0x390] sm:$0xff]
    %v4401 = vld [vmem:[%s4285 + $0x398] sm:$0xff]
    %v4402 = vld [vmem:[%s4285 + $0x3a0] sm:$0xff]
    %v4403 = vld [vmem:[%s4285 + $0x3a8] sm:$0xff]
    %v4404 = vld [vmem:[%s4285 + $0x3b0] sm:$0xff]
    %v4405 = vld [vmem:[%s4285 + $0x3b8] sm:$0xff]
    %v4406 = vld [vmem:[%s4285 + $0x3c0] sm:$0xff]
    %v4407 = vld [vmem:[%s4285 + $0x3c8] sm:$0xff]
    %v4408 = vld [vmem:[%s4285 + $0x3d0] sm:$0xff]
    %v4409 = vld [vmem:[%s4285 + $0x3d8] sm:$0xff]
    %v4410 = vld [vmem:[%s4285 + $0x3e0] sm:$0xff]
    %v4411 = vld [vmem:[%s4285 + $0x3e8] sm:$0xff]
    %v4412 = vld [vmem:[%s4285 + $0x3f0] sm:$0xff]
    %v4413 = vld [vmem:[%s4285 + $0x3f8] sm:$0xff]
    %4414 = vmatpush.msra.mxu0 %v4346
    %4415 = vmatpush.msra.mxu0 %v4342
    %4416 = vmatpush.msra.mxu0 %v4338
    %4417 = vmatpush.msra.mxu0 %v4334
    %4418 = vmatpush.msra.mxu0 %v4330
    %4419 = vmatpush.msra.mxu0 %v4326
    %4420 = vmatpush.msra.mxu0 %v4322
    %4421 = vmatpush.msra.mxu0 %v4318
    %4422 = vmatpush.msra.mxu0 %v4314
    %4423 = vmatpush.msra.mxu0 %v4310
    %4424 = vmatpush.msra.mxu0 %v4306
    %4425 = vmatpush.msra.mxu0 %v4302
    %4426 = vmatpush.msra.mxu0 %v4298
    %4427 = vmatpush.msra.mxu0 %v4294
    %4428 = vmatpush.msra.mxu0 %v4290
    %4429 = vmatpush.msra.mxu0 %v4286
    %4430 = vmatmul.f32.gmra.mxu0 %v4283
    %v4431 = vpop.f32.mrf.mxu0
    %v4432 = vadd.f32 0.0, %v4431
    %4433 = vdwg.mxu0
    %4434 = vmatpush.msra.mxu0 %v4410
    %4435 = vmatpush.msra.mxu0 %v4406
    %4436 = vmatpush.msra.mxu0 %v4402
    %4437 = vmatpush.msra.mxu0 %v4398
    %4438 = vmatpush.msra.mxu0 %v4394
    %4439 = vmatpush.msra.mxu0 %v4390
    %4440 = vmatpush.msra.mxu0 %v4386
    %4441 = vmatpush.msra.mxu0 %v4382
    %4442 = vmatpush.msra.mxu0 %v4378
    %4443 = vmatpush.msra.mxu0 %v4374
    %4444 = vmatpush.msra.mxu0 %v4370
    %4445 = vmatpush.msra.mxu0 %v4366
    %4446 = vmatpush.msra.mxu0 %v4362
    %4447 = vmatpush.msra.mxu0 %v4358
    %4448 = vmatpush.msra.mxu0 %v4354
    %4449 = vmatpush.msra.mxu0 %v4350
    %4450 = vmatmul.f32.gmra.mxu0 %v4284
    %v4451 = vpop.f32.mrf.mxu0
    %v4452 = vadd.f32 %v4432, %v4451
    %4453 = vdwg.mxu0
    %4454 = vmatpush.msra.mxu0 %v4347
    %4455 = vmatpush.msra.mxu0 %v4343
    %4456 = vmatpush.msra.mxu0 %v4339
    %4457 = vmatpush.msra.mxu0 %v4335
    %4458 = vmatpush.msra.mxu0 %v4331
    %4459 = vmatpush.msra.mxu0 %v4327
    %4460 = vmatpush.msra.mxu0 %v4323
    %4461 = vmatpush.msra.mxu0 %v4319
    %4462 = vmatpush.msra.mxu0 %v4315
    %4463 = vmatpush.msra.mxu0 %v4311
    %4464 = vmatpush.msra.mxu0 %v4307
    %4465 = vmatpush.msra.mxu0 %v4303
    %4466 = vmatpush.msra.mxu0 %v4299
    %4467 = vmatpush.msra.mxu0 %v4295
    %4468 = vmatpush.msra.mxu0 %v4291
    %4469 = vmatpush.msra.mxu0 %v4287
    %4470 = vmatmul.f32.gmra.mxu0 %v4283
    %v4471 = vpop.f32.mrf.mxu0
    %v4472 = vadd.f32 0.0, %v4471
    %4473 = vdwg.mxu0
    %4474 = vmatpush.msra.mxu0 %v4411
    %4475 = vmatpush.msra.mxu0 %v4407
    %4476 = vmatpush.msra.mxu0 %v4403
    %4477 = vmatpush.msra.mxu0 %v4399
    %4478 = vmatpush.msra.mxu0 %v4395
    %4479 = vmatpush.msra.mxu0 %v4391
    %4480 = vmatpush.msra.mxu0 %v4387
    %4481 = vmatpush.msra.mxu0 %v4383
    %4482 = vmatpush.msra.mxu0 %v4379
    %4483 = vmatpush.msra.mxu0 %v4375
    %4484 = vmatpush.msra.mxu0 %v4371
    %4485 = vmatpush.msra.mxu0 %v4367
    %4486 = vmatpush.msra.mxu0 %v4363
    %4487 = vmatpush.msra.mxu0 %v4359
    %4488 = vmatpush.msra.mxu0 %v4355
    %4489 = vmatpush.msra.mxu0 %v4351
    %4490 = vmatmul.f32.gmra.mxu0 %v4284
    %v4491 = vpop.f32.mrf.mxu0
    %v4492 = vadd.f32 %v4472, %v4491
    %4493 = vdwg.mxu0
    %4494 = vmatpush.msra.mxu0 %v4348
    %4495 = vmatpush.msra.mxu0 %v4344
    %4496 = vmatpush.msra.mxu0 %v4340
    %4497 = vmatpush.msra.mxu0 %v4336
    %4498 = vmatpush.msra.mxu0 %v4332
    %4499 = vmatpush.msra.mxu0 %v4328
    %4500 = vmatpush.msra.mxu0 %v4324
    %4501 = vmatpush.msra.mxu0 %v4320
    %4502 = vmatpush.msra.mxu0 %v4316
    %4503 = vmatpush.msra.mxu0 %v4312
    %4504 = vmatpush.msra.mxu0 %v4308
    %4505 = vmatpush.msra.mxu0 %v4304
    %4506 = vmatpush.msra.mxu0 %v4300
    %4507 = vmatpush.msra.mxu0 %v4296
    %4508 = vmatpush.msra.mxu0 %v4292
    %4509 = vmatpush.msra.mxu0 %v4288
    %4510 = vmatmul.f32.gmra.mxu0 %v4283
    %v4511 = vpop.f32.mrf.mxu0
    %v4512 = vadd.f32 0.0, %v4511
    %4513 = vdwg.mxu0
    %4514 = vmatpush.msra.mxu0 %v4412
    %4515 = vmatpush.msra.mxu0 %v4408
    %4516 = vmatpush.msra.mxu0 %v4404
    %4517 = vmatpush.msra.mxu0 %v4400
    %4518 = vmatpush.msra.mxu0 %v4396
    %4519 = vmatpush.msra.mxu0 %v4392
    %4520 = vmatpush.msra.mxu0 %v4388
    %4521 = vmatpush.msra.mxu0 %v4384
    %4522 = vmatpush.msra.mxu0 %v4380
    %4523 = vmatpush.msra.mxu0 %v4376
    %4524 = vmatpush.msra.mxu0 %v4372
    %4525 = vmatpush.msra.mxu0 %v4368
    %4526 = vmatpush.msra.mxu0 %v4364
    %4527 = vmatpush.msra.mxu0 %v4360
    %4528 = vmatpush.msra.mxu0 %v4356
    %4529 = vmatpush.msra.mxu0 %v4352
    %4530 = vmatmul.f32.gmra.mxu0 %v4284
    %v4531 = vpop.f32.mrf.mxu0
    %v4532 = vadd.f32 %v4512, %v4531
    %4533 = vdwg.mxu0
    %4534 = vmatpush.msra.mxu0 %v4349
    %4535 = vmatpush.msra.mxu0 %v4345
    %4536 = vmatpush.msra.mxu0 %v4341
    %4537 = vmatpush.msra.mxu0 %v4337
    %4538 = vmatpush.msra.mxu0 %v4333
    %4539 = vmatpush.msra.mxu0 %v4329
    %4540 = vmatpush.msra.mxu0 %v4325
    %4541 = vmatpush.msra.mxu0 %v4321
    %4542 = vmatpush.msra.mxu0 %v4317
    %4543 = vmatpush.msra.mxu0 %v4313
    %4544 = vmatpush.msra.mxu0 %v4309
    %4545 = vmatpush.msra.mxu0 %v4305
    %4546 = vmatpush.msra.mxu0 %v4301
    %4547 = vmatpush.msra.mxu0 %v4297
    %4548 = vmatpush.msra.mxu0 %v4293
    %4549 = vmatpush.msra.mxu0 %v4289
    %4550 = vmatmul.f32.gmra.mxu0 %v4283
    %v4551 = vpop.f32.mrf.mxu0
    %v4552 = vadd.f32 0.0, %v4551
    %4553 = vdwg.mxu0
    %4554 = vmatpush.msra.mxu0 %v4413
    %4555 = vmatpush.msra.mxu0 %v4409
    %4556 = vmatpush.msra.mxu0 %v4405
    %4557 = vmatpush.msra.mxu0 %v4401
    %4558 = vmatpush.msra.mxu0 %v4397
    %4559 = vmatpush.msra.mxu0 %v4393
    %4560 = vmatpush.msra.mxu0 %v4389
    %4561 = vmatpush.msra.mxu0 %v4385
    %4562 = vmatpush.msra.mxu0 %v4381
    %4563 = vmatpush.msra.mxu0 %v4377
    %4564 = vmatpush.msra.mxu0 %v4373
    %4565 = vmatpush.msra.mxu0 %v4369
    %4566 = vmatpush.msra.mxu0 %v4365
    %4567 = vmatpush.msra.mxu0 %v4361
    %4568 = vmatpush.msra.mxu0 %v4357
    %4569 = vmatpush.msra.mxu0 %v4353
    %4570 = vmatmul.f32.gmra.mxu0 %v4284
    %v4571 = vpop.f32.mrf.mxu0
    %v4572 = vadd.f32 %v4552, %v4571
    %4573 = vdwg.mxu0
    %v4574 = vadd.f32 %v3558, %v4452
    %v4575 = vadd.f32 %v3559, %v4492
    %v4576 = vadd.f32 %v3560, %v4532
    %v4577 = vadd.f32 %v3561, %v4572
    %s4578 = scalar_lea.vmem %s0, 8
    %v4579 = vld [vmem:[%s4578] sm:$0x3]
    %v4581 = vsel %vm50, %v4579, 0
    %4583 = vmatpush.msra.mxu0 0.0
    %4584 = vmatpush.msra.mxu0 0.0
    %4585 = vmatpush.msra.mxu0 0.0
    %4586 = vmatpush.msra.mxu0 0.0
    %4587 = vmatpush.msra.mxu0 0.0
    %4588 = vmatpush.msra.mxu0 0.0
    %4589 = vmatpush.msra.mxu0 0.0
    %4590 = vmatpush.msra.mxu0 0.0
    %4591 = vmatpush.msra.mxu0 0.0
    %4592 = vmatpush.msra.mxu0 0.0
    %4593 = vmatpush.msra.mxu0 0.0
    %4594 = vmatpush.msra.mxu0 0.0
    %4595 = vmatpush.msra.mxu0 0.0
    %4596 = vmatpush.msra.mxu0 0.0
    %4597 = vmatpush.msra.mxu0 %v46
    %4598 = vmatpush.msra.mxu0 %v42
    %4599 = vmatmul.f32.gmra.mxu0 %v4581
    %v4600 = vpop.f32.mrf.mxu0
    %v4601 = vadd.f32 0.0, %v4600
    %4602 = vdwg.mxu0
    %4603 = vmatpush.msra.mxu0 0.0
    %4604 = vmatpush.msra.mxu0 0.0
    %4605 = vmatpush.msra.mxu0 0.0
    %4606 = vmatpush.msra.mxu0 0.0
    %4607 = vmatpush.msra.mxu0 0.0
    %4608 = vmatpush.msra.mxu0 0.0
    %4609 = vmatpush.msra.mxu0 0.0
    %4610 = vmatpush.msra.mxu0 0.0
    %4611 = vmatpush.msra.mxu0 0.0
    %4612 = vmatpush.msra.mxu0 0.0
    %4613 = vmatpush.msra.mxu0 0.0
    %4614 = vmatpush.msra.mxu0 0.0
    %4615 = vmatpush.msra.mxu0 0.0
    %4616 = vmatpush.msra.mxu0 0.0
    %4617 = vmatpush.msra.mxu0 %v47
    %4618 = vmatpush.msra.mxu0 %v43
    %4619 = vmatmul.f32.gmra.mxu0 %v4581
    %v4620 = vpop.f32.mrf.mxu0
    %v4621 = vadd.f32 0.0, %v4620
    %4622 = vdwg.mxu0
    %4623 = vmatpush.msra.mxu0 0.0
    %4624 = vmatpush.msra.mxu0 0.0
    %4625 = vmatpush.msra.mxu0 0.0
    %4626 = vmatpush.msra.mxu0 0.0
    %4627 = vmatpush.msra.mxu0 0.0
    %4628 = vmatpush.msra.mxu0 0.0
    %4629 = vmatpush.msra.mxu0 0.0
    %4630 = vmatpush.msra.mxu0 0.0
    %4631 = vmatpush.msra.mxu0 0.0
    %4632 = vmatpush.msra.mxu0 0.0
    %4633 = vmatpush.msra.mxu0 0.0
    %4634 = vmatpush.msra.mxu0 0.0
    %4635 = vmatpush.msra.mxu0 0.0
    %4636 = vmatpush.msra.mxu0 0.0
    %4637 = vmatpush.msra.mxu0 %v48
    %4638 = vmatpush.msra.mxu0 %v44
    %4639 = vmatmul.f32.gmra.mxu0 %v4581
    %v4640 = vpop.f32.mrf.mxu0
    %v4641 = vadd.f32 0.0, %v4640
    %4642 = vdwg.mxu0
    %4643 = vmatpush.msra.mxu0 0.0
    %4644 = vmatpush.msra.mxu0 0.0
    %4645 = vmatpush.msra.mxu0 0.0
    %4646 = vmatpush.msra.mxu0 0.0
    %4647 = vmatpush.msra.mxu0 0.0
    %4648 = vmatpush.msra.mxu0 0.0
    %4649 = vmatpush.msra.mxu0 0.0
    %4650 = vmatpush.msra.mxu0 0.0
    %4651 = vmatpush.msra.mxu0 0.0
    %4652 = vmatpush.msra.mxu0 0.0
    %4653 = vmatpush.msra.mxu0 0.0
    %4654 = vmatpush.msra.mxu0 0.0
    %4655 = vmatpush.msra.mxu0 0.0
    %4656 = vmatpush.msra.mxu0 0.0
    %4657 = vmatpush.msra.mxu0 %v49
    %4658 = vmatpush.msra.mxu0 %v45
    %4659 = vmatmul.f32.gmra.mxu0 %v4581
    %v4660 = vpop.f32.mrf.mxu0
    %v4661 = vadd.f32 0.0, %v4660
    %4662 = vdwg.mxu0
    %v4663 = vadd.f32 %v135, %v4601
    %v4664 = vadd.f32 %v136, %v4621
    %v4665 = vadd.f32 %v137, %v4641
    %v4666 = vadd.f32 %v138, %v4661
    %4667 = vmatpush.msra.mxu0 %v207
    %4668 = vmatpush.msra.mxu0 %v203
    %4669 = vmatpush.msra.mxu0 %v199
    %4670 = vmatpush.msra.mxu0 %v195
    %4671 = vmatpush.msra.mxu0 %v191
    %4672 = vmatpush.msra.mxu0 %v187
    %4673 = vmatpush.msra.mxu0 %v183
    %4674 = vmatpush.msra.mxu0 %v179
    %4675 = vmatpush.msra.mxu0 %v175
    %4676 = vmatpush.msra.mxu0 %v171
    %4677 = vmatpush.msra.mxu0 %v167
    %4678 = vmatpush.msra.mxu0 %v163
    %4679 = vmatpush.msra.mxu0 %v159
    %4680 = vmatpush.msra.mxu0 %v155
    %4681 = vmatpush.msra.mxu0 %v151
    %4682 = vmatpush.msra.mxu0 %v147
    %4683 = vmatmul.f32.gmra.mxu0 %v3752
    %v4684 = vpop.f32.mrf.mxu0
    %v4685 = vadd.f32 0.0, %v4684
    %4686 = vdwg.mxu0
    %4687 = vmatpush.msra.mxu0 %v208
    %4688 = vmatpush.msra.mxu0 %v204
    %4689 = vmatpush.msra.mxu0 %v200
    %4690 = vmatpush.msra.mxu0 %v196
    %4691 = vmatpush.msra.mxu0 %v192
    %4692 = vmatpush.msra.mxu0 %v188
    %4693 = vmatpush.msra.mxu0 %v184
    %4694 = vmatpush.msra.mxu0 %v180
    %4695 = vmatpush.msra.mxu0 %v176
    %4696 = vmatpush.msra.mxu0 %v172
    %4697 = vmatpush.msra.mxu0 %v168
    %4698 = vmatpush.msra.mxu0 %v164
    %4699 = vmatpush.msra.mxu0 %v160
    %4700 = vmatpush.msra.mxu0 %v156
    %4701 = vmatpush.msra.mxu0 %v152
    %4702 = vmatpush.msra.mxu0 %v148
    %4703 = vmatmul.f32.gmra.mxu0 %v3752
    %v4704 = vpop.f32.mrf.mxu0
    %v4705 = vadd.f32 0.0, %v4704
    %4706 = vdwg.mxu0
    %4707 = vmatpush.msra.mxu0 %v209
    %4708 = vmatpush.msra.mxu0 %v205
    %4709 = vmatpush.msra.mxu0 %v201
    %4710 = vmatpush.msra.mxu0 %v197
    %4711 = vmatpush.msra.mxu0 %v193
    %4712 = vmatpush.msra.mxu0 %v189
    %4713 = vmatpush.msra.mxu0 %v185
    %4714 = vmatpush.msra.mxu0 %v181
    %4715 = vmatpush.msra.mxu0 %v177
    %4716 = vmatpush.msra.mxu0 %v173
    %4717 = vmatpush.msra.mxu0 %v169
    %4718 = vmatpush.msra.mxu0 %v165
    %4719 = vmatpush.msra.mxu0 %v161
    %4720 = vmatpush.msra.mxu0 %v157
    %4721 = vmatpush.msra.mxu0 %v153
    %4722 = vmatpush.msra.mxu0 %v149
    %4723 = vmatmul.f32.gmra.mxu0 %v3752
    %v4724 = vpop.f32.mrf.mxu0
    %v4725 = vadd.f32 0.0, %v4724
    %4726 = vdwg.mxu0
    %4727 = vmatpush.msra.mxu0 %v210
    %4728 = vmatpush.msra.mxu0 %v206
    %4729 = vmatpush.msra.mxu0 %v202
    %4730 = vmatpush.msra.mxu0 %v198
    %4731 = vmatpush.msra.mxu0 %v194
    %4732 = vmatpush.msra.mxu0 %v190
    %4733 = vmatpush.msra.mxu0 %v186
    %4734 = vmatpush.msra.mxu0 %v182
    %4735 = vmatpush.msra.mxu0 %v178
    %4736 = vmatpush.msra.mxu0 %v174
    %4737 = vmatpush.msra.mxu0 %v170
    %4738 = vmatpush.msra.mxu0 %v166
    %4739 = vmatpush.msra.mxu0 %v162
    %4740 = vmatpush.msra.mxu0 %v158
    %4741 = vmatpush.msra.mxu0 %v154
    %4742 = vmatpush.msra.mxu0 %v150
    %4743 = vmatmul.f32.gmra.mxu0 %v3752
    %v4744 = vpop.f32.mrf.mxu0
    %v4745 = vadd.f32 0.0, %v4744
    %4746 = vdwg.mxu0
    %v4747 = vadd.f32 %v4663, %v4685
    %v4748 = vadd.f32 %v4664, %v4705
    %v4749 = vadd.f32 %v4665, %v4725
    %v4750 = vadd.f32 %v4666, %v4745
    %v4751 = vmul.f32 %v4747, 0.5
    %v4752 = vtanh.pop %v4751
    %v4753 = vadd.f32 %v4752, 1.0
    %v4754 = vmul.f32 %v4753, 0.5
    %v4755 = vmul.f32 %v4748, 0.5
    %v4756 = vtanh.pop %v4755
    %v4757 = vadd.f32 %v4756, 1.0
    %v4758 = vmul.f32 %v4757, 0.5
    %v4759 = vmul.f32 %v4749, 0.5
    %v4760 = vtanh.pop %v4759
    %v4761 = vadd.f32 %v4760, 1.0
    %v4762 = vmul.f32 %v4761, 0.5
    %v4763 = vtanh.pop %v4750
    %v4764 = vmul.f32 %v4758, %v3750
    %v4765 = vmul.f32 %v4754, %v4763
    %v4766 = vadd.f32 %v4764, %v4765
    %v4767 = vtanh.pop %v4766
    %v4768 = vmul.f32 %v4762, %v4767
    %4769 = vmatpush.msra.mxu0 %v433
    %4770 = vmatpush.msra.mxu0 %v425
    %4771 = vmatpush.msra.mxu0 %v417
    %4772 = vmatpush.msra.mxu0 %v409
    %4773 = vmatpush.msra.mxu0 %v401
    %4774 = vmatpush.msra.mxu0 %v393
    %4775 = vmatpush.msra.mxu0 %v385
    %4776 = vmatpush.msra.mxu0 %v377
    %4777 = vmatpush.msra.mxu0 %v369
    %4778 = vmatpush.msra.mxu0 %v361
    %4779 = vmatpush.msra.mxu0 %v353
    %4780 = vmatpush.msra.mxu0 %v345
    %4781 = vmatpush.msra.mxu0 %v337
    %4782 = vmatpush.msra.mxu0 %v329
    %4783 = vmatpush.msra.mxu0 %v321
    %4784 = vmatpush.msra.mxu0 %v313
    %4785 = vmatmul.f32.gmra.mxu0 %v4768
    %v4786 = vpop.f32.mrf.mxu0
    %v4787 = vadd.f32 0.0, %v4786
    %4788 = vdwg.mxu0
    %4789 = vmatpush.msra.mxu0 %v434
    %4790 = vmatpush.msra.mxu0 %v426
    %4791 = vmatpush.msra.mxu0 %v418
    %4792 = vmatpush.msra.mxu0 %v410
    %4793 = vmatpush.msra.mxu0 %v402
    %4794 = vmatpush.msra.mxu0 %v394
    %4795 = vmatpush.msra.mxu0 %v386
    %4796 = vmatpush.msra.mxu0 %v378
    %4797 = vmatpush.msra.mxu0 %v370
    %4798 = vmatpush.msra.mxu0 %v362
    %4799 = vmatpush.msra.mxu0 %v354
    %4800 = vmatpush.msra.mxu0 %v346
    %4801 = vmatpush.msra.mxu0 %v338
    %4802 = vmatpush.msra.mxu0 %v330
    %4803 = vmatpush.msra.mxu0 %v322
    %4804 = vmatpush.msra.mxu0 %v314
    %4805 = vmatmul.f32.gmra.mxu0 %v4768
    %v4806 = vpop.f32.mrf.mxu0
    %v4807 = vadd.f32 0.0, %v4806
    %4808 = vdwg.mxu0
    %4809 = vmatpush.msra.mxu0 %v435
    %4810 = vmatpush.msra.mxu0 %v427
    %4811 = vmatpush.msra.mxu0 %v419
    %4812 = vmatpush.msra.mxu0 %v411
    %4813 = vmatpush.msra.mxu0 %v403
    %4814 = vmatpush.msra.mxu0 %v395
    %4815 = vmatpush.msra.mxu0 %v387
    %4816 = vmatpush.msra.mxu0 %v379
    %4817 = vmatpush.msra.mxu0 %v371
    %4818 = vmatpush.msra.mxu0 %v363
    %4819 = vmatpush.msra.mxu0 %v355
    %4820 = vmatpush.msra.mxu0 %v347
    %4821 = vmatpush.msra.mxu0 %v339
    %4822 = vmatpush.msra.mxu0 %v331
    %4823 = vmatpush.msra.mxu0 %v323
    %4824 = vmatpush.msra.mxu0 %v315
    %4825 = vmatmul.f32.gmra.mxu0 %v4768
    %v4826 = vpop.f32.mrf.mxu0
    %v4827 = vadd.f32 0.0, %v4826
    %4828 = vdwg.mxu0
    %4829 = vmatpush.msra.mxu0 %v436
    %4830 = vmatpush.msra.mxu0 %v428
    %4831 = vmatpush.msra.mxu0 %v420
    %4832 = vmatpush.msra.mxu0 %v412
    %4833 = vmatpush.msra.mxu0 %v404
    %4834 = vmatpush.msra.mxu0 %v396
    %4835 = vmatpush.msra.mxu0 %v388
    %4836 = vmatpush.msra.mxu0 %v380
    %4837 = vmatpush.msra.mxu0 %v372
    %4838 = vmatpush.msra.mxu0 %v364
    %4839 = vmatpush.msra.mxu0 %v356
    %4840 = vmatpush.msra.mxu0 %v348
    %4841 = vmatpush.msra.mxu0 %v340
    %4842 = vmatpush.msra.mxu0 %v332
    %4843 = vmatpush.msra.mxu0 %v324
    %4844 = vmatpush.msra.mxu0 %v316
    %4845 = vmatmul.f32.gmra.mxu0 %v4768
    %v4846 = vpop.f32.mrf.mxu0
    %v4847 = vadd.f32 0.0, %v4846
    %4848 = vdwg.mxu0
    %4849 = vmatpush.msra.mxu0 %v437
    %4850 = vmatpush.msra.mxu0 %v429
    %4851 = vmatpush.msra.mxu0 %v421
    %4852 = vmatpush.msra.mxu0 %v413
    %4853 = vmatpush.msra.mxu0 %v405
    %4854 = vmatpush.msra.mxu0 %v397
    %4855 = vmatpush.msra.mxu0 %v389
    %4856 = vmatpush.msra.mxu0 %v381
    %4857 = vmatpush.msra.mxu0 %v373
    %4858 = vmatpush.msra.mxu0 %v365
    %4859 = vmatpush.msra.mxu0 %v357
    %4860 = vmatpush.msra.mxu0 %v349
    %4861 = vmatpush.msra.mxu0 %v341
    %4862 = vmatpush.msra.mxu0 %v333
    %4863 = vmatpush.msra.mxu0 %v325
    %4864 = vmatpush.msra.mxu0 %v317
    %4865 = vmatmul.f32.gmra.mxu0 %v4768
    %v4866 = vpop.f32.mrf.mxu0
    %v4867 = vadd.f32 0.0, %v4866
    %4868 = vdwg.mxu0
    %4869 = vmatpush.msra.mxu0 %v438
    %4870 = vmatpush.msra.mxu0 %v430
    %4871 = vmatpush.msra.mxu0 %v422
    %4872 = vmatpush.msra.mxu0 %v414
    %4873 = vmatpush.msra.mxu0 %v406
    %4874 = vmatpush.msra.mxu0 %v398
    %4875 = vmatpush.msra.mxu0 %v390
    %4876 = vmatpush.msra.mxu0 %v382
    %4877 = vmatpush.msra.mxu0 %v374
    %4878 = vmatpush.msra.mxu0 %v366
    %4879 = vmatpush.msra.mxu0 %v358
    %4880 = vmatpush.msra.mxu0 %v350
    %4881 = vmatpush.msra.mxu0 %v342
    %4882 = vmatpush.msra.mxu0 %v334
    %4883 = vmatpush.msra.mxu0 %v326
    %4884 = vmatpush.msra.mxu0 %v318
    %4885 = vmatmul.f32.gmra.mxu0 %v4768
    %v4886 = vpop.f32.mrf.mxu0
    %v4887 = vadd.f32 0.0, %v4886
    %4888 = vdwg.mxu0
    %4889 = vmatpush.msra.mxu0 %v439
    %4890 = vmatpush.msra.mxu0 %v431
    %4891 = vmatpush.msra.mxu0 %v423
    %4892 = vmatpush.msra.mxu0 %v415
    %4893 = vmatpush.msra.mxu0 %v407
    %4894 = vmatpush.msra.mxu0 %v399
    %4895 = vmatpush.msra.mxu0 %v391
    %4896 = vmatpush.msra.mxu0 %v383
    %4897 = vmatpush.msra.mxu0 %v375
    %4898 = vmatpush.msra.mxu0 %v367
    %4899 = vmatpush.msra.mxu0 %v359
    %4900 = vmatpush.msra.mxu0 %v351
    %4901 = vmatpush.msra.mxu0 %v343
    %4902 = vmatpush.msra.mxu0 %v335
    %4903 = vmatpush.msra.mxu0 %v327
    %4904 = vmatpush.msra.mxu0 %v319
    %4905 = vmatmul.f32.gmra.mxu0 %v4768
    %v4906 = vpop.f32.mrf.mxu0
    %v4907 = vadd.f32 0.0, %v4906
    %4908 = vdwg.mxu0
    %4909 = vmatpush.msra.mxu0 %v440
    %4910 = vmatpush.msra.mxu0 %v432
    %4911 = vmatpush.msra.mxu0 %v424
    %4912 = vmatpush.msra.mxu0 %v416
    %4913 = vmatpush.msra.mxu0 %v408
    %4914 = vmatpush.msra.mxu0 %v400
    %4915 = vmatpush.msra.mxu0 %v392
    %4916 = vmatpush.msra.mxu0 %v384
    %4917 = vmatpush.msra.mxu0 %v376
    %4918 = vmatpush.msra.mxu0 %v368
    %4919 = vmatpush.msra.mxu0 %v360
    %4920 = vmatpush.msra.mxu0 %v352
    %4921 = vmatpush.msra.mxu0 %v344
    %4922 = vmatpush.msra.mxu0 %v336
    %4923 = vmatpush.msra.mxu0 %v328
    %4924 = vmatpush.msra.mxu0 %v320
    %4925 = vmatmul.f32.gmra.mxu0 %v4768
    %v4926 = vpop.f32.mrf.mxu0
    %v4927 = vadd.f32 0.0, %v4926
    %4928 = vdwg.mxu0
    %v4929 = vadd.f32 %v602, %v4787
    %v4930 = vadd.f32 %v603, %v4807
    %v4931 = vadd.f32 %v604, %v4827
    %v4932 = vadd.f32 %v605, %v4847
    %v4933 = vadd.f32 %v606, %v4867
    %v4934 = vadd.f32 %v607, %v4887
    %v4935 = vadd.f32 %v608, %v4907
    %v4936 = vadd.f32 %v609, %v4927
    %4937 = vmatpush.msra.mxu0 %v746
    %4938 = vmatpush.msra.mxu0 %v738
    %4939 = vmatpush.msra.mxu0 %v730
    %4940 = vmatpush.msra.mxu0 %v722
    %4941 = vmatpush.msra.mxu0 %v714
    %4942 = vmatpush.msra.mxu0 %v706
    %4943 = vmatpush.msra.mxu0 %v698
    %4944 = vmatpush.msra.mxu0 %v690
    %4945 = vmatpush.msra.mxu0 %v682
    %4946 = vmatpush.msra.mxu0 %v674
    %4947 = vmatpush.msra.mxu0 %v666
    %4948 = vmatpush.msra.mxu0 %v658
    %4949 = vmatpush.msra.mxu0 %v650
    %4950 = vmatpush.msra.mxu0 %v642
    %4951 = vmatpush.msra.mxu0 %v634
    %4952 = vmatpush.msra.mxu0 %v626
    %4953 = vmatmul.f32.gmra.mxu0 %v4283
    %v4954 = vpop.f32.mrf.mxu0
    %v4955 = vadd.f32 0.0, %v4954
    %4956 = vdwg.mxu0
    %4957 = vmatpush.msra.mxu0 %v874
    %4958 = vmatpush.msra.mxu0 %v866
    %4959 = vmatpush.msra.mxu0 %v858
    %4960 = vmatpush.msra.mxu0 %v850
    %4961 = vmatpush.msra.mxu0 %v842
    %4962 = vmatpush.msra.mxu0 %v834
    %4963 = vmatpush.msra.mxu0 %v826
    %4964 = vmatpush.msra.mxu0 %v818
    %4965 = vmatpush.msra.mxu0 %v810
    %4966 = vmatpush.msra.mxu0 %v802
    %4967 = vmatpush.msra.mxu0 %v794
    %4968 = vmatpush.msra.mxu0 %v786
    %4969 = vmatpush.msra.mxu0 %v778
    %4970 = vmatpush.msra.mxu0 %v770
    %4971 = vmatpush.msra.mxu0 %v762
    %4972 = vmatpush.msra.mxu0 %v754
    %4973 = vmatmul.f32.gmra.mxu0 %v4284
    %v4974 = vpop.f32.mrf.mxu0
    %v4975 = vadd.f32 %v4955, %v4974
    %4976 = vdwg.mxu0
    %4977 = vmatpush.msra.mxu0 %v747
    %4978 = vmatpush.msra.mxu0 %v739
    %4979 = vmatpush.msra.mxu0 %v731
    %4980 = vmatpush.msra.mxu0 %v723
    %4981 = vmatpush.msra.mxu0 %v715
    %4982 = vmatpush.msra.mxu0 %v707
    %4983 = vmatpush.msra.mxu0 %v699
    %4984 = vmatpush.msra.mxu0 %v691
    %4985 = vmatpush.msra.mxu0 %v683
    %4986 = vmatpush.msra.mxu0 %v675
    %4987 = vmatpush.msra.mxu0 %v667
    %4988 = vmatpush.msra.mxu0 %v659
    %4989 = vmatpush.msra.mxu0 %v651
    %4990 = vmatpush.msra.mxu0 %v643
    %4991 = vmatpush.msra.mxu0 %v635
    %4992 = vmatpush.msra.mxu0 %v627
    %4993 = vmatmul.f32.gmra.mxu0 %v4283
    %v4994 = vpop.f32.mrf.mxu0
    %v4995 = vadd.f32 0.0, %v4994
    %4996 = vdwg.mxu0
    %4997 = vmatpush.msra.mxu0 %v875
    %4998 = vmatpush.msra.mxu0 %v867
    %4999 = vmatpush.msra.mxu0 %v859
    %5000 = vmatpush.msra.mxu0 %v851
    %5001 = vmatpush.msra.mxu0 %v843
    %5002 = vmatpush.msra.mxu0 %v835
    %5003 = vmatpush.msra.mxu0 %v827
    %5004 = vmatpush.msra.mxu0 %v819
    %5005 = vmatpush.msra.mxu0 %v811
    %5006 = vmatpush.msra.mxu0 %v803
    %5007 = vmatpush.msra.mxu0 %v795
    %5008 = vmatpush.msra.mxu0 %v787
    %5009 = vmatpush.msra.mxu0 %v779
    %5010 = vmatpush.msra.mxu0 %v771
    %5011 = vmatpush.msra.mxu0 %v763
    %5012 = vmatpush.msra.mxu0 %v755
    %5013 = vmatmul.f32.gmra.mxu0 %v4284
    %v5014 = vpop.f32.mrf.mxu0
    %v5015 = vadd.f32 %v4995, %v5014
    %5016 = vdwg.mxu0
    %5017 = vmatpush.msra.mxu0 %v748
    %5018 = vmatpush.msra.mxu0 %v740
    %5019 = vmatpush.msra.mxu0 %v732
    %5020 = vmatpush.msra.mxu0 %v724
    %5021 = vmatpush.msra.mxu0 %v716
    %5022 = vmatpush.msra.mxu0 %v708
    %5023 = vmatpush.msra.mxu0 %v700
    %5024 = vmatpush.msra.mxu0 %v692
    %5025 = vmatpush.msra.mxu0 %v684
    %5026 = vmatpush.msra.mxu0 %v676
    %5027 = vmatpush.msra.mxu0 %v668
    %5028 = vmatpush.msra.mxu0 %v660
    %5029 = vmatpush.msra.mxu0 %v652
    %5030 = vmatpush.msra.mxu0 %v644
    %5031 = vmatpush.msra.mxu0 %v636
    %5032 = vmatpush.msra.mxu0 %v628
    %5033 = vmatmul.f32.gmra.mxu0 %v4283
    %v5034 = vpop.f32.mrf.mxu0
    %v5035 = vadd.f32 0.0, %v5034
    %5036 = vdwg.mxu0
    %5037 = vmatpush.msra.mxu0 %v876
    %5038 = vmatpush.msra.mxu0 %v868
    %5039 = vmatpush.msra.mxu0 %v860
    %5040 = vmatpush.msra.mxu0 %v852
    %5041 = vmatpush.msra.mxu0 %v844
    %5042 = vmatpush.msra.mxu0 %v836
    %5043 = vmatpush.msra.mxu0 %v828
    %5044 = vmatpush.msra.mxu0 %v820
    %5045 = vmatpush.msra.mxu0 %v812
    %5046 = vmatpush.msra.mxu0 %v804
    %5047 = vmatpush.msra.mxu0 %v796
    %5048 = vmatpush.msra.mxu0 %v788
    %5049 = vmatpush.msra.mxu0 %v780
    %5050 = vmatpush.msra.mxu0 %v772
    %5051 = vmatpush.msra.mxu0 %v764
    %5052 = vmatpush.msra.mxu0 %v756
    %5053 = vmatmul.f32.gmra.mxu0 %v4284
    %v5054 = vpop.f32.mrf.mxu0
    %v5055 = vadd.f32 %v5035, %v5054
    %5056 = vdwg.mxu0
    %5057 = vmatpush.msra.mxu0 %v749
    %5058 = vmatpush.msra.mxu0 %v741
    %5059 = vmatpush.msra.mxu0 %v733
    %5060 = vmatpush.msra.mxu0 %v725
    %5061 = vmatpush.msra.mxu0 %v717
    %5062 = vmatpush.msra.mxu0 %v709
    %5063 = vmatpush.msra.mxu0 %v701
    %5064 = vmatpush.msra.mxu0 %v693
    %5065 = vmatpush.msra.mxu0 %v685
    %5066 = vmatpush.msra.mxu0 %v677
    %5067 = vmatpush.msra.mxu0 %v669
    %5068 = vmatpush.msra.mxu0 %v661
    %5069 = vmatpush.msra.mxu0 %v653
    %5070 = vmatpush.msra.mxu0 %v645
    %5071 = vmatpush.msra.mxu0 %v637
    %5072 = vmatpush.msra.mxu0 %v629
    %5073 = vmatmul.f32.gmra.mxu0 %v4283
    %v5074 = vpop.f32.mrf.mxu0
    %v5075 = vadd.f32 0.0, %v5074
    %5076 = vdwg.mxu0
    %5077 = vmatpush.msra.mxu0 %v877
    %5078 = vmatpush.msra.mxu0 %v869
    %5079 = vmatpush.msra.mxu0 %v861
    %5080 = vmatpush.msra.mxu0 %v853
    %5081 = vmatpush.msra.mxu0 %v845
    %5082 = vmatpush.msra.mxu0 %v837
    %5083 = vmatpush.msra.mxu0 %v829
    %5084 = vmatpush.msra.mxu0 %v821
    %5085 = vmatpush.msra.mxu0 %v813
    %5086 = vmatpush.msra.mxu0 %v805
    %5087 = vmatpush.msra.mxu0 %v797
    %5088 = vmatpush.msra.mxu0 %v789
    %5089 = vmatpush.msra.mxu0 %v781
    %5090 = vmatpush.msra.mxu0 %v773
    %5091 = vmatpush.msra.mxu0 %v765
    %5092 = vmatpush.msra.mxu0 %v757
    %5093 = vmatmul.f32.gmra.mxu0 %v4284
    %v5094 = vpop.f32.mrf.mxu0
    %v5095 = vadd.f32 %v5075, %v5094
    %5096 = vdwg.mxu0
    %5097 = vmatpush.msra.mxu0 %v750
    %5098 = vmatpush.msra.mxu0 %v742
    %5099 = vmatpush.msra.mxu0 %v734
    %5100 = vmatpush.msra.mxu0 %v726
    %5101 = vmatpush.msra.mxu0 %v718
    %5102 = vmatpush.msra.mxu0 %v710
    %5103 = vmatpush.msra.mxu0 %v702
    %5104 = vmatpush.msra.mxu0 %v694
    %5105 = vmatpush.msra.mxu0 %v686
    %5106 = vmatpush.msra.mxu0 %v678
    %5107 = vmatpush.msra.mxu0 %v670
    %5108 = vmatpush.msra.mxu0 %v662
    %5109 = vmatpush.msra.mxu0 %v654
    %5110 = vmatpush.msra.mxu0 %v646
    %5111 = vmatpush.msra.mxu0 %v638
    %5112 = vmatpush.msra.mxu0 %v630
    %5113 = vmatmul.f32.gmra.mxu0 %v4283
    %v5114 = vpop.f32.mrf.mxu0
    %v5115 = vadd.f32 0.0, %v5114
    %5116 = vdwg.mxu0
    %5117 = vmatpush.msra.mxu0 %v878
    %5118 = vmatpush.msra.mxu0 %v870
    %5119 = vmatpush.msra.mxu0 %v862
    %5120 = vmatpush.msra.mxu0 %v854
    %5121 = vmatpush.msra.mxu0 %v846
    %5122 = vmatpush.msra.mxu0 %v838
    %5123 = vmatpush.msra.mxu0 %v830
    %5124 = vmatpush.msra.mxu0 %v822
    %5125 = vmatpush.msra.mxu0 %v814
    %5126 = vmatpush.msra.mxu0 %v806
    %5127 = vmatpush.msra.mxu0 %v798
    %5128 = vmatpush.msra.mxu0 %v790
    %5129 = vmatpush.msra.mxu0 %v782
    %5130 = vmatpush.msra.mxu0 %v774
    %5131 = vmatpush.msra.mxu0 %v766
    %5132 = vmatpush.msra.mxu0 %v758
    %5133 = vmatmul.f32.gmra.mxu0 %v4284
    %v5134 = vpop.f32.mrf.mxu0
    %v5135 = vadd.f32 %v5115, %v5134
    %5136 = vdwg.mxu0
    %5137 = vmatpush.msra.mxu0 %v751
    %5138 = vmatpush.msra.mxu0 %v743
    %5139 = vmatpush.msra.mxu0 %v735
    %5140 = vmatpush.msra.mxu0 %v727
    %5141 = vmatpush.msra.mxu0 %v719
    %5142 = vmatpush.msra.mxu0 %v711
    %5143 = vmatpush.msra.mxu0 %v703
    %5144 = vmatpush.msra.mxu0 %v695
    %5145 = vmatpush.msra.mxu0 %v687
    %5146 = vmatpush.msra.mxu0 %v679
    %5147 = vmatpush.msra.mxu0 %v671
    %5148 = vmatpush.msra.mxu0 %v663
    %5149 = vmatpush.msra.mxu0 %v655
    %5150 = vmatpush.msra.mxu0 %v647
    %5151 = vmatpush.msra.mxu0 %v639
    %5152 = vmatpush.msra.mxu0 %v631
    %5153 = vmatmul.f32.gmra.mxu0 %v4283
    %v5154 = vpop.f32.mrf.mxu0
    %v5155 = vadd.f32 0.0, %v5154
    %5156 = vdwg.mxu0
    %5157 = vmatpush.msra.mxu0 %v879
    %5158 = vmatpush.msra.mxu0 %v871
    %5159 = vmatpush.msra.mxu0 %v863
    %5160 = vmatpush.msra.mxu0 %v855
    %5161 = vmatpush.msra.mxu0 %v847
    %5162 = vmatpush.msra.mxu0 %v839
    %5163 = vmatpush.msra.mxu0 %v831
    %5164 = vmatpush.msra.mxu0 %v823
    %5165 = vmatpush.msra.mxu0 %v815
    %5166 = vmatpush.msra.mxu0 %v807
    %5167 = vmatpush.msra.mxu0 %v799
    %5168 = vmatpush.msra.mxu0 %v791
    %5169 = vmatpush.msra.mxu0 %v783
    %5170 = vmatpush.msra.mxu0 %v775
    %5171 = vmatpush.msra.mxu0 %v767
    %5172 = vmatpush.msra.mxu0 %v759
    %5173 = vmatmul.f32.gmra.mxu0 %v4284
    %v5174 = vpop.f32.mrf.mxu0
    %v5175 = vadd.f32 %v5155, %v5174
    %5176 = vdwg.mxu0
    %5177 = vmatpush.msra.mxu0 %v752
    %5178 = vmatpush.msra.mxu0 %v744
    %5179 = vmatpush.msra.mxu0 %v736
    %5180 = vmatpush.msra.mxu0 %v728
    %5181 = vmatpush.msra.mxu0 %v720
    %5182 = vmatpush.msra.mxu0 %v712
    %5183 = vmatpush.msra.mxu0 %v704
    %5184 = vmatpush.msra.mxu0 %v696
    %5185 = vmatpush.msra.mxu0 %v688
    %5186 = vmatpush.msra.mxu0 %v680
    %5187 = vmatpush.msra.mxu0 %v672
    %5188 = vmatpush.msra.mxu0 %v664
    %5189 = vmatpush.msra.mxu0 %v656
    %5190 = vmatpush.msra.mxu0 %v648
    %5191 = vmatpush.msra.mxu0 %v640
    %5192 = vmatpush.msra.mxu0 %v632
    %5193 = vmatmul.f32.gmra.mxu0 %v4283
    %v5194 = vpop.f32.mrf.mxu0
    %v5195 = vadd.f32 0.0, %v5194
    %5196 = vdwg.mxu0
    %5197 = vmatpush.msra.mxu0 %v880
    %5198 = vmatpush.msra.mxu0 %v872
    %5199 = vmatpush.msra.mxu0 %v864
    %5200 = vmatpush.msra.mxu0 %v856
    %5201 = vmatpush.msra.mxu0 %v848
    %5202 = vmatpush.msra.mxu0 %v840
    %5203 = vmatpush.msra.mxu0 %v832
    %5204 = vmatpush.msra.mxu0 %v824
    %5205 = vmatpush.msra.mxu0 %v816
    %5206 = vmatpush.msra.mxu0 %v808
    %5207 = vmatpush.msra.mxu0 %v800
    %5208 = vmatpush.msra.mxu0 %v792
    %5209 = vmatpush.msra.mxu0 %v784
    %5210 = vmatpush.msra.mxu0 %v776
    %5211 = vmatpush.msra.mxu0 %v768
    %5212 = vmatpush.msra.mxu0 %v760
    %5213 = vmatmul.f32.gmra.mxu0 %v4284
    %v5214 = vpop.f32.mrf.mxu0
    %v5215 = vadd.f32 %v5195, %v5214
    %5216 = vdwg.mxu0
    %5217 = vmatpush.msra.mxu0 %v753
    %5218 = vmatpush.msra.mxu0 %v745
    %5219 = vmatpush.msra.mxu0 %v737
    %5220 = vmatpush.msra.mxu0 %v729
    %5221 = vmatpush.msra.mxu0 %v721
    %5222 = vmatpush.msra.mxu0 %v713
    %5223 = vmatpush.msra.mxu0 %v705
    %5224 = vmatpush.msra.mxu0 %v697
    %5225 = vmatpush.msra.mxu0 %v689
    %5226 = vmatpush.msra.mxu0 %v681
    %5227 = vmatpush.msra.mxu0 %v673
    %5228 = vmatpush.msra.mxu0 %v665
    %5229 = vmatpush.msra.mxu0 %v657
    %5230 = vmatpush.msra.mxu0 %v649
    %5231 = vmatpush.msra.mxu0 %v641
    %5232 = vmatpush.msra.mxu0 %v633
    %5233 = vmatmul.f32.gmra.mxu0 %v4283
    %v5234 = vpop.f32.mrf.mxu0
    %v5235 = vadd.f32 0.0, %v5234
    %5236 = vdwg.mxu0
    %5237 = vmatpush.msra.mxu0 %v881
    %5238 = vmatpush.msra.mxu0 %v873
    %5239 = vmatpush.msra.mxu0 %v865
    %5240 = vmatpush.msra.mxu0 %v857
    %5241 = vmatpush.msra.mxu0 %v849
    %5242 = vmatpush.msra.mxu0 %v841
    %5243 = vmatpush.msra.mxu0 %v833
    %5244 = vmatpush.msra.mxu0 %v825
    %5245 = vmatpush.msra.mxu0 %v817
    %5246 = vmatpush.msra.mxu0 %v809
    %5247 = vmatpush.msra.mxu0 %v801
    %5248 = vmatpush.msra.mxu0 %v793
    %5249 = vmatpush.msra.mxu0 %v785
    %5250 = vmatpush.msra.mxu0 %v777
    %5251 = vmatpush.msra.mxu0 %v769
    %5252 = vmatpush.msra.mxu0 %v761
    %5253 = vmatmul.f32.gmra.mxu0 %v4284
    %v5254 = vpop.f32.mrf.mxu0
    %v5255 = vadd.f32 %v5235, %v5254
    %5256 = vdwg.mxu0
    %v5257 = vadd.f32 %v4929, %v4975
    %v5258 = vadd.f32 %v4930, %v5015
    %v5259 = vadd.f32 %v4931, %v5055
    %v5260 = vadd.f32 %v4932, %v5095
    %v5261 = vadd.f32 %v4933, %v5135
    %v5262 = vadd.f32 %v4934, %v5175
    %v5263 = vadd.f32 %v4935, %v5215
    %v5264 = vadd.f32 %v4936, %v5255
    %v5265 = vmul.f32 %v5257, 0.5
    %v5266 = vmul.f32 %v5258, 0.5
    %v5267 = vtanh.pop %v5265
    %v5268 = vtanh.pop %v5266
    %v5269 = vadd.f32 %v5267, 1.0
    %v5270 = vadd.f32 %v5268, 1.0
    %v5271 = vmul.f32 %v5269, 0.5
    %v5272 = vmul.f32 %v5270, 0.5
    %v5273 = vmul.f32 %v5259, 0.5
    %v5274 = vmul.f32 %v5260, 0.5
    %v5275 = vtanh.pop %v5273
    %v5276 = vtanh.pop %v5274
    %v5277 = vadd.f32 %v5275, 1.0
    %v5278 = vadd.f32 %v5276, 1.0
    %v5279 = vmul.f32 %v5277, 0.5
    %v5280 = vmul.f32 %v5278, 0.5
    %v5281 = vmul.f32 %v5261, 0.5
    %v5282 = vmul.f32 %v5262, 0.5
    %v5283 = vtanh.pop %v5281
    %v5284 = vtanh.pop %v5282
    %v5285 = vadd.f32 %v5283, 1.0
    %v5286 = vadd.f32 %v5284, 1.0
    %v5287 = vmul.f32 %v5285, 0.5
    %v5288 = vmul.f32 %v5286, 0.5
    %v5289 = vtanh.pop %v5263
    %v5290 = vtanh.pop %v5264
    %v5291 = vmul.f32 %v5279, %v4279
    %v5292 = vmul.f32 %v5280, %v4280
    %v5293 = vmul.f32 %v5271, %v5289
    %v5294 = vmul.f32 %v5272, %v5290
    %v5295 = vadd.f32 %v5291, %v5293
    %v5296 = vadd.f32 %v5292, %v5294
    %v5297 = vtanh.pop %v5295
    %v5298 = vtanh.pop %v5296
    %v5299 = vmul.f32 %v5287, %v5297
    %v5300 = vmul.f32 %v5288, %v5298
    %s5301 = scalar_lea.vmem %s7, 4096
    %v5302 = vld [vmem:[%s5301] sm:$0xff]
    %v5303 = vld [vmem:[%s5301 + $0x8] sm:$0xff]
    %v5304 = vld [vmem:[%s5301 + $0x10] sm:$0xff]
    %v5305 = vld [vmem:[%s5301 + $0x18] sm:$0xff]
    %v5306 = vld [vmem:[%s5301 + $0x20] sm:$0xff]
    %v5307 = vld [vmem:[%s5301 + $0x28] sm:$0xff]
    %v5308 = vld [vmem:[%s5301 + $0x30] sm:$0xff]
    %v5309 = vld [vmem:[%s5301 + $0x38] sm:$0xff]
    %v5310 = vld [vmem:[%s5301 + $0x40] sm:$0xff]
    %v5311 = vld [vmem:[%s5301 + $0x48] sm:$0xff]
    %v5312 = vld [vmem:[%s5301 + $0x50] sm:$0xff]
    %v5313 = vld [vmem:[%s5301 + $0x58] sm:$0xff]
    %v5314 = vld [vmem:[%s5301 + $0x60] sm:$0xff]
    %v5315 = vld [vmem:[%s5301 + $0x68] sm:$0xff]
    %v5316 = vld [vmem:[%s5301 + $0x70] sm:$0xff]
    %v5317 = vld [vmem:[%s5301 + $0x78] sm:$0xff]
    %v5318 = vld [vmem:[%s5301 + $0x80] sm:$0xff]
    %v5319 = vld [vmem:[%s5301 + $0x88] sm:$0xff]
    %v5320 = vld [vmem:[%s5301 + $0x90] sm:$0xff]
    %v5321 = vld [vmem:[%s5301 + $0x98] sm:$0xff]
    %v5322 = vld [vmem:[%s5301 + $0xa0] sm:$0xff]
    %v5323 = vld [vmem:[%s5301 + $0xa8] sm:$0xff]
    %v5324 = vld [vmem:[%s5301 + $0xb0] sm:$0xff]
    %v5325 = vld [vmem:[%s5301 + $0xb8] sm:$0xff]
    %v5326 = vld [vmem:[%s5301 + $0xc0] sm:$0xff]
    %v5327 = vld [vmem:[%s5301 + $0xc8] sm:$0xff]
    %v5328 = vld [vmem:[%s5301 + $0xd0] sm:$0xff]
    %v5329 = vld [vmem:[%s5301 + $0xd8] sm:$0xff]
    %v5330 = vld [vmem:[%s5301 + $0xe0] sm:$0xff]
    %v5331 = vld [vmem:[%s5301 + $0xe8] sm:$0xff]
    %v5332 = vld [vmem:[%s5301 + $0xf0] sm:$0xff]
    %v5333 = vld [vmem:[%s5301 + $0xf8] sm:$0xff]
    %v5334 = vld [vmem:[%s5301 + $0x100] sm:$0xff]
    %v5335 = vld [vmem:[%s5301 + $0x108] sm:$0xff]
    %v5336 = vld [vmem:[%s5301 + $0x110] sm:$0xff]
    %v5337 = vld [vmem:[%s5301 + $0x118] sm:$0xff]
    %v5338 = vld [vmem:[%s5301 + $0x120] sm:$0xff]
    %v5339 = vld [vmem:[%s5301 + $0x128] sm:$0xff]
    %v5340 = vld [vmem:[%s5301 + $0x130] sm:$0xff]
    %v5341 = vld [vmem:[%s5301 + $0x138] sm:$0xff]
    %v5342 = vld [vmem:[%s5301 + $0x140] sm:$0xff]
    %v5343 = vld [vmem:[%s5301 + $0x148] sm:$0xff]
    %v5344 = vld [vmem:[%s5301 + $0x150] sm:$0xff]
    %v5345 = vld [vmem:[%s5301 + $0x158] sm:$0xff]
    %v5346 = vld [vmem:[%s5301 + $0x160] sm:$0xff]
    %v5347 = vld [vmem:[%s5301 + $0x168] sm:$0xff]
    %v5348 = vld [vmem:[%s5301 + $0x170] sm:$0xff]
    %v5349 = vld [vmem:[%s5301 + $0x178] sm:$0xff]
    %v5350 = vld [vmem:[%s5301 + $0x180] sm:$0xff]
    %v5351 = vld [vmem:[%s5301 + $0x188] sm:$0xff]
    %v5352 = vld [vmem:[%s5301 + $0x190] sm:$0xff]
    %v5353 = vld [vmem:[%s5301 + $0x198] sm:$0xff]
    %v5354 = vld [vmem:[%s5301 + $0x1a0] sm:$0xff]
    %v5355 = vld [vmem:[%s5301 + $0x1a8] sm:$0xff]
    %v5356 = vld [vmem:[%s5301 + $0x1b0] sm:$0xff]
    %v5357 = vld [vmem:[%s5301 + $0x1b8] sm:$0xff]
    %v5358 = vld [vmem:[%s5301 + $0x1c0] sm:$0xff]
    %v5359 = vld [vmem:[%s5301 + $0x1c8] sm:$0xff]
    %v5360 = vld [vmem:[%s5301 + $0x1d0] sm:$0xff]
    %v5361 = vld [vmem:[%s5301 + $0x1d8] sm:$0xff]
    %v5362 = vld [vmem:[%s5301 + $0x1e0] sm:$0xff]
    %v5363 = vld [vmem:[%s5301 + $0x1e8] sm:$0xff]
    %v5364 = vld [vmem:[%s5301 + $0x1f0] sm:$0xff]
    %v5365 = vld [vmem:[%s5301 + $0x1f8] sm:$0xff]
    %v5366 = vld [vmem:[%s5301 + $0x200] sm:$0xff]
    %v5367 = vld [vmem:[%s5301 + $0x208] sm:$0xff]
    %v5368 = vld [vmem:[%s5301 + $0x210] sm:$0xff]
    %v5369 = vld [vmem:[%s5301 + $0x218] sm:$0xff]
    %v5370 = vld [vmem:[%s5301 + $0x220] sm:$0xff]
    %v5371 = vld [vmem:[%s5301 + $0x228] sm:$0xff]
    %v5372 = vld [vmem:[%s5301 + $0x230] sm:$0xff]
    %v5373 = vld [vmem:[%s5301 + $0x238] sm:$0xff]
    %v5374 = vld [vmem:[%s5301 + $0x240] sm:$0xff]
    %v5375 = vld [vmem:[%s5301 + $0x248] sm:$0xff]
    %v5376 = vld [vmem:[%s5301 + $0x250] sm:$0xff]
    %v5377 = vld [vmem:[%s5301 + $0x258] sm:$0xff]
    %v5378 = vld [vmem:[%s5301 + $0x260] sm:$0xff]
    %v5379 = vld [vmem:[%s5301 + $0x268] sm:$0xff]
    %v5380 = vld [vmem:[%s5301 + $0x270] sm:$0xff]
    %v5381 = vld [vmem:[%s5301 + $0x278] sm:$0xff]
    %v5382 = vld [vmem:[%s5301 + $0x280] sm:$0xff]
    %v5383 = vld [vmem:[%s5301 + $0x288] sm:$0xff]
    %v5384 = vld [vmem:[%s5301 + $0x290] sm:$0xff]
    %v5385 = vld [vmem:[%s5301 + $0x298] sm:$0xff]
    %v5386 = vld [vmem:[%s5301 + $0x2a0] sm:$0xff]
    %v5387 = vld [vmem:[%s5301 + $0x2a8] sm:$0xff]
    %v5388 = vld [vmem:[%s5301 + $0x2b0] sm:$0xff]
    %v5389 = vld [vmem:[%s5301 + $0x2b8] sm:$0xff]
    %v5390 = vld [vmem:[%s5301 + $0x2c0] sm:$0xff]
    %v5391 = vld [vmem:[%s5301 + $0x2c8] sm:$0xff]
    %v5392 = vld [vmem:[%s5301 + $0x2d0] sm:$0xff]
    %v5393 = vld [vmem:[%s5301 + $0x2d8] sm:$0xff]
    %v5394 = vld [vmem:[%s5301 + $0x2e0] sm:$0xff]
    %v5395 = vld [vmem:[%s5301 + $0x2e8] sm:$0xff]
    %v5396 = vld [vmem:[%s5301 + $0x2f0] sm:$0xff]
    %v5397 = vld [vmem:[%s5301 + $0x2f8] sm:$0xff]
    %v5398 = vld [vmem:[%s5301 + $0x300] sm:$0xff]
    %v5399 = vld [vmem:[%s5301 + $0x308] sm:$0xff]
    %v5400 = vld [vmem:[%s5301 + $0x310] sm:$0xff]
    %v5401 = vld [vmem:[%s5301 + $0x318] sm:$0xff]
    %v5402 = vld [vmem:[%s5301 + $0x320] sm:$0xff]
    %v5403 = vld [vmem:[%s5301 + $0x328] sm:$0xff]
    %v5404 = vld [vmem:[%s5301 + $0x330] sm:$0xff]
    %v5405 = vld [vmem:[%s5301 + $0x338] sm:$0xff]
    %v5406 = vld [vmem:[%s5301 + $0x340] sm:$0xff]
    %v5407 = vld [vmem:[%s5301 + $0x348] sm:$0xff]
    %v5408 = vld [vmem:[%s5301 + $0x350] sm:$0xff]
    %v5409 = vld [vmem:[%s5301 + $0x358] sm:$0xff]
    %v5410 = vld [vmem:[%s5301 + $0x360] sm:$0xff]
    %v5411 = vld [vmem:[%s5301 + $0x368] sm:$0xff]
    %v5412 = vld [vmem:[%s5301 + $0x370] sm:$0xff]
    %v5413 = vld [vmem:[%s5301 + $0x378] sm:$0xff]
    %v5414 = vld [vmem:[%s5301 + $0x380] sm:$0xff]
    %v5415 = vld [vmem:[%s5301 + $0x388] sm:$0xff]
    %v5416 = vld [vmem:[%s5301 + $0x390] sm:$0xff]
    %v5417 = vld [vmem:[%s5301 + $0x398] sm:$0xff]
    %v5418 = vld [vmem:[%s5301 + $0x3a0] sm:$0xff]
    %v5419 = vld [vmem:[%s5301 + $0x3a8] sm:$0xff]
    %v5420 = vld [vmem:[%s5301 + $0x3b0] sm:$0xff]
    %v5421 = vld [vmem:[%s5301 + $0x3b8] sm:$0xff]
    %v5422 = vld [vmem:[%s5301 + $0x3c0] sm:$0xff]
    %v5423 = vld [vmem:[%s5301 + $0x3c8] sm:$0xff]
    %v5424 = vld [vmem:[%s5301 + $0x3d0] sm:$0xff]
    %v5425 = vld [vmem:[%s5301 + $0x3d8] sm:$0xff]
    %v5426 = vld [vmem:[%s5301 + $0x3e0] sm:$0xff]
    %v5427 = vld [vmem:[%s5301 + $0x3e8] sm:$0xff]
    %v5428 = vld [vmem:[%s5301 + $0x3f0] sm:$0xff]
    %v5429 = vld [vmem:[%s5301 + $0x3f8] sm:$0xff]
    %5430 = vmatpush.msra.mxu0 %v5362
    %5431 = vmatpush.msra.mxu0 %v5358
    %5432 = vmatpush.msra.mxu0 %v5354
    %5433 = vmatpush.msra.mxu0 %v5350
    %5434 = vmatpush.msra.mxu0 %v5346
    %5435 = vmatpush.msra.mxu0 %v5342
    %5436 = vmatpush.msra.mxu0 %v5338
    %5437 = vmatpush.msra.mxu0 %v5334
    %5438 = vmatpush.msra.mxu0 %v5330
    %5439 = vmatpush.msra.mxu0 %v5326
    %5440 = vmatpush.msra.mxu0 %v5322
    %5441 = vmatpush.msra.mxu0 %v5318
    %5442 = vmatpush.msra.mxu0 %v5314
    %5443 = vmatpush.msra.mxu0 %v5310
    %5444 = vmatpush.msra.mxu0 %v5306
    %5445 = vmatpush.msra.mxu0 %v5302
    %5446 = vmatmul.f32.gmra.mxu0 %v5299
    %v5447 = vpop.f32.mrf.mxu0
    %v5448 = vadd.f32 0.0, %v5447
    %5449 = vdwg.mxu0
    %5450 = vmatpush.msra.mxu0 %v5426
    %5451 = vmatpush.msra.mxu0 %v5422
    %5452 = vmatpush.msra.mxu0 %v5418
    %5453 = vmatpush.msra.mxu0 %v5414
    %5454 = vmatpush.msra.mxu0 %v5410
    %5455 = vmatpush.msra.mxu0 %v5406
    %5456 = vmatpush.msra.mxu0 %v5402
    %5457 = vmatpush.msra.mxu0 %v5398
    %5458 = vmatpush.msra.mxu0 %v5394
    %5459 = vmatpush.msra.mxu0 %v5390
    %5460 = vmatpush.msra.mxu0 %v5386
    %5461 = vmatpush.msra.mxu0 %v5382
    %5462 = vmatpush.msra.mxu0 %v5378
    %5463 = vmatpush.msra.mxu0 %v5374
    %5464 = vmatpush.msra.mxu0 %v5370
    %5465 = vmatpush.msra.mxu0 %v5366
    %5466 = vmatmul.f32.gmra.mxu0 %v5300
    %v5467 = vpop.f32.mrf.mxu0
    %v5468 = vadd.f32 %v5448, %v5467
    %5469 = vdwg.mxu0
    %5470 = vmatpush.msra.mxu0 %v5363
    %5471 = vmatpush.msra.mxu0 %v5359
    %5472 = vmatpush.msra.mxu0 %v5355
    %5473 = vmatpush.msra.mxu0 %v5351
    %5474 = vmatpush.msra.mxu0 %v5347
    %5475 = vmatpush.msra.mxu0 %v5343
    %5476 = vmatpush.msra.mxu0 %v5339
    %5477 = vmatpush.msra.mxu0 %v5335
    %5478 = vmatpush.msra.mxu0 %v5331
    %5479 = vmatpush.msra.mxu0 %v5327
    %5480 = vmatpush.msra.mxu0 %v5323
    %5481 = vmatpush.msra.mxu0 %v5319
    %5482 = vmatpush.msra.mxu0 %v5315
    %5483 = vmatpush.msra.mxu0 %v5311
    %5484 = vmatpush.msra.mxu0 %v5307
    %5485 = vmatpush.msra.mxu0 %v5303
    %5486 = vmatmul.f32.gmra.mxu0 %v5299
    %v5487 = vpop.f32.mrf.mxu0
    %v5488 = vadd.f32 0.0, %v5487
    %5489 = vdwg.mxu0
    %5490 = vmatpush.msra.mxu0 %v5427
    %5491 = vmatpush.msra.mxu0 %v5423
    %5492 = vmatpush.msra.mxu0 %v5419
    %5493 = vmatpush.msra.mxu0 %v5415
    %5494 = vmatpush.msra.mxu0 %v5411
    %5495 = vmatpush.msra.mxu0 %v5407
    %5496 = vmatpush.msra.mxu0 %v5403
    %5497 = vmatpush.msra.mxu0 %v5399
    %5498 = vmatpush.msra.mxu0 %v5395
    %5499 = vmatpush.msra.mxu0 %v5391
    %5500 = vmatpush.msra.mxu0 %v5387
    %5501 = vmatpush.msra.mxu0 %v5383
    %5502 = vmatpush.msra.mxu0 %v5379
    %5503 = vmatpush.msra.mxu0 %v5375
    %5504 = vmatpush.msra.mxu0 %v5371
    %5505 = vmatpush.msra.mxu0 %v5367
    %5506 = vmatmul.f32.gmra.mxu0 %v5300
    %v5507 = vpop.f32.mrf.mxu0
    %v5508 = vadd.f32 %v5488, %v5507
    %5509 = vdwg.mxu0
    %5510 = vmatpush.msra.mxu0 %v5364
    %5511 = vmatpush.msra.mxu0 %v5360
    %5512 = vmatpush.msra.mxu0 %v5356
    %5513 = vmatpush.msra.mxu0 %v5352
    %5514 = vmatpush.msra.mxu0 %v5348
    %5515 = vmatpush.msra.mxu0 %v5344
    %5516 = vmatpush.msra.mxu0 %v5340
    %5517 = vmatpush.msra.mxu0 %v5336
    %5518 = vmatpush.msra.mxu0 %v5332
    %5519 = vmatpush.msra.mxu0 %v5328
    %5520 = vmatpush.msra.mxu0 %v5324
    %5521 = vmatpush.msra.mxu0 %v5320
    %5522 = vmatpush.msra.mxu0 %v5316
    %5523 = vmatpush.msra.mxu0 %v5312
    %5524 = vmatpush.msra.mxu0 %v5308
    %5525 = vmatpush.msra.mxu0 %v5304
    %5526 = vmatmul.f32.gmra.mxu0 %v5299
    %v5527 = vpop.f32.mrf.mxu0
    %v5528 = vadd.f32 0.0, %v5527
    %5529 = vdwg.mxu0
    %5530 = vmatpush.msra.mxu0 %v5428
    %5531 = vmatpush.msra.mxu0 %v5424
    %5532 = vmatpush.msra.mxu0 %v5420
    %5533 = vmatpush.msra.mxu0 %v5416
    %5534 = vmatpush.msra.mxu0 %v5412
    %5535 = vmatpush.msra.mxu0 %v5408
    %5536 = vmatpush.msra.mxu0 %v5404
    %5537 = vmatpush.msra.mxu0 %v5400
    %5538 = vmatpush.msra.mxu0 %v5396
    %5539 = vmatpush.msra.mxu0 %v5392
    %5540 = vmatpush.msra.mxu0 %v5388
    %5541 = vmatpush.msra.mxu0 %v5384
    %5542 = vmatpush.msra.mxu0 %v5380
    %5543 = vmatpush.msra.mxu0 %v5376
    %5544 = vmatpush.msra.mxu0 %v5372
    %5545 = vmatpush.msra.mxu0 %v5368
    %5546 = vmatmul.f32.gmra.mxu0 %v5300
    %v5547 = vpop.f32.mrf.mxu0
    %v5548 = vadd.f32 %v5528, %v5547
    %5549 = vdwg.mxu0
    %5550 = vmatpush.msra.mxu0 %v5365
    %5551 = vmatpush.msra.mxu0 %v5361
    %5552 = vmatpush.msra.mxu0 %v5357
    %5553 = vmatpush.msra.mxu0 %v5353
    %5554 = vmatpush.msra.mxu0 %v5349
    %5555 = vmatpush.msra.mxu0 %v5345
    %5556 = vmatpush.msra.mxu0 %v5341
    %5557 = vmatpush.msra.mxu0 %v5337
    %5558 = vmatpush.msra.mxu0 %v5333
    %5559 = vmatpush.msra.mxu0 %v5329
    %5560 = vmatpush.msra.mxu0 %v5325
    %5561 = vmatpush.msra.mxu0 %v5321
    %5562 = vmatpush.msra.mxu0 %v5317
    %5563 = vmatpush.msra.mxu0 %v5313
    %5564 = vmatpush.msra.mxu0 %v5309
    %5565 = vmatpush.msra.mxu0 %v5305
    %5566 = vmatmul.f32.gmra.mxu0 %v5299
    %v5567 = vpop.f32.mrf.mxu0
    %v5568 = vadd.f32 0.0, %v5567
    %5569 = vdwg.mxu0
    %5570 = vmatpush.msra.mxu0 %v5429
    %5571 = vmatpush.msra.mxu0 %v5425
    %5572 = vmatpush.msra.mxu0 %v5421
    %5573 = vmatpush.msra.mxu0 %v5417
    %5574 = vmatpush.msra.mxu0 %v5413
    %5575 = vmatpush.msra.mxu0 %v5409
    %5576 = vmatpush.msra.mxu0 %v5405
    %5577 = vmatpush.msra.mxu0 %v5401
    %5578 = vmatpush.msra.mxu0 %v5397
    %5579 = vmatpush.msra.mxu0 %v5393
    %5580 = vmatpush.msra.mxu0 %v5389
    %5581 = vmatpush.msra.mxu0 %v5385
    %5582 = vmatpush.msra.mxu0 %v5381
    %5583 = vmatpush.msra.mxu0 %v5377
    %5584 = vmatpush.msra.mxu0 %v5373
    %5585 = vmatpush.msra.mxu0 %v5369
    %5586 = vmatmul.f32.gmra.mxu0 %v5300
    %v5587 = vpop.f32.mrf.mxu0
    %v5588 = vadd.f32 %v5568, %v5587
    %5589 = vdwg.mxu0
    %v5590 = vadd.f32 %v4574, %v5468
    %v5591 = vadd.f32 %v4575, %v5508
    %v5592 = vadd.f32 %v4576, %v5548
    %v5593 = vadd.f32 %v4577, %v5588
    %s5594 = scalar_lea.vmem %s0, 10
    %v5595 = vld [vmem:[%s5594] sm:$0x3]
    %v5597 = vsel %vm50, %v5595, 0
    %5599 = vmatpush.msra.mxu0 0.0
    %5600 = vmatpush.msra.mxu0 0.0
    %5601 = vmatpush.msra.mxu0 0.0
    %5602 = vmatpush.msra.mxu0 0.0
    %5603 = vmatpush.msra.mxu0 0.0
    %5604 = vmatpush.msra.mxu0 0.0
    %5605 = vmatpush.msra.mxu0 0.0
    %5606 = vmatpush.msra.mxu0 0.0
    %5607 = vmatpush.msra.mxu0 0.0
    %5608 = vmatpush.msra.mxu0 0.0
    %5609 = vmatpush.msra.mxu0 0.0
    %5610 = vmatpush.msra.mxu0 0.0
    %5611 = vmatpush.msra.mxu0 0.0
    %5612 = vmatpush.msra.mxu0 0.0
    %5613 = vmatpush.msra.mxu0 %v46
    %5614 = vmatpush.msra.mxu0 %v42
    %5615 = vmatmul.f32.gmra.mxu0 %v5597
    %v5616 = vpop.f32.mrf.mxu0
    %v5617 = vadd.f32 0.0, %v5616
    %5618 = vdwg.mxu0
    %5619 = vmatpush.msra.mxu0 0.0
    %5620 = vmatpush.msra.mxu0 0.0
    %5621 = vmatpush.msra.mxu0 0.0
    %5622 = vmatpush.msra.mxu0 0.0
    %5623 = vmatpush.msra.mxu0 0.0
    %5624 = vmatpush.msra.mxu0 0.0
    %5625 = vmatpush.msra.mxu0 0.0
    %5626 = vmatpush.msra.mxu0 0.0
    %5627 = vmatpush.msra.mxu0 0.0
    %5628 = vmatpush.msra.mxu0 0.0
    %5629 = vmatpush.msra.mxu0 0.0
    %5630 = vmatpush.msra.mxu0 0.0
    %5631 = vmatpush.msra.mxu0 0.0
    %5632 = vmatpush.msra.mxu0 0.0
    %5633 = vmatpush.msra.mxu0 %v47
    %5634 = vmatpush.msra.mxu0 %v43
    %5635 = vmatmul.f32.gmra.mxu0 %v5597
    %v5636 = vpop.f32.mrf.mxu0
    %v5637 = vadd.f32 0.0, %v5636
    %5638 = vdwg.mxu0
    %5639 = vmatpush.msra.mxu0 0.0
    %5640 = vmatpush.msra.mxu0 0.0
    %5641 = vmatpush.msra.mxu0 0.0
    %5642 = vmatpush.msra.mxu0 0.0
    %5643 = vmatpush.msra.mxu0 0.0
    %5644 = vmatpush.msra.mxu0 0.0
    %5645 = vmatpush.msra.mxu0 0.0
    %5646 = vmatpush.msra.mxu0 0.0
    %5647 = vmatpush.msra.mxu0 0.0
    %5648 = vmatpush.msra.mxu0 0.0
    %5649 = vmatpush.msra.mxu0 0.0
    %5650 = vmatpush.msra.mxu0 0.0
    %5651 = vmatpush.msra.mxu0 0.0
    %5652 = vmatpush.msra.mxu0 0.0
    %5653 = vmatpush.msra.mxu0 %v48
    %5654 = vmatpush.msra.mxu0 %v44
    %5655 = vmatmul.f32.gmra.mxu0 %v5597
    %v5656 = vpop.f32.mrf.mxu0
    %v5657 = vadd.f32 0.0, %v5656
    %5658 = vdwg.mxu0
    %5659 = vmatpush.msra.mxu0 0.0
    %5660 = vmatpush.msra.mxu0 0.0
    %5661 = vmatpush.msra.mxu0 0.0
    %5662 = vmatpush.msra.mxu0 0.0
    %5663 = vmatpush.msra.mxu0 0.0
    %5664 = vmatpush.msra.mxu0 0.0
    %5665 = vmatpush.msra.mxu0 0.0
    %5666 = vmatpush.msra.mxu0 0.0
    %5667 = vmatpush.msra.mxu0 0.0
    %5668 = vmatpush.msra.mxu0 0.0
    %5669 = vmatpush.msra.mxu0 0.0
    %5670 = vmatpush.msra.mxu0 0.0
    %5671 = vmatpush.msra.mxu0 0.0
    %5672 = vmatpush.msra.mxu0 0.0
    %5673 = vmatpush.msra.mxu0 %v49
    %5674 = vmatpush.msra.mxu0 %v45
    %5675 = vmatmul.f32.gmra.mxu0 %v5597
    %v5676 = vpop.f32.mrf.mxu0
    %v5677 = vadd.f32 0.0, %v5676
    %5678 = vdwg.mxu0
    %v5679 = vadd.f32 %v135, %v5617
    %v5680 = vadd.f32 %v136, %v5637
    %v5681 = vadd.f32 %v137, %v5657
    %v5682 = vadd.f32 %v138, %v5677
    %5683 = vmatpush.msra.mxu0 %v207
    %5684 = vmatpush.msra.mxu0 %v203
    %5685 = vmatpush.msra.mxu0 %v199
    %5686 = vmatpush.msra.mxu0 %v195
    %5687 = vmatpush.msra.mxu0 %v191
    %5688 = vmatpush.msra.mxu0 %v187
    %5689 = vmatpush.msra.mxu0 %v183
    %5690 = vmatpush.msra.mxu0 %v179
    %5691 = vmatpush.msra.mxu0 %v175
    %5692 = vmatpush.msra.mxu0 %v171
    %5693 = vmatpush.msra.mxu0 %v167
    %5694 = vmatpush.msra.mxu0 %v163
    %5695 = vmatpush.msra.mxu0 %v159
    %5696 = vmatpush.msra.mxu0 %v155
    %5697 = vmatpush.msra.mxu0 %v151
    %5698 = vmatpush.msra.mxu0 %v147
    %5699 = vmatmul.f32.gmra.mxu0 %v4768
    %v5700 = vpop.f32.mrf.mxu0
    %v5701 = vadd.f32 0.0, %v5700
    %5702 = vdwg.mxu0
    %5703 = vmatpush.msra.mxu0 %v208
    %5704 = vmatpush.msra.mxu0 %v204
    %5705 = vmatpush.msra.mxu0 %v200
    %5706 = vmatpush.msra.mxu0 %v196
    %5707 = vmatpush.msra.mxu0 %v192
    %5708 = vmatpush.msra.mxu0 %v188
    %5709 = vmatpush.msra.mxu0 %v184
    %5710 = vmatpush.msra.mxu0 %v180
    %5711 = vmatpush.msra.mxu0 %v176
    %5712 = vmatpush.msra.mxu0 %v172
    %5713 = vmatpush.msra.mxu0 %v168
    %5714 = vmatpush.msra.mxu0 %v164
    %5715 = vmatpush.msra.mxu0 %v160
    %5716 = vmatpush.msra.mxu0 %v156
    %5717 = vmatpush.msra.mxu0 %v152
    %5718 = vmatpush.msra.mxu0 %v148
    %5719 = vmatmul.f32.gmra.mxu0 %v4768
    %v5720 = vpop.f32.mrf.mxu0
    %v5721 = vadd.f32 0.0, %v5720
    %5722 = vdwg.mxu0
    %5723 = vmatpush.msra.mxu0 %v209
    %5724 = vmatpush.msra.mxu0 %v205
    %5725 = vmatpush.msra.mxu0 %v201
    %5726 = vmatpush.msra.mxu0 %v197
    %5727 = vmatpush.msra.mxu0 %v193
    %5728 = vmatpush.msra.mxu0 %v189
    %5729 = vmatpush.msra.mxu0 %v185
    %5730 = vmatpush.msra.mxu0 %v181
    %5731 = vmatpush.msra.mxu0 %v177
    %5732 = vmatpush.msra.mxu0 %v173
    %5733 = vmatpush.msra.mxu0 %v169
    %5734 = vmatpush.msra.mxu0 %v165
    %5735 = vmatpush.msra.mxu0 %v161
    %5736 = vmatpush.msra.mxu0 %v157
    %5737 = vmatpush.msra.mxu0 %v153
    %5738 = vmatpush.msra.mxu0 %v149
    %5739 = vmatmul.f32.gmra.mxu0 %v4768
    %v5740 = vpop.f32.mrf.mxu0
    %v5741 = vadd.f32 0.0, %v5740
    %5742 = vdwg.mxu0
    %5743 = vmatpush.msra.mxu0 %v210
    %5744 = vmatpush.msra.mxu0 %v206
    %5745 = vmatpush.msra.mxu0 %v202
    %5746 = vmatpush.msra.mxu0 %v198
    %5747 = vmatpush.msra.mxu0 %v194
    %5748 = vmatpush.msra.mxu0 %v190
    %5749 = vmatpush.msra.mxu0 %v186
    %5750 = vmatpush.msra.mxu0 %v182
    %5751 = vmatpush.msra.mxu0 %v178
    %5752 = vmatpush.msra.mxu0 %v174
    %5753 = vmatpush.msra.mxu0 %v170
    %5754 = vmatpush.msra.mxu0 %v166
    %5755 = vmatpush.msra.mxu0 %v162
    %5756 = vmatpush.msra.mxu0 %v158
    %5757 = vmatpush.msra.mxu0 %v154
    %5758 = vmatpush.msra.mxu0 %v150
    %5759 = vmatmul.f32.gmra.mxu0 %v4768
    %v5760 = vpop.f32.mrf.mxu0
    %v5761 = vadd.f32 0.0, %v5760
    %5762 = vdwg.mxu0
    %v5763 = vadd.f32 %v5679, %v5701
    %v5764 = vadd.f32 %v5680, %v5721
    %v5765 = vadd.f32 %v5681, %v5741
    %v5766 = vadd.f32 %v5682, %v5761
    %v5767 = vmul.f32 %v5763, 0.5
    %v5768 = vtanh.pop %v5767
    %v5769 = vadd.f32 %v5768, 1.0
    %v5770 = vmul.f32 %v5769, 0.5
    %v5771 = vmul.f32 %v5764, 0.5
    %v5772 = vtanh.pop %v5771
    %v5773 = vadd.f32 %v5772, 1.0
    %v5774 = vmul.f32 %v5773, 0.5
    %v5775 = vmul.f32 %v5765, 0.5
    %v5776 = vtanh.pop %v5775
    %v5777 = vadd.f32 %v5776, 1.0
    %v5778 = vmul.f32 %v5777, 0.5
    %v5779 = vtanh.pop %v5766
    %v5780 = vmul.f32 %v5774, %v4766
    %v5781 = vmul.f32 %v5770, %v5779
    %v5782 = vadd.f32 %v5780, %v5781
    %v5783 = vtanh.pop %v5782
    %v5784 = vmul.f32 %v5778, %v5783
    %5785 = vmatpush.msra.mxu0 %v433
    %5786 = vmatpush.msra.mxu0 %v425
    %5787 = vmatpush.msra.mxu0 %v417
    %5788 = vmatpush.msra.mxu0 %v409
    %5789 = vmatpush.msra.mxu0 %v401
    %5790 = vmatpush.msra.mxu0 %v393
    %5791 = vmatpush.msra.mxu0 %v385
    %5792 = vmatpush.msra.mxu0 %v377
    %5793 = vmatpush.msra.mxu0 %v369
    %5794 = vmatpush.msra.mxu0 %v361
    %5795 = vmatpush.msra.mxu0 %v353
    %5796 = vmatpush.msra.mxu0 %v345
    %5797 = vmatpush.msra.mxu0 %v337
    %5798 = vmatpush.msra.mxu0 %v329
    %5799 = vmatpush.msra.mxu0 %v321
    %5800 = vmatpush.msra.mxu0 %v313
    %5801 = vmatmul.f32.gmra.mxu0 %v5784
    %v5802 = vpop.f32.mrf.mxu0
    %v5803 = vadd.f32 0.0, %v5802
    %5804 = vdwg.mxu0
    %5805 = vmatpush.msra.mxu0 %v434
    %5806 = vmatpush.msra.mxu0 %v426
    %5807 = vmatpush.msra.mxu0 %v418
    %5808 = vmatpush.msra.mxu0 %v410
    %5809 = vmatpush.msra.mxu0 %v402
    %5810 = vmatpush.msra.mxu0 %v394
    %5811 = vmatpush.msra.mxu0 %v386
    %5812 = vmatpush.msra.mxu0 %v378
    %5813 = vmatpush.msra.mxu0 %v370
    %5814 = vmatpush.msra.mxu0 %v362
    %5815 = vmatpush.msra.mxu0 %v354
    %5816 = vmatpush.msra.mxu0 %v346
    %5817 = vmatpush.msra.mxu0 %v338
    %5818 = vmatpush.msra.mxu0 %v330
    %5819 = vmatpush.msra.mxu0 %v322
    %5820 = vmatpush.msra.mxu0 %v314
    %5821 = vmatmul.f32.gmra.mxu0 %v5784
    %v5822 = vpop.f32.mrf.mxu0
    %v5823 = vadd.f32 0.0, %v5822
    %5824 = vdwg.mxu0
    %5825 = vmatpush.msra.mxu0 %v435
    %5826 = vmatpush.msra.mxu0 %v427
    %5827 = vmatpush.msra.mxu0 %v419
    %5828 = vmatpush.msra.mxu0 %v411
    %5829 = vmatpush.msra.mxu0 %v403
    %5830 = vmatpush.msra.mxu0 %v395
    %5831 = vmatpush.msra.mxu0 %v387
    %5832 = vmatpush.msra.mxu0 %v379
    %5833 = vmatpush.msra.mxu0 %v371
    %5834 = vmatpush.msra.mxu0 %v363
    %5835 = vmatpush.msra.mxu0 %v355
    %5836 = vmatpush.msra.mxu0 %v347
    %5837 = vmatpush.msra.mxu0 %v339
    %5838 = vmatpush.msra.mxu0 %v331
    %5839 = vmatpush.msra.mxu0 %v323
    %5840 = vmatpush.msra.mxu0 %v315
    %5841 = vmatmul.f32.gmra.mxu0 %v5784
    %v5842 = vpop.f32.mrf.mxu0
    %v5843 = vadd.f32 0.0, %v5842
    %5844 = vdwg.mxu0
    %5845 = vmatpush.msra.mxu0 %v436
    %5846 = vmatpush.msra.mxu0 %v428
    %5847 = vmatpush.msra.mxu0 %v420
    %5848 = vmatpush.msra.mxu0 %v412
    %5849 = vmatpush.msra.mxu0 %v404
    %5850 = vmatpush.msra.mxu0 %v396
    %5851 = vmatpush.msra.mxu0 %v388
    %5852 = vmatpush.msra.mxu0 %v380
    %5853 = vmatpush.msra.mxu0 %v372
    %5854 = vmatpush.msra.mxu0 %v364
    %5855 = vmatpush.msra.mxu0 %v356
    %5856 = vmatpush.msra.mxu0 %v348
    %5857 = vmatpush.msra.mxu0 %v340
    %5858 = vmatpush.msra.mxu0 %v332
    %5859 = vmatpush.msra.mxu0 %v324
    %5860 = vmatpush.msra.mxu0 %v316
    %5861 = vmatmul.f32.gmra.mxu0 %v5784
    %v5862 = vpop.f32.mrf.mxu0
    %v5863 = vadd.f32 0.0, %v5862
    %5864 = vdwg.mxu0
    %5865 = vmatpush.msra.mxu0 %v437
    %5866 = vmatpush.msra.mxu0 %v429
    %5867 = vmatpush.msra.mxu0 %v421
    %5868 = vmatpush.msra.mxu0 %v413
    %5869 = vmatpush.msra.mxu0 %v405
    %5870 = vmatpush.msra.mxu0 %v397
    %5871 = vmatpush.msra.mxu0 %v389
    %5872 = vmatpush.msra.mxu0 %v381
    %5873 = vmatpush.msra.mxu0 %v373
    %5874 = vmatpush.msra.mxu0 %v365
    %5875 = vmatpush.msra.mxu0 %v357
    %5876 = vmatpush.msra.mxu0 %v349
    %5877 = vmatpush.msra.mxu0 %v341
    %5878 = vmatpush.msra.mxu0 %v333
    %5879 = vmatpush.msra.mxu0 %v325
    %5880 = vmatpush.msra.mxu0 %v317
    %5881 = vmatmul.f32.gmra.mxu0 %v5784
    %v5882 = vpop.f32.mrf.mxu0
    %v5883 = vadd.f32 0.0, %v5882
    %5884 = vdwg.mxu0
    %5885 = vmatpush.msra.mxu0 %v438
    %5886 = vmatpush.msra.mxu0 %v430
    %5887 = vmatpush.msra.mxu0 %v422
    %5888 = vmatpush.msra.mxu0 %v414
    %5889 = vmatpush.msra.mxu0 %v406
    %5890 = vmatpush.msra.mxu0 %v398
    %5891 = vmatpush.msra.mxu0 %v390
    %5892 = vmatpush.msra.mxu0 %v382
    %5893 = vmatpush.msra.mxu0 %v374
    %5894 = vmatpush.msra.mxu0 %v366
    %5895 = vmatpush.msra.mxu0 %v358
    %5896 = vmatpush.msra.mxu0 %v350
    %5897 = vmatpush.msra.mxu0 %v342
    %5898 = vmatpush.msra.mxu0 %v334
    %5899 = vmatpush.msra.mxu0 %v326
    %5900 = vmatpush.msra.mxu0 %v318
    %5901 = vmatmul.f32.gmra.mxu0 %v5784
    %v5902 = vpop.f32.mrf.mxu0
    %v5903 = vadd.f32 0.0, %v5902
    %5904 = vdwg.mxu0
    %5905 = vmatpush.msra.mxu0 %v439
    %5906 = vmatpush.msra.mxu0 %v431
    %5907 = vmatpush.msra.mxu0 %v423
    %5908 = vmatpush.msra.mxu0 %v415
    %5909 = vmatpush.msra.mxu0 %v407
    %5910 = vmatpush.msra.mxu0 %v399
    %5911 = vmatpush.msra.mxu0 %v391
    %5912 = vmatpush.msra.mxu0 %v383
    %5913 = vmatpush.msra.mxu0 %v375
    %5914 = vmatpush.msra.mxu0 %v367
    %5915 = vmatpush.msra.mxu0 %v359
    %5916 = vmatpush.msra.mxu0 %v351
    %5917 = vmatpush.msra.mxu0 %v343
    %5918 = vmatpush.msra.mxu0 %v335
    %5919 = vmatpush.msra.mxu0 %v327
    %5920 = vmatpush.msra.mxu0 %v319
    %5921 = vmatmul.f32.gmra.mxu0 %v5784
    %v5922 = vpop.f32.mrf.mxu0
    %v5923 = vadd.f32 0.0, %v5922
    %5924 = vdwg.mxu0
    %5925 = vmatpush.msra.mxu0 %v440
    %5926 = vmatpush.msra.mxu0 %v432
    %5927 = vmatpush.msra.mxu0 %v424
    %5928 = vmatpush.msra.mxu0 %v416
    %5929 = vmatpush.msra.mxu0 %v408
    %5930 = vmatpush.msra.mxu0 %v400
    %5931 = vmatpush.msra.mxu0 %v392
    %5932 = vmatpush.msra.mxu0 %v384
    %5933 = vmatpush.msra.mxu0 %v376
    %5934 = vmatpush.msra.mxu0 %v368
    %5935 = vmatpush.msra.mxu0 %v360
    %5936 = vmatpush.msra.mxu0 %v352
    %5937 = vmatpush.msra.mxu0 %v344
    %5938 = vmatpush.msra.mxu0 %v336
    %5939 = vmatpush.msra.mxu0 %v328
    %5940 = vmatpush.msra.mxu0 %v320
    %5941 = vmatmul.f32.gmra.mxu0 %v5784
    %v5942 = vpop.f32.mrf.mxu0
    %v5943 = vadd.f32 0.0, %v5942
    %5944 = vdwg.mxu0
    %v5945 = vadd.f32 %v602, %v5803
    %v5946 = vadd.f32 %v603, %v5823
    %v5947 = vadd.f32 %v604, %v5843
    %v5948 = vadd.f32 %v605, %v5863
    %v5949 = vadd.f32 %v606, %v5883
    %v5950 = vadd.f32 %v607, %v5903
    %v5951 = vadd.f32 %v608, %v5923
    %v5952 = vadd.f32 %v609, %v5943
    %5953 = vmatpush.msra.mxu0 %v746
    %5954 = vmatpush.msra.mxu0 %v738
    %5955 = vmatpush.msra.mxu0 %v730
    %5956 = vmatpush.msra.mxu0 %v722
    %5957 = vmatpush.msra.mxu0 %v714
    %5958 = vmatpush.msra.mxu0 %v706
    %5959 = vmatpush.msra.mxu0 %v698
    %5960 = vmatpush.msra.mxu0 %v690
    %5961 = vmatpush.msra.mxu0 %v682
    %5962 = vmatpush.msra.mxu0 %v674
    %5963 = vmatpush.msra.mxu0 %v666
    %5964 = vmatpush.msra.mxu0 %v658
    %5965 = vmatpush.msra.mxu0 %v650
    %5966 = vmatpush.msra.mxu0 %v642
    %5967 = vmatpush.msra.mxu0 %v634
    %5968 = vmatpush.msra.mxu0 %v626
    %5969 = vmatmul.f32.gmra.mxu0 %v5299
    %v5970 = vpop.f32.mrf.mxu0
    %v5971 = vadd.f32 0.0, %v5970
    %5972 = vdwg.mxu0
    %5973 = vmatpush.msra.mxu0 %v874
    %5974 = vmatpush.msra.mxu0 %v866
    %5975 = vmatpush.msra.mxu0 %v858
    %5976 = vmatpush.msra.mxu0 %v850
    %5977 = vmatpush.msra.mxu0 %v842
    %5978 = vmatpush.msra.mxu0 %v834
    %5979 = vmatpush.msra.mxu0 %v826
    %5980 = vmatpush.msra.mxu0 %v818
    %5981 = vmatpush.msra.mxu0 %v810
    %5982 = vmatpush.msra.mxu0 %v802
    %5983 = vmatpush.msra.mxu0 %v794
    %5984 = vmatpush.msra.mxu0 %v786
    %5985 = vmatpush.msra.mxu0 %v778
    %5986 = vmatpush.msra.mxu0 %v770
    %5987 = vmatpush.msra.mxu0 %v762
    %5988 = vmatpush.msra.mxu0 %v754
    %5989 = vmatmul.f32.gmra.mxu0 %v5300
    %v5990 = vpop.f32.mrf.mxu0
    %v5991 = vadd.f32 %v5971, %v5990
    %5992 = vdwg.mxu0
    %5993 = vmatpush.msra.mxu0 %v747
    %5994 = vmatpush.msra.mxu0 %v739
    %5995 = vmatpush.msra.mxu0 %v731
    %5996 = vmatpush.msra.mxu0 %v723
    %5997 = vmatpush.msra.mxu0 %v715
    %5998 = vmatpush.msra.mxu0 %v707
    %5999 = vmatpush.msra.mxu0 %v699
    %6000 = vmatpush.msra.mxu0 %v691
    %6001 = vmatpush.msra.mxu0 %v683
    %6002 = vmatpush.msra.mxu0 %v675
    %6003 = vmatpush.msra.mxu0 %v667
    %6004 = vmatpush.msra.mxu0 %v659
    %6005 = vmatpush.msra.mxu0 %v651
    %6006 = vmatpush.msra.mxu0 %v643
    %6007 = vmatpush.msra.mxu0 %v635
    %6008 = vmatpush.msra.mxu0 %v627
    %6009 = vmatmul.f32.gmra.mxu0 %v5299
    %v6010 = vpop.f32.mrf.mxu0
    %v6011 = vadd.f32 0.0, %v6010
    %6012 = vdwg.mxu0
    %6013 = vmatpush.msra.mxu0 %v875
    %6014 = vmatpush.msra.mxu0 %v867
    %6015 = vmatpush.msra.mxu0 %v859
    %6016 = vmatpush.msra.mxu0 %v851
    %6017 = vmatpush.msra.mxu0 %v843
    %6018 = vmatpush.msra.mxu0 %v835
    %6019 = vmatpush.msra.mxu0 %v827
    %6020 = vmatpush.msra.mxu0 %v819
    %6021 = vmatpush.msra.mxu0 %v811
    %6022 = vmatpush.msra.mxu0 %v803
    %6023 = vmatpush.msra.mxu0 %v795
    %6024 = vmatpush.msra.mxu0 %v787
    %6025 = vmatpush.msra.mxu0 %v779
    %6026 = vmatpush.msra.mxu0 %v771
    %6027 = vmatpush.msra.mxu0 %v763
    %6028 = vmatpush.msra.mxu0 %v755
    %6029 = vmatmul.f32.gmra.mxu0 %v5300
    %v6030 = vpop.f32.mrf.mxu0
    %v6031 = vadd.f32 %v6011, %v6030
    %6032 = vdwg.mxu0
    %6033 = vmatpush.msra.mxu0 %v748
    %6034 = vmatpush.msra.mxu0 %v740
    %6035 = vmatpush.msra.mxu0 %v732
    %6036 = vmatpush.msra.mxu0 %v724
    %6037 = vmatpush.msra.mxu0 %v716
    %6038 = vmatpush.msra.mxu0 %v708
    %6039 = vmatpush.msra.mxu0 %v700
    %6040 = vmatpush.msra.mxu0 %v692
    %6041 = vmatpush.msra.mxu0 %v684
    %6042 = vmatpush.msra.mxu0 %v676
    %6043 = vmatpush.msra.mxu0 %v668
    %6044 = vmatpush.msra.mxu0 %v660
    %6045 = vmatpush.msra.mxu0 %v652
    %6046 = vmatpush.msra.mxu0 %v644
    %6047 = vmatpush.msra.mxu0 %v636
    %6048 = vmatpush.msra.mxu0 %v628
    %6049 = vmatmul.f32.gmra.mxu0 %v5299
    %v6050 = vpop.f32.mrf.mxu0
    %v6051 = vadd.f32 0.0, %v6050
    %6052 = vdwg.mxu0
    %6053 = vmatpush.msra.mxu0 %v876
    %6054 = vmatpush.msra.mxu0 %v868
    %6055 = vmatpush.msra.mxu0 %v860
    %6056 = vmatpush.msra.mxu0 %v852
    %6057 = vmatpush.msra.mxu0 %v844
    %6058 = vmatpush.msra.mxu0 %v836
    %6059 = vmatpush.msra.mxu0 %v828
    %6060 = vmatpush.msra.mxu0 %v820
    %6061 = vmatpush.msra.mxu0 %v812
    %6062 = vmatpush.msra.mxu0 %v804
    %6063 = vmatpush.msra.mxu0 %v796
    %6064 = vmatpush.msra.mxu0 %v788
    %6065 = vmatpush.msra.mxu0 %v780
    %6066 = vmatpush.msra.mxu0 %v772
    %6067 = vmatpush.msra.mxu0 %v764
    %6068 = vmatpush.msra.mxu0 %v756
    %6069 = vmatmul.f32.gmra.mxu0 %v5300
    %v6070 = vpop.f32.mrf.mxu0
    %v6071 = vadd.f32 %v6051, %v6070
    %6072 = vdwg.mxu0
    %6073 = vmatpush.msra.mxu0 %v749
    %6074 = vmatpush.msra.mxu0 %v741
    %6075 = vmatpush.msra.mxu0 %v733
    %6076 = vmatpush.msra.mxu0 %v725
    %6077 = vmatpush.msra.mxu0 %v717
    %6078 = vmatpush.msra.mxu0 %v709
    %6079 = vmatpush.msra.mxu0 %v701
    %6080 = vmatpush.msra.mxu0 %v693
    %6081 = vmatpush.msra.mxu0 %v685
    %6082 = vmatpush.msra.mxu0 %v677
    %6083 = vmatpush.msra.mxu0 %v669
    %6084 = vmatpush.msra.mxu0 %v661
    %6085 = vmatpush.msra.mxu0 %v653
    %6086 = vmatpush.msra.mxu0 %v645
    %6087 = vmatpush.msra.mxu0 %v637
    %6088 = vmatpush.msra.mxu0 %v629
    %6089 = vmatmul.f32.gmra.mxu0 %v5299
    %v6090 = vpop.f32.mrf.mxu0
    %v6091 = vadd.f32 0.0, %v6090
    %6092 = vdwg.mxu0
    %6093 = vmatpush.msra.mxu0 %v877
    %6094 = vmatpush.msra.mxu0 %v869
    %6095 = vmatpush.msra.mxu0 %v861
    %6096 = vmatpush.msra.mxu0 %v853
    %6097 = vmatpush.msra.mxu0 %v845
    %6098 = vmatpush.msra.mxu0 %v837
    %6099 = vmatpush.msra.mxu0 %v829
    %6100 = vmatpush.msra.mxu0 %v821
    %6101 = vmatpush.msra.mxu0 %v813
    %6102 = vmatpush.msra.mxu0 %v805
    %6103 = vmatpush.msra.mxu0 %v797
    %6104 = vmatpush.msra.mxu0 %v789
    %6105 = vmatpush.msra.mxu0 %v781
    %6106 = vmatpush.msra.mxu0 %v773
    %6107 = vmatpush.msra.mxu0 %v765
    %6108 = vmatpush.msra.mxu0 %v757
    %6109 = vmatmul.f32.gmra.mxu0 %v5300
    %v6110 = vpop.f32.mrf.mxu0
    %v6111 = vadd.f32 %v6091, %v6110
    %6112 = vdwg.mxu0
    %6113 = vmatpush.msra.mxu0 %v750
    %6114 = vmatpush.msra.mxu0 %v742
    %6115 = vmatpush.msra.mxu0 %v734
    %6116 = vmatpush.msra.mxu0 %v726
    %6117 = vmatpush.msra.mxu0 %v718
    %6118 = vmatpush.msra.mxu0 %v710
    %6119 = vmatpush.msra.mxu0 %v702
    %6120 = vmatpush.msra.mxu0 %v694
    %6121 = vmatpush.msra.mxu0 %v686
    %6122 = vmatpush.msra.mxu0 %v678
    %6123 = vmatpush.msra.mxu0 %v670
    %6124 = vmatpush.msra.mxu0 %v662
    %6125 = vmatpush.msra.mxu0 %v654
    %6126 = vmatpush.msra.mxu0 %v646
    %6127 = vmatpush.msra.mxu0 %v638
    %6128 = vmatpush.msra.mxu0 %v630
    %6129 = vmatmul.f32.gmra.mxu0 %v5299
    %v6130 = vpop.f32.mrf.mxu0
    %v6131 = vadd.f32 0.0, %v6130
    %6132 = vdwg.mxu0
    %6133 = vmatpush.msra.mxu0 %v878
    %6134 = vmatpush.msra.mxu0 %v870
    %6135 = vmatpush.msra.mxu0 %v862
    %6136 = vmatpush.msra.mxu0 %v854
    %6137 = vmatpush.msra.mxu0 %v846
    %6138 = vmatpush.msra.mxu0 %v838
    %6139 = vmatpush.msra.mxu0 %v830
    %6140 = vmatpush.msra.mxu0 %v822
    %6141 = vmatpush.msra.mxu0 %v814
    %6142 = vmatpush.msra.mxu0 %v806
    %6143 = vmatpush.msra.mxu0 %v798
    %6144 = vmatpush.msra.mxu0 %v790
    %6145 = vmatpush.msra.mxu0 %v782
    %6146 = vmatpush.msra.mxu0 %v774
    %6147 = vmatpush.msra.mxu0 %v766
    %6148 = vmatpush.msra.mxu0 %v758
    %6149 = vmatmul.f32.gmra.mxu0 %v5300
    %v6150 = vpop.f32.mrf.mxu0
    %v6151 = vadd.f32 %v6131, %v6150
    %6152 = vdwg.mxu0
    %6153 = vmatpush.msra.mxu0 %v751
    %6154 = vmatpush.msra.mxu0 %v743
    %6155 = vmatpush.msra.mxu0 %v735
    %6156 = vmatpush.msra.mxu0 %v727
    %6157 = vmatpush.msra.mxu0 %v719
    %6158 = vmatpush.msra.mxu0 %v711
    %6159 = vmatpush.msra.mxu0 %v703
    %6160 = vmatpush.msra.mxu0 %v695
    %6161 = vmatpush.msra.mxu0 %v687
    %6162 = vmatpush.msra.mxu0 %v679
    %6163 = vmatpush.msra.mxu0 %v671
    %6164 = vmatpush.msra.mxu0 %v663
    %6165 = vmatpush.msra.mxu0 %v655
    %6166 = vmatpush.msra.mxu0 %v647
    %6167 = vmatpush.msra.mxu0 %v639
    %6168 = vmatpush.msra.mxu0 %v631
    %6169 = vmatmul.f32.gmra.mxu0 %v5299
    %v6170 = vpop.f32.mrf.mxu0
    %v6171 = vadd.f32 0.0, %v6170
    %6172 = vdwg.mxu0
    %6173 = vmatpush.msra.mxu0 %v879
    %6174 = vmatpush.msra.mxu0 %v871
    %6175 = vmatpush.msra.mxu0 %v863
    %6176 = vmatpush.msra.mxu0 %v855
    %6177 = vmatpush.msra.mxu0 %v847
    %6178 = vmatpush.msra.mxu0 %v839
    %6179 = vmatpush.msra.mxu0 %v831
    %6180 = vmatpush.msra.mxu0 %v823
    %6181 = vmatpush.msra.mxu0 %v815
    %6182 = vmatpush.msra.mxu0 %v807
    %6183 = vmatpush.msra.mxu0 %v799
    %6184 = vmatpush.msra.mxu0 %v791
    %6185 = vmatpush.msra.mxu0 %v783
    %6186 = vmatpush.msra.mxu0 %v775
    %6187 = vmatpush.msra.mxu0 %v767
    %6188 = vmatpush.msra.mxu0 %v759
    %6189 = vmatmul.f32.gmra.mxu0 %v5300
    %v6190 = vpop.f32.mrf.mxu0
    %v6191 = vadd.f32 %v6171, %v6190
    %6192 = vdwg.mxu0
    %6193 = vmatpush.msra.mxu0 %v752
    %6194 = vmatpush.msra.mxu0 %v744
    %6195 = vmatpush.msra.mxu0 %v736
    %6196 = vmatpush.msra.mxu0 %v728
    %6197 = vmatpush.msra.mxu0 %v720
    %6198 = vmatpush.msra.mxu0 %v712
    %6199 = vmatpush.msra.mxu0 %v704
    %6200 = vmatpush.msra.mxu0 %v696
    %6201 = vmatpush.msra.mxu0 %v688
    %6202 = vmatpush.msra.mxu0 %v680
    %6203 = vmatpush.msra.mxu0 %v672
    %6204 = vmatpush.msra.mxu0 %v664
    %6205 = vmatpush.msra.mxu0 %v656
    %6206 = vmatpush.msra.mxu0 %v648
    %6207 = vmatpush.msra.mxu0 %v640
    %6208 = vmatpush.msra.mxu0 %v632
    %6209 = vmatmul.f32.gmra.mxu0 %v5299
    %v6210 = vpop.f32.mrf.mxu0
    %v6211 = vadd.f32 0.0, %v6210
    %6212 = vdwg.mxu0
    %6213 = vmatpush.msra.mxu0 %v880
    %6214 = vmatpush.msra.mxu0 %v872
    %6215 = vmatpush.msra.mxu0 %v864
    %6216 = vmatpush.msra.mxu0 %v856
    %6217 = vmatpush.msra.mxu0 %v848
    %6218 = vmatpush.msra.mxu0 %v840
    %6219 = vmatpush.msra.mxu0 %v832
    %6220 = vmatpush.msra.mxu0 %v824
    %6221 = vmatpush.msra.mxu0 %v816
    %6222 = vmatpush.msra.mxu0 %v808
    %6223 = vmatpush.msra.mxu0 %v800
    %6224 = vmatpush.msra.mxu0 %v792
    %6225 = vmatpush.msra.mxu0 %v784
    %6226 = vmatpush.msra.mxu0 %v776
    %6227 = vmatpush.msra.mxu0 %v768
    %6228 = vmatpush.msra.mxu0 %v760
    %6229 = vmatmul.f32.gmra.mxu0 %v5300
    %v6230 = vpop.f32.mrf.mxu0
    %v6231 = vadd.f32 %v6211, %v6230
    %6232 = vdwg.mxu0
    %6233 = vmatpush.msra.mxu0 %v753
    %6234 = vmatpush.msra.mxu0 %v745
    %6235 = vmatpush.msra.mxu0 %v737
    %6236 = vmatpush.msra.mxu0 %v729
    %6237 = vmatpush.msra.mxu0 %v721
    %6238 = vmatpush.msra.mxu0 %v713
    %6239 = vmatpush.msra.mxu0 %v705
    %6240 = vmatpush.msra.mxu0 %v697
    %6241 = vmatpush.msra.mxu0 %v689
    %6242 = vmatpush.msra.mxu0 %v681
    %6243 = vmatpush.msra.mxu0 %v673
    %6244 = vmatpush.msra.mxu0 %v665
    %6245 = vmatpush.msra.mxu0 %v657
    %6246 = vmatpush.msra.mxu0 %v649
    %6247 = vmatpush.msra.mxu0 %v641
    %6248 = vmatpush.msra.mxu0 %v633
    %6249 = vmatmul.f32.gmra.mxu0 %v5299
    %v6250 = vpop.f32.mrf.mxu0
    %v6251 = vadd.f32 0.0, %v6250
    %6252 = vdwg.mxu0
    %6253 = vmatpush.msra.mxu0 %v881
    %6254 = vmatpush.msra.mxu0 %v873
    %6255 = vmatpush.msra.mxu0 %v865
    %6256 = vmatpush.msra.mxu0 %v857
    %6257 = vmatpush.msra.mxu0 %v849
    %6258 = vmatpush.msra.mxu0 %v841
    %6259 = vmatpush.msra.mxu0 %v833
    %6260 = vmatpush.msra.mxu0 %v825
    %6261 = vmatpush.msra.mxu0 %v817
    %6262 = vmatpush.msra.mxu0 %v809
    %6263 = vmatpush.msra.mxu0 %v801
    %6264 = vmatpush.msra.mxu0 %v793
    %6265 = vmatpush.msra.mxu0 %v785
    %6266 = vmatpush.msra.mxu0 %v777
    %6267 = vmatpush.msra.mxu0 %v769
    %6268 = vmatpush.msra.mxu0 %v761
    %6269 = vmatmul.f32.gmra.mxu0 %v5300
    %v6270 = vpop.f32.mrf.mxu0
    %v6271 = vadd.f32 %v6251, %v6270
    %6272 = vdwg.mxu0
    %v6273 = vadd.f32 %v5945, %v5991
    %v6274 = vadd.f32 %v5946, %v6031
    %v6275 = vadd.f32 %v5947, %v6071
    %v6276 = vadd.f32 %v5948, %v6111
    %v6277 = vadd.f32 %v5949, %v6151
    %v6278 = vadd.f32 %v5950, %v6191
    %v6279 = vadd.f32 %v5951, %v6231
    %v6280 = vadd.f32 %v5952, %v6271
    %v6281 = vmul.f32 %v6273, 0.5
    %v6282 = vmul.f32 %v6274, 0.5
    %v6283 = vtanh.pop %v6281
    %v6284 = vtanh.pop %v6282
    %v6285 = vadd.f32 %v6283, 1.0
    %v6286 = vadd.f32 %v6284, 1.0
    %v6287 = vmul.f32 %v6285, 0.5
    %v6288 = vmul.f32 %v6286, 0.5
    %v6289 = vmul.f32 %v6275, 0.5
    %v6290 = vmul.f32 %v6276, 0.5
    %v6291 = vtanh.pop %v6289
    %v6292 = vtanh.pop %v6290
    %v6293 = vadd.f32 %v6291, 1.0
    %v6294 = vadd.f32 %v6292, 1.0
    %v6295 = vmul.f32 %v6293, 0.5
    %v6296 = vmul.f32 %v6294, 0.5
    %v6297 = vmul.f32 %v6277, 0.5
    %v6298 = vmul.f32 %v6278, 0.5
    %v6299 = vtanh.pop %v6297
    %v6300 = vtanh.pop %v6298
    %v6301 = vadd.f32 %v6299, 1.0
    %v6302 = vadd.f32 %v6300, 1.0
    %v6303 = vmul.f32 %v6301, 0.5
    %v6304 = vmul.f32 %v6302, 0.5
    %v6305 = vtanh.pop %v6279
    %v6306 = vtanh.pop %v6280
    %v6307 = vmul.f32 %v6295, %v5295
    %v6308 = vmul.f32 %v6296, %v5296
    %v6309 = vmul.f32 %v6287, %v6305
    %v6310 = vmul.f32 %v6288, %v6306
    %v6311 = vadd.f32 %v6307, %v6309
    %v6312 = vadd.f32 %v6308, %v6310
    %v6313 = vtanh.pop %v6311
    %v6314 = vtanh.pop %v6312
    %v6315 = vmul.f32 %v6303, %v6313
    %v6316 = vmul.f32 %v6304, %v6314
    %s6317 = scalar_lea.vmem %s7, 5120
    %v6318 = vld [vmem:[%s6317] sm:$0xff]
    %v6319 = vld [vmem:[%s6317 + $0x8] sm:$0xff]
    %v6320 = vld [vmem:[%s6317 + $0x10] sm:$0xff]
    %v6321 = vld [vmem:[%s6317 + $0x18] sm:$0xff]
    %v6322 = vld [vmem:[%s6317 + $0x20] sm:$0xff]
    %v6323 = vld [vmem:[%s6317 + $0x28] sm:$0xff]
    %v6324 = vld [vmem:[%s6317 + $0x30] sm:$0xff]
    %v6325 = vld [vmem:[%s6317 + $0x38] sm:$0xff]
    %v6326 = vld [vmem:[%s6317 + $0x40] sm:$0xff]
    %v6327 = vld [vmem:[%s6317 + $0x48] sm:$0xff]
    %v6328 = vld [vmem:[%s6317 + $0x50] sm:$0xff]
    %v6329 = vld [vmem:[%s6317 + $0x58] sm:$0xff]
    %v6330 = vld [vmem:[%s6317 + $0x60] sm:$0xff]
    %v6331 = vld [vmem:[%s6317 + $0x68] sm:$0xff]
    %v6332 = vld [vmem:[%s6317 + $0x70] sm:$0xff]
    %v6333 = vld [vmem:[%s6317 + $0x78] sm:$0xff]
    %v6334 = vld [vmem:[%s6317 + $0x80] sm:$0xff]
    %v6335 = vld [vmem:[%s6317 + $0x88] sm:$0xff]
    %v6336 = vld [vmem:[%s6317 + $0x90] sm:$0xff]
    %v6337 = vld [vmem:[%s6317 + $0x98] sm:$0xff]
    %v6338 = vld [vmem:[%s6317 + $0xa0] sm:$0xff]
    %v6339 = vld [vmem:[%s6317 + $0xa8] sm:$0xff]
    %v6340 = vld [vmem:[%s6317 + $0xb0] sm:$0xff]
    %v6341 = vld [vmem:[%s6317 + $0xb8] sm:$0xff]
    %v6342 = vld [vmem:[%s6317 + $0xc0] sm:$0xff]
    %v6343 = vld [vmem:[%s6317 + $0xc8] sm:$0xff]
    %v6344 = vld [vmem:[%s6317 + $0xd0] sm:$0xff]
    %v6345 = vld [vmem:[%s6317 + $0xd8] sm:$0xff]
    %v6346 = vld [vmem:[%s6317 + $0xe0] sm:$0xff]
    %v6347 = vld [vmem:[%s6317 + $0xe8] sm:$0xff]
    %v6348 = vld [vmem:[%s6317 + $0xf0] sm:$0xff]
    %v6349 = vld [vmem:[%s6317 + $0xf8] sm:$0xff]
    %v6350 = vld [vmem:[%s6317 + $0x100] sm:$0xff]
    %v6351 = vld [vmem:[%s6317 + $0x108] sm:$0xff]
    %v6352 = vld [vmem:[%s6317 + $0x110] sm:$0xff]
    %v6353 = vld [vmem:[%s6317 + $0x118] sm:$0xff]
    %v6354 = vld [vmem:[%s6317 + $0x120] sm:$0xff]
    %v6355 = vld [vmem:[%s6317 + $0x128] sm:$0xff]
    %v6356 = vld [vmem:[%s6317 + $0x130] sm:$0xff]
    %v6357 = vld [vmem:[%s6317 + $0x138] sm:$0xff]
    %v6358 = vld [vmem:[%s6317 + $0x140] sm:$0xff]
    %v6359 = vld [vmem:[%s6317 + $0x148] sm:$0xff]
    %v6360 = vld [vmem:[%s6317 + $0x150] sm:$0xff]
    %v6361 = vld [vmem:[%s6317 + $0x158] sm:$0xff]
    %v6362 = vld [vmem:[%s6317 + $0x160] sm:$0xff]
    %v6363 = vld [vmem:[%s6317 + $0x168] sm:$0xff]
    %v6364 = vld [vmem:[%s6317 + $0x170] sm:$0xff]
    %v6365 = vld [vmem:[%s6317 + $0x178] sm:$0xff]
    %v6366 = vld [vmem:[%s6317 + $0x180] sm:$0xff]
    %v6367 = vld [vmem:[%s6317 + $0x188] sm:$0xff]
    %v6368 = vld [vmem:[%s6317 + $0x190] sm:$0xff]
    %v6369 = vld [vmem:[%s6317 + $0x198] sm:$0xff]
    %v6370 = vld [vmem:[%s6317 + $0x1a0] sm:$0xff]
    %v6371 = vld [vmem:[%s6317 + $0x1a8] sm:$0xff]
    %v6372 = vld [vmem:[%s6317 + $0x1b0] sm:$0xff]
    %v6373 = vld [vmem:[%s6317 + $0x1b8] sm:$0xff]
    %v6374 = vld [vmem:[%s6317 + $0x1c0] sm:$0xff]
    %v6375 = vld [vmem:[%s6317 + $0x1c8] sm:$0xff]
    %v6376 = vld [vmem:[%s6317 + $0x1d0] sm:$0xff]
    %v6377 = vld [vmem:[%s6317 + $0x1d8] sm:$0xff]
    %v6378 = vld [vmem:[%s6317 + $0x1e0] sm:$0xff]
    %v6379 = vld [vmem:[%s6317 + $0x1e8] sm:$0xff]
    %v6380 = vld [vmem:[%s6317 + $0x1f0] sm:$0xff]
    %v6381 = vld [vmem:[%s6317 + $0x1f8] sm:$0xff]
    %v6382 = vld [vmem:[%s6317 + $0x200] sm:$0xff]
    %v6383 = vld [vmem:[%s6317 + $0x208] sm:$0xff]
    %v6384 = vld [vmem:[%s6317 + $0x210] sm:$0xff]
    %v6385 = vld [vmem:[%s6317 + $0x218] sm:$0xff]
    %v6386 = vld [vmem:[%s6317 + $0x220] sm:$0xff]
    %v6387 = vld [vmem:[%s6317 + $0x228] sm:$0xff]
    %v6388 = vld [vmem:[%s6317 + $0x230] sm:$0xff]
    %v6389 = vld [vmem:[%s6317 + $0x238] sm:$0xff]
    %v6390 = vld [vmem:[%s6317 + $0x240] sm:$0xff]
    %v6391 = vld [vmem:[%s6317 + $0x248] sm:$0xff]
    %v6392 = vld [vmem:[%s6317 + $0x250] sm:$0xff]
    %v6393 = vld [vmem:[%s6317 + $0x258] sm:$0xff]
    %v6394 = vld [vmem:[%s6317 + $0x260] sm:$0xff]
    %v6395 = vld [vmem:[%s6317 + $0x268] sm:$0xff]
    %v6396 = vld [vmem:[%s6317 + $0x270] sm:$0xff]
    %v6397 = vld [vmem:[%s6317 + $0x278] sm:$0xff]
    %v6398 = vld [vmem:[%s6317 + $0x280] sm:$0xff]
    %v6399 = vld [vmem:[%s6317 + $0x288] sm:$0xff]
    %v6400 = vld [vmem:[%s6317 + $0x290] sm:$0xff]
    %v6401 = vld [vmem:[%s6317 + $0x298] sm:$0xff]
    %v6402 = vld [vmem:[%s6317 + $0x2a0] sm:$0xff]
    %v6403 = vld [vmem:[%s6317 + $0x2a8] sm:$0xff]
    %v6404 = vld [vmem:[%s6317 + $0x2b0] sm:$0xff]
    %v6405 = vld [vmem:[%s6317 + $0x2b8] sm:$0xff]
    %v6406 = vld [vmem:[%s6317 + $0x2c0] sm:$0xff]
    %v6407 = vld [vmem:[%s6317 + $0x2c8] sm:$0xff]
    %v6408 = vld [vmem:[%s6317 + $0x2d0] sm:$0xff]
    %v6409 = vld [vmem:[%s6317 + $0x2d8] sm:$0xff]
    %v6410 = vld [vmem:[%s6317 + $0x2e0] sm:$0xff]
    %v6411 = vld [vmem:[%s6317 + $0x2e8] sm:$0xff]
    %v6412 = vld [vmem:[%s6317 + $0x2f0] sm:$0xff]
    %v6413 = vld [vmem:[%s6317 + $0x2f8] sm:$0xff]
    %v6414 = vld [vmem:[%s6317 + $0x300] sm:$0xff]
    %v6415 = vld [vmem:[%s6317 + $0x308] sm:$0xff]
    %v6416 = vld [vmem:[%s6317 + $0x310] sm:$0xff]
    %v6417 = vld [vmem:[%s6317 + $0x318] sm:$0xff]
    %v6418 = vld [vmem:[%s6317 + $0x320] sm:$0xff]
    %v6419 = vld [vmem:[%s6317 + $0x328] sm:$0xff]
    %v6420 = vld [vmem:[%s6317 + $0x330] sm:$0xff]
    %v6421 = vld [vmem:[%s6317 + $0x338] sm:$0xff]
    %v6422 = vld [vmem:[%s6317 + $0x340] sm:$0xff]
    %v6423 = vld [vmem:[%s6317 + $0x348] sm:$0xff]
    %v6424 = vld [vmem:[%s6317 + $0x350] sm:$0xff]
    %v6425 = vld [vmem:[%s6317 + $0x358] sm:$0xff]
    %v6426 = vld [vmem:[%s6317 + $0x360] sm:$0xff]
    %v6427 = vld [vmem:[%s6317 + $0x368] sm:$0xff]
    %v6428 = vld [vmem:[%s6317 + $0x370] sm:$0xff]
    %v6429 = vld [vmem:[%s6317 + $0x378] sm:$0xff]
    %v6430 = vld [vmem:[%s6317 + $0x380] sm:$0xff]
    %v6431 = vld [vmem:[%s6317 + $0x388] sm:$0xff]
    %v6432 = vld [vmem:[%s6317 + $0x390] sm:$0xff]
    %v6433 = vld [vmem:[%s6317 + $0x398] sm:$0xff]
    %v6434 = vld [vmem:[%s6317 + $0x3a0] sm:$0xff]
    %v6435 = vld [vmem:[%s6317 + $0x3a8] sm:$0xff]
    %v6436 = vld [vmem:[%s6317 + $0x3b0] sm:$0xff]
    %v6437 = vld [vmem:[%s6317 + $0x3b8] sm:$0xff]
    %v6438 = vld [vmem:[%s6317 + $0x3c0] sm:$0xff]
    %v6439 = vld [vmem:[%s6317 + $0x3c8] sm:$0xff]
    %v6440 = vld [vmem:[%s6317 + $0x3d0] sm:$0xff]
    %v6441 = vld [vmem:[%s6317 + $0x3d8] sm:$0xff]
    %v6442 = vld [vmem:[%s6317 + $0x3e0] sm:$0xff]
    %v6443 = vld [vmem:[%s6317 + $0x3e8] sm:$0xff]
    %v6444 = vld [vmem:[%s6317 + $0x3f0] sm:$0xff]
    %v6445 = vld [vmem:[%s6317 + $0x3f8] sm:$0xff]
    %6446 = vmatpush.msra.mxu0 %v6378
    %6447 = vmatpush.msra.mxu0 %v6374
    %6448 = vmatpush.msra.mxu0 %v6370
    %6449 = vmatpush.msra.mxu0 %v6366
    %6450 = vmatpush.msra.mxu0 %v6362
    %6451 = vmatpush.msra.mxu0 %v6358
    %6452 = vmatpush.msra.mxu0 %v6354
    %6453 = vmatpush.msra.mxu0 %v6350
    %6454 = vmatpush.msra.mxu0 %v6346
    %6455 = vmatpush.msra.mxu0 %v6342
    %6456 = vmatpush.msra.mxu0 %v6338
    %6457 = vmatpush.msra.mxu0 %v6334
    %6458 = vmatpush.msra.mxu0 %v6330
    %6459 = vmatpush.msra.mxu0 %v6326
    %6460 = vmatpush.msra.mxu0 %v6322
    %6461 = vmatpush.msra.mxu0 %v6318
    %6462 = vmatmul.f32.gmra.mxu0 %v6315
    %v6463 = vpop.f32.mrf.mxu0
    %v6464 = vadd.f32 0.0, %v6463
    %6465 = vdwg.mxu0
    %6466 = vmatpush.msra.mxu0 %v6442
    %6467 = vmatpush.msra.mxu0 %v6438
    %6468 = vmatpush.msra.mxu0 %v6434
    %6469 = vmatpush.msra.mxu0 %v6430
    %6470 = vmatpush.msra.mxu0 %v6426
    %6471 = vmatpush.msra.mxu0 %v6422
    %6472 = vmatpush.msra.mxu0 %v6418
    %6473 = vmatpush.msra.mxu0 %v6414
    %6474 = vmatpush.msra.mxu0 %v6410
    %6475 = vmatpush.msra.mxu0 %v6406
    %6476 = vmatpush.msra.mxu0 %v6402
    %6477 = vmatpush.msra.mxu0 %v6398
    %6478 = vmatpush.msra.mxu0 %v6394
    %6479 = vmatpush.msra.mxu0 %v6390
    %6480 = vmatpush.msra.mxu0 %v6386
    %6481 = vmatpush.msra.mxu0 %v6382
    %6482 = vmatmul.f32.gmra.mxu0 %v6316
    %v6483 = vpop.f32.mrf.mxu0
    %v6484 = vadd.f32 %v6464, %v6483
    %6485 = vdwg.mxu0
    %6486 = vmatpush.msra.mxu0 %v6379
    %6487 = vmatpush.msra.mxu0 %v6375
    %6488 = vmatpush.msra.mxu0 %v6371
    %6489 = vmatpush.msra.mxu0 %v6367
    %6490 = vmatpush.msra.mxu0 %v6363
    %6491 = vmatpush.msra.mxu0 %v6359
    %6492 = vmatpush.msra.mxu0 %v6355
    %6493 = vmatpush.msra.mxu0 %v6351
    %6494 = vmatpush.msra.mxu0 %v6347
    %6495 = vmatpush.msra.mxu0 %v6343
    %6496 = vmatpush.msra.mxu0 %v6339
    %6497 = vmatpush.msra.mxu0 %v6335
    %6498 = vmatpush.msra.mxu0 %v6331
    %6499 = vmatpush.msra.mxu0 %v6327
    %6500 = vmatpush.msra.mxu0 %v6323
    %6501 = vmatpush.msra.mxu0 %v6319
    %6502 = vmatmul.f32.gmra.mxu0 %v6315
    %v6503 = vpop.f32.mrf.mxu0
    %v6504 = vadd.f32 0.0, %v6503
    %6505 = vdwg.mxu0
    %6506 = vmatpush.msra.mxu0 %v6443
    %6507 = vmatpush.msra.mxu0 %v6439
    %6508 = vmatpush.msra.mxu0 %v6435
    %6509 = vmatpush.msra.mxu0 %v6431
    %6510 = vmatpush.msra.mxu0 %v6427
    %6511 = vmatpush.msra.mxu0 %v6423
    %6512 = vmatpush.msra.mxu0 %v6419
    %6513 = vmatpush.msra.mxu0 %v6415
    %6514 = vmatpush.msra.mxu0 %v6411
    %6515 = vmatpush.msra.mxu0 %v6407
    %6516 = vmatpush.msra.mxu0 %v6403
    %6517 = vmatpush.msra.mxu0 %v6399
    %6518 = vmatpush.msra.mxu0 %v6395
    %6519 = vmatpush.msra.mxu0 %v6391
    %6520 = vmatpush.msra.mxu0 %v6387
    %6521 = vmatpush.msra.mxu0 %v6383
    %6522 = vmatmul.f32.gmra.mxu0 %v6316
    %v6523 = vpop.f32.mrf.mxu0
    %v6524 = vadd.f32 %v6504, %v6523
    %6525 = vdwg.mxu0
    %6526 = vmatpush.msra.mxu0 %v6380
    %6527 = vmatpush.msra.mxu0 %v6376
    %6528 = vmatpush.msra.mxu0 %v6372
    %6529 = vmatpush.msra.mxu0 %v6368
    %6530 = vmatpush.msra.mxu0 %v6364
    %6531 = vmatpush.msra.mxu0 %v6360
    %6532 = vmatpush.msra.mxu0 %v6356
    %6533 = vmatpush.msra.mxu0 %v6352
    %6534 = vmatpush.msra.mxu0 %v6348
    %6535 = vmatpush.msra.mxu0 %v6344
    %6536 = vmatpush.msra.mxu0 %v6340
    %6537 = vmatpush.msra.mxu0 %v6336
    %6538 = vmatpush.msra.mxu0 %v6332
    %6539 = vmatpush.msra.mxu0 %v6328
    %6540 = vmatpush.msra.mxu0 %v6324
    %6541 = vmatpush.msra.mxu0 %v6320
    %6542 = vmatmul.f32.gmra.mxu0 %v6315
    %v6543 = vpop.f32.mrf.mxu0
    %v6544 = vadd.f32 0.0, %v6543
    %6545 = vdwg.mxu0
    %6546 = vmatpush.msra.mxu0 %v6444
    %6547 = vmatpush.msra.mxu0 %v6440
    %6548 = vmatpush.msra.mxu0 %v6436
    %6549 = vmatpush.msra.mxu0 %v6432
    %6550 = vmatpush.msra.mxu0 %v6428
    %6551 = vmatpush.msra.mxu0 %v6424
    %6552 = vmatpush.msra.mxu0 %v6420
    %6553 = vmatpush.msra.mxu0 %v6416
    %6554 = vmatpush.msra.mxu0 %v6412
    %6555 = vmatpush.msra.mxu0 %v6408
    %6556 = vmatpush.msra.mxu0 %v6404
    %6557 = vmatpush.msra.mxu0 %v6400
    %6558 = vmatpush.msra.mxu0 %v6396
    %6559 = vmatpush.msra.mxu0 %v6392
    %6560 = vmatpush.msra.mxu0 %v6388
    %6561 = vmatpush.msra.mxu0 %v6384
    %6562 = vmatmul.f32.gmra.mxu0 %v6316
    %v6563 = vpop.f32.mrf.mxu0
    %v6564 = vadd.f32 %v6544, %v6563
    %6565 = vdwg.mxu0
    %6566 = vmatpush.msra.mxu0 %v6381
    %6567 = vmatpush.msra.mxu0 %v6377
    %6568 = vmatpush.msra.mxu0 %v6373
    %6569 = vmatpush.msra.mxu0 %v6369
    %6570 = vmatpush.msra.mxu0 %v6365
    %6571 = vmatpush.msra.mxu0 %v6361
    %6572 = vmatpush.msra.mxu0 %v6357
    %6573 = vmatpush.msra.mxu0 %v6353
    %6574 = vmatpush.msra.mxu0 %v6349
    %6575 = vmatpush.msra.mxu0 %v6345
    %6576 = vmatpush.msra.mxu0 %v6341
    %6577 = vmatpush.msra.mxu0 %v6337
    %6578 = vmatpush.msra.mxu0 %v6333
    %6579 = vmatpush.msra.mxu0 %v6329
    %6580 = vmatpush.msra.mxu0 %v6325
    %6581 = vmatpush.msra.mxu0 %v6321
    %6582 = vmatmul.f32.gmra.mxu0 %v6315
    %v6583 = vpop.f32.mrf.mxu0
    %v6584 = vadd.f32 0.0, %v6583
    %6585 = vdwg.mxu0
    %6586 = vmatpush.msra.mxu0 %v6445
    %6587 = vmatpush.msra.mxu0 %v6441
    %6588 = vmatpush.msra.mxu0 %v6437
    %6589 = vmatpush.msra.mxu0 %v6433
    %6590 = vmatpush.msra.mxu0 %v6429
    %6591 = vmatpush.msra.mxu0 %v6425
    %6592 = vmatpush.msra.mxu0 %v6421
    %6593 = vmatpush.msra.mxu0 %v6417
    %6594 = vmatpush.msra.mxu0 %v6413
    %6595 = vmatpush.msra.mxu0 %v6409
    %6596 = vmatpush.msra.mxu0 %v6405
    %6597 = vmatpush.msra.mxu0 %v6401
    %6598 = vmatpush.msra.mxu0 %v6397
    %6599 = vmatpush.msra.mxu0 %v6393
    %6600 = vmatpush.msra.mxu0 %v6389
    %6601 = vmatpush.msra.mxu0 %v6385
    %6602 = vmatmul.f32.gmra.mxu0 %v6316
    %v6603 = vpop.f32.mrf.mxu0
    %v6604 = vadd.f32 %v6584, %v6603
    %6605 = vdwg.mxu0
    %v6606 = vadd.f32 %v5590, %v6484
    %v6607 = vadd.f32 %v5591, %v6524
    %v6608 = vadd.f32 %v5592, %v6564
    %v6609 = vadd.f32 %v5593, %v6604
    %s6610 = scalar_lea.vmem %s0, 12
    %v6611 = vld [vmem:[%s6610] sm:$0x3]
    %v6613 = vsel %vm50, %v6611, 0
    %6615 = vmatpush.msra.mxu0 0.0
    %6616 = vmatpush.msra.mxu0 0.0
    %6617 = vmatpush.msra.mxu0 0.0
    %6618 = vmatpush.msra.mxu0 0.0
    %6619 = vmatpush.msra.mxu0 0.0
    %6620 = vmatpush.msra.mxu0 0.0
    %6621 = vmatpush.msra.mxu0 0.0
    %6622 = vmatpush.msra.mxu0 0.0
    %6623 = vmatpush.msra.mxu0 0.0
    %6624 = vmatpush.msra.mxu0 0.0
    %6625 = vmatpush.msra.mxu0 0.0
    %6626 = vmatpush.msra.mxu0 0.0
    %6627 = vmatpush.msra.mxu0 0.0
    %6628 = vmatpush.msra.mxu0 0.0
    %6629 = vmatpush.msra.mxu0 %v46
    %6630 = vmatpush.msra.mxu0 %v42
    %6631 = vmatmul.f32.gmra.mxu0 %v6613
    %v6632 = vpop.f32.mrf.mxu0
    %v6633 = vadd.f32 0.0, %v6632
    %6634 = vdwg.mxu0
    %6635 = vmatpush.msra.mxu0 0.0
    %6636 = vmatpush.msra.mxu0 0.0
    %6637 = vmatpush.msra.mxu0 0.0
    %6638 = vmatpush.msra.mxu0 0.0
    %6639 = vmatpush.msra.mxu0 0.0
    %6640 = vmatpush.msra.mxu0 0.0
    %6641 = vmatpush.msra.mxu0 0.0
    %6642 = vmatpush.msra.mxu0 0.0
    %6643 = vmatpush.msra.mxu0 0.0
    %6644 = vmatpush.msra.mxu0 0.0
    %6645 = vmatpush.msra.mxu0 0.0
    %6646 = vmatpush.msra.mxu0 0.0
    %6647 = vmatpush.msra.mxu0 0.0
    %6648 = vmatpush.msra.mxu0 0.0
    %6649 = vmatpush.msra.mxu0 %v47
    %6650 = vmatpush.msra.mxu0 %v43
    %6651 = vmatmul.f32.gmra.mxu0 %v6613
    %v6652 = vpop.f32.mrf.mxu0
    %v6653 = vadd.f32 0.0, %v6652
    %6654 = vdwg.mxu0
    %6655 = vmatpush.msra.mxu0 0.0
    %6656 = vmatpush.msra.mxu0 0.0
    %6657 = vmatpush.msra.mxu0 0.0
    %6658 = vmatpush.msra.mxu0 0.0
    %6659 = vmatpush.msra.mxu0 0.0
    %6660 = vmatpush.msra.mxu0 0.0
    %6661 = vmatpush.msra.mxu0 0.0
    %6662 = vmatpush.msra.mxu0 0.0
    %6663 = vmatpush.msra.mxu0 0.0
    %6664 = vmatpush.msra.mxu0 0.0
    %6665 = vmatpush.msra.mxu0 0.0
    %6666 = vmatpush.msra.mxu0 0.0
    %6667 = vmatpush.msra.mxu0 0.0
    %6668 = vmatpush.msra.mxu0 0.0
    %6669 = vmatpush.msra.mxu0 %v48
    %6670 = vmatpush.msra.mxu0 %v44
    %6671 = vmatmul.f32.gmra.mxu0 %v6613
    %v6672 = vpop.f32.mrf.mxu0
    %v6673 = vadd.f32 0.0, %v6672
    %6674 = vdwg.mxu0
    %6675 = vmatpush.msra.mxu0 0.0
    %6676 = vmatpush.msra.mxu0 0.0
    %6677 = vmatpush.msra.mxu0 0.0
    %6678 = vmatpush.msra.mxu0 0.0
    %6679 = vmatpush.msra.mxu0 0.0
    %6680 = vmatpush.msra.mxu0 0.0
    %6681 = vmatpush.msra.mxu0 0.0
    %6682 = vmatpush.msra.mxu0 0.0
    %6683 = vmatpush.msra.mxu0 0.0
    %6684 = vmatpush.msra.mxu0 0.0
    %6685 = vmatpush.msra.mxu0 0.0
    %6686 = vmatpush.msra.mxu0 0.0
    %6687 = vmatpush.msra.mxu0 0.0
    %6688 = vmatpush.msra.mxu0 0.0
    %6689 = vmatpush.msra.mxu0 %v49
    %6690 = vmatpush.msra.mxu0 %v45
    %6691 = vmatmul.f32.gmra.mxu0 %v6613
    %v6692 = vpop.f32.mrf.mxu0
    %v6693 = vadd.f32 0.0, %v6692
    %6694 = vdwg.mxu0
    %v6695 = vadd.f32 %v135, %v6633
    %v6696 = vadd.f32 %v136, %v6653
    %v6697 = vadd.f32 %v137, %v6673
    %v6698 = vadd.f32 %v138, %v6693
    %6699 = vmatpush.msra.mxu0 %v207
    %6700 = vmatpush.msra.mxu0 %v203
    %6701 = vmatpush.msra.mxu0 %v199
    %6702 = vmatpush.msra.mxu0 %v195
    %6703 = vmatpush.msra.mxu0 %v191
    %6704 = vmatpush.msra.mxu0 %v187
    %6705 = vmatpush.msra.mxu0 %v183
    %6706 = vmatpush.msra.mxu0 %v179
    %6707 = vmatpush.msra.mxu0 %v175
    %6708 = vmatpush.msra.mxu0 %v171
    %6709 = vmatpush.msra.mxu0 %v167
    %6710 = vmatpush.msra.mxu0 %v163
    %6711 = vmatpush.msra.mxu0 %v159
    %6712 = vmatpush.msra.mxu0 %v155
    %6713 = vmatpush.msra.mxu0 %v151
    %6714 = vmatpush.msra.mxu0 %v147
    %6715 = vmatmul.f32.gmra.mxu0 %v5784
    %v6716 = vpop.f32.mrf.mxu0
    %v6717 = vadd.f32 0.0, %v6716
    %6718 = vdwg.mxu0
    %6719 = vmatpush.msra.mxu0 %v208
    %6720 = vmatpush.msra.mxu0 %v204
    %6721 = vmatpush.msra.mxu0 %v200
    %6722 = vmatpush.msra.mxu0 %v196
    %6723 = vmatpush.msra.mxu0 %v192
    %6724 = vmatpush.msra.mxu0 %v188
    %6725 = vmatpush.msra.mxu0 %v184
    %6726 = vmatpush.msra.mxu0 %v180
    %6727 = vmatpush.msra.mxu0 %v176
    %6728 = vmatpush.msra.mxu0 %v172
    %6729 = vmatpush.msra.mxu0 %v168
    %6730 = vmatpush.msra.mxu0 %v164
    %6731 = vmatpush.msra.mxu0 %v160
    %6732 = vmatpush.msra.mxu0 %v156
    %6733 = vmatpush.msra.mxu0 %v152
    %6734 = vmatpush.msra.mxu0 %v148
    %6735 = vmatmul.f32.gmra.mxu0 %v5784
    %v6736 = vpop.f32.mrf.mxu0
    %v6737 = vadd.f32 0.0, %v6736
    %6738 = vdwg.mxu0
    %6739 = vmatpush.msra.mxu0 %v209
    %6740 = vmatpush.msra.mxu0 %v205
    %6741 = vmatpush.msra.mxu0 %v201
    %6742 = vmatpush.msra.mxu0 %v197
    %6743 = vmatpush.msra.mxu0 %v193
    %6744 = vmatpush.msra.mxu0 %v189
    %6745 = vmatpush.msra.mxu0 %v185
    %6746 = vmatpush.msra.mxu0 %v181
    %6747 = vmatpush.msra.mxu0 %v177
    %6748 = vmatpush.msra.mxu0 %v173
    %6749 = vmatpush.msra.mxu0 %v169
    %6750 = vmatpush.msra.mxu0 %v165
    %6751 = vmatpush.msra.mxu0 %v161
    %6752 = vmatpush.msra.mxu0 %v157
    %6753 = vmatpush.msra.mxu0 %v153
    %6754 = vmatpush.msra.mxu0 %v149
    %6755 = vmatmul.f32.gmra.mxu0 %v5784
    %v6756 = vpop.f32.mrf.mxu0
    %v6757 = vadd.f32 0.0, %v6756
    %6758 = vdwg.mxu0
    %6759 = vmatpush.msra.mxu0 %v210
    %6760 = vmatpush.msra.mxu0 %v206
    %6761 = vmatpush.msra.mxu0 %v202
    %6762 = vmatpush.msra.mxu0 %v198
    %6763 = vmatpush.msra.mxu0 %v194
    %6764 = vmatpush.msra.mxu0 %v190
    %6765 = vmatpush.msra.mxu0 %v186
    %6766 = vmatpush.msra.mxu0 %v182
    %6767 = vmatpush.msra.mxu0 %v178
    %6768 = vmatpush.msra.mxu0 %v174
    %6769 = vmatpush.msra.mxu0 %v170
    %6770 = vmatpush.msra.mxu0 %v166
    %6771 = vmatpush.msra.mxu0 %v162
    %6772 = vmatpush.msra.mxu0 %v158
    %6773 = vmatpush.msra.mxu0 %v154
    %6774 = vmatpush.msra.mxu0 %v150
    %6775 = vmatmul.f32.gmra.mxu0 %v5784
    %v6776 = vpop.f32.mrf.mxu0
    %v6777 = vadd.f32 0.0, %v6776
    %6778 = vdwg.mxu0
    %v6779 = vadd.f32 %v6695, %v6717
    %v6780 = vadd.f32 %v6696, %v6737
    %v6781 = vadd.f32 %v6697, %v6757
    %v6782 = vadd.f32 %v6698, %v6777
    %v6783 = vmul.f32 %v6779, 0.5
    %v6784 = vtanh.pop %v6783
    %v6785 = vadd.f32 %v6784, 1.0
    %v6786 = vmul.f32 %v6785, 0.5
    %v6787 = vmul.f32 %v6780, 0.5
    %v6788 = vtanh.pop %v6787
    %v6789 = vadd.f32 %v6788, 1.0
    %v6790 = vmul.f32 %v6789, 0.5
    %v6791 = vmul.f32 %v6781, 0.5
    %v6792 = vtanh.pop %v6791
    %v6793 = vadd.f32 %v6792, 1.0
    %v6794 = vmul.f32 %v6793, 0.5
    %v6795 = vtanh.pop %v6782
    %v6796 = vmul.f32 %v6790, %v5782
    %v6797 = vmul.f32 %v6786, %v6795
    %v6798 = vadd.f32 %v6796, %v6797
    %v6799 = vtanh.pop %v6798
    %v6800 = vmul.f32 %v6794, %v6799
    %6801 = vmatpush.msra.mxu0 %v433
    %6802 = vmatpush.msra.mxu0 %v425
    %6803 = vmatpush.msra.mxu0 %v417
    %6804 = vmatpush.msra.mxu0 %v409
    %6805 = vmatpush.msra.mxu0 %v401
    %6806 = vmatpush.msra.mxu0 %v393
    %6807 = vmatpush.msra.mxu0 %v385
    %6808 = vmatpush.msra.mxu0 %v377
    %6809 = vmatpush.msra.mxu0 %v369
    %6810 = vmatpush.msra.mxu0 %v361
    %6811 = vmatpush.msra.mxu0 %v353
    %6812 = vmatpush.msra.mxu0 %v345
    %6813 = vmatpush.msra.mxu0 %v337
    %6814 = vmatpush.msra.mxu0 %v329
    %6815 = vmatpush.msra.mxu0 %v321
    %6816 = vmatpush.msra.mxu0 %v313
    %6817 = vmatmul.f32.gmra.mxu0 %v6800
    %v6818 = vpop.f32.mrf.mxu0
    %v6819 = vadd.f32 0.0, %v6818
    %6820 = vdwg.mxu0
    %6821 = vmatpush.msra.mxu0 %v434
    %6822 = vmatpush.msra.mxu0 %v426
    %6823 = vmatpush.msra.mxu0 %v418
    %6824 = vmatpush.msra.mxu0 %v410
    %6825 = vmatpush.msra.mxu0 %v402
    %6826 = vmatpush.msra.mxu0 %v394
    %6827 = vmatpush.msra.mxu0 %v386
    %6828 = vmatpush.msra.mxu0 %v378
    %6829 = vmatpush.msra.mxu0 %v370
    %6830 = vmatpush.msra.mxu0 %v362
    %6831 = vmatpush.msra.mxu0 %v354
    %6832 = vmatpush.msra.mxu0 %v346
    %6833 = vmatpush.msra.mxu0 %v338
    %6834 = vmatpush.msra.mxu0 %v330
    %6835 = vmatpush.msra.mxu0 %v322
    %6836 = vmatpush.msra.mxu0 %v314
    %6837 = vmatmul.f32.gmra.mxu0 %v6800
    %v6838 = vpop.f32.mrf.mxu0
    %v6839 = vadd.f32 0.0, %v6838
    %6840 = vdwg.mxu0
    %6841 = vmatpush.msra.mxu0 %v435
    %6842 = vmatpush.msra.mxu0 %v427
    %6843 = vmatpush.msra.mxu0 %v419
    %6844 = vmatpush.msra.mxu0 %v411
    %6845 = vmatpush.msra.mxu0 %v403
    %6846 = vmatpush.msra.mxu0 %v395
    %6847 = vmatpush.msra.mxu0 %v387
    %6848 = vmatpush.msra.mxu0 %v379
    %6849 = vmatpush.msra.mxu0 %v371
    %6850 = vmatpush.msra.mxu0 %v363
    %6851 = vmatpush.msra.mxu0 %v355
    %6852 = vmatpush.msra.mxu0 %v347
    %6853 = vmatpush.msra.mxu0 %v339
    %6854 = vmatpush.msra.mxu0 %v331
    %6855 = vmatpush.msra.mxu0 %v323
    %6856 = vmatpush.msra.mxu0 %v315
    %6857 = vmatmul.f32.gmra.mxu0 %v6800
    %v6858 = vpop.f32.mrf.mxu0
    %v6859 = vadd.f32 0.0, %v6858
    %6860 = vdwg.mxu0
    %6861 = vmatpush.msra.mxu0 %v436
    %6862 = vmatpush.msra.mxu0 %v428
    %6863 = vmatpush.msra.mxu0 %v420
    %6864 = vmatpush.msra.mxu0 %v412
    %6865 = vmatpush.msra.mxu0 %v404
    %6866 = vmatpush.msra.mxu0 %v396
    %6867 = vmatpush.msra.mxu0 %v388
    %6868 = vmatpush.msra.mxu0 %v380
    %6869 = vmatpush.msra.mxu0 %v372
    %6870 = vmatpush.msra.mxu0 %v364
    %6871 = vmatpush.msra.mxu0 %v356
    %6872 = vmatpush.msra.mxu0 %v348
    %6873 = vmatpush.msra.mxu0 %v340
    %6874 = vmatpush.msra.mxu0 %v332
    %6875 = vmatpush.msra.mxu0 %v324
    %6876 = vmatpush.msra.mxu0 %v316
    %6877 = vmatmul.f32.gmra.mxu0 %v6800
    %v6878 = vpop.f32.mrf.mxu0
    %v6879 = vadd.f32 0.0, %v6878
    %6880 = vdwg.mxu0
    %6881 = vmatpush.msra.mxu0 %v437
    %6882 = vmatpush.msra.mxu0 %v429
    %6883 = vmatpush.msra.mxu0 %v421
    %6884 = vmatpush.msra.mxu0 %v413
    %6885 = vmatpush.msra.mxu0 %v405
    %6886 = vmatpush.msra.mxu0 %v397
    %6887 = vmatpush.msra.mxu0 %v389
    %6888 = vmatpush.msra.mxu0 %v381
    %6889 = vmatpush.msra.mxu0 %v373
    %6890 = vmatpush.msra.mxu0 %v365
    %6891 = vmatpush.msra.mxu0 %v357
    %6892 = vmatpush.msra.mxu0 %v349
    %6893 = vmatpush.msra.mxu0 %v341
    %6894 = vmatpush.msra.mxu0 %v333
    %6895 = vmatpush.msra.mxu0 %v325
    %6896 = vmatpush.msra.mxu0 %v317
    %6897 = vmatmul.f32.gmra.mxu0 %v6800
    %v6898 = vpop.f32.mrf.mxu0
    %v6899 = vadd.f32 0.0, %v6898
    %6900 = vdwg.mxu0
    %6901 = vmatpush.msra.mxu0 %v438
    %6902 = vmatpush.msra.mxu0 %v430
    %6903 = vmatpush.msra.mxu0 %v422
    %6904 = vmatpush.msra.mxu0 %v414
    %6905 = vmatpush.msra.mxu0 %v406
    %6906 = vmatpush.msra.mxu0 %v398
    %6907 = vmatpush.msra.mxu0 %v390
    %6908 = vmatpush.msra.mxu0 %v382
    %6909 = vmatpush.msra.mxu0 %v374
    %6910 = vmatpush.msra.mxu0 %v366
    %6911 = vmatpush.msra.mxu0 %v358
    %6912 = vmatpush.msra.mxu0 %v350
    %6913 = vmatpush.msra.mxu0 %v342
    %6914 = vmatpush.msra.mxu0 %v334
    %6915 = vmatpush.msra.mxu0 %v326
    %6916 = vmatpush.msra.mxu0 %v318
    %6917 = vmatmul.f32.gmra.mxu0 %v6800
    %v6918 = vpop.f32.mrf.mxu0
    %v6919 = vadd.f32 0.0, %v6918
    %6920 = vdwg.mxu0
    %6921 = vmatpush.msra.mxu0 %v439
    %6922 = vmatpush.msra.mxu0 %v431
    %6923 = vmatpush.msra.mxu0 %v423
    %6924 = vmatpush.msra.mxu0 %v415
    %6925 = vmatpush.msra.mxu0 %v407
    %6926 = vmatpush.msra.mxu0 %v399
    %6927 = vmatpush.msra.mxu0 %v391
    %6928 = vmatpush.msra.mxu0 %v383
    %6929 = vmatpush.msra.mxu0 %v375
    %6930 = vmatpush.msra.mxu0 %v367
    %6931 = vmatpush.msra.mxu0 %v359
    %6932 = vmatpush.msra.mxu0 %v351
    %6933 = vmatpush.msra.mxu0 %v343
    %6934 = vmatpush.msra.mxu0 %v335
    %6935 = vmatpush.msra.mxu0 %v327
    %6936 = vmatpush.msra.mxu0 %v319
    %6937 = vmatmul.f32.gmra.mxu0 %v6800
    %v6938 = vpop.f32.mrf.mxu0
    %v6939 = vadd.f32 0.0, %v6938
    %6940 = vdwg.mxu0
    %6941 = vmatpush.msra.mxu0 %v440
    %6942 = vmatpush.msra.mxu0 %v432
    %6943 = vmatpush.msra.mxu0 %v424
    %6944 = vmatpush.msra.mxu0 %v416
    %6945 = vmatpush.msra.mxu0 %v408
    %6946 = vmatpush.msra.mxu0 %v400
    %6947 = vmatpush.msra.mxu0 %v392
    %6948 = vmatpush.msra.mxu0 %v384
    %6949 = vmatpush.msra.mxu0 %v376
    %6950 = vmatpush.msra.mxu0 %v368
    %6951 = vmatpush.msra.mxu0 %v360
    %6952 = vmatpush.msra.mxu0 %v352
    %6953 = vmatpush.msra.mxu0 %v344
    %6954 = vmatpush.msra.mxu0 %v336
    %6955 = vmatpush.msra.mxu0 %v328
    %6956 = vmatpush.msra.mxu0 %v320
    %6957 = vmatmul.f32.gmra.mxu0 %v6800
    %v6958 = vpop.f32.mrf.mxu0
    %v6959 = vadd.f32 0.0, %v6958
    %6960 = vdwg.mxu0
    %v6961 = vadd.f32 %v602, %v6819
    %v6962 = vadd.f32 %v603, %v6839
    %v6963 = vadd.f32 %v604, %v6859
    %v6964 = vadd.f32 %v605, %v6879
    %v6965 = vadd.f32 %v606, %v6899
    %v6966 = vadd.f32 %v607, %v6919
    %v6967 = vadd.f32 %v608, %v6939
    %v6968 = vadd.f32 %v609, %v6959
    %6969 = vmatpush.msra.mxu0 %v746
    %6970 = vmatpush.msra.mxu0 %v738
    %6971 = vmatpush.msra.mxu0 %v730
    %6972 = vmatpush.msra.mxu0 %v722
    %6973 = vmatpush.msra.mxu0 %v714
    %6974 = vmatpush.msra.mxu0 %v706
    %6975 = vmatpush.msra.mxu0 %v698
    %6976 = vmatpush.msra.mxu0 %v690
    %6977 = vmatpush.msra.mxu0 %v682
    %6978 = vmatpush.msra.mxu0 %v674
    %6979 = vmatpush.msra.mxu0 %v666
    %6980 = vmatpush.msra.mxu0 %v658
    %6981 = vmatpush.msra.mxu0 %v650
    %6982 = vmatpush.msra.mxu0 %v642
    %6983 = vmatpush.msra.mxu0 %v634
    %6984 = vmatpush.msra.mxu0 %v626
    %6985 = vmatmul.f32.gmra.mxu0 %v6315
    %v6986 = vpop.f32.mrf.mxu0
    %v6987 = vadd.f32 0.0, %v6986
    %6988 = vdwg.mxu0
    %6989 = vmatpush.msra.mxu0 %v874
    %6990 = vmatpush.msra.mxu0 %v866
    %6991 = vmatpush.msra.mxu0 %v858
    %6992 = vmatpush.msra.mxu0 %v850
    %6993 = vmatpush.msra.mxu0 %v842
    %6994 = vmatpush.msra.mxu0 %v834
    %6995 = vmatpush.msra.mxu0 %v826
    %6996 = vmatpush.msra.mxu0 %v818
    %6997 = vmatpush.msra.mxu0 %v810
    %6998 = vmatpush.msra.mxu0 %v802
    %6999 = vmatpush.msra.mxu0 %v794
    %7000 = vmatpush.msra.mxu0 %v786
    %7001 = vmatpush.msra.mxu0 %v778
    %7002 = vmatpush.msra.mxu0 %v770
    %7003 = vmatpush.msra.mxu0 %v762
    %7004 = vmatpush.msra.mxu0 %v754
    %7005 = vmatmul.f32.gmra.mxu0 %v6316
    %v7006 = vpop.f32.mrf.mxu0
    %v7007 = vadd.f32 %v6987, %v7006
    %7008 = vdwg.mxu0
    %7009 = vmatpush.msra.mxu0 %v747
    %7010 = vmatpush.msra.mxu0 %v739
    %7011 = vmatpush.msra.mxu0 %v731
    %7012 = vmatpush.msra.mxu0 %v723
    %7013 = vmatpush.msra.mxu0 %v715
    %7014 = vmatpush.msra.mxu0 %v707
    %7015 = vmatpush.msra.mxu0 %v699
    %7016 = vmatpush.msra.mxu0 %v691
    %7017 = vmatpush.msra.mxu0 %v683
    %7018 = vmatpush.msra.mxu0 %v675
    %7019 = vmatpush.msra.mxu0 %v667
    %7020 = vmatpush.msra.mxu0 %v659
    %7021 = vmatpush.msra.mxu0 %v651
    %7022 = vmatpush.msra.mxu0 %v643
    %7023 = vmatpush.msra.mxu0 %v635
    %7024 = vmatpush.msra.mxu0 %v627
    %7025 = vmatmul.f32.gmra.mxu0 %v6315
    %v7026 = vpop.f32.mrf.mxu0
    %v7027 = vadd.f32 0.0, %v7026
    %7028 = vdwg.mxu0
    %7029 = vmatpush.msra.mxu0 %v875
    %7030 = vmatpush.msra.mxu0 %v867
    %7031 = vmatpush.msra.mxu0 %v859
    %7032 = vmatpush.msra.mxu0 %v851
    %7033 = vmatpush.msra.mxu0 %v843
    %7034 = vmatpush.msra.mxu0 %v835
    %7035 = vmatpush.msra.mxu0 %v827
    %7036 = vmatpush.msra.mxu0 %v819
    %7037 = vmatpush.msra.mxu0 %v811
    %7038 = vmatpush.msra.mxu0 %v803
    %7039 = vmatpush.msra.mxu0 %v795
    %7040 = vmatpush.msra.mxu0 %v787
    %7041 = vmatpush.msra.mxu0 %v779
    %7042 = vmatpush.msra.mxu0 %v771
    %7043 = vmatpush.msra.mxu0 %v763
    %7044 = vmatpush.msra.mxu0 %v755
    %7045 = vmatmul.f32.gmra.mxu0 %v6316
    %v7046 = vpop.f32.mrf.mxu0
    %v7047 = vadd.f32 %v7027, %v7046
    %7048 = vdwg.mxu0
    %7049 = vmatpush.msra.mxu0 %v748
    %7050 = vmatpush.msra.mxu0 %v740
    %7051 = vmatpush.msra.mxu0 %v732
    %7052 = vmatpush.msra.mxu0 %v724
    %7053 = vmatpush.msra.mxu0 %v716
    %7054 = vmatpush.msra.mxu0 %v708
    %7055 = vmatpush.msra.mxu0 %v700
    %7056 = vmatpush.msra.mxu0 %v692
    %7057 = vmatpush.msra.mxu0 %v684
    %7058 = vmatpush.msra.mxu0 %v676
    %7059 = vmatpush.msra.mxu0 %v668
    %7060 = vmatpush.msra.mxu0 %v660
    %7061 = vmatpush.msra.mxu0 %v652
    %7062 = vmatpush.msra.mxu0 %v644
    %7063 = vmatpush.msra.mxu0 %v636
    %7064 = vmatpush.msra.mxu0 %v628
    %7065 = vmatmul.f32.gmra.mxu0 %v6315
    %v7066 = vpop.f32.mrf.mxu0
    %v7067 = vadd.f32 0.0, %v7066
    %7068 = vdwg.mxu0
    %7069 = vmatpush.msra.mxu0 %v876
    %7070 = vmatpush.msra.mxu0 %v868
    %7071 = vmatpush.msra.mxu0 %v860
    %7072 = vmatpush.msra.mxu0 %v852
    %7073 = vmatpush.msra.mxu0 %v844
    %7074 = vmatpush.msra.mxu0 %v836
    %7075 = vmatpush.msra.mxu0 %v828
    %7076 = vmatpush.msra.mxu0 %v820
    %7077 = vmatpush.msra.mxu0 %v812
    %7078 = vmatpush.msra.mxu0 %v804
    %7079 = vmatpush.msra.mxu0 %v796
    %7080 = vmatpush.msra.mxu0 %v788
    %7081 = vmatpush.msra.mxu0 %v780
    %7082 = vmatpush.msra.mxu0 %v772
    %7083 = vmatpush.msra.mxu0 %v764
    %7084 = vmatpush.msra.mxu0 %v756
    %7085 = vmatmul.f32.gmra.mxu0 %v6316
    %v7086 = vpop.f32.mrf.mxu0
    %v7087 = vadd.f32 %v7067, %v7086
    %7088 = vdwg.mxu0
    %7089 = vmatpush.msra.mxu0 %v749
    %7090 = vmatpush.msra.mxu0 %v741
    %7091 = vmatpush.msra.mxu0 %v733
    %7092 = vmatpush.msra.mxu0 %v725
    %7093 = vmatpush.msra.mxu0 %v717
    %7094 = vmatpush.msra.mxu0 %v709
    %7095 = vmatpush.msra.mxu0 %v701
    %7096 = vmatpush.msra.mxu0 %v693
    %7097 = vmatpush.msra.mxu0 %v685
    %7098 = vmatpush.msra.mxu0 %v677
    %7099 = vmatpush.msra.mxu0 %v669
    %7100 = vmatpush.msra.mxu0 %v661
    %7101 = vmatpush.msra.mxu0 %v653
    %7102 = vmatpush.msra.mxu0 %v645
    %7103 = vmatpush.msra.mxu0 %v637
    %7104 = vmatpush.msra.mxu0 %v629
    %7105 = vmatmul.f32.gmra.mxu0 %v6315
    %v7106 = vpop.f32.mrf.mxu0
    %v7107 = vadd.f32 0.0, %v7106
    %7108 = vdwg.mxu0
    %7109 = vmatpush.msra.mxu0 %v877
    %7110 = vmatpush.msra.mxu0 %v869
    %7111 = vmatpush.msra.mxu0 %v861
    %7112 = vmatpush.msra.mxu0 %v853
    %7113 = vmatpush.msra.mxu0 %v845
    %7114 = vmatpush.msra.mxu0 %v837
    %7115 = vmatpush.msra.mxu0 %v829
    %7116 = vmatpush.msra.mxu0 %v821
    %7117 = vmatpush.msra.mxu0 %v813
    %7118 = vmatpush.msra.mxu0 %v805
    %7119 = vmatpush.msra.mxu0 %v797
    %7120 = vmatpush.msra.mxu0 %v789
    %7121 = vmatpush.msra.mxu0 %v781
    %7122 = vmatpush.msra.mxu0 %v773
    %7123 = vmatpush.msra.mxu0 %v765
    %7124 = vmatpush.msra.mxu0 %v757
    %7125 = vmatmul.f32.gmra.mxu0 %v6316
    %v7126 = vpop.f32.mrf.mxu0
    %v7127 = vadd.f32 %v7107, %v7126
    %7128 = vdwg.mxu0
    %7129 = vmatpush.msra.mxu0 %v750
    %7130 = vmatpush.msra.mxu0 %v742
    %7131 = vmatpush.msra.mxu0 %v734
    %7132 = vmatpush.msra.mxu0 %v726
    %7133 = vmatpush.msra.mxu0 %v718
    %7134 = vmatpush.msra.mxu0 %v710
    %7135 = vmatpush.msra.mxu0 %v702
    %7136 = vmatpush.msra.mxu0 %v694
    %7137 = vmatpush.msra.mxu0 %v686
    %7138 = vmatpush.msra.mxu0 %v678
    %7139 = vmatpush.msra.mxu0 %v670
    %7140 = vmatpush.msra.mxu0 %v662
    %7141 = vmatpush.msra.mxu0 %v654
    %7142 = vmatpush.msra.mxu0 %v646
    %7143 = vmatpush.msra.mxu0 %v638
    %7144 = vmatpush.msra.mxu0 %v630
    %7145 = vmatmul.f32.gmra.mxu0 %v6315
    %v7146 = vpop.f32.mrf.mxu0
    %v7147 = vadd.f32 0.0, %v7146
    %7148 = vdwg.mxu0
    %7149 = vmatpush.msra.mxu0 %v878
    %7150 = vmatpush.msra.mxu0 %v870
    %7151 = vmatpush.msra.mxu0 %v862
    %7152 = vmatpush.msra.mxu0 %v854
    %7153 = vmatpush.msra.mxu0 %v846
    %7154 = vmatpush.msra.mxu0 %v838
    %7155 = vmatpush.msra.mxu0 %v830
    %7156 = vmatpush.msra.mxu0 %v822
    %7157 = vmatpush.msra.mxu0 %v814
    %7158 = vmatpush.msra.mxu0 %v806
    %7159 = vmatpush.msra.mxu0 %v798
    %7160 = vmatpush.msra.mxu0 %v790
    %7161 = vmatpush.msra.mxu0 %v782
    %7162 = vmatpush.msra.mxu0 %v774
    %7163 = vmatpush.msra.mxu0 %v766
    %7164 = vmatpush.msra.mxu0 %v758
    %7165 = vmatmul.f32.gmra.mxu0 %v6316
    %v7166 = vpop.f32.mrf.mxu0
    %v7167 = vadd.f32 %v7147, %v7166
    %7168 = vdwg.mxu0
    %7169 = vmatpush.msra.mxu0 %v751
    %7170 = vmatpush.msra.mxu0 %v743
    %7171 = vmatpush.msra.mxu0 %v735
    %7172 = vmatpush.msra.mxu0 %v727
    %7173 = vmatpush.msra.mxu0 %v719
    %7174 = vmatpush.msra.mxu0 %v711
    %7175 = vmatpush.msra.mxu0 %v703
    %7176 = vmatpush.msra.mxu0 %v695
    %7177 = vmatpush.msra.mxu0 %v687
    %7178 = vmatpush.msra.mxu0 %v679
    %7179 = vmatpush.msra.mxu0 %v671
    %7180 = vmatpush.msra.mxu0 %v663
    %7181 = vmatpush.msra.mxu0 %v655
    %7182 = vmatpush.msra.mxu0 %v647
    %7183 = vmatpush.msra.mxu0 %v639
    %7184 = vmatpush.msra.mxu0 %v631
    %7185 = vmatmul.f32.gmra.mxu0 %v6315
    %v7186 = vpop.f32.mrf.mxu0
    %v7187 = vadd.f32 0.0, %v7186
    %7188 = vdwg.mxu0
    %7189 = vmatpush.msra.mxu0 %v879
    %7190 = vmatpush.msra.mxu0 %v871
    %7191 = vmatpush.msra.mxu0 %v863
    %7192 = vmatpush.msra.mxu0 %v855
    %7193 = vmatpush.msra.mxu0 %v847
    %7194 = vmatpush.msra.mxu0 %v839
    %7195 = vmatpush.msra.mxu0 %v831
    %7196 = vmatpush.msra.mxu0 %v823
    %7197 = vmatpush.msra.mxu0 %v815
    %7198 = vmatpush.msra.mxu0 %v807
    %7199 = vmatpush.msra.mxu0 %v799
    %7200 = vmatpush.msra.mxu0 %v791
    %7201 = vmatpush.msra.mxu0 %v783
    %7202 = vmatpush.msra.mxu0 %v775
    %7203 = vmatpush.msra.mxu0 %v767
    %7204 = vmatpush.msra.mxu0 %v759
    %7205 = vmatmul.f32.gmra.mxu0 %v6316
    %v7206 = vpop.f32.mrf.mxu0
    %v7207 = vadd.f32 %v7187, %v7206
    %7208 = vdwg.mxu0
    %7209 = vmatpush.msra.mxu0 %v752
    %7210 = vmatpush.msra.mxu0 %v744
    %7211 = vmatpush.msra.mxu0 %v736
    %7212 = vmatpush.msra.mxu0 %v728
    %7213 = vmatpush.msra.mxu0 %v720
    %7214 = vmatpush.msra.mxu0 %v712
    %7215 = vmatpush.msra.mxu0 %v704
    %7216 = vmatpush.msra.mxu0 %v696
    %7217 = vmatpush.msra.mxu0 %v688
    %7218 = vmatpush.msra.mxu0 %v680
    %7219 = vmatpush.msra.mxu0 %v672
    %7220 = vmatpush.msra.mxu0 %v664
    %7221 = vmatpush.msra.mxu0 %v656
    %7222 = vmatpush.msra.mxu0 %v648
    %7223 = vmatpush.msra.mxu0 %v640
    %7224 = vmatpush.msra.mxu0 %v632
    %7225 = vmatmul.f32.gmra.mxu0 %v6315
    %v7226 = vpop.f32.mrf.mxu0
    %v7227 = vadd.f32 0.0, %v7226
    %7228 = vdwg.mxu0
    %7229 = vmatpush.msra.mxu0 %v880
    %7230 = vmatpush.msra.mxu0 %v872
    %7231 = vmatpush.msra.mxu0 %v864
    %7232 = vmatpush.msra.mxu0 %v856
    %7233 = vmatpush.msra.mxu0 %v848
    %7234 = vmatpush.msra.mxu0 %v840
    %7235 = vmatpush.msra.mxu0 %v832
    %7236 = vmatpush.msra.mxu0 %v824
    %7237 = vmatpush.msra.mxu0 %v816
    %7238 = vmatpush.msra.mxu0 %v808
    %7239 = vmatpush.msra.mxu0 %v800
    %7240 = vmatpush.msra.mxu0 %v792
    %7241 = vmatpush.msra.mxu0 %v784
    %7242 = vmatpush.msra.mxu0 %v776
    %7243 = vmatpush.msra.mxu0 %v768
    %7244 = vmatpush.msra.mxu0 %v760
    %7245 = vmatmul.f32.gmra.mxu0 %v6316
    %v7246 = vpop.f32.mrf.mxu0
    %v7247 = vadd.f32 %v7227, %v7246
    %7248 = vdwg.mxu0
    %7249 = vmatpush.msra.mxu0 %v753
    %7250 = vmatpush.msra.mxu0 %v745
    %7251 = vmatpush.msra.mxu0 %v737
    %7252 = vmatpush.msra.mxu0 %v729
    %7253 = vmatpush.msra.mxu0 %v721
    %7254 = vmatpush.msra.mxu0 %v713
    %7255 = vmatpush.msra.mxu0 %v705
    %7256 = vmatpush.msra.mxu0 %v697
    %7257 = vmatpush.msra.mxu0 %v689
    %7258 = vmatpush.msra.mxu0 %v681
    %7259 = vmatpush.msra.mxu0 %v673
    %7260 = vmatpush.msra.mxu0 %v665
    %7261 = vmatpush.msra.mxu0 %v657
    %7262 = vmatpush.msra.mxu0 %v649
    %7263 = vmatpush.msra.mxu0 %v641
    %7264 = vmatpush.msra.mxu0 %v633
    %7265 = vmatmul.f32.gmra.mxu0 %v6315
    %v7266 = vpop.f32.mrf.mxu0
    %v7267 = vadd.f32 0.0, %v7266
    %7268 = vdwg.mxu0
    %7269 = vmatpush.msra.mxu0 %v881
    %7270 = vmatpush.msra.mxu0 %v873
    %7271 = vmatpush.msra.mxu0 %v865
    %7272 = vmatpush.msra.mxu0 %v857
    %7273 = vmatpush.msra.mxu0 %v849
    %7274 = vmatpush.msra.mxu0 %v841
    %7275 = vmatpush.msra.mxu0 %v833
    %7276 = vmatpush.msra.mxu0 %v825
    %7277 = vmatpush.msra.mxu0 %v817
    %7278 = vmatpush.msra.mxu0 %v809
    %7279 = vmatpush.msra.mxu0 %v801
    %7280 = vmatpush.msra.mxu0 %v793
    %7281 = vmatpush.msra.mxu0 %v785
    %7282 = vmatpush.msra.mxu0 %v777
    %7283 = vmatpush.msra.mxu0 %v769
    %7284 = vmatpush.msra.mxu0 %v761
    %7285 = vmatmul.f32.gmra.mxu0 %v6316
    %v7286 = vpop.f32.mrf.mxu0
    %v7287 = vadd.f32 %v7267, %v7286
    %7288 = vdwg.mxu0
    %v7289 = vadd.f32 %v6961, %v7007
    %v7290 = vadd.f32 %v6962, %v7047
    %v7291 = vadd.f32 %v6963, %v7087
    %v7292 = vadd.f32 %v6964, %v7127
    %v7293 = vadd.f32 %v6965, %v7167
    %v7294 = vadd.f32 %v6966, %v7207
    %v7295 = vadd.f32 %v6967, %v7247
    %v7296 = vadd.f32 %v6968, %v7287
    %v7297 = vmul.f32 %v7289, 0.5
    %v7298 = vmul.f32 %v7290, 0.5
    %v7299 = vtanh.pop %v7297
    %v7300 = vtanh.pop %v7298
    %v7301 = vadd.f32 %v7299, 1.0
    %v7302 = vadd.f32 %v7300, 1.0
    %v7303 = vmul.f32 %v7301, 0.5
    %v7304 = vmul.f32 %v7302, 0.5
    %v7305 = vmul.f32 %v7291, 0.5
    %v7306 = vmul.f32 %v7292, 0.5
    %v7307 = vtanh.pop %v7305
    %v7308 = vtanh.pop %v7306
    %v7309 = vadd.f32 %v7307, 1.0
    %v7310 = vadd.f32 %v7308, 1.0
    %v7311 = vmul.f32 %v7309, 0.5
    %v7312 = vmul.f32 %v7310, 0.5
    %v7313 = vmul.f32 %v7293, 0.5
    %v7314 = vmul.f32 %v7294, 0.5
    %v7315 = vtanh.pop %v7313
    %v7316 = vtanh.pop %v7314
    %v7317 = vadd.f32 %v7315, 1.0
    %v7318 = vadd.f32 %v7316, 1.0
    %v7319 = vmul.f32 %v7317, 0.5
    %v7320 = vmul.f32 %v7318, 0.5
    %v7321 = vtanh.pop %v7295
    %v7322 = vtanh.pop %v7296
    %v7323 = vmul.f32 %v7311, %v6311
    %v7324 = vmul.f32 %v7312, %v6312
    %v7325 = vmul.f32 %v7303, %v7321
    %v7326 = vmul.f32 %v7304, %v7322
    %v7327 = vadd.f32 %v7323, %v7325
    %v7328 = vadd.f32 %v7324, %v7326
    %v7329 = vtanh.pop %v7327
    %v7330 = vtanh.pop %v7328
    %v7331 = vmul.f32 %v7319, %v7329
    %v7332 = vmul.f32 %v7320, %v7330
    %s7333 = scalar_lea.vmem %s7, 6144
    %v7334 = vld [vmem:[%s7333] sm:$0xff]
    %v7335 = vld [vmem:[%s7333 + $0x8] sm:$0xff]
    %v7336 = vld [vmem:[%s7333 + $0x10] sm:$0xff]
    %v7337 = vld [vmem:[%s7333 + $0x18] sm:$0xff]
    %v7338 = vld [vmem:[%s7333 + $0x20] sm:$0xff]
    %v7339 = vld [vmem:[%s7333 + $0x28] sm:$0xff]
    %v7340 = vld [vmem:[%s7333 + $0x30] sm:$0xff]
    %v7341 = vld [vmem:[%s7333 + $0x38] sm:$0xff]
    %v7342 = vld [vmem:[%s7333 + $0x40] sm:$0xff]
    %v7343 = vld [vmem:[%s7333 + $0x48] sm:$0xff]
    %v7344 = vld [vmem:[%s7333 + $0x50] sm:$0xff]
    %v7345 = vld [vmem:[%s7333 + $0x58] sm:$0xff]
    %v7346 = vld [vmem:[%s7333 + $0x60] sm:$0xff]
    %v7347 = vld [vmem:[%s7333 + $0x68] sm:$0xff]
    %v7348 = vld [vmem:[%s7333 + $0x70] sm:$0xff]
    %v7349 = vld [vmem:[%s7333 + $0x78] sm:$0xff]
    %v7350 = vld [vmem:[%s7333 + $0x80] sm:$0xff]
    %v7351 = vld [vmem:[%s7333 + $0x88] sm:$0xff]
    %v7352 = vld [vmem:[%s7333 + $0x90] sm:$0xff]
    %v7353 = vld [vmem:[%s7333 + $0x98] sm:$0xff]
    %v7354 = vld [vmem:[%s7333 + $0xa0] sm:$0xff]
    %v7355 = vld [vmem:[%s7333 + $0xa8] sm:$0xff]
    %v7356 = vld [vmem:[%s7333 + $0xb0] sm:$0xff]
    %v7357 = vld [vmem:[%s7333 + $0xb8] sm:$0xff]
    %v7358 = vld [vmem:[%s7333 + $0xc0] sm:$0xff]
    %v7359 = vld [vmem:[%s7333 + $0xc8] sm:$0xff]
    %v7360 = vld [vmem:[%s7333 + $0xd0] sm:$0xff]
    %v7361 = vld [vmem:[%s7333 + $0xd8] sm:$0xff]
    %v7362 = vld [vmem:[%s7333 + $0xe0] sm:$0xff]
    %v7363 = vld [vmem:[%s7333 + $0xe8] sm:$0xff]
    %v7364 = vld [vmem:[%s7333 + $0xf0] sm:$0xff]
    %v7365 = vld [vmem:[%s7333 + $0xf8] sm:$0xff]
    %v7366 = vld [vmem:[%s7333 + $0x100] sm:$0xff]
    %v7367 = vld [vmem:[%s7333 + $0x108] sm:$0xff]
    %v7368 = vld [vmem:[%s7333 + $0x110] sm:$0xff]
    %v7369 = vld [vmem:[%s7333 + $0x118] sm:$0xff]
    %v7370 = vld [vmem:[%s7333 + $0x120] sm:$0xff]
    %v7371 = vld [vmem:[%s7333 + $0x128] sm:$0xff]
    %v7372 = vld [vmem:[%s7333 + $0x130] sm:$0xff]
    %v7373 = vld [vmem:[%s7333 + $0x138] sm:$0xff]
    %v7374 = vld [vmem:[%s7333 + $0x140] sm:$0xff]
    %v7375 = vld [vmem:[%s7333 + $0x148] sm:$0xff]
    %v7376 = vld [vmem:[%s7333 + $0x150] sm:$0xff]
    %v7377 = vld [vmem:[%s7333 + $0x158] sm:$0xff]
    %v7378 = vld [vmem:[%s7333 + $0x160] sm:$0xff]
    %v7379 = vld [vmem:[%s7333 + $0x168] sm:$0xff]
    %v7380 = vld [vmem:[%s7333 + $0x170] sm:$0xff]
    %v7381 = vld [vmem:[%s7333 + $0x178] sm:$0xff]
    %v7382 = vld [vmem:[%s7333 + $0x180] sm:$0xff]
    %v7383 = vld [vmem:[%s7333 + $0x188] sm:$0xff]
    %v7384 = vld [vmem:[%s7333 + $0x190] sm:$0xff]
    %v7385 = vld [vmem:[%s7333 + $0x198] sm:$0xff]
    %v7386 = vld [vmem:[%s7333 + $0x1a0] sm:$0xff]
    %v7387 = vld [vmem:[%s7333 + $0x1a8] sm:$0xff]
    %v7388 = vld [vmem:[%s7333 + $0x1b0] sm:$0xff]
    %v7389 = vld [vmem:[%s7333 + $0x1b8] sm:$0xff]
    %v7390 = vld [vmem:[%s7333 + $0x1c0] sm:$0xff]
    %v7391 = vld [vmem:[%s7333 + $0x1c8] sm:$0xff]
    %v7392 = vld [vmem:[%s7333 + $0x1d0] sm:$0xff]
    %v7393 = vld [vmem:[%s7333 + $0x1d8] sm:$0xff]
    %v7394 = vld [vmem:[%s7333 + $0x1e0] sm:$0xff]
    %v7395 = vld [vmem:[%s7333 + $0x1e8] sm:$0xff]
    %v7396 = vld [vmem:[%s7333 + $0x1f0] sm:$0xff]
    %v7397 = vld [vmem:[%s7333 + $0x1f8] sm:$0xff]
    %v7398 = vld [vmem:[%s7333 + $0x200] sm:$0xff]
    %v7399 = vld [vmem:[%s7333 + $0x208] sm:$0xff]
    %v7400 = vld [vmem:[%s7333 + $0x210] sm:$0xff]
    %v7401 = vld [vmem:[%s7333 + $0x218] sm:$0xff]
    %v7402 = vld [vmem:[%s7333 + $0x220] sm:$0xff]
    %v7403 = vld [vmem:[%s7333 + $0x228] sm:$0xff]
    %v7404 = vld [vmem:[%s7333 + $0x230] sm:$0xff]
    %v7405 = vld [vmem:[%s7333 + $0x238] sm:$0xff]
    %v7406 = vld [vmem:[%s7333 + $0x240] sm:$0xff]
    %v7407 = vld [vmem:[%s7333 + $0x248] sm:$0xff]
    %v7408 = vld [vmem:[%s7333 + $0x250] sm:$0xff]
    %v7409 = vld [vmem:[%s7333 + $0x258] sm:$0xff]
    %v7410 = vld [vmem:[%s7333 + $0x260] sm:$0xff]
    %v7411 = vld [vmem:[%s7333 + $0x268] sm:$0xff]
    %v7412 = vld [vmem:[%s7333 + $0x270] sm:$0xff]
    %v7413 = vld [vmem:[%s7333 + $0x278] sm:$0xff]
    %v7414 = vld [vmem:[%s7333 + $0x280] sm:$0xff]
    %v7415 = vld [vmem:[%s7333 + $0x288] sm:$0xff]
    %v7416 = vld [vmem:[%s7333 + $0x290] sm:$0xff]
    %v7417 = vld [vmem:[%s7333 + $0x298] sm:$0xff]
    %v7418 = vld [vmem:[%s7333 + $0x2a0] sm:$0xff]
    %v7419 = vld [vmem:[%s7333 + $0x2a8] sm:$0xff]
    %v7420 = vld [vmem:[%s7333 + $0x2b0] sm:$0xff]
    %v7421 = vld [vmem:[%s7333 + $0x2b8] sm:$0xff]
    %v7422 = vld [vmem:[%s7333 + $0x2c0] sm:$0xff]
    %v7423 = vld [vmem:[%s7333 + $0x2c8] sm:$0xff]
    %v7424 = vld [vmem:[%s7333 + $0x2d0] sm:$0xff]
    %v7425 = vld [vmem:[%s7333 + $0x2d8] sm:$0xff]
    %v7426 = vld [vmem:[%s7333 + $0x2e0] sm:$0xff]
    %v7427 = vld [vmem:[%s7333 + $0x2e8] sm:$0xff]
    %v7428 = vld [vmem:[%s7333 + $0x2f0] sm:$0xff]
    %v7429 = vld [vmem:[%s7333 + $0x2f8] sm:$0xff]
    %v7430 = vld [vmem:[%s7333 + $0x300] sm:$0xff]
    %v7431 = vld [vmem:[%s7333 + $0x308] sm:$0xff]
    %v7432 = vld [vmem:[%s7333 + $0x310] sm:$0xff]
    %v7433 = vld [vmem:[%s7333 + $0x318] sm:$0xff]
    %v7434 = vld [vmem:[%s7333 + $0x320] sm:$0xff]
    %v7435 = vld [vmem:[%s7333 + $0x328] sm:$0xff]
    %v7436 = vld [vmem:[%s7333 + $0x330] sm:$0xff]
    %v7437 = vld [vmem:[%s7333 + $0x338] sm:$0xff]
    %v7438 = vld [vmem:[%s7333 + $0x340] sm:$0xff]
    %v7439 = vld [vmem:[%s7333 + $0x348] sm:$0xff]
    %v7440 = vld [vmem:[%s7333 + $0x350] sm:$0xff]
    %v7441 = vld [vmem:[%s7333 + $0x358] sm:$0xff]
    %v7442 = vld [vmem:[%s7333 + $0x360] sm:$0xff]
    %v7443 = vld [vmem:[%s7333 + $0x368] sm:$0xff]
    %v7444 = vld [vmem:[%s7333 + $0x370] sm:$0xff]
    %v7445 = vld [vmem:[%s7333 + $0x378] sm:$0xff]
    %v7446 = vld [vmem:[%s7333 + $0x380] sm:$0xff]
    %v7447 = vld [vmem:[%s7333 + $0x388] sm:$0xff]
    %v7448 = vld [vmem:[%s7333 + $0x390] sm:$0xff]
    %v7449 = vld [vmem:[%s7333 + $0x398] sm:$0xff]
    %v7450 = vld [vmem:[%s7333 + $0x3a0] sm:$0xff]
    %v7451 = vld [vmem:[%s7333 + $0x3a8] sm:$0xff]
    %v7452 = vld [vmem:[%s7333 + $0x3b0] sm:$0xff]
    %v7453 = vld [vmem:[%s7333 + $0x3b8] sm:$0xff]
    %v7454 = vld [vmem:[%s7333 + $0x3c0] sm:$0xff]
    %v7455 = vld [vmem:[%s7333 + $0x3c8] sm:$0xff]
    %v7456 = vld [vmem:[%s7333 + $0x3d0] sm:$0xff]
    %v7457 = vld [vmem:[%s7333 + $0x3d8] sm:$0xff]
    %v7458 = vld [vmem:[%s7333 + $0x3e0] sm:$0xff]
    %v7459 = vld [vmem:[%s7333 + $0x3e8] sm:$0xff]
    %v7460 = vld [vmem:[%s7333 + $0x3f0] sm:$0xff]
    %v7461 = vld [vmem:[%s7333 + $0x3f8] sm:$0xff]
    %7462 = vmatpush.msra.mxu0 %v7394
    %7463 = vmatpush.msra.mxu0 %v7390
    %7464 = vmatpush.msra.mxu0 %v7386
    %7465 = vmatpush.msra.mxu0 %v7382
    %7466 = vmatpush.msra.mxu0 %v7378
    %7467 = vmatpush.msra.mxu0 %v7374
    %7468 = vmatpush.msra.mxu0 %v7370
    %7469 = vmatpush.msra.mxu0 %v7366
    %7470 = vmatpush.msra.mxu0 %v7362
    %7471 = vmatpush.msra.mxu0 %v7358
    %7472 = vmatpush.msra.mxu0 %v7354
    %7473 = vmatpush.msra.mxu0 %v7350
    %7474 = vmatpush.msra.mxu0 %v7346
    %7475 = vmatpush.msra.mxu0 %v7342
    %7476 = vmatpush.msra.mxu0 %v7338
    %7477 = vmatpush.msra.mxu0 %v7334
    %7478 = vmatmul.f32.gmra.mxu0 %v7331
    %v7479 = vpop.f32.mrf.mxu0
    %v7480 = vadd.f32 0.0, %v7479
    %7481 = vdwg.mxu0
    %7482 = vmatpush.msra.mxu0 %v7458
    %7483 = vmatpush.msra.mxu0 %v7454
    %7484 = vmatpush.msra.mxu0 %v7450
    %7485 = vmatpush.msra.mxu0 %v7446
    %7486 = vmatpush.msra.mxu0 %v7442
    %7487 = vmatpush.msra.mxu0 %v7438
    %7488 = vmatpush.msra.mxu0 %v7434
    %7489 = vmatpush.msra.mxu0 %v7430
    %7490 = vmatpush.msra.mxu0 %v7426
    %7491 = vmatpush.msra.mxu0 %v7422
    %7492 = vmatpush.msra.mxu0 %v7418
    %7493 = vmatpush.msra.mxu0 %v7414
    %7494 = vmatpush.msra.mxu0 %v7410
    %7495 = vmatpush.msra.mxu0 %v7406
    %7496 = vmatpush.msra.mxu0 %v7402
    %7497 = vmatpush.msra.mxu0 %v7398
    %7498 = vmatmul.f32.gmra.mxu0 %v7332
    %v7499 = vpop.f32.mrf.mxu0
    %v7500 = vadd.f32 %v7480, %v7499
    %7501 = vdwg.mxu0
    %7502 = vmatpush.msra.mxu0 %v7395
    %7503 = vmatpush.msra.mxu0 %v7391
    %7504 = vmatpush.msra.mxu0 %v7387
    %7505 = vmatpush.msra.mxu0 %v7383
    %7506 = vmatpush.msra.mxu0 %v7379
    %7507 = vmatpush.msra.mxu0 %v7375
    %7508 = vmatpush.msra.mxu0 %v7371
    %7509 = vmatpush.msra.mxu0 %v7367
    %7510 = vmatpush.msra.mxu0 %v7363
    %7511 = vmatpush.msra.mxu0 %v7359
    %7512 = vmatpush.msra.mxu0 %v7355
    %7513 = vmatpush.msra.mxu0 %v7351
    %7514 = vmatpush.msra.mxu0 %v7347
    %7515 = vmatpush.msra.mxu0 %v7343
    %7516 = vmatpush.msra.mxu0 %v7339
    %7517 = vmatpush.msra.mxu0 %v7335
    %7518 = vmatmul.f32.gmra.mxu0 %v7331
    %v7519 = vpop.f32.mrf.mxu0
    %v7520 = vadd.f32 0.0, %v7519
    %7521 = vdwg.mxu0
    %7522 = vmatpush.msra.mxu0 %v7459
    %7523 = vmatpush.msra.mxu0 %v7455
    %7524 = vmatpush.msra.mxu0 %v7451
    %7525 = vmatpush.msra.mxu0 %v7447
    %7526 = vmatpush.msra.mxu0 %v7443
    %7527 = vmatpush.msra.mxu0 %v7439
    %7528 = vmatpush.msra.mxu0 %v7435
    %7529 = vmatpush.msra.mxu0 %v7431
    %7530 = vmatpush.msra.mxu0 %v7427
    %7531 = vmatpush.msra.mxu0 %v7423
    %7532 = vmatpush.msra.mxu0 %v7419
    %7533 = vmatpush.msra.mxu0 %v7415
    %7534 = vmatpush.msra.mxu0 %v7411
    %7535 = vmatpush.msra.mxu0 %v7407
    %7536 = vmatpush.msra.mxu0 %v7403
    %7537 = vmatpush.msra.mxu0 %v7399
    %7538 = vmatmul.f32.gmra.mxu0 %v7332
    %v7539 = vpop.f32.mrf.mxu0
    %v7540 = vadd.f32 %v7520, %v7539
    %7541 = vdwg.mxu0
    %7542 = vmatpush.msra.mxu0 %v7396
    %7543 = vmatpush.msra.mxu0 %v7392
    %7544 = vmatpush.msra.mxu0 %v7388
    %7545 = vmatpush.msra.mxu0 %v7384
    %7546 = vmatpush.msra.mxu0 %v7380
    %7547 = vmatpush.msra.mxu0 %v7376
    %7548 = vmatpush.msra.mxu0 %v7372
    %7549 = vmatpush.msra.mxu0 %v7368
    %7550 = vmatpush.msra.mxu0 %v7364
    %7551 = vmatpush.msra.mxu0 %v7360
    %7552 = vmatpush.msra.mxu0 %v7356
    %7553 = vmatpush.msra.mxu0 %v7352
    %7554 = vmatpush.msra.mxu0 %v7348
    %7555 = vmatpush.msra.mxu0 %v7344
    %7556 = vmatpush.msra.mxu0 %v7340
    %7557 = vmatpush.msra.mxu0 %v7336
    %7558 = vmatmul.f32.gmra.mxu0 %v7331
    %v7559 = vpop.f32.mrf.mxu0
    %v7560 = vadd.f32 0.0, %v7559
    %7561 = vdwg.mxu0
    %7562 = vmatpush.msra.mxu0 %v7460
    %7563 = vmatpush.msra.mxu0 %v7456
    %7564 = vmatpush.msra.mxu0 %v7452
    %7565 = vmatpush.msra.mxu0 %v7448
    %7566 = vmatpush.msra.mxu0 %v7444
    %7567 = vmatpush.msra.mxu0 %v7440
    %7568 = vmatpush.msra.mxu0 %v7436
    %7569 = vmatpush.msra.mxu0 %v7432
    %7570 = vmatpush.msra.mxu0 %v7428
    %7571 = vmatpush.msra.mxu0 %v7424
    %7572 = vmatpush.msra.mxu0 %v7420
    %7573 = vmatpush.msra.mxu0 %v7416
    %7574 = vmatpush.msra.mxu0 %v7412
    %7575 = vmatpush.msra.mxu0 %v7408
    %7576 = vmatpush.msra.mxu0 %v7404
    %7577 = vmatpush.msra.mxu0 %v7400
    %7578 = vmatmul.f32.gmra.mxu0 %v7332
    %v7579 = vpop.f32.mrf.mxu0
    %v7580 = vadd.f32 %v7560, %v7579
    %7581 = vdwg.mxu0
    %7582 = vmatpush.msra.mxu0 %v7397
    %7583 = vmatpush.msra.mxu0 %v7393
    %7584 = vmatpush.msra.mxu0 %v7389
    %7585 = vmatpush.msra.mxu0 %v7385
    %7586 = vmatpush.msra.mxu0 %v7381
    %7587 = vmatpush.msra.mxu0 %v7377
    %7588 = vmatpush.msra.mxu0 %v7373
    %7589 = vmatpush.msra.mxu0 %v7369
    %7590 = vmatpush.msra.mxu0 %v7365
    %7591 = vmatpush.msra.mxu0 %v7361
    %7592 = vmatpush.msra.mxu0 %v7357
    %7593 = vmatpush.msra.mxu0 %v7353
    %7594 = vmatpush.msra.mxu0 %v7349
    %7595 = vmatpush.msra.mxu0 %v7345
    %7596 = vmatpush.msra.mxu0 %v7341
    %7597 = vmatpush.msra.mxu0 %v7337
    %7598 = vmatmul.f32.gmra.mxu0 %v7331
    %v7599 = vpop.f32.mrf.mxu0
    %v7600 = vadd.f32 0.0, %v7599
    %7601 = vdwg.mxu0
    %7602 = vmatpush.msra.mxu0 %v7461
    %7603 = vmatpush.msra.mxu0 %v7457
    %7604 = vmatpush.msra.mxu0 %v7453
    %7605 = vmatpush.msra.mxu0 %v7449
    %7606 = vmatpush.msra.mxu0 %v7445
    %7607 = vmatpush.msra.mxu0 %v7441
    %7608 = vmatpush.msra.mxu0 %v7437
    %7609 = vmatpush.msra.mxu0 %v7433
    %7610 = vmatpush.msra.mxu0 %v7429
    %7611 = vmatpush.msra.mxu0 %v7425
    %7612 = vmatpush.msra.mxu0 %v7421
    %7613 = vmatpush.msra.mxu0 %v7417
    %7614 = vmatpush.msra.mxu0 %v7413
    %7615 = vmatpush.msra.mxu0 %v7409
    %7616 = vmatpush.msra.mxu0 %v7405
    %7617 = vmatpush.msra.mxu0 %v7401
    %7618 = vmatmul.f32.gmra.mxu0 %v7332
    %v7619 = vpop.f32.mrf.mxu0
    %v7620 = vadd.f32 %v7600, %v7619
    %7621 = vdwg.mxu0
    %v7622 = vadd.f32 %v6606, %v7500
    %v7623 = vadd.f32 %v6607, %v7540
    %v7624 = vadd.f32 %v6608, %v7580
    %v7625 = vadd.f32 %v6609, %v7620
    %s7626 = scalar_lea.vmem %s0, 14
    %v7627 = vld [vmem:[%s7626] sm:$0x3]
    %v7629 = vsel %vm50, %v7627, 0
    %7631 = vmatpush.msra.mxu0 0.0
    %7632 = vmatpush.msra.mxu0 0.0
    %7633 = vmatpush.msra.mxu0 0.0
    %7634 = vmatpush.msra.mxu0 0.0
    %7635 = vmatpush.msra.mxu0 0.0
    %7636 = vmatpush.msra.mxu0 0.0
    %7637 = vmatpush.msra.mxu0 0.0
    %7638 = vmatpush.msra.mxu0 0.0
    %7639 = vmatpush.msra.mxu0 0.0
    %7640 = vmatpush.msra.mxu0 0.0
    %7641 = vmatpush.msra.mxu0 0.0
    %7642 = vmatpush.msra.mxu0 0.0
    %7643 = vmatpush.msra.mxu0 0.0
    %7644 = vmatpush.msra.mxu0 0.0
    %7645 = vmatpush.msra.mxu0 %v46
    %7646 = vmatpush.msra.mxu0 %v42
    %7647 = vmatmul.f32.gmra.mxu0 %v7629
    %v7648 = vpop.f32.mrf.mxu0
    %v7649 = vadd.f32 0.0, %v7648
    %7650 = vdwg.mxu0
    %7651 = vmatpush.msra.mxu0 0.0
    %7652 = vmatpush.msra.mxu0 0.0
    %7653 = vmatpush.msra.mxu0 0.0
    %7654 = vmatpush.msra.mxu0 0.0
    %7655 = vmatpush.msra.mxu0 0.0
    %7656 = vmatpush.msra.mxu0 0.0
    %7657 = vmatpush.msra.mxu0 0.0
    %7658 = vmatpush.msra.mxu0 0.0
    %7659 = vmatpush.msra.mxu0 0.0
    %7660 = vmatpush.msra.mxu0 0.0
    %7661 = vmatpush.msra.mxu0 0.0
    %7662 = vmatpush.msra.mxu0 0.0
    %7663 = vmatpush.msra.mxu0 0.0
    %7664 = vmatpush.msra.mxu0 0.0
    %7665 = vmatpush.msra.mxu0 %v47
    %7666 = vmatpush.msra.mxu0 %v43
    %7667 = vmatmul.f32.gmra.mxu0 %v7629
    %v7668 = vpop.f32.mrf.mxu0
    %v7669 = vadd.f32 0.0, %v7668
    %7670 = vdwg.mxu0
    %7671 = vmatpush.msra.mxu0 0.0
    %7672 = vmatpush.msra.mxu0 0.0
    %7673 = vmatpush.msra.mxu0 0.0
    %7674 = vmatpush.msra.mxu0 0.0
    %7675 = vmatpush.msra.mxu0 0.0
    %7676 = vmatpush.msra.mxu0 0.0
    %7677 = vmatpush.msra.mxu0 0.0
    %7678 = vmatpush.msra.mxu0 0.0
    %7679 = vmatpush.msra.mxu0 0.0
    %7680 = vmatpush.msra.mxu0 0.0
    %7681 = vmatpush.msra.mxu0 0.0
    %7682 = vmatpush.msra.mxu0 0.0
    %7683 = vmatpush.msra.mxu0 0.0
    %7684 = vmatpush.msra.mxu0 0.0
    %7685 = vmatpush.msra.mxu0 %v48
    %7686 = vmatpush.msra.mxu0 %v44
    %7687 = vmatmul.f32.gmra.mxu0 %v7629
    %v7688 = vpop.f32.mrf.mxu0
    %v7689 = vadd.f32 0.0, %v7688
    %7690 = vdwg.mxu0
    %7691 = vmatpush.msra.mxu0 0.0
    %7692 = vmatpush.msra.mxu0 0.0
    %7693 = vmatpush.msra.mxu0 0.0
    %7694 = vmatpush.msra.mxu0 0.0
    %7695 = vmatpush.msra.mxu0 0.0
    %7696 = vmatpush.msra.mxu0 0.0
    %7697 = vmatpush.msra.mxu0 0.0
    %7698 = vmatpush.msra.mxu0 0.0
    %7699 = vmatpush.msra.mxu0 0.0
    %7700 = vmatpush.msra.mxu0 0.0
    %7701 = vmatpush.msra.mxu0 0.0
    %7702 = vmatpush.msra.mxu0 0.0
    %7703 = vmatpush.msra.mxu0 0.0
    %7704 = vmatpush.msra.mxu0 0.0
    %7705 = vmatpush.msra.mxu0 %v49
    %7706 = vmatpush.msra.mxu0 %v45
    %7707 = vmatmul.f32.gmra.mxu0 %v7629
    %v7708 = vpop.f32.mrf.mxu0
    %v7709 = vadd.f32 0.0, %v7708
    %7710 = vdwg.mxu0
    %v7711 = vadd.f32 %v135, %v7649
    %v7712 = vadd.f32 %v136, %v7669
    %v7713 = vadd.f32 %v137, %v7689
    %v7714 = vadd.f32 %v138, %v7709
    %7715 = vmatpush.msra.mxu0 %v207
    %7716 = vmatpush.msra.mxu0 %v203
    %7717 = vmatpush.msra.mxu0 %v199
    %7718 = vmatpush.msra.mxu0 %v195
    %7719 = vmatpush.msra.mxu0 %v191
    %7720 = vmatpush.msra.mxu0 %v187
    %7721 = vmatpush.msra.mxu0 %v183
    %7722 = vmatpush.msra.mxu0 %v179
    %7723 = vmatpush.msra.mxu0 %v175
    %7724 = vmatpush.msra.mxu0 %v171
    %7725 = vmatpush.msra.mxu0 %v167
    %7726 = vmatpush.msra.mxu0 %v163
    %7727 = vmatpush.msra.mxu0 %v159
    %7728 = vmatpush.msra.mxu0 %v155
    %7729 = vmatpush.msra.mxu0 %v151
    %7730 = vmatpush.msra.mxu0 %v147
    %7731 = vmatmul.f32.gmra.mxu0 %v6800
    %v7732 = vpop.f32.mrf.mxu0
    %v7733 = vadd.f32 0.0, %v7732
    %7734 = vdwg.mxu0
    %7735 = vmatpush.msra.mxu0 %v208
    %7736 = vmatpush.msra.mxu0 %v204
    %7737 = vmatpush.msra.mxu0 %v200
    %7738 = vmatpush.msra.mxu0 %v196
    %7739 = vmatpush.msra.mxu0 %v192
    %7740 = vmatpush.msra.mxu0 %v188
    %7741 = vmatpush.msra.mxu0 %v184
    %7742 = vmatpush.msra.mxu0 %v180
    %7743 = vmatpush.msra.mxu0 %v176
    %7744 = vmatpush.msra.mxu0 %v172
    %7745 = vmatpush.msra.mxu0 %v168
    %7746 = vmatpush.msra.mxu0 %v164
    %7747 = vmatpush.msra.mxu0 %v160
    %7748 = vmatpush.msra.mxu0 %v156
    %7749 = vmatpush.msra.mxu0 %v152
    %7750 = vmatpush.msra.mxu0 %v148
    %7751 = vmatmul.f32.gmra.mxu0 %v6800
    %v7752 = vpop.f32.mrf.mxu0
    %v7753 = vadd.f32 0.0, %v7752
    %7754 = vdwg.mxu0
    %7755 = vmatpush.msra.mxu0 %v209
    %7756 = vmatpush.msra.mxu0 %v205
    %7757 = vmatpush.msra.mxu0 %v201
    %7758 = vmatpush.msra.mxu0 %v197
    %7759 = vmatpush.msra.mxu0 %v193
    %7760 = vmatpush.msra.mxu0 %v189
    %7761 = vmatpush.msra.mxu0 %v185
    %7762 = vmatpush.msra.mxu0 %v181
    %7763 = vmatpush.msra.mxu0 %v177
    %7764 = vmatpush.msra.mxu0 %v173
    %7765 = vmatpush.msra.mxu0 %v169
    %7766 = vmatpush.msra.mxu0 %v165
    %7767 = vmatpush.msra.mxu0 %v161
    %7768 = vmatpush.msra.mxu0 %v157
    %7769 = vmatpush.msra.mxu0 %v153
    %7770 = vmatpush.msra.mxu0 %v149
    %7771 = vmatmul.f32.gmra.mxu0 %v6800
    %v7772 = vpop.f32.mrf.mxu0
    %v7773 = vadd.f32 0.0, %v7772
    %7774 = vdwg.mxu0
    %7775 = vmatpush.msra.mxu0 %v210
    %7776 = vmatpush.msra.mxu0 %v206
    %7777 = vmatpush.msra.mxu0 %v202
    %7778 = vmatpush.msra.mxu0 %v198
    %7779 = vmatpush.msra.mxu0 %v194
    %7780 = vmatpush.msra.mxu0 %v190
    %7781 = vmatpush.msra.mxu0 %v186
    %7782 = vmatpush.msra.mxu0 %v182
    %7783 = vmatpush.msra.mxu0 %v178
    %7784 = vmatpush.msra.mxu0 %v174
    %7785 = vmatpush.msra.mxu0 %v170
    %7786 = vmatpush.msra.mxu0 %v166
    %7787 = vmatpush.msra.mxu0 %v162
    %7788 = vmatpush.msra.mxu0 %v158
    %7789 = vmatpush.msra.mxu0 %v154
    %7790 = vmatpush.msra.mxu0 %v150
    %7791 = vmatmul.f32.gmra.mxu0 %v6800
    %v7792 = vpop.f32.mrf.mxu0
    %v7793 = vadd.f32 0.0, %v7792
    %7794 = vdwg.mxu0
    %v7795 = vadd.f32 %v7711, %v7733
    %v7796 = vadd.f32 %v7712, %v7753
    %v7797 = vadd.f32 %v7713, %v7773
    %v7798 = vadd.f32 %v7714, %v7793
    %v7799 = vmul.f32 %v7795, 0.5
    %v7800 = vtanh.pop %v7799
    %v7801 = vadd.f32 %v7800, 1.0
    %v7802 = vmul.f32 %v7801, 0.5
    %v7803 = vmul.f32 %v7796, 0.5
    %v7804 = vtanh.pop %v7803
    %v7805 = vadd.f32 %v7804, 1.0
    %v7806 = vmul.f32 %v7805, 0.5
    %v7807 = vmul.f32 %v7797, 0.5
    %v7808 = vtanh.pop %v7807
    %v7809 = vadd.f32 %v7808, 1.0
    %v7810 = vmul.f32 %v7809, 0.5
    %v7811 = vtanh.pop %v7798
    %v7812 = vmul.f32 %v7806, %v6798
    %v7813 = vmul.f32 %v7802, %v7811
    %v7814 = vadd.f32 %v7812, %v7813
    %v7815 = vtanh.pop %v7814
    %v7816 = vmul.f32 %v7810, %v7815
    %7817 = vmatpush.msra.mxu0 %v433
    %7818 = vmatpush.msra.mxu0 %v425
    %7819 = vmatpush.msra.mxu0 %v417
    %7820 = vmatpush.msra.mxu0 %v409
    %7821 = vmatpush.msra.mxu0 %v401
    %7822 = vmatpush.msra.mxu0 %v393
    %7823 = vmatpush.msra.mxu0 %v385
    %7824 = vmatpush.msra.mxu0 %v377
    %7825 = vmatpush.msra.mxu0 %v369
    %7826 = vmatpush.msra.mxu0 %v361
    %7827 = vmatpush.msra.mxu0 %v353
    %7828 = vmatpush.msra.mxu0 %v345
    %7829 = vmatpush.msra.mxu0 %v337
    %7830 = vmatpush.msra.mxu0 %v329
    %7831 = vmatpush.msra.mxu0 %v321
    %7832 = vmatpush.msra.mxu0 %v313
    %7833 = vmatmul.f32.gmra.mxu0 %v7816
    %v7834 = vpop.f32.mrf.mxu0
    %v7835 = vadd.f32 0.0, %v7834
    %7836 = vdwg.mxu0
    %7837 = vmatpush.msra.mxu0 %v434
    %7838 = vmatpush.msra.mxu0 %v426
    %7839 = vmatpush.msra.mxu0 %v418
    %7840 = vmatpush.msra.mxu0 %v410
    %7841 = vmatpush.msra.mxu0 %v402
    %7842 = vmatpush.msra.mxu0 %v394
    %7843 = vmatpush.msra.mxu0 %v386
    %7844 = vmatpush.msra.mxu0 %v378
    %7845 = vmatpush.msra.mxu0 %v370
    %7846 = vmatpush.msra.mxu0 %v362
    %7847 = vmatpush.msra.mxu0 %v354
    %7848 = vmatpush.msra.mxu0 %v346
    %7849 = vmatpush.msra.mxu0 %v338
    %7850 = vmatpush.msra.mxu0 %v330
    %7851 = vmatpush.msra.mxu0 %v322
    %7852 = vmatpush.msra.mxu0 %v314
    %7853 = vmatmul.f32.gmra.mxu0 %v7816
    %v7854 = vpop.f32.mrf.mxu0
    %v7855 = vadd.f32 0.0, %v7854
    %7856 = vdwg.mxu0
    %7857 = vmatpush.msra.mxu0 %v435
    %7858 = vmatpush.msra.mxu0 %v427
    %7859 = vmatpush.msra.mxu0 %v419
    %7860 = vmatpush.msra.mxu0 %v411
    %7861 = vmatpush.msra.mxu0 %v403
    %7862 = vmatpush.msra.mxu0 %v395
    %7863 = vmatpush.msra.mxu0 %v387
    %7864 = vmatpush.msra.mxu0 %v379
    %7865 = vmatpush.msra.mxu0 %v371
    %7866 = vmatpush.msra.mxu0 %v363
    %7867 = vmatpush.msra.mxu0 %v355
    %7868 = vmatpush.msra.mxu0 %v347
    %7869 = vmatpush.msra.mxu0 %v339
    %7870 = vmatpush.msra.mxu0 %v331
    %7871 = vmatpush.msra.mxu0 %v323
    %7872 = vmatpush.msra.mxu0 %v315
    %7873 = vmatmul.f32.gmra.mxu0 %v7816
    %v7874 = vpop.f32.mrf.mxu0
    %v7875 = vadd.f32 0.0, %v7874
    %7876 = vdwg.mxu0
    %7877 = vmatpush.msra.mxu0 %v436
    %7878 = vmatpush.msra.mxu0 %v428
    %7879 = vmatpush.msra.mxu0 %v420
    %7880 = vmatpush.msra.mxu0 %v412
    %7881 = vmatpush.msra.mxu0 %v404
    %7882 = vmatpush.msra.mxu0 %v396
    %7883 = vmatpush.msra.mxu0 %v388
    %7884 = vmatpush.msra.mxu0 %v380
    %7885 = vmatpush.msra.mxu0 %v372
    %7886 = vmatpush.msra.mxu0 %v364
    %7887 = vmatpush.msra.mxu0 %v356
    %7888 = vmatpush.msra.mxu0 %v348
    %7889 = vmatpush.msra.mxu0 %v340
    %7890 = vmatpush.msra.mxu0 %v332
    %7891 = vmatpush.msra.mxu0 %v324
    %7892 = vmatpush.msra.mxu0 %v316
    %7893 = vmatmul.f32.gmra.mxu0 %v7816
    %v7894 = vpop.f32.mrf.mxu0
    %v7895 = vadd.f32 0.0, %v7894
    %7896 = vdwg.mxu0
    %7897 = vmatpush.msra.mxu0 %v437
    %7898 = vmatpush.msra.mxu0 %v429
    %7899 = vmatpush.msra.mxu0 %v421
    %7900 = vmatpush.msra.mxu0 %v413
    %7901 = vmatpush.msra.mxu0 %v405
    %7902 = vmatpush.msra.mxu0 %v397
    %7903 = vmatpush.msra.mxu0 %v389
    %7904 = vmatpush.msra.mxu0 %v381
    %7905 = vmatpush.msra.mxu0 %v373
    %7906 = vmatpush.msra.mxu0 %v365
    %7907 = vmatpush.msra.mxu0 %v357
    %7908 = vmatpush.msra.mxu0 %v349
    %7909 = vmatpush.msra.mxu0 %v341
    %7910 = vmatpush.msra.mxu0 %v333
    %7911 = vmatpush.msra.mxu0 %v325
    %7912 = vmatpush.msra.mxu0 %v317
    %7913 = vmatmul.f32.gmra.mxu0 %v7816
    %v7914 = vpop.f32.mrf.mxu0
    %v7915 = vadd.f32 0.0, %v7914
    %7916 = vdwg.mxu0
    %7917 = vmatpush.msra.mxu0 %v438
    %7918 = vmatpush.msra.mxu0 %v430
    %7919 = vmatpush.msra.mxu0 %v422
    %7920 = vmatpush.msra.mxu0 %v414
    %7921 = vmatpush.msra.mxu0 %v406
    %7922 = vmatpush.msra.mxu0 %v398
    %7923 = vmatpush.msra.mxu0 %v390
    %7924 = vmatpush.msra.mxu0 %v382
    %7925 = vmatpush.msra.mxu0 %v374
    %7926 = vmatpush.msra.mxu0 %v366
    %7927 = vmatpush.msra.mxu0 %v358
    %7928 = vmatpush.msra.mxu0 %v350
    %7929 = vmatpush.msra.mxu0 %v342
    %7930 = vmatpush.msra.mxu0 %v334
    %7931 = vmatpush.msra.mxu0 %v326
    %7932 = vmatpush.msra.mxu0 %v318
    %7933 = vmatmul.f32.gmra.mxu0 %v7816
    %v7934 = vpop.f32.mrf.mxu0
    %v7935 = vadd.f32 0.0, %v7934
    %7936 = vdwg.mxu0
    %7937 = vmatpush.msra.mxu0 %v439
    %7938 = vmatpush.msra.mxu0 %v431
    %7939 = vmatpush.msra.mxu0 %v423
    %7940 = vmatpush.msra.mxu0 %v415
    %7941 = vmatpush.msra.mxu0 %v407
    %7942 = vmatpush.msra.mxu0 %v399
    %7943 = vmatpush.msra.mxu0 %v391
    %7944 = vmatpush.msra.mxu0 %v383
    %7945 = vmatpush.msra.mxu0 %v375
    %7946 = vmatpush.msra.mxu0 %v367
    %7947 = vmatpush.msra.mxu0 %v359
    %7948 = vmatpush.msra.mxu0 %v351
    %7949 = vmatpush.msra.mxu0 %v343
    %7950 = vmatpush.msra.mxu0 %v335
    %7951 = vmatpush.msra.mxu0 %v327
    %7952 = vmatpush.msra.mxu0 %v319
    %7953 = vmatmul.f32.gmra.mxu0 %v7816
    %v7954 = vpop.f32.mrf.mxu0
    %v7955 = vadd.f32 0.0, %v7954
    %7956 = vdwg.mxu0
    %7957 = vmatpush.msra.mxu0 %v440
    %7958 = vmatpush.msra.mxu0 %v432
    %7959 = vmatpush.msra.mxu0 %v424
    %7960 = vmatpush.msra.mxu0 %v416
    %7961 = vmatpush.msra.mxu0 %v408
    %7962 = vmatpush.msra.mxu0 %v400
    %7963 = vmatpush.msra.mxu0 %v392
    %7964 = vmatpush.msra.mxu0 %v384
    %7965 = vmatpush.msra.mxu0 %v376
    %7966 = vmatpush.msra.mxu0 %v368
    %7967 = vmatpush.msra.mxu0 %v360
    %7968 = vmatpush.msra.mxu0 %v352
    %7969 = vmatpush.msra.mxu0 %v344
    %7970 = vmatpush.msra.mxu0 %v336
    %7971 = vmatpush.msra.mxu0 %v328
    %7972 = vmatpush.msra.mxu0 %v320
    %7973 = vmatmul.f32.gmra.mxu0 %v7816
    %v7974 = vpop.f32.mrf.mxu0
    %v7975 = vadd.f32 0.0, %v7974
    %7976 = vdwg.mxu0
    %v7977 = vadd.f32 %v602, %v7835
    %v7978 = vadd.f32 %v603, %v7855
    %v7979 = vadd.f32 %v604, %v7875
    %v7980 = vadd.f32 %v605, %v7895
    %v7981 = vadd.f32 %v606, %v7915
    %v7982 = vadd.f32 %v607, %v7935
    %v7983 = vadd.f32 %v608, %v7955
    %v7984 = vadd.f32 %v609, %v7975
    %7985 = vmatpush.msra.mxu0 %v746
    %7986 = vmatpush.msra.mxu0 %v738
    %7987 = vmatpush.msra.mxu0 %v730
    %7988 = vmatpush.msra.mxu0 %v722
    %7989 = vmatpush.msra.mxu0 %v714
    %7990 = vmatpush.msra.mxu0 %v706
    %7991 = vmatpush.msra.mxu0 %v698
    %7992 = vmatpush.msra.mxu0 %v690
    %7993 = vmatpush.msra.mxu0 %v682
    %7994 = vmatpush.msra.mxu0 %v674
    %7995 = vmatpush.msra.mxu0 %v666
    %7996 = vmatpush.msra.mxu0 %v658
    %7997 = vmatpush.msra.mxu0 %v650
    %7998 = vmatpush.msra.mxu0 %v642
    %7999 = vmatpush.msra.mxu0 %v634
    %8000 = vmatpush.msra.mxu0 %v626
    %8001 = vmatmul.f32.gmra.mxu0 %v7331
    %v8002 = vpop.f32.mrf.mxu0
    %v8003 = vadd.f32 0.0, %v8002
    %8004 = vdwg.mxu0
    %8005 = vmatpush.msra.mxu0 %v874
    %8006 = vmatpush.msra.mxu0 %v866
    %8007 = vmatpush.msra.mxu0 %v858
    %8008 = vmatpush.msra.mxu0 %v850
    %8009 = vmatpush.msra.mxu0 %v842
    %8010 = vmatpush.msra.mxu0 %v834
    %8011 = vmatpush.msra.mxu0 %v826
    %8012 = vmatpush.msra.mxu0 %v818
    %8013 = vmatpush.msra.mxu0 %v810
    %8014 = vmatpush.msra.mxu0 %v802
    %8015 = vmatpush.msra.mxu0 %v794
    %8016 = vmatpush.msra.mxu0 %v786
    %8017 = vmatpush.msra.mxu0 %v778
    %8018 = vmatpush.msra.mxu0 %v770
    %8019 = vmatpush.msra.mxu0 %v762
    %8020 = vmatpush.msra.mxu0 %v754
    %8021 = vmatmul.f32.gmra.mxu0 %v7332
    %v8022 = vpop.f32.mrf.mxu0
    %v8023 = vadd.f32 %v8003, %v8022
    %8024 = vdwg.mxu0
    %8025 = vmatpush.msra.mxu0 %v747
    %8026 = vmatpush.msra.mxu0 %v739
    %8027 = vmatpush.msra.mxu0 %v731
    %8028 = vmatpush.msra.mxu0 %v723
    %8029 = vmatpush.msra.mxu0 %v715
    %8030 = vmatpush.msra.mxu0 %v707
    %8031 = vmatpush.msra.mxu0 %v699
    %8032 = vmatpush.msra.mxu0 %v691
    %8033 = vmatpush.msra.mxu0 %v683
    %8034 = vmatpush.msra.mxu0 %v675
    %8035 = vmatpush.msra.mxu0 %v667
    %8036 = vmatpush.msra.mxu0 %v659
    %8037 = vmatpush.msra.mxu0 %v651
    %8038 = vmatpush.msra.mxu0 %v643
    %8039 = vmatpush.msra.mxu0 %v635
    %8040 = vmatpush.msra.mxu0 %v627
    %8041 = vmatmul.f32.gmra.mxu0 %v7331
    %v8042 = vpop.f32.mrf.mxu0
    %v8043 = vadd.f32 0.0, %v8042
    %8044 = vdwg.mxu0
    %8045 = vmatpush.msra.mxu0 %v875
    %8046 = vmatpush.msra.mxu0 %v867
    %8047 = vmatpush.msra.mxu0 %v859
    %8048 = vmatpush.msra.mxu0 %v851
    %8049 = vmatpush.msra.mxu0 %v843
    %8050 = vmatpush.msra.mxu0 %v835
    %8051 = vmatpush.msra.mxu0 %v827
    %8052 = vmatpush.msra.mxu0 %v819
    %8053 = vmatpush.msra.mxu0 %v811
    %8054 = vmatpush.msra.mxu0 %v803
    %8055 = vmatpush.msra.mxu0 %v795
    %8056 = vmatpush.msra.mxu0 %v787
    %8057 = vmatpush.msra.mxu0 %v779
    %8058 = vmatpush.msra.mxu0 %v771
    %8059 = vmatpush.msra.mxu0 %v763
    %8060 = vmatpush.msra.mxu0 %v755
    %8061 = vmatmul.f32.gmra.mxu0 %v7332
    %v8062 = vpop.f32.mrf.mxu0
    %v8063 = vadd.f32 %v8043, %v8062
    %8064 = vdwg.mxu0
    %8065 = vmatpush.msra.mxu0 %v748
    %8066 = vmatpush.msra.mxu0 %v740
    %8067 = vmatpush.msra.mxu0 %v732
    %8068 = vmatpush.msra.mxu0 %v724
    %8069 = vmatpush.msra.mxu0 %v716
    %8070 = vmatpush.msra.mxu0 %v708
    %8071 = vmatpush.msra.mxu0 %v700
    %8072 = vmatpush.msra.mxu0 %v692
    %8073 = vmatpush.msra.mxu0 %v684
    %8074 = vmatpush.msra.mxu0 %v676
    %8075 = vmatpush.msra.mxu0 %v668
    %8076 = vmatpush.msra.mxu0 %v660
    %8077 = vmatpush.msra.mxu0 %v652
    %8078 = vmatpush.msra.mxu0 %v644
    %8079 = vmatpush.msra.mxu0 %v636
    %8080 = vmatpush.msra.mxu0 %v628
    %8081 = vmatmul.f32.gmra.mxu0 %v7331
    %v8082 = vpop.f32.mrf.mxu0
    %v8083 = vadd.f32 0.0, %v8082
    %8084 = vdwg.mxu0
    %8085 = vmatpush.msra.mxu0 %v876
    %8086 = vmatpush.msra.mxu0 %v868
    %8087 = vmatpush.msra.mxu0 %v860
    %8088 = vmatpush.msra.mxu0 %v852
    %8089 = vmatpush.msra.mxu0 %v844
    %8090 = vmatpush.msra.mxu0 %v836
    %8091 = vmatpush.msra.mxu0 %v828
    %8092 = vmatpush.msra.mxu0 %v820
    %8093 = vmatpush.msra.mxu0 %v812
    %8094 = vmatpush.msra.mxu0 %v804
    %8095 = vmatpush.msra.mxu0 %v796
    %8096 = vmatpush.msra.mxu0 %v788
    %8097 = vmatpush.msra.mxu0 %v780
    %8098 = vmatpush.msra.mxu0 %v772
    %8099 = vmatpush.msra.mxu0 %v764
    %8100 = vmatpush.msra.mxu0 %v756
    %8101 = vmatmul.f32.gmra.mxu0 %v7332
    %v8102 = vpop.f32.mrf.mxu0
    %v8103 = vadd.f32 %v8083, %v8102
    %8104 = vdwg.mxu0
    %8105 = vmatpush.msra.mxu0 %v749
    %8106 = vmatpush.msra.mxu0 %v741
    %8107 = vmatpush.msra.mxu0 %v733
    %8108 = vmatpush.msra.mxu0 %v725
    %8109 = vmatpush.msra.mxu0 %v717
    %8110 = vmatpush.msra.mxu0 %v709
    %8111 = vmatpush.msra.mxu0 %v701
    %8112 = vmatpush.msra.mxu0 %v693
    %8113 = vmatpush.msra.mxu0 %v685
    %8114 = vmatpush.msra.mxu0 %v677
    %8115 = vmatpush.msra.mxu0 %v669
    %8116 = vmatpush.msra.mxu0 %v661
    %8117 = vmatpush.msra.mxu0 %v653
    %8118 = vmatpush.msra.mxu0 %v645
    %8119 = vmatpush.msra.mxu0 %v637
    %8120 = vmatpush.msra.mxu0 %v629
    %8121 = vmatmul.f32.gmra.mxu0 %v7331
    %v8122 = vpop.f32.mrf.mxu0
    %v8123 = vadd.f32 0.0, %v8122
    %8124 = vdwg.mxu0
    %8125 = vmatpush.msra.mxu0 %v877
    %8126 = vmatpush.msra.mxu0 %v869
    %8127 = vmatpush.msra.mxu0 %v861
    %8128 = vmatpush.msra.mxu0 %v853
    %8129 = vmatpush.msra.mxu0 %v845
    %8130 = vmatpush.msra.mxu0 %v837
    %8131 = vmatpush.msra.mxu0 %v829
    %8132 = vmatpush.msra.mxu0 %v821
    %8133 = vmatpush.msra.mxu0 %v813
    %8134 = vmatpush.msra.mxu0 %v805
    %8135 = vmatpush.msra.mxu0 %v797
    %8136 = vmatpush.msra.mxu0 %v789
    %8137 = vmatpush.msra.mxu0 %v781
    %8138 = vmatpush.msra.mxu0 %v773
    %8139 = vmatpush.msra.mxu0 %v765
    %8140 = vmatpush.msra.mxu0 %v757
    %8141 = vmatmul.f32.gmra.mxu0 %v7332
    %v8142 = vpop.f32.mrf.mxu0
    %v8143 = vadd.f32 %v8123, %v8142
    %8144 = vdwg.mxu0
    %8145 = vmatpush.msra.mxu0 %v750
    %8146 = vmatpush.msra.mxu0 %v742
    %8147 = vmatpush.msra.mxu0 %v734
    %8148 = vmatpush.msra.mxu0 %v726
    %8149 = vmatpush.msra.mxu0 %v718
    %8150 = vmatpush.msra.mxu0 %v710
    %8151 = vmatpush.msra.mxu0 %v702
    %8152 = vmatpush.msra.mxu0 %v694
    %8153 = vmatpush.msra.mxu0 %v686
    %8154 = vmatpush.msra.mxu0 %v678
    %8155 = vmatpush.msra.mxu0 %v670
    %8156 = vmatpush.msra.mxu0 %v662
    %8157 = vmatpush.msra.mxu0 %v654
    %8158 = vmatpush.msra.mxu0 %v646
    %8159 = vmatpush.msra.mxu0 %v638
    %8160 = vmatpush.msra.mxu0 %v630
    %8161 = vmatmul.f32.gmra.mxu0 %v7331
    %v8162 = vpop.f32.mrf.mxu0
    %v8163 = vadd.f32 0.0, %v8162
    %8164 = vdwg.mxu0
    %8165 = vmatpush.msra.mxu0 %v878
    %8166 = vmatpush.msra.mxu0 %v870
    %8167 = vmatpush.msra.mxu0 %v862
    %8168 = vmatpush.msra.mxu0 %v854
    %8169 = vmatpush.msra.mxu0 %v846
    %8170 = vmatpush.msra.mxu0 %v838
    %8171 = vmatpush.msra.mxu0 %v830
    %8172 = vmatpush.msra.mxu0 %v822
    %8173 = vmatpush.msra.mxu0 %v814
    %8174 = vmatpush.msra.mxu0 %v806
    %8175 = vmatpush.msra.mxu0 %v798
    %8176 = vmatpush.msra.mxu0 %v790
    %8177 = vmatpush.msra.mxu0 %v782
    %8178 = vmatpush.msra.mxu0 %v774
    %8179 = vmatpush.msra.mxu0 %v766
    %8180 = vmatpush.msra.mxu0 %v758
    %8181 = vmatmul.f32.gmra.mxu0 %v7332
    %v8182 = vpop.f32.mrf.mxu0
    %v8183 = vadd.f32 %v8163, %v8182
    %8184 = vdwg.mxu0
    %8185 = vmatpush.msra.mxu0 %v751
    %8186 = vmatpush.msra.mxu0 %v743
    %8187 = vmatpush.msra.mxu0 %v735
    %8188 = vmatpush.msra.mxu0 %v727
    %8189 = vmatpush.msra.mxu0 %v719
    %8190 = vmatpush.msra.mxu0 %v711
    %8191 = vmatpush.msra.mxu0 %v703
    %8192 = vmatpush.msra.mxu0 %v695
    %8193 = vmatpush.msra.mxu0 %v687
    %8194 = vmatpush.msra.mxu0 %v679
    %8195 = vmatpush.msra.mxu0 %v671
    %8196 = vmatpush.msra.mxu0 %v663
    %8197 = vmatpush.msra.mxu0 %v655
    %8198 = vmatpush.msra.mxu0 %v647
    %8199 = vmatpush.msra.mxu0 %v639
    %8200 = vmatpush.msra.mxu0 %v631
    %8201 = vmatmul.f32.gmra.mxu0 %v7331
    %v8202 = vpop.f32.mrf.mxu0
    %v8203 = vadd.f32 0.0, %v8202
    %8204 = vdwg.mxu0
    %8205 = vmatpush.msra.mxu0 %v879
    %8206 = vmatpush.msra.mxu0 %v871
    %8207 = vmatpush.msra.mxu0 %v863
    %8208 = vmatpush.msra.mxu0 %v855
    %8209 = vmatpush.msra.mxu0 %v847
    %8210 = vmatpush.msra.mxu0 %v839
    %8211 = vmatpush.msra.mxu0 %v831
    %8212 = vmatpush.msra.mxu0 %v823
    %8213 = vmatpush.msra.mxu0 %v815
    %8214 = vmatpush.msra.mxu0 %v807
    %8215 = vmatpush.msra.mxu0 %v799
    %8216 = vmatpush.msra.mxu0 %v791
    %8217 = vmatpush.msra.mxu0 %v783
    %8218 = vmatpush.msra.mxu0 %v775
    %8219 = vmatpush.msra.mxu0 %v767
    %8220 = vmatpush.msra.mxu0 %v759
    %8221 = vmatmul.f32.gmra.mxu0 %v7332
    %v8222 = vpop.f32.mrf.mxu0
    %v8223 = vadd.f32 %v8203, %v8222
    %8224 = vdwg.mxu0
    %8225 = vmatpush.msra.mxu0 %v752
    %8226 = vmatpush.msra.mxu0 %v744
    %8227 = vmatpush.msra.mxu0 %v736
    %8228 = vmatpush.msra.mxu0 %v728
    %8229 = vmatpush.msra.mxu0 %v720
    %8230 = vmatpush.msra.mxu0 %v712
    %8231 = vmatpush.msra.mxu0 %v704
    %8232 = vmatpush.msra.mxu0 %v696
    %8233 = vmatpush.msra.mxu0 %v688
    %8234 = vmatpush.msra.mxu0 %v680
    %8235 = vmatpush.msra.mxu0 %v672
    %8236 = vmatpush.msra.mxu0 %v664
    %8237 = vmatpush.msra.mxu0 %v656
    %8238 = vmatpush.msra.mxu0 %v648
    %8239 = vmatpush.msra.mxu0 %v640
    %8240 = vmatpush.msra.mxu0 %v632
    %8241 = vmatmul.f32.gmra.mxu0 %v7331
    %v8242 = vpop.f32.mrf.mxu0
    %v8243 = vadd.f32 0.0, %v8242
    %8244 = vdwg.mxu0
    %8245 = vmatpush.msra.mxu0 %v880
    %8246 = vmatpush.msra.mxu0 %v872
    %8247 = vmatpush.msra.mxu0 %v864
    %8248 = vmatpush.msra.mxu0 %v856
    %8249 = vmatpush.msra.mxu0 %v848
    %8250 = vmatpush.msra.mxu0 %v840
    %8251 = vmatpush.msra.mxu0 %v832
    %8252 = vmatpush.msra.mxu0 %v824
    %8253 = vmatpush.msra.mxu0 %v816
    %8254 = vmatpush.msra.mxu0 %v808
    %8255 = vmatpush.msra.mxu0 %v800
    %8256 = vmatpush.msra.mxu0 %v792
    %8257 = vmatpush.msra.mxu0 %v784
    %8258 = vmatpush.msra.mxu0 %v776
    %8259 = vmatpush.msra.mxu0 %v768
    %8260 = vmatpush.msra.mxu0 %v760
    %8261 = vmatmul.f32.gmra.mxu0 %v7332
    %v8262 = vpop.f32.mrf.mxu0
    %v8263 = vadd.f32 %v8243, %v8262
    %8264 = vdwg.mxu0
    %8265 = vmatpush.msra.mxu0 %v753
    %8266 = vmatpush.msra.mxu0 %v745
    %8267 = vmatpush.msra.mxu0 %v737
    %8268 = vmatpush.msra.mxu0 %v729
    %8269 = vmatpush.msra.mxu0 %v721
    %8270 = vmatpush.msra.mxu0 %v713
    %8271 = vmatpush.msra.mxu0 %v705
    %8272 = vmatpush.msra.mxu0 %v697
    %8273 = vmatpush.msra.mxu0 %v689
    %8274 = vmatpush.msra.mxu0 %v681
    %8275 = vmatpush.msra.mxu0 %v673
    %8276 = vmatpush.msra.mxu0 %v665
    %8277 = vmatpush.msra.mxu0 %v657
    %8278 = vmatpush.msra.mxu0 %v649
    %8279 = vmatpush.msra.mxu0 %v641
    %8280 = vmatpush.msra.mxu0 %v633
    %8281 = vmatmul.f32.gmra.mxu0 %v7331
    %v8282 = vpop.f32.mrf.mxu0
    %v8283 = vadd.f32 0.0, %v8282
    %8284 = vdwg.mxu0
    %8285 = vmatpush.msra.mxu0 %v881
    %8286 = vmatpush.msra.mxu0 %v873
    %8287 = vmatpush.msra.mxu0 %v865
    %8288 = vmatpush.msra.mxu0 %v857
    %8289 = vmatpush.msra.mxu0 %v849
    %8290 = vmatpush.msra.mxu0 %v841
    %8291 = vmatpush.msra.mxu0 %v833
    %8292 = vmatpush.msra.mxu0 %v825
    %8293 = vmatpush.msra.mxu0 %v817
    %8294 = vmatpush.msra.mxu0 %v809
    %8295 = vmatpush.msra.mxu0 %v801
    %8296 = vmatpush.msra.mxu0 %v793
    %8297 = vmatpush.msra.mxu0 %v785
    %8298 = vmatpush.msra.mxu0 %v777
    %8299 = vmatpush.msra.mxu0 %v769
    %8300 = vmatpush.msra.mxu0 %v761
    %8301 = vmatmul.f32.gmra.mxu0 %v7332
    %v8302 = vpop.f32.mrf.mxu0
    %v8303 = vadd.f32 %v8283, %v8302
    %8304 = vdwg.mxu0
    %v8305 = vadd.f32 %v7977, %v8023
    %v8306 = vadd.f32 %v7978, %v8063
    %v8307 = vadd.f32 %v7979, %v8103
    %v8308 = vadd.f32 %v7980, %v8143
    %v8309 = vadd.f32 %v7981, %v8183
    %v8310 = vadd.f32 %v7982, %v8223
    %v8311 = vadd.f32 %v7983, %v8263
    %v8312 = vadd.f32 %v7984, %v8303
    %v8313 = vmul.f32 %v8305, 0.5
    %v8314 = vmul.f32 %v8306, 0.5
    %v8315 = vtanh.pop %v8313
    %v8316 = vtanh.pop %v8314
    %v8317 = vadd.f32 %v8315, 1.0
    %v8318 = vadd.f32 %v8316, 1.0
    %v8319 = vmul.f32 %v8317, 0.5
    %v8320 = vmul.f32 %v8318, 0.5
    %v8321 = vmul.f32 %v8307, 0.5
    %v8322 = vmul.f32 %v8308, 0.5
    %v8323 = vtanh.pop %v8321
    %v8324 = vtanh.pop %v8322
    %v8325 = vadd.f32 %v8323, 1.0
    %v8326 = vadd.f32 %v8324, 1.0
    %v8327 = vmul.f32 %v8325, 0.5
    %v8328 = vmul.f32 %v8326, 0.5
    %v8329 = vmul.f32 %v8309, 0.5
    %v8330 = vmul.f32 %v8310, 0.5
    %v8331 = vtanh.pop %v8329
    %v8332 = vtanh.pop %v8330
    %v8333 = vadd.f32 %v8331, 1.0
    %v8334 = vadd.f32 %v8332, 1.0
    %v8335 = vmul.f32 %v8333, 0.5
    %v8336 = vmul.f32 %v8334, 0.5
    %v8337 = vtanh.pop %v8311
    %v8338 = vtanh.pop %v8312
    %v8339 = vmul.f32 %v8327, %v7327
    %v8340 = vmul.f32 %v8328, %v7328
    %v8341 = vmul.f32 %v8319, %v8337
    %v8342 = vmul.f32 %v8320, %v8338
    %v8343 = vadd.f32 %v8339, %v8341
    %v8344 = vadd.f32 %v8340, %v8342
    %v8345 = vtanh.pop %v8343
    %v8346 = vtanh.pop %v8344
    %v8347 = vmul.f32 %v8335, %v8345
    %v8348 = vmul.f32 %v8336, %v8346
    %s8349 = scalar_lea.vmem %s7, 7168
    %v8350 = vld [vmem:[%s8349] sm:$0xff]
    %v8351 = vld [vmem:[%s8349 + $0x8] sm:$0xff]
    %v8352 = vld [vmem:[%s8349 + $0x10] sm:$0xff]
    %v8353 = vld [vmem:[%s8349 + $0x18] sm:$0xff]
    %v8354 = vld [vmem:[%s8349 + $0x20] sm:$0xff]
    %v8355 = vld [vmem:[%s8349 + $0x28] sm:$0xff]
    %v8356 = vld [vmem:[%s8349 + $0x30] sm:$0xff]
    %v8357 = vld [vmem:[%s8349 + $0x38] sm:$0xff]
    %v8358 = vld [vmem:[%s8349 + $0x40] sm:$0xff]
    %v8359 = vld [vmem:[%s8349 + $0x48] sm:$0xff]
    %v8360 = vld [vmem:[%s8349 + $0x50] sm:$0xff]
    %v8361 = vld [vmem:[%s8349 + $0x58] sm:$0xff]
    %v8362 = vld [vmem:[%s8349 + $0x60] sm:$0xff]
    %v8363 = vld [vmem:[%s8349 + $0x68] sm:$0xff]
    %v8364 = vld [vmem:[%s8349 + $0x70] sm:$0xff]
    %v8365 = vld [vmem:[%s8349 + $0x78] sm:$0xff]
    %v8366 = vld [vmem:[%s8349 + $0x80] sm:$0xff]
    %v8367 = vld [vmem:[%s8349 + $0x88] sm:$0xff]
    %v8368 = vld [vmem:[%s8349 + $0x90] sm:$0xff]
    %v8369 = vld [vmem:[%s8349 + $0x98] sm:$0xff]
    %v8370 = vld [vmem:[%s8349 + $0xa0] sm:$0xff]
    %v8371 = vld [vmem:[%s8349 + $0xa8] sm:$0xff]
    %v8372 = vld [vmem:[%s8349 + $0xb0] sm:$0xff]
    %v8373 = vld [vmem:[%s8349 + $0xb8] sm:$0xff]
    %v8374 = vld [vmem:[%s8349 + $0xc0] sm:$0xff]
    %v8375 = vld [vmem:[%s8349 + $0xc8] sm:$0xff]
    %v8376 = vld [vmem:[%s8349 + $0xd0] sm:$0xff]
    %v8377 = vld [vmem:[%s8349 + $0xd8] sm:$0xff]
    %v8378 = vld [vmem:[%s8349 + $0xe0] sm:$0xff]
    %v8379 = vld [vmem:[%s8349 + $0xe8] sm:$0xff]
    %v8380 = vld [vmem:[%s8349 + $0xf0] sm:$0xff]
    %v8381 = vld [vmem:[%s8349 + $0xf8] sm:$0xff]
    %v8382 = vld [vmem:[%s8349 + $0x100] sm:$0xff]
    %v8383 = vld [vmem:[%s8349 + $0x108] sm:$0xff]
    %v8384 = vld [vmem:[%s8349 + $0x110] sm:$0xff]
    %v8385 = vld [vmem:[%s8349 + $0x118] sm:$0xff]
    %v8386 = vld [vmem:[%s8349 + $0x120] sm:$0xff]
    %v8387 = vld [vmem:[%s8349 + $0x128] sm:$0xff]
    %v8388 = vld [vmem:[%s8349 + $0x130] sm:$0xff]
    %v8389 = vld [vmem:[%s8349 + $0x138] sm:$0xff]
    %v8390 = vld [vmem:[%s8349 + $0x140] sm:$0xff]
    %v8391 = vld [vmem:[%s8349 + $0x148] sm:$0xff]
    %v8392 = vld [vmem:[%s8349 + $0x150] sm:$0xff]
    %v8393 = vld [vmem:[%s8349 + $0x158] sm:$0xff]
    %v8394 = vld [vmem:[%s8349 + $0x160] sm:$0xff]
    %v8395 = vld [vmem:[%s8349 + $0x168] sm:$0xff]
    %v8396 = vld [vmem:[%s8349 + $0x170] sm:$0xff]
    %v8397 = vld [vmem:[%s8349 + $0x178] sm:$0xff]
    %v8398 = vld [vmem:[%s8349 + $0x180] sm:$0xff]
    %v8399 = vld [vmem:[%s8349 + $0x188] sm:$0xff]
    %v8400 = vld [vmem:[%s8349 + $0x190] sm:$0xff]
    %v8401 = vld [vmem:[%s8349 + $0x198] sm:$0xff]
    %v8402 = vld [vmem:[%s8349 + $0x1a0] sm:$0xff]
    %v8403 = vld [vmem:[%s8349 + $0x1a8] sm:$0xff]
    %v8404 = vld [vmem:[%s8349 + $0x1b0] sm:$0xff]
    %v8405 = vld [vmem:[%s8349 + $0x1b8] sm:$0xff]
    %v8406 = vld [vmem:[%s8349 + $0x1c0] sm:$0xff]
    %v8407 = vld [vmem:[%s8349 + $0x1c8] sm:$0xff]
    %v8408 = vld [vmem:[%s8349 + $0x1d0] sm:$0xff]
    %v8409 = vld [vmem:[%s8349 + $0x1d8] sm:$0xff]
    %v8410 = vld [vmem:[%s8349 + $0x1e0] sm:$0xff]
    %v8411 = vld [vmem:[%s8349 + $0x1e8] sm:$0xff]
    %v8412 = vld [vmem:[%s8349 + $0x1f0] sm:$0xff]
    %v8413 = vld [vmem:[%s8349 + $0x1f8] sm:$0xff]
    %v8414 = vld [vmem:[%s8349 + $0x200] sm:$0xff]
    %v8415 = vld [vmem:[%s8349 + $0x208] sm:$0xff]
    %v8416 = vld [vmem:[%s8349 + $0x210] sm:$0xff]
    %v8417 = vld [vmem:[%s8349 + $0x218] sm:$0xff]
    %v8418 = vld [vmem:[%s8349 + $0x220] sm:$0xff]
    %v8419 = vld [vmem:[%s8349 + $0x228] sm:$0xff]
    %v8420 = vld [vmem:[%s8349 + $0x230] sm:$0xff]
    %v8421 = vld [vmem:[%s8349 + $0x238] sm:$0xff]
    %v8422 = vld [vmem:[%s8349 + $0x240] sm:$0xff]
    %v8423 = vld [vmem:[%s8349 + $0x248] sm:$0xff]
    %v8424 = vld [vmem:[%s8349 + $0x250] sm:$0xff]
    %v8425 = vld [vmem:[%s8349 + $0x258] sm:$0xff]
    %v8426 = vld [vmem:[%s8349 + $0x260] sm:$0xff]
    %v8427 = vld [vmem:[%s8349 + $0x268] sm:$0xff]
    %v8428 = vld [vmem:[%s8349 + $0x270] sm:$0xff]
    %v8429 = vld [vmem:[%s8349 + $0x278] sm:$0xff]
    %v8430 = vld [vmem:[%s8349 + $0x280] sm:$0xff]
    %v8431 = vld [vmem:[%s8349 + $0x288] sm:$0xff]
    %v8432 = vld [vmem:[%s8349 + $0x290] sm:$0xff]
    %v8433 = vld [vmem:[%s8349 + $0x298] sm:$0xff]
    %v8434 = vld [vmem:[%s8349 + $0x2a0] sm:$0xff]
    %v8435 = vld [vmem:[%s8349 + $0x2a8] sm:$0xff]
    %v8436 = vld [vmem:[%s8349 + $0x2b0] sm:$0xff]
    %v8437 = vld [vmem:[%s8349 + $0x2b8] sm:$0xff]
    %v8438 = vld [vmem:[%s8349 + $0x2c0] sm:$0xff]
    %v8439 = vld [vmem:[%s8349 + $0x2c8] sm:$0xff]
    %v8440 = vld [vmem:[%s8349 + $0x2d0] sm:$0xff]
    %v8441 = vld [vmem:[%s8349 + $0x2d8] sm:$0xff]
    %v8442 = vld [vmem:[%s8349 + $0x2e0] sm:$0xff]
    %v8443 = vld [vmem:[%s8349 + $0x2e8] sm:$0xff]
    %v8444 = vld [vmem:[%s8349 + $0x2f0] sm:$0xff]
    %v8445 = vld [vmem:[%s8349 + $0x2f8] sm:$0xff]
    %v8446 = vld [vmem:[%s8349 + $0x300] sm:$0xff]
    %v8447 = vld [vmem:[%s8349 + $0x308] sm:$0xff]
    %v8448 = vld [vmem:[%s8349 + $0x310] sm:$0xff]
    %v8449 = vld [vmem:[%s8349 + $0x318] sm:$0xff]
    %v8450 = vld [vmem:[%s8349 + $0x320] sm:$0xff]
    %v8451 = vld [vmem:[%s8349 + $0x328] sm:$0xff]
    %v8452 = vld [vmem:[%s8349 + $0x330] sm:$0xff]
    %v8453 = vld [vmem:[%s8349 + $0x338] sm:$0xff]
    %v8454 = vld [vmem:[%s8349 + $0x340] sm:$0xff]
    %v8455 = vld [vmem:[%s8349 + $0x348] sm:$0xff]
    %v8456 = vld [vmem:[%s8349 + $0x350] sm:$0xff]
    %v8457 = vld [vmem:[%s8349 + $0x358] sm:$0xff]
    %v8458 = vld [vmem:[%s8349 + $0x360] sm:$0xff]
    %v8459 = vld [vmem:[%s8349 + $0x368] sm:$0xff]
    %v8460 = vld [vmem:[%s8349 + $0x370] sm:$0xff]
    %v8461 = vld [vmem:[%s8349 + $0x378] sm:$0xff]
    %v8462 = vld [vmem:[%s8349 + $0x380] sm:$0xff]
    %v8463 = vld [vmem:[%s8349 + $0x388] sm:$0xff]
    %v8464 = vld [vmem:[%s8349 + $0x390] sm:$0xff]
    %v8465 = vld [vmem:[%s8349 + $0x398] sm:$0xff]
    %v8466 = vld [vmem:[%s8349 + $0x3a0] sm:$0xff]
    %v8467 = vld [vmem:[%s8349 + $0x3a8] sm:$0xff]
    %v8468 = vld [vmem:[%s8349 + $0x3b0] sm:$0xff]
    %v8469 = vld [vmem:[%s8349 + $0x3b8] sm:$0xff]
    %v8470 = vld [vmem:[%s8349 + $0x3c0] sm:$0xff]
    %v8471 = vld [vmem:[%s8349 + $0x3c8] sm:$0xff]
    %v8472 = vld [vmem:[%s8349 + $0x3d0] sm:$0xff]
    %v8473 = vld [vmem:[%s8349 + $0x3d8] sm:$0xff]
    %v8474 = vld [vmem:[%s8349 + $0x3e0] sm:$0xff]
    %v8475 = vld [vmem:[%s8349 + $0x3e8] sm:$0xff]
    %v8476 = vld [vmem:[%s8349 + $0x3f0] sm:$0xff]
    %v8477 = vld [vmem:[%s8349 + $0x3f8] sm:$0xff]
    %8478 = vmatpush.msra.mxu0 %v8410
    %8479 = vmatpush.msra.mxu0 %v8406
    %8480 = vmatpush.msra.mxu0 %v8402
    %8481 = vmatpush.msra.mxu0 %v8398
    %8482 = vmatpush.msra.mxu0 %v8394
    %8483 = vmatpush.msra.mxu0 %v8390
    %8484 = vmatpush.msra.mxu0 %v8386
    %8485 = vmatpush.msra.mxu0 %v8382
    %8486 = vmatpush.msra.mxu0 %v8378
    %8487 = vmatpush.msra.mxu0 %v8374
    %8488 = vmatpush.msra.mxu0 %v8370
    %8489 = vmatpush.msra.mxu0 %v8366
    %8490 = vmatpush.msra.mxu0 %v8362
    %8491 = vmatpush.msra.mxu0 %v8358
    %8492 = vmatpush.msra.mxu0 %v8354
    %8493 = vmatpush.msra.mxu0 %v8350
    %8494 = vmatmul.f32.gmra.mxu0 %v8347
    %v8495 = vpop.f32.mrf.mxu0
    %v8496 = vadd.f32 0.0, %v8495
    %8497 = vdwg.mxu0
    %8498 = vmatpush.msra.mxu0 %v8474
    %8499 = vmatpush.msra.mxu0 %v8470
    %8500 = vmatpush.msra.mxu0 %v8466
    %8501 = vmatpush.msra.mxu0 %v8462
    %8502 = vmatpush.msra.mxu0 %v8458
    %8503 = vmatpush.msra.mxu0 %v8454
    %8504 = vmatpush.msra.mxu0 %v8450
    %8505 = vmatpush.msra.mxu0 %v8446
    %8506 = vmatpush.msra.mxu0 %v8442
    %8507 = vmatpush.msra.mxu0 %v8438
    %8508 = vmatpush.msra.mxu0 %v8434
    %8509 = vmatpush.msra.mxu0 %v8430
    %8510 = vmatpush.msra.mxu0 %v8426
    %8511 = vmatpush.msra.mxu0 %v8422
    %8512 = vmatpush.msra.mxu0 %v8418
    %8513 = vmatpush.msra.mxu0 %v8414
    %8514 = vmatmul.f32.gmra.mxu0 %v8348
    %v8515 = vpop.f32.mrf.mxu0
    %v8516 = vadd.f32 %v8496, %v8515
    %8517 = vdwg.mxu0
    %8518 = vmatpush.msra.mxu0 %v8411
    %8519 = vmatpush.msra.mxu0 %v8407
    %8520 = vmatpush.msra.mxu0 %v8403
    %8521 = vmatpush.msra.mxu0 %v8399
    %8522 = vmatpush.msra.mxu0 %v8395
    %8523 = vmatpush.msra.mxu0 %v8391
    %8524 = vmatpush.msra.mxu0 %v8387
    %8525 = vmatpush.msra.mxu0 %v8383
    %8526 = vmatpush.msra.mxu0 %v8379
    %8527 = vmatpush.msra.mxu0 %v8375
    %8528 = vmatpush.msra.mxu0 %v8371
    %8529 = vmatpush.msra.mxu0 %v8367
    %8530 = vmatpush.msra.mxu0 %v8363
    %8531 = vmatpush.msra.mxu0 %v8359
    %8532 = vmatpush.msra.mxu0 %v8355
    %8533 = vmatpush.msra.mxu0 %v8351
    %8534 = vmatmul.f32.gmra.mxu0 %v8347
    %v8535 = vpop.f32.mrf.mxu0
    %v8536 = vadd.f32 0.0, %v8535
    %8537 = vdwg.mxu0
    %8538 = vmatpush.msra.mxu0 %v8475
    %8539 = vmatpush.msra.mxu0 %v8471
    %8540 = vmatpush.msra.mxu0 %v8467
    %8541 = vmatpush.msra.mxu0 %v8463
    %8542 = vmatpush.msra.mxu0 %v8459
    %8543 = vmatpush.msra.mxu0 %v8455
    %8544 = vmatpush.msra.mxu0 %v8451
    %8545 = vmatpush.msra.mxu0 %v8447
    %8546 = vmatpush.msra.mxu0 %v8443
    %8547 = vmatpush.msra.mxu0 %v8439
    %8548 = vmatpush.msra.mxu0 %v8435
    %8549 = vmatpush.msra.mxu0 %v8431
    %8550 = vmatpush.msra.mxu0 %v8427
    %8551 = vmatpush.msra.mxu0 %v8423
    %8552 = vmatpush.msra.mxu0 %v8419
    %8553 = vmatpush.msra.mxu0 %v8415
    %8554 = vmatmul.f32.gmra.mxu0 %v8348
    %v8555 = vpop.f32.mrf.mxu0
    %v8556 = vadd.f32 %v8536, %v8555
    %8557 = vdwg.mxu0
    %8558 = vmatpush.msra.mxu0 %v8412
    %8559 = vmatpush.msra.mxu0 %v8408
    %8560 = vmatpush.msra.mxu0 %v8404
    %8561 = vmatpush.msra.mxu0 %v8400
    %8562 = vmatpush.msra.mxu0 %v8396
    %8563 = vmatpush.msra.mxu0 %v8392
    %8564 = vmatpush.msra.mxu0 %v8388
    %8565 = vmatpush.msra.mxu0 %v8384
    %8566 = vmatpush.msra.mxu0 %v8380
    %8567 = vmatpush.msra.mxu0 %v8376
    %8568 = vmatpush.msra.mxu0 %v8372
    %8569 = vmatpush.msra.mxu0 %v8368
    %8570 = vmatpush.msra.mxu0 %v8364
    %8571 = vmatpush.msra.mxu0 %v8360
    %8572 = vmatpush.msra.mxu0 %v8356
    %8573 = vmatpush.msra.mxu0 %v8352
    %8574 = vmatmul.f32.gmra.mxu0 %v8347
    %v8575 = vpop.f32.mrf.mxu0
    %v8576 = vadd.f32 0.0, %v8575
    %8577 = vdwg.mxu0
    %8578 = vmatpush.msra.mxu0 %v8476
    %8579 = vmatpush.msra.mxu0 %v8472
    %8580 = vmatpush.msra.mxu0 %v8468
    %8581 = vmatpush.msra.mxu0 %v8464
    %8582 = vmatpush.msra.mxu0 %v8460
    %8583 = vmatpush.msra.mxu0 %v8456
    %8584 = vmatpush.msra.mxu0 %v8452
    %8585 = vmatpush.msra.mxu0 %v8448
    %8586 = vmatpush.msra.mxu0 %v8444
    %8587 = vmatpush.msra.mxu0 %v8440
    %8588 = vmatpush.msra.mxu0 %v8436
    %8589 = vmatpush.msra.mxu0 %v8432
    %8590 = vmatpush.msra.mxu0 %v8428
    %8591 = vmatpush.msra.mxu0 %v8424
    %8592 = vmatpush.msra.mxu0 %v8420
    %8593 = vmatpush.msra.mxu0 %v8416
    %8594 = vmatmul.f32.gmra.mxu0 %v8348
    %v8595 = vpop.f32.mrf.mxu0
    %v8596 = vadd.f32 %v8576, %v8595
    %8597 = vdwg.mxu0
    %8598 = vmatpush.msra.mxu0 %v8413
    %8599 = vmatpush.msra.mxu0 %v8409
    %8600 = vmatpush.msra.mxu0 %v8405
    %8601 = vmatpush.msra.mxu0 %v8401
    %8602 = vmatpush.msra.mxu0 %v8397
    %8603 = vmatpush.msra.mxu0 %v8393
    %8604 = vmatpush.msra.mxu0 %v8389
    %8605 = vmatpush.msra.mxu0 %v8385
    %8606 = vmatpush.msra.mxu0 %v8381
    %8607 = vmatpush.msra.mxu0 %v8377
    %8608 = vmatpush.msra.mxu0 %v8373
    %8609 = vmatpush.msra.mxu0 %v8369
    %8610 = vmatpush.msra.mxu0 %v8365
    %8611 = vmatpush.msra.mxu0 %v8361
    %8612 = vmatpush.msra.mxu0 %v8357
    %8613 = vmatpush.msra.mxu0 %v8353
    %8614 = vmatmul.f32.gmra.mxu0 %v8347
    %v8615 = vpop.f32.mrf.mxu0
    %v8616 = vadd.f32 0.0, %v8615
    %8617 = vdwg.mxu0
    %8618 = vmatpush.msra.mxu0 %v8477
    %8619 = vmatpush.msra.mxu0 %v8473
    %8620 = vmatpush.msra.mxu0 %v8469
    %8621 = vmatpush.msra.mxu0 %v8465
    %8622 = vmatpush.msra.mxu0 %v8461
    %8623 = vmatpush.msra.mxu0 %v8457
    %8624 = vmatpush.msra.mxu0 %v8453
    %8625 = vmatpush.msra.mxu0 %v8449
    %8626 = vmatpush.msra.mxu0 %v8445
    %8627 = vmatpush.msra.mxu0 %v8441
    %8628 = vmatpush.msra.mxu0 %v8437
    %8629 = vmatpush.msra.mxu0 %v8433
    %8630 = vmatpush.msra.mxu0 %v8429
    %8631 = vmatpush.msra.mxu0 %v8425
    %8632 = vmatpush.msra.mxu0 %v8421
    %8633 = vmatpush.msra.mxu0 %v8417
    %8634 = vmatmul.f32.gmra.mxu0 %v8348
    %v8635 = vpop.f32.mrf.mxu0
    %v8636 = vadd.f32 %v8616, %v8635
    %8637 = vdwg.mxu0
    %v8638 = vadd.f32 %v7622, %v8516
    %v8639 = vadd.f32 %v7623, %v8556
    %v8640 = vadd.f32 %v7624, %v8596
    %v8641 = vadd.f32 %v7625, %v8636
    %v8642 = vld [vmem:[%s8] sm:$0xf]
    %v8644 = vperm.slane %v8642, 0
    %v8645 = vperm.slane %v8642, 1
    %v8646 = vperm.slane %v8642, 2
    %v8647 = vperm.slane %v8642, 3
    %v8652 = vadd.f32 %v8638, %v8644
    %v8653 = vadd.f32 %v8639, %v8645
    %v8654 = vadd.f32 %v8640, %v8646
    %v8655 = vadd.f32 %v8641, %v8647
    %v8656 = vmax.f32 %v8652, 0.0
    %v8657 = vmax.f32 %v8653, 0.0
    %v8658 = vmax.f32 %v8654, 0.0
    %v8659 = vmax.f32 %v8655, 0.0
    %v8660 = vld [vmem:[%s9] sm:$0xff]
    %v8661 = vld [vmem:[%s9 + $0x8] sm:$0xff]
    %v8662 = vld [vmem:[%s9 + $0x10] sm:$0xff]
    %v8663 = vld [vmem:[%s9 + $0x18] sm:$0xff]
    %v8664 = vld [vmem:[%s9 + $0x20] sm:$0xff]
    %v8665 = vld [vmem:[%s9 + $0x28] sm:$0xff]
    %v8666 = vld [vmem:[%s9 + $0x30] sm:$0xff]
    %v8667 = vld [vmem:[%s9 + $0x38] sm:$0xff]
    %v8668 = vld [vmem:[%s9 + $0x40] sm:$0xff]
    %v8669 = vld [vmem:[%s9 + $0x48] sm:$0xff]
    %v8670 = vld [vmem:[%s9 + $0x50] sm:$0xff]
    %v8671 = vld [vmem:[%s9 + $0x58] sm:$0xff]
    %v8672 = vld [vmem:[%s9 + $0x60] sm:$0xff]
    %v8673 = vld [vmem:[%s9 + $0x68] sm:$0xff]
    %v8674 = vld [vmem:[%s9 + $0x70] sm:$0xff]
    %v8675 = vld [vmem:[%s9 + $0x78] sm:$0xff]
    %v8676 = vld [vmem:[%s9 + $0x80] sm:$0xff]
    %v8677 = vld [vmem:[%s9 + $0x88] sm:$0xff]
    %v8678 = vld [vmem:[%s9 + $0x90] sm:$0xff]
    %v8679 = vld [vmem:[%s9 + $0x98] sm:$0xff]
    %v8680 = vld [vmem:[%s9 + $0xa0] sm:$0xff]
    %v8681 = vld [vmem:[%s9 + $0xa8] sm:$0xff]
    %v8682 = vld [vmem:[%s9 + $0xb0] sm:$0xff]
    %v8683 = vld [vmem:[%s9 + $0xb8] sm:$0xff]
    %v8684 = vld [vmem:[%s9 + $0xc0] sm:$0xff]
    %v8685 = vld [vmem:[%s9 + $0xc8] sm:$0xff]
    %v8686 = vld [vmem:[%s9 + $0xd0] sm:$0xff]
    %v8687 = vld [vmem:[%s9 + $0xd8] sm:$0xff]
    %v8688 = vld [vmem:[%s9 + $0xe0] sm:$0xff]
    %v8689 = vld [vmem:[%s9 + $0xe8] sm:$0xff]
    %v8690 = vld [vmem:[%s9 + $0xf0] sm:$0xff]
    %v8691 = vld [vmem:[%s9 + $0xf8] sm:$0xff]
    %v8692 = vld [vmem:[%s9 + $0x100] sm:$0xff]
    %v8693 = vld [vmem:[%s9 + $0x108] sm:$0xff]
    %v8694 = vld [vmem:[%s9 + $0x110] sm:$0xff]
    %v8695 = vld [vmem:[%s9 + $0x118] sm:$0xff]
    %v8696 = vld [vmem:[%s9 + $0x120] sm:$0xff]
    %v8697 = vld [vmem:[%s9 + $0x128] sm:$0xff]
    %v8698 = vld [vmem:[%s9 + $0x130] sm:$0xff]
    %v8699 = vld [vmem:[%s9 + $0x138] sm:$0xff]
    %v8700 = vld [vmem:[%s9 + $0x140] sm:$0xff]
    %v8701 = vld [vmem:[%s9 + $0x148] sm:$0xff]
    %v8702 = vld [vmem:[%s9 + $0x150] sm:$0xff]
    %v8703 = vld [vmem:[%s9 + $0x158] sm:$0xff]
    %v8704 = vld [vmem:[%s9 + $0x160] sm:$0xff]
    %v8705 = vld [vmem:[%s9 + $0x168] sm:$0xff]
    %v8706 = vld [vmem:[%s9 + $0x170] sm:$0xff]
    %v8707 = vld [vmem:[%s9 + $0x178] sm:$0xff]
    %v8708 = vld [vmem:[%s9 + $0x180] sm:$0xff]
    %v8709 = vld [vmem:[%s9 + $0x188] sm:$0xff]
    %v8710 = vld [vmem:[%s9 + $0x190] sm:$0xff]
    %v8711 = vld [vmem:[%s9 + $0x198] sm:$0xff]
    %v8712 = vld [vmem:[%s9 + $0x1a0] sm:$0xff]
    %v8713 = vld [vmem:[%s9 + $0x1a8] sm:$0xff]
    %v8714 = vld [vmem:[%s9 + $0x1b0] sm:$0xff]
    %v8715 = vld [vmem:[%s9 + $0x1b8] sm:$0xff]
    %v8716 = vld [vmem:[%s9 + $0x1c0] sm:$0xff]
    %v8717 = vld [vmem:[%s9 + $0x1c8] sm:$0xff]
    %v8718 = vld [vmem:[%s9 + $0x1d0] sm:$0xff]
    %v8719 = vld [vmem:[%s9 + $0x1d8] sm:$0xff]
    %v8720 = vld [vmem:[%s9 + $0x1e0] sm:$0xff]
    %v8721 = vld [vmem:[%s9 + $0x1e8] sm:$0xff]
    %v8722 = vld [vmem:[%s9 + $0x1f0] sm:$0xff]
    %v8723 = vld [vmem:[%s9 + $0x1f8] sm:$0xff]
    %v8724 = vld [vmem:[%s10] sm:$0x1]
    %v8726 = vperm.slane %v8724, 0
    %8728 = vmatpush.msra.mxu0 %v8675
    %8729 = vmatpush.msra.mxu0 %v8674
    %8730 = vmatpush.msra.mxu0 %v8673
    %8731 = vmatpush.msra.mxu0 %v8672
    %8732 = vmatpush.msra.mxu0 %v8671
    %8733 = vmatpush.msra.mxu0 %v8670
    %8734 = vmatpush.msra.mxu0 %v8669
    %8735 = vmatpush.msra.mxu0 %v8668
    %8736 = vmatpush.msra.mxu0 %v8667
    %8737 = vmatpush.msra.mxu0 %v8666
    %8738 = vmatpush.msra.mxu0 %v8665
    %8739 = vmatpush.msra.mxu0 %v8664
    %8740 = vmatpush.msra.mxu0 %v8663
    %8741 = vmatpush.msra.mxu0 %v8662
    %8742 = vmatpush.msra.mxu0 %v8661
    %8743 = vmatpush.msra.mxu0 %v8660
    %8744 = vmatmul.f32.gmra.mxu0 %v8656
    %v8745 = vpop.f32.mrf.mxu0
    %v8746 = vadd.f32 %v8726, %v8745
    %8747 = vdwg.mxu0
    %8748 = vmatpush.msra.mxu0 %v8691
    %8749 = vmatpush.msra.mxu0 %v8690
    %8750 = vmatpush.msra.mxu0 %v8689
    %8751 = vmatpush.msra.mxu0 %v8688
    %8752 = vmatpush.msra.mxu0 %v8687
    %8753 = vmatpush.msra.mxu0 %v8686
    %8754 = vmatpush.msra.mxu0 %v8685
    %8755 = vmatpush.msra.mxu0 %v8684
    %8756 = vmatpush.msra.mxu0 %v8683
    %8757 = vmatpush.msra.mxu0 %v8682
    %8758 = vmatpush.msra.mxu0 %v8681
    %8759 = vmatpush.msra.mxu0 %v8680
    %8760 = vmatpush.msra.mxu0 %v8679
    %8761 = vmatpush.msra.mxu0 %v8678
    %8762 = vmatpush.msra.mxu0 %v8677
    %8763 = vmatpush.msra.mxu0 %v8676
    %8764 = vmatmul.f32.gmra.mxu0 %v8657
    %v8765 = vpop.f32.mrf.mxu0
    %v8766 = vadd.f32 %v8746, %v8765
    %8767 = vdwg.mxu0
    %8768 = vmatpush.msra.mxu0 %v8707
    %8769 = vmatpush.msra.mxu0 %v8706
    %8770 = vmatpush.msra.mxu0 %v8705
    %8771 = vmatpush.msra.mxu0 %v8704
    %8772 = vmatpush.msra.mxu0 %v8703
    %8773 = vmatpush.msra.mxu0 %v8702
    %8774 = vmatpush.msra.mxu0 %v8701
    %8775 = vmatpush.msra.mxu0 %v8700
    %8776 = vmatpush.msra.mxu0 %v8699
    %8777 = vmatpush.msra.mxu0 %v8698
    %8778 = vmatpush.msra.mxu0 %v8697
    %8779 = vmatpush.msra.mxu0 %v8696
    %8780 = vmatpush.msra.mxu0 %v8695
    %8781 = vmatpush.msra.mxu0 %v8694
    %8782 = vmatpush.msra.mxu0 %v8693
    %8783 = vmatpush.msra.mxu0 %v8692
    %8784 = vmatmul.f32.gmra.mxu0 %v8658
    %v8785 = vpop.f32.mrf.mxu0
    %v8786 = vadd.f32 %v8766, %v8785
    %8787 = vdwg.mxu0
    %8788 = vmatpush.msra.mxu0 %v8723
    %8789 = vmatpush.msra.mxu0 %v8722
    %8790 = vmatpush.msra.mxu0 %v8721
    %8791 = vmatpush.msra.mxu0 %v8720
    %8792 = vmatpush.msra.mxu0 %v8719
    %8793 = vmatpush.msra.mxu0 %v8718
    %8794 = vmatpush.msra.mxu0 %v8717
    %8795 = vmatpush.msra.mxu0 %v8716
    %8796 = vmatpush.msra.mxu0 %v8715
    %8797 = vmatpush.msra.mxu0 %v8714
    %8798 = vmatpush.msra.mxu0 %v8713
    %8799 = vmatpush.msra.mxu0 %v8712
    %8800 = vmatpush.msra.mxu0 %v8711
    %8801 = vmatpush.msra.mxu0 %v8710
    %8802 = vmatpush.msra.mxu0 %v8709
    %8803 = vmatpush.msra.mxu0 %v8708
    %8804 = vmatmul.f32.gmra.mxu0 %v8659
    %v8805 = vpop.f32.mrf.mxu0
    %v8806 = vadd.f32 %v8786, %v8805
    %8807 = vdwg.mxu0
    %v8808 = vlaneseq
    %v8809 = vand.u32 %v8808, 127
    %vm8810 = vcmp.lt.s32.totalorder %v8809, 2
    %v8811 = vmul.f32 %v8806, 0.5
    %v8812 = vtanh.pop %v8811
    %v8813 = vadd.f32 %v8812, 1.0
    %v8814 = vmul.f32 %v8813, 0.5
    %v8815 = vsel %vm8810, %v8806, %v8814
    %vm8816 = vcmask 25600
    %8817 = vst.msk [vmem:[#allocation2] sm:$0x3] %vm8816, %v8815
    // Predicated region
    $region46: #{modified_seismic_convlstm.1} parent=1 // pred_check
      _
    $region47: #{modified_seismic_convlstm.1} parent=1 // pred_check_branch
      %8819 = sbr.rel (0) target = $region49
    $region48: #{modified_seismic_convlstm.1} parent=1 // pred_region
      %8821 = vsyncadd [#allocation3], 0
      %s8823 = sshll.u32 [#allocation2], 4
      %s8824 = int_to_ptr.vmem [resolvable:$true] %s8823
      %s8825 = sshll.u32 %s11, 4
      %s8826 = int_to_ptr.hbm [resolvable:$true] %s8825
      %8828 = dma.vmem_to_hbm [thread:$0]  %s8824, 32, %s8826, [#allocation3]
    $region49: #{modified_seismic_convlstm.1} parent=1 // pred_fallthru
      _
    // Predicated region
    $region50: #{modified_seismic_convlstm.1} parent=1 // pred_check
      _
    $region51: #{modified_seismic_convlstm.1} parent=1 // pred_check_branch
      %8830 = sbr.rel (0) target = $region53
    $region52: #{modified_seismic_convlstm.1} parent=1 // pred_region
      %8832 = dma.done [#allocation3], 32
    $region53: #{modified_seismic_convlstm.1} parent=1 // pred_fallthru
      _
    %8833 = vsyncpa [#allocation3], 1

</llo_original>
